<compile_context>
chip_gen: v7x
topology: tpu7x:2x2x1
jax: 0.10.0
libtpu: 0.0.40
codegen_flags: <defaults>
</compile_context>

<pallas_src>
import functools

import jax
import jax.numpy as jnp
from jax.experimental import pallas as pl
from jax.experimental.pallas import tpu as pltpu


def _round_up(x, m):
    return (x + m - 1) // m * m


def _choose_tm(M, block_m=256):
    """Pick an M tile (multiple of 8) that gives >=2 grid steps when possible."""
    mp8 = _round_up(M, 8)
    tm = min(block_m, mp8)
    if mp8 // tm < 2 and mp8 >= 16:
        tm = _round_up(mp8 // 2, 8)
    mp = _round_up(M, tm)
    return tm, mp


# -----------------------------------------------------------------------------
# Kernel 1: tiled fused matmul (1x1 conv)   out = relu?(X @ W + shift)
# (BN scales are folded into W columns at param-prep time.)
# -----------------------------------------------------------------------------
def _mm_kernel(x_ref, w_ref, shift_ref, o_ref, *, do_relu):
    y = jnp.dot(x_ref[...], w_ref[...], preferred_element_type=jnp.float32)
    y = y + shift_ref[...]
    if do_relu:
        y = jnp.maximum(y, 0.0)
    o_ref[...] = y.astype(o_ref.dtype)


def fused_matmul(x, w, shift=None, do_relu=False, block_m=256):
    M, K = x.shape
    N = w.shape[1]
    if shift is None:
        shift = jnp.zeros((1, N), jnp.float32)
    shift = shift.reshape(1, N).astype(jnp.float32)
    tm, mp = _choose_tm(M, block_m)
    xb = x.astype(jnp.bfloat16)
    if mp != M:
        xb = jnp.pad(xb, ((0, mp - M), (0, 0)))
    out = pl.pallas_call(
        functools.partial(_mm_kernel, do_relu=do_relu),
        grid=(mp // tm,),
        in_specs=[
            pl.BlockSpec((tm, K), lambda i: (i, 0)),
            pl.BlockSpec((K, N), lambda i: (0, 0)),
            pl.BlockSpec((1, N), lambda i: (0, 0)),
        ],
        out_specs=pl.BlockSpec((tm, N), lambda i: (i, 0)),
        out_shape=jax.ShapeDtypeStruct((mp, N), jnp.bfloat16),
        compiler_params=pltpu.CompilerParams(dimension_semantics=("parallel",)),
    )(xb, w.astype(jnp.bfloat16), shift)
    return out[:M] if mp != M else out


# -----------------------------------------------------------------------------
# Kernel 2: fused radio (768->768, +bias) -> transit (768->256, BN+ReLU).
# The 768-wide intermediate lives only in a VMEM scratch (no HBM round trip).
# -----------------------------------------------------------------------------
def _extract_kernel(x_ref, w1_ref, b1_ref, w2_ref, b2_ref, o_ref, h_sc):
    h = jnp.dot(x_ref[...], w1_ref[...], preferred_element_type=jnp.float32)
    h = h + b1_ref[...]
    h_sc[...] = h.astype(jnp.bfloat16)
    y = jnp.dot(h_sc[...], w2_ref[...], preferred_element_type=jnp.float32)
    y = jnp.maximum(y + b2_ref[...], 0.0)
    o_ref[...] = y.astype(o_ref.dtype)


def radio_transit(x, params, block_m=256):
    M, K = x.shape
    N1 = params["radio_w"].shape[1]
    N2 = params["transit_w"].shape[1]
    tm, mp = _choose_tm(M, block_m)
    xb = x.astype(jnp.bfloat16)
    if mp != M:
        xb = jnp.pad(xb, ((0, mp - M), (0, 0)))
    out = pl.pallas_call(
        _extract_kernel,
        grid=(mp // tm,),
        in_specs=[
            pl.BlockSpec((tm, K), lambda i: (i, 0)),
            pl.BlockSpec((K, N1), lambda i: (0, 0)),
            pl.BlockSpec((1, N1), lambda i: (0, 0)),
            pl.BlockSpec((N1, N2), lambda i: (0, 0)),
            pl.BlockSpec((1, N2), lambda i: (0, 0)),
        ],
        out_specs=pl.BlockSpec((tm, N2), lambda i: (i, 0)),
        out_shape=jax.ShapeDtypeStruct((mp, N2), jnp.bfloat16),
        scratch_shapes=[pltpu.VMEM((tm, N1), jnp.bfloat16)],
        compiler_params=pltpu.CompilerParams(dimension_semantics=("parallel",)),
    )(xb, params["radio_w"], params["radio_b"],
      params["transit_w"], params["transit_shift"])
    return out[:M] if mp != M else out


# -----------------------------------------------------------------------------
# In-kernel 3x3 convolution helpers (tap-folded K, no HBM im2col).
# Per batch, x is ((H+4)*W, Cin): 2 zero rows above / below the image, row
# major.  Conv tap (dy, dx) is a contiguous row slice at offset
# (dy+1)*W + dx - 1; column wrap-around for dx==0 / dx==2 is zeroed with
# per-row masks generated in-kernel.  The 9 masked tap slices are staged into
# one (L, 9*Cin) VMEM slab and consumed by a single MXU dot.
# -----------------------------------------------------------------------------
def _flat_pad_h(x_nhwc):
    """(B, H, W, C) -> (B, (H+4)*W, C) with two zero rows above and below."""
    B, H, W, C = x_nhwc.shape
    xp = jnp.pad(x_nhwc, ((0, 0), (2, 2), (0, 0), (0, 0)))
    return xp.reshape(B, (H + 4) * W, C)


def _inkernel_col_masks(L, W, dtype=jnp.bfloat16):
    col = jax.lax.broadcasted_iota(jnp.int32, (L, 1), 0) % W
    lmask = (col != 0).astype(dtype)
    rmask = (col != W - 1).astype(dtype)
    return lmask, rmask


def _stage_taps(read, slab_ref, base, L, W, C, lmask, rmask):
    for dy in range(3):
        for dx in range(3):
            t = dy * 3 + dx
            start = (dy + 1) * W + dx - 1
            xs = read(start)
            if dx == 0:
                xs = xs * lmask
            elif dx == 2:
                xs = xs * rmask
            slab_ref[:, base + t * C: base + (t + 1) * C] = xs


# -----------------------------------------------------------------------------
# Kernel 3: fully fused ResBlock (conv3x3+BN+ReLU -> conv3x3+BN -> +id -> ReLU)
# Residual is read from the already-loaded padded slab.  BN scales are folded
# into the tap weights; only shifts are added.
# -----------------------------------------------------------------------------
def _resblock_kernel(xp_ref, w1_ref, b1_ref, w2_ref, b2_ref, o_ref,
                     slab_sc, yp_sc, *, H, W):
    L = H * W
    C = xp_ref.shape[-1]
    lmask, rmask = _inkernel_col_masks(L, W)

    # conv1 + BN1 + ReLU  (one K=9*C matmul)
    _stage_taps(lambda s: xp_ref[0, s:s + L, :], slab_sc, 0, L, W, C,
                lmask, rmask)
    acc1 = jnp.dot(slab_sc[...], w1_ref[...], preferred_element_type=jnp.float32)
    y1 = jnp.maximum(acc1 + b1_ref[...], 0.0)

    # stage the intermediate into a flat H-padded VMEM scratch (zero borders)
    yp_sc[0:2 * W, :] = jnp.zeros((2 * W, C), yp_sc.dtype)
    yp_sc[2 * W:2 * W + L, :] = y1.astype(yp_sc.dtype)
    yp_sc[2 * W + L:, :] = jnp.zeros((2 * W, C), yp_sc.dtype)

    # conv2 + BN2 + identity + ReLU
    _stage_taps(lambda s: yp_sc[s:s + L, :], slab_sc, 0, L, W, C,
                lmask, rmask)
    acc2 = jnp.dot(slab_sc[...], w2_ref[...], preferred_element_type=jnp.float32)
    res = xp_ref[0, 2 * W:2 * W + L, :].astype(jnp.float32)
    o_ref[0] = jnp.maximum(acc2 + b2_ref[...] + res, 0.0).astype(o_ref.dtype)


def res_block(x_nhwc, p):
    Bn, H, W, C = x_nhwc.shape
    L = H * W
    xp = _flat_pad_h(x_nhwc).astype(jnp.bfloat16)
    out = pl.pallas_call(
        functools.partial(_resblock_kernel, H=H, W=W),
        grid=(Bn,),
        in_specs=[
            pl.BlockSpec((1, (H + 4) * W, C), lambda b: (b, 0, 0)),
            pl.BlockSpec((9 * C, C), lambda b: (0, 0)),
            pl.BlockSpec((1, C), lambda b: (0, 0)),
            pl.BlockSpec((9 * C, C), lambda b: (0, 0)),
            pl.BlockSpec((1, C), lambda b: (0, 0)),
        ],
        out_specs=pl.BlockSpec((1, L, C), lambda b: (b, 0, 0)),
        out_shape=jax.ShapeDtypeStruct((Bn, L, C), jnp.bfloat16),
        scratch_shapes=[pltpu.VMEM((L, 9 * C), jnp.bfloat16),
                        pltpu.VMEM(((H + 4) * W, C), jnp.bfloat16)],
        compiler_params=pltpu.CompilerParams(dimension_semantics=("parallel",)),
    )(xp, p["w1"], p["b1"], p["w2"], p["b2"])
    return out.reshape(Bn, H, W, C)


# -----------------------------------------------------------------------------
# Kernel 4: change head.  Takes the two branches separately (no HBM concat);
# conv3x3(256->128)+BN+ReLU is one K=2304 dot over the stacked im2col slab,
# fused with the final 1x1 (128->1) lane reduction.  Dropout(0.2) is identity
# in eval mode.
# -----------------------------------------------------------------------------
def _head_kernel(xa_ref, xb_ref, w1_ref, b1_ref, w2_ref, b2_ref, o_ref,
                 slab_sc, *, H, W):
    L = H * W
    C = xa_ref.shape[-1]          # 128 per branch
    lmask, rmask = _inkernel_col_masks(L, W)

    _stage_taps(lambda s: xa_ref[0, s:s + L, :], slab_sc, 0, L, W, C,
                lmask, rmask)
    _stage_taps(lambda s: xb_ref[0, s:s + L, :], slab_sc, 9 * C, L, W, C,
                lmask, rmask)
    acc = jnp.dot(slab_sc[...], w1_ref[...], preferred_element_type=jnp.float32)
    y = jnp.maximum(acc + b1_ref[...], 0.0)                     # (L, 128)
    cm = jnp.sum(y * w2_ref[...], axis=-1, keepdims=True) + b2_ref[...]
    o_ref[0] = cm.astype(o_ref.dtype)


def change_head(xf, yf, params):
    B, H, W, C = xf.shape
    L = H * W
    xa = _flat_pad_h(xf).astype(jnp.bfloat16)
    xb = _flat_pad_h(yf).astype(jnp.bfloat16)
    cm = pl.pallas_call(
        functools.partial(_head_kernel, H=H, W=W),
        grid=(B,),
        in_specs=[
            pl.BlockSpec((1, (H + 4) * W, C), lambda b: (b, 0, 0)),
            pl.BlockSpec((1, (H + 4) * W, C), lambda b: (b, 0, 0)),
            pl.BlockSpec((2 * 9 * C, 128), lambda b: (0, 0)),
            pl.BlockSpec((1, 128), lambda b: (0, 0)),
            pl.BlockSpec((1, 128), lambda b: (0, 0)),
            pl.BlockSpec((1, 1), lambda b: (0, 0)),
        ],
        out_specs=pl.BlockSpec((1, L, 1), lambda b: (b, 0, 0)),
        out_shape=jax.ShapeDtypeStruct((B, L, 1), jnp.float32),
        scratch_shapes=[pltpu.VMEM((L, 2 * 9 * C), jnp.bfloat16)],
        compiler_params=pltpu.CompilerParams(dimension_semantics=("parallel",)),
    )(xa, xb, params["head_w1"], params["head_b1"],
      params["head_w2"], params["head_b2"])
    return cm.reshape(B, H, W)


# -----------------------------------------------------------------------------
# Kernel 5: simplified GrootV3DLayer (Mamba-style selective EMA scan).
# TODO(synk): GrootV3DLayer source is not provided; this is a simplified
#             stand-in (LN -> fused SiLU in/gate projection -> per-channel EMA
#             scan over the flattened H*(2W) sequence -> gated out-proj ->
#             residual).
# Grid over batch; one fused (L,C)x(C,2C) projection; chunked log-depth scan
# with pltpu.roll shifts (XLU) and pre-masked decay constants hoisted out of
# the loop; the gate and scan state live in VMEM scratch (no large live f32
# values across the loop).
# -----------------------------------------------------------------------------
def _groot_kernel(x_ref, ln_g_ref, ln_b_ref, w_ug_ref, w_out_ref, decay_ref,
                  o_ref, u_sc, g_sc, h_sc, *, L, S):
    C = x_ref.shape[-1]
    x = x_ref[0].astype(jnp.float32)                              # (L, C)

    # LayerNorm
    mean = jnp.mean(x, axis=-1, keepdims=True)
    var = jnp.mean(jnp.square(x - mean), axis=-1, keepdims=True)
    xn = (x - mean) * jax.lax.rsqrt(var + 1e-5)
    xn = xn * ln_g_ref[...] + ln_b_ref[...]
    xn_b = xn.astype(jnp.bfloat16)

    # fused input / gate projection (single N=2C MXU dot) + SiLU
    ug = jnp.dot(xn_b, w_ug_ref[...], preferred_element_type=jnp.float32)
    u = ug[:, :C]
    g = ug[:, C:]
    u = u * jax.nn.sigmoid(u)
    g = g * jax.nn.sigmoid(g)

    a = jax.nn.sigmoid(decay_ref[...])                            # (1, C)
    u_sc[...] = (1.0 - a) * u                                     # scan inputs
    g_sc[...] = g.astype(jnp.bfloat16)                            # stash gate

    # hoisted constants: pre-masked a^(2^k) for the doubling steps (top 2^k
    # rows zeroed so the rolled wrap-around contributes nothing), and a^(i+1)
    # for the inter-chunk carry.
    row = jax.lax.broadcasted_iota(jnp.int32, (S, 1), 0)
    loga = jnp.log(a)                                             # (1, C)
    apow = jnp.exp(loga * (row.astype(jnp.float32) + 1.0))        # (S, C)
    steps = []
    d = 1
    while d < S:
        ak = jnp.exp(loga * float(d))                             # (1, C)
        steps.append((d, jnp.where(row >= d, ak, 0.0)))           # (S, C)
        d *= 2

    def chunk_body(j, carry):                                     # carry (1, C)
        start = pl.multiple_of(j * S, S)
        xc = u_sc[pl.ds(start, S), :]
        for dd, mk in steps:                                      # log-depth scan
            xc = xc + mk * pltpu.roll(xc, dd, axis=0)
        sc = xc + apow * carry
        h_sc[pl.ds(start, S), :] = sc
        return sc[S - 1:S, :]

    jax.lax.fori_loop(0, L // S, chunk_body,
                      jnp.zeros((1, C), jnp.float32), unroll=True)

    # gated output projection + residual (residual re-read from the ref)
    y = jnp.dot(h_sc[...].astype(jnp.bfloat16) * g_sc[...], w_out_ref[...],
                preferred_element_type=jnp.float32)
    o_ref[0] = (x_ref[0].astype(jnp.float32) + y).astype(o_ref.dtype)


def _pow2_chunk(L, cap=128):
    s = 1
    while s * 2 <= cap and L % (s * 2) == 0:
        s *= 2
    return s


def groot_layer(x, p):
    B, L, C = x.shape
    S = _pow2_chunk(L)
    return pl.pallas_call(
        functools.partial(_groot_kernel, L=L, S=S),
        grid=(B,),
        in_specs=[
            pl.BlockSpec((1, L, C), lambda b: (b, 0, 0)),
            pl.BlockSpec((1, C), lambda b: (0, 0)),
            pl.BlockSpec((1, C), lambda b: (0, 0)),
            pl.BlockSpec((C, 2 * C), lambda b: (0, 0)),
            pl.BlockSpec((C, C), lambda b: (0, 0)),
            pl.BlockSpec((1, C), lambda b: (0, 0)),
        ],
        out_specs=pl.BlockSpec((1, L, C), lambda b: (b, 0, 0)),
        out_shape=jax.ShapeDtypeStruct((B, L, C), jnp.bfloat16),
        scratch_shapes=[pltpu.VMEM((L, C), jnp.float32),    # scan inputs
                        pltpu.VMEM((L, C), jnp.bfloat16),   # gate
                        pltpu.VMEM((L, C), jnp.float32)],   # scan state
        compiler_params=pltpu.CompilerParams(dimension_semantics=("parallel",)),
    )(x.astype(jnp.bfloat16), p["ln_g"], p["ln_b"],
      p["w_ug"], p["w_out"], p["decay"])


# -----------------------------------------------------------------------------
# Bilinear upsample (align_corners=False, half-pixel): left to XLA as two
# tiny interpolation matmuls.
# -----------------------------------------------------------------------------
def _interp_matrix(out_n, in_n):
    scale = in_n / out_n
    c = (jnp.arange(out_n, dtype=jnp.float32) + 0.5) * scale - 0.5
    c = jnp.clip(c, 0.0, in_n - 1.0)
    lo = jnp.floor(c).astype(jnp.int32)
    hi = jnp.minimum(lo + 1, in_n - 1)
    frac = c - lo.astype(jnp.float32)
    return (jax.nn.one_hot(lo, in_n, dtype=jnp.float32) * (1.0 - frac)[:, None]
            + jax.nn.one_hot(hi, in_n, dtype=jnp.float32) * frac[:, None])


# -----------------------------------------------------------------------------
# Parameters (inference-mode BN folded: gamma=1, beta=0, mean=0, var=1; the
# resulting per-channel scale is folded into the weight columns).
# -----------------------------------------------------------------------------
def init_params(key):
    ks = jax.random.split(key, 12)
    eps = 1e-5

    def bn_scale(n):
        return jnp.full((1, n), (1.0 + eps) ** -0.5, jnp.float32)

    def bn_shift(n):
        return jnp.zeros((1, n), jnp.float32)

    def kaiming_conv(k, cout, cin, ksz):
        fan_in = cin * ksz * ksz
        std = (2.0 / fan_in) ** 0.5
        return jax.random.normal(k, (cout, cin, ksz, ksz), jnp.float32) * std

    def conv1x1_to_mm(wc, scale=None):      # (Cout, Cin, 1, 1) -> (Cin, Cout)
        w = jnp.transpose(wc[:, :, 0, 0], (1, 0))
        if scale is not None:
            w = w * scale
        return w.astype(jnp.bfloat16)

    def conv3x3_to_flat(wc, scale=None):    # (Cout, Cin, 3, 3) -> (9*Cin, Cout)
        cout, cin = wc.shape[0], wc.shape[1]
        w = jnp.transpose(wc, (2, 3, 1, 0)).reshape(9 * cin, cout)
        if scale is not None:
            w = w * scale
        return w.astype(jnp.bfloat16)

    def conv3x3_to_flat_split2(wc, scale=None):
        # (Cout, 256, 3, 3) -> (2*9*128, Cout), branch-major then tap-major,
        # matching the head slab staging (xf taps first, then yf taps).
        cout = wc.shape[0]
        w = jnp.transpose(wc, (2, 3, 1, 0)).reshape(3, 3, 2, 128, cout)
        w = jnp.transpose(w, (2, 0, 1, 3, 4)).reshape(2 * 9 * 128, cout)
        if scale is not None:
            w = w * scale
        return w.astype(jnp.bfloat16)

    C = 128
    w_in = jax.random.normal(ks[3], (C, C), jnp.float32) * (1.0 / C) ** 0.5
    w_gate = jax.random.normal(ks[4], (C, C), jnp.float32) * (1.0 / C) ** 0.5

    params = {
        # TODO(synk): Lora_Radio_model (RADIO ViT + LoRA) is not in the source;
        # replaced by a deterministic linear patch embedding to 768 dims.
        "radio_w": (jax.random.normal(ks[0], (768, 768), jnp.float32)
                    * 0.02).astype(jnp.bfloat16),
        "radio_b": jnp.zeros((1, 768), jnp.float32),
        # transit: 1x1 conv 768->256 (no bias) + BN + ReLU  (scale folded)
        "transit_w": conv1x1_to_mm(kaiming_conv(ks[1], 256, 768, 1),
                                   bn_scale(256)),
        "transit_shift": bn_shift(256),
        # STM_block.conv2: 1x1 conv 256->128 (bias zeroed by initialize_weights)
        "stm_conv2_w": conv1x1_to_mm(kaiming_conv(ks[2], 128, 256, 1)),
        "stm_conv2_b": jnp.zeros((1, 128), jnp.float32),
        # simplified GrootV3DLayer (in/gate projections fused along N)
        "groot": dict(
            ln_g=jnp.ones((1, C), jnp.float32),
            ln_b=jnp.zeros((1, C), jnp.float32),
            w_ug=jnp.concatenate([w_in, w_gate], axis=1).astype(jnp.bfloat16),
            w_out=(jax.random.normal(ks[5], (C, C), jnp.float32)
                   * (1.0 / C) ** 0.5).astype(jnp.bfloat16),
            decay=jax.random.normal(ks[6], (1, C), jnp.float32),
        ),
        # smooth_layer_x (ResBlock 128->128); the original applies it to BOTH
        # branches (smooth_layer_y is unused) — reproduced faithfully.
        "smooth_x": dict(
            w1=conv3x3_to_flat(kaiming_conv(ks[7], 128, 128, 3), bn_scale(128)),
            b1=bn_shift(128),
            w2=conv3x3_to_flat(kaiming_conv(ks[8], 128, 128, 3), bn_scale(128)),
            b2=bn_shift(128),
        ),
        # change_head (BN scale folded into the 3x3 weight)
        "head_w1": conv3x3_to_flat_split2(kaiming_conv(ks[9], 128, 256, 3),
                                          bn_scale(128)),
        "head_b1": bn_shift(128),
        "head_w2": kaiming_conv(ks[10], 1, 128, 1)[:, :, 0, 0],   # (1, 128) f32
        "head_b2": jnp.zeros((1, 1), jnp.float32),
    }
    return params


# -----------------------------------------------------------------------------
# Full forward
# -----------------------------------------------------------------------------
def radio_mamba_v2_forward(params, x1, x2):
    B, Cin, H, W = x1.shape
    h, w = H // 16, W // 16

    def patchify(x):  # (B, 3, H, W) -> (B*h*w, 3*16*16 = 768)
        p = x.reshape(B, Cin, h, 16, w, 16)
        p = jnp.transpose(p, (0, 2, 4, 1, 3, 5))
        return p.reshape(B * h * w, Cin * 256)

    def extract_features(x):
        feat = radio_transit(patchify(x), params)     # fused radio+transit
        return feat.reshape(B, h, w, 256)

    f1 = extract_features(x1)
    f2 = extract_features(x2)

    # ---- STM_block ----
    ct = jnp.concatenate([f1, f2], axis=2)            # concat along width
    L = h * 2 * w
    ct = fused_matmul(ct.reshape(B * L, 256), params["stm_conv2_w"],
                      shift=params["stm_conv2_b"])
    gm = groot_layer(ct.reshape(B, L, 128), params["groot"])

    # smooth_layer_x applied to BOTH branches (as in the original); run both in
    # a single pallas_call by stacking branches on the batch axis.
    gm = gm.reshape(B, h, 2, w, 128)
    branches = jnp.transpose(gm, (2, 0, 1, 3, 4)).reshape(2 * B, h, w, 128)
    sm = res_block(branches, params["smooth_x"])      # (2B, h, w, 128)
    xf, yf = sm[:B], sm[B:]

    # ---- change head (conv3x3+BN+ReLU fused with final 1x1 conv) ----
    cm = change_head(xf, yf, params)                  # (B, h, w) f32

    # ---- bilinear upsample (align_corners=False), done by XLA ----
    ry = _interp_matrix(H, h)                         # (H, h)
    rx = _interp_matrix(W, w)                         # (W, w)
    up = jnp.einsum("oh,bhw->bow", ry, cm)
    up = jnp.einsum("bow,pw->bop", up, rx)
    return up[:, None, :, :].astype(jnp.float32)      # NCHW (B, 1, H, W)


if __name__ == "__main__":
    key = jax.random.PRNGKey(0)
    pkey, k1, k2 = jax.random.split(key, 3)
    params = init_params(pkey)

    B, C, H, W = 2, 3, 64, 64
    x1 = jax.random.normal(k1, (B, C, H, W), jnp.float32)
    x2 = jax.random.normal(k2, (B, C, H, W), jnp.float32)

    fwd = jax.jit(radio_mamba_v2_forward)
    out = jax.block_until_ready(fwd(params, x1, x2))
    assert out.shape == (B, 1, H, W), out.shape
    assert bool(jnp.all(jnp.isfinite(out)))
    print("KERNEL_OK")
</pallas_src>

<mosaic_0001>
module attributes {stable_mosaic.version = 11 : i64} {
  func.func @_extract_kernel(%arg0: i32, %arg1: memref<16x768xbf16, #tpu.memory_space<vmem>>, %arg2: memref<768x768xbf16, #tpu.memory_space<vmem>>, %arg3: memref<1x768xf32, #tpu.memory_space<vmem>>, %arg4: memref<768x256xbf16, #tpu.memory_space<vmem>>, %arg5: memref<1x256xf32, #tpu.memory_space<vmem>>, %arg6: memref<16x256xbf16, #tpu.memory_space<vmem>>, %arg7: memref<16x768xbf16, #tpu.memory_space<vmem>>) attributes {dimension_semantics = [#tpu.dimension_semantics<parallel>], iteration_bounds = array<i64: 2>, scalar_prefetch = 0 : i64, scratch_operands = 1 : i64, tpu.core_type = #tpu.core_type<tc>, window_params = [{transform_indices = @transform_0, window_bounds = array<i64: 16, 768>}, {pipeline_mode = #tpu.pipeline_mode<synchronous>, transform_indices = @transform_1, window_bounds = array<i64: 768, 768>}, {pipeline_mode = #tpu.pipeline_mode<synchronous>, transform_indices = @transform_2, window_bounds = array<i64: 1, 768>}, {pipeline_mode = #tpu.pipeline_mode<synchronous>, transform_indices = @transform_3, window_bounds = array<i64: 768, 256>}, {pipeline_mode = #tpu.pipeline_mode<synchronous>, transform_indices = @transform_4, window_bounds = array<i64: 1, 256>}, {transform_indices = @transform_5, window_bounds = array<i64: 16, 256>}]} {
    %c0 = arith.constant 0 : index
    %c0_0 = arith.constant 0 : index
    %0 = vector.load %arg1[%c0, %c0_0] : memref<16x768xbf16, #tpu.memory_space<vmem>>, vector<16x768xbf16>
    %c0_1 = arith.constant 0 : index
    %c0_2 = arith.constant 0 : index
    %1 = vector.load %arg2[%c0_1, %c0_2] : memref<768x768xbf16, #tpu.memory_space<vmem>>, vector<768x768xbf16>
    %cst = arith.constant dense<0.000000e+00> : vector<16x768xf32>
    %2 = tpu.matmul %0, %1, %cst {dimension_numbers = #tpu.dot_dimension_numbers<[1], [0], [0], [1], [0, 0, 1, 1], [], []>} : vector<16x768xbf16>, vector<768x768xbf16>, vector<16x768xf32> -> vector<16x768xf32>
    %c0_3 = arith.constant 0 : index
    %c0_4 = arith.constant 0 : index
    %3 = vector.load %arg3[%c0_3, %c0_4] : memref<1x768xf32, #tpu.memory_space<vmem>>, vector<1x768xf32>
    %4 = vector.broadcast %3 : vector<1x768xf32> to vector<16x768xf32>
    %5 = arith.addf %2, %4 : vector<16x768xf32>
    %6 = arith.truncf %5 : vector<16x768xf32> to vector<16x768xbf16>
    %c0_5 = arith.constant 0 : index
    %c0_6 = arith.constant 0 : index
    %7 = vector.load %arg7[%c0_5, %c0_6] : memref<16x768xbf16, #tpu.memory_space<vmem>>, vector<16x768xbf16>
    tpu.vector_store %arg7[%c0_5, %c0_6], %6 {strides = array<i32>} : memref<16x768xbf16, #tpu.memory_space<vmem>>, vector<16x768xbf16>,
    %c0_7 = arith.constant 0 : index
    %c0_8 = arith.constant 0 : index
    %8 = vector.load %arg7[%c0_7, %c0_8] : memref<16x768xbf16, #tpu.memory_space<vmem>>, vector<16x768xbf16>
    %c0_9 = arith.constant 0 : index
    %c0_10 = arith.constant 0 : index
    %9 = vector.load %arg4[%c0_9, %c0_10] : memref<768x256xbf16, #tpu.memory_space<vmem>>, vector<768x256xbf16>
    %cst_11 = arith.constant dense<0.000000e+00> : vector<16x256xf32>
    %10 = tpu.matmul %8, %9, %cst_11 {dimension_numbers = #tpu.dot_dimension_numbers<[1], [0], [0], [1], [0, 0, 1, 1], [], []>} : vector<16x768xbf16>, vector<768x256xbf16>, vector<16x256xf32> -> vector<16x256xf32>
    %c0_12 = arith.constant 0 : index
    %c0_13 = arith.constant 0 : index
    %11 = vector.load %arg5[%c0_12, %c0_13] : memref<1x256xf32, #tpu.memory_space<vmem>>, vector<1x256xf32>
    %12 = vector.broadcast %11 : vector<1x256xf32> to vector<16x256xf32>
    %13 = arith.addf %10, %12 : vector<16x256xf32>
    %cst_14 = arith.constant 0.000000e+00 : f32
    %14 = vector.broadcast %cst_14 : f32 to vector<16x256xf32>
    %15 = arith.maximumf %13, %14 : vector<16x256xf32>
    %16 = arith.truncf %15 : vector<16x256xf32> to vector<16x256xbf16>
    %c0_15 = arith.constant 0 : index
    %c0_16 = arith.constant 0 : index
    %17 = vector.load %arg6[%c0_15, %c0_16] : memref<16x256xbf16, #tpu.memory_space<vmem>>, vector<16x256xbf16>
    tpu.vector_store %arg6[%c0_15, %c0_16], %16 {strides = array<i32>} : memref<16x256xbf16, #tpu.memory_space<vmem>>, vector<16x256xbf16>,
    return
  }
  func.func @transform_0(%arg0: i32) -> (i32, i32) {
    %c0_i32 = arith.constant 0 : i32
    %c0_i32_0 = arith.constant 0 : i32
    return %arg0, %c0_i32 : i32, i32
  }
  func.func @transform_1(%arg0: i32) -> (i32, i32) {
    %c0_i32 = arith.constant 0 : i32
    %c0_i32_0 = arith.constant 0 : i32
    %c0_i32_1 = arith.constant 0 : i32
    return %c0_i32, %c0_i32_0 : i32, i32
  }
  func.func @transform_2(%arg0: i32) -> (i32, i32) {
    %c0_i32 = arith.constant 0 : i32
    %c0_i32_0 = arith.constant 0 : i32
    %c0_i32_1 = arith.constant 0 : i32
    return %c0_i32, %c0_i32_0 : i32, i32
  }
  func.func @transform_3(%arg0: i32) -> (i32, i32) {
    %c0_i32 = arith.constant 0 : i32
    %c0_i32_0 = arith.constant 0 : i32
    %c0_i32_1 = arith.constant 0 : i32
    return %c0_i32, %c0_i32_0 : i32, i32
  }
  func.func @transform_4(%arg0: i32) -> (i32, i32) {
    %c0_i32 = arith.constant 0 : i32
    %c0_i32_0 = arith.constant 0 : i32
    %c0_i32_1 = arith.constant 0 : i32
    return %c0_i32, %c0_i32_0 : i32, i32
  }
  func.func @transform_5(%arg0: i32) -> (i32, i32) {
    %c0_i32 = arith.constant 0 : i32
    %c0_i32_0 = arith.constant 0 : i32
    return %arg0, %c0_i32 : i32, i32
  }
}

module attributes {stable_mosaic.version = 11 : i64} {
  func.func @_mm_kernel(%arg0: i32, %arg1: memref<32x256xbf16, #tpu.memory_space<vmem>>, %arg2: memref<256x128xbf16, #tpu.memory_space<vmem>>, %arg3: memref<1x128xf32, #tpu.memory_space<vmem>>, %arg4: memref<32x128xbf16, #tpu.memory_space<vmem>>) attributes {dimension_semantics = [#tpu.dimension_semantics<parallel>], iteration_bounds = array<i64: 2>, scalar_prefetch = 0 : i64, scratch_operands = 0 : i64, tpu.core_type = #tpu.core_type<tc>, window_params = [{transform_indices = @transform_0, window_bounds = array<i64: 32, 256>}, {pipeline_mode = #tpu.pipeline_mode<synchronous>, transform_indices = @transform_1, window_bounds = array<i64: 256, 128>}, {pipeline_mode = #tpu.pipeline_mode<synchronous>, transform_indices = @transform_2, window_bounds = array<i64: 1, 128>}, {transform_indices = @transform_3, window_bounds = array<i64: 32, 128>}]} {
    %c0 = arith.constant 0 : index
    %c0_0 = arith.constant 0 : index
    %0 = vector.load %arg1[%c0, %c0_0] : memref<32x256xbf16, #tpu.memory_space<vmem>>, vector<32x256xbf16>
    %c0_1 = arith.constant 0 : index
    %c0_2 = arith.constant 0 : index
    %1 = vector.load %arg2[%c0_1, %c0_2] : memref<256x128xbf16, #tpu.memory_space<vmem>>, vector<256x128xbf16>
    %cst = arith.constant dense<0.000000e+00> : vector<32x128xf32>
    %2 = tpu.matmul %0, %1, %cst {dimension_numbers = #tpu.dot_dimension_numbers<[1], [0], [0], [1], [0, 0, 1, 1], [], []>} : vector<32x256xbf16>, vector<256x128xbf16>, vector<32x128xf32> -> vector<32x128xf32>
    %c0_3 = arith.constant 0 : index
    %c0_4 = arith.constant 0 : index
    %3 = vector.load %arg3[%c0_3, %c0_4] : memref<1x128xf32, #tpu.memory_space<vmem>>, vector<1x128xf32>
    %4 = vector.broadcast %3 : vector<1x128xf32> to vector<32x128xf32>
    %5 = arith.addf %2, %4 : vector<32x128xf32>
    %6 = arith.truncf %5 : vector<32x128xf32> to vector<32x128xbf16>
    %c0_5 = arith.constant 0 : index
    %c0_6 = arith.constant 0 : index
    %7 = vector.load %arg4[%c0_5, %c0_6] : memref<32x128xbf16, #tpu.memory_space<vmem>>, vector<32x128xbf16>
    tpu.vector_store %arg4[%c0_5, %c0_6], %6 {strides = array<i32>} : memref<32x128xbf16, #tpu.memory_space<vmem>>, vector<32x128xbf16>,
    return
  }
  func.func @transform_0(%arg0: i32) -> (i32, i32) {
    %c0_i32 = arith.constant 0 : i32
    %c0_i32_0 = arith.constant 0 : i32
    return %arg0, %c0_i32 : i32, i32
  }
  func.func @transform_1(%arg0: i32) -> (i32, i32) {
    %c0_i32 = arith.constant 0 : i32
    %c0_i32_0 = arith.constant 0 : i32
    %c0_i32_1 = arith.constant 0 : i32
    return %c0_i32, %c0_i32_0 : i32, i32
  }
  func.func @transform_2(%arg0: i32) -> (i32, i32) {
    %c0_i32 = arith.constant 0 : i32
    %c0_i32_0 = arith.constant 0 : i32
    %c0_i32_1 = arith.constant 0 : i32
    return %c0_i32, %c0_i32_0 : i32, i32
  }
  func.func @transform_3(%arg0: i32) -> (i32, i32) {
    %c0_i32 = arith.constant 0 : i32
    %c0_i32_0 = arith.constant 0 : i32
    return %arg0, %c0_i32 : i32, i32
  }
}

module attributes {stable_mosaic.version = 11 : i64} {
  func.func @_groot_kernel(%arg0: i32, %arg1: memref<1x32x128xbf16, #tpu.memory_space<vmem>>, %arg2: memref<1x128xf32, #tpu.memory_space<vmem>>, %arg3: memref<1x128xf32, #tpu.memory_space<vmem>>, %arg4: memref<128x256xbf16, #tpu.memory_space<vmem>>, %arg5: memref<128x128xbf16, #tpu.memory_space<vmem>>, %arg6: memref<1x128xf32, #tpu.memory_space<vmem>>, %arg7: memref<1x32x128xbf16, #tpu.memory_space<vmem>>, %arg8: memref<32x128xf32, #tpu.memory_space<vmem>>, %arg9: memref<32x128xbf16, #tpu.memory_space<vmem>>, %arg10: memref<32x128xf32, #tpu.memory_space<vmem>>) attributes {dimension_semantics = [#tpu.dimension_semantics<parallel>], iteration_bounds = array<i64: 2>, scalar_prefetch = 0 : i64, scratch_operands = 3 : i64, tpu.core_type = #tpu.core_type<tc>, window_params = [{transform_indices = @transform_0, window_bounds = array<i64: 1, 32, 128>}, {pipeline_mode = #tpu.pipeline_mode<synchronous>, transform_indices = @transform_1, window_bounds = array<i64: 1, 128>}, {pipeline_mode = #tpu.pipeline_mode<synchronous>, transform_indices = @transform_2, window_bounds = array<i64: 1, 128>}, {pipeline_mode = #tpu.pipeline_mode<synchronous>, transform_indices = @transform_3, window_bounds = array<i64: 128, 256>}, {pipeline_mode = #tpu.pipeline_mode<synchronous>, transform_indices = @transform_4, window_bounds = array<i64: 128, 128>}, {pipeline_mode = #tpu.pipeline_mode<synchronous>, transform_indices = @transform_5, window_bounds = array<i64: 1, 128>}, {transform_indices = @transform_6, window_bounds = array<i64: 1, 32, 128>}]} {
    %c0 = arith.constant 0 : index
    %c0_0 = arith.constant 0 : index
    %c0_1 = arith.constant 0 : index
    %0 = vector.load %arg1[%c0, %c0_0, %c0_1] : memref<1x32x128xbf16, #tpu.memory_space<vmem>>, vector<1x32x128xbf16>
    %1 = vector.shape_cast %0 : vector<1x32x128xbf16> to vector<32x128xbf16>
    %2 = arith.extf %1 : vector<32x128xbf16> to vector<32x128xf32>
    %cst = arith.constant dense<0.000000e+00> : vector<32xf32>
    %3 = vector.multi_reduction <add>, %2, %cst [1] : vector<32x128xf32> to vector<32xf32>
    %4 = vector.shape_cast %3 : vector<32xf32> to vector<32x1xf32>
    %cst_2 = arith.constant 1.280000e+02 : f32
    %5 = vector.broadcast %cst_2 : f32 to vector<32x1xf32>
    %6 = arith.divf %4, %5 : vector<32x1xf32>
    %7 = vector.broadcast %6 : vector<32x1xf32> to vector<32x128xf32>
    %8 = arith.subf %2, %7 : vector<32x128xf32>
    %9 = arith.mulf %8, %8 : vector<32x128xf32>
    %cst_3 = arith.constant dense<0.000000e+00> : vector<32xf32>
    %10 = vector.multi_reduction <add>, %9, %cst_3 [1] : vector<32x128xf32> to vector<32xf32>
    %11 = vector.shape_cast %10 : vector<32xf32> to vector<32x1xf32>
    %cst_4 = arith.constant 1.280000e+02 : f32
    %12 = vector.broadcast %cst_4 : f32 to vector<32x1xf32>
    %13 = arith.divf %11, %12 : vector<32x1xf32>
    %14 = vector.broadcast %6 : vector<32x1xf32> to vector<32x128xf32>
    %15 = arith.subf %2, %14 : vector<32x128xf32>
    %cst_5 = arith.constant 9.99999974E-6 : f32
    %16 = vector.broadcast %cst_5 : f32 to vector<32x1xf32>
    %17 = arith.addf %13, %16 : vector<32x1xf32>
    %18 = math.rsqrt %17 : vector<32x1xf32>
    %19 = vector.broadcast %18 : vector<32x1xf32> to vector<32x128xf32>
    %20 = arith.mulf %15, %19 : vector<32x128xf32>
    %c0_6 = arith.constant 0 : index
    %c0_7 = arith.constant 0 : index
    %21 = vector.load %arg2[%c0_6, %c0_7] : memref<1x128xf32, #tpu.memory_space<vmem>>, vector<1x128xf32>
    %22 = vector.broadcast %21 : vector<1x128xf32> to vector<32x128xf32>
    %23 = arith.mulf %20, %22 : vector<32x128xf32>
    %c0_8 = arith.constant 0 : index
    %c0_9 = arith.constant 0 : index
    %24 = vector.load %arg3[%c0_8, %c0_9] : memref<1x128xf32, #tpu.memory_space<vmem>>, vector<1x128xf32>
    %25 = vector.broadcast %24 : vector<1x128xf32> to vector<32x128xf32>
    %26 = arith.addf %23, %25 : vector<32x128xf32>
    %27 = arith.truncf %26 : vector<32x128xf32> to vector<32x128xbf16>
    %c0_10 = arith.constant 0 : index
    %c0_11 = arith.constant 0 : index
    %28 = vector.load %arg4[%c0_10, %c0_11] : memref<128x256xbf16, #tpu.memory_space<vmem>>, vector<128x256xbf16>
    %cst_12 = arith.constant dense<0.000000e+00> : vector<32x256xf32>
    %29 = tpu.matmul %27, %28, %cst_12 {dimension_numbers = #tpu.dot_dimension_numbers<[1], [0], [0], [1], [0, 0, 1, 1], [], []>} : vector<32x128xbf16>, vector<128x256xbf16>, vector<32x256xf32> -> vector<32x256xf32>
    %30 = vector.extract_strided_slice %29 {offsets = [0, 0], sizes = [32, 128], strides = [1, 1]} : vector<32x256xf32> to vector<32x128xf32>
    %31 = vector.extract_strided_slice %29 {offsets = [0, 128], sizes = [32, 128], strides = [1, 1]} : vector<32x256xf32> to vector<32x128xf32>
    %32 = arith.negf %30 : vector<32x128xf32>
    %33 = math.exp %32 : vector<32x128xf32>
    %cst_13 = arith.constant 1.000000e+00 : f32
    %34 = vector.broadcast %cst_13 : f32 to vector<32x128xf32>
    %35 = arith.addf %34, %33 : vector<32x128xf32>
    %36 = arith.divf %34, %35 : vector<32x128xf32>
    %37 = arith.mulf %30, %36 : vector<32x128xf32>
    %38 = arith.negf %31 : vector<32x128xf32>
    %39 = math.exp %38 : vector<32x128xf32>
    %cst_14 = arith.constant 1.000000e+00 : f32
    %40 = vector.broadcast %cst_14 : f32 to vector<32x128xf32>
    %41 = arith.addf %40, %39 : vector<32x128xf32>
    %42 = arith.divf %40, %41 : vector<32x128xf32>
    %43 = arith.mulf %31, %42 : vector<32x128xf32>
    %c0_15 = arith.constant 0 : index
    %c0_16 = arith.constant 0 : index
    %44 = vector.load %arg6[%c0_15, %c0_16] : memref<1x128xf32, #tpu.memory_space<vmem>>, vector<1x128xf32>
    %45 = arith.negf %44 : vector<1x128xf32>
    %46 = math.exp %45 : vector<1x128xf32>
    %cst_17 = arith.constant 1.000000e+00 : f32
    %47 = vector.broadcast %cst_17 : f32 to vector<1x128xf32>
    %48 = arith.addf %47, %46 : vector<1x128xf32>
    %49 = arith.divf %47, %48 : vector<1x128xf32>
    %cst_18 = arith.constant 1.000000e+00 : f32
    %50 = vector.broadcast %cst_18 : f32 to vector<1x128xf32>
    %51 = arith.subf %50, %49 : vector<1x128xf32>
    %52 = vector.broadcast %51 : vector<1x128xf32> to vector<32x128xf32>
    %53 = arith.mulf %52, %37 : vector<32x128xf32>
    %c0_19 = arith.constant 0 : index
    %c0_20 = arith.constant 0 : index
    %54 = vector.load %arg8[%c0_19, %c0_20] : memref<32x128xf32, #tpu.memory_space<vmem>>, vector<32x128xf32>
    tpu.vector_store %arg8[%c0_19, %c0_20], %53 {strides = array<i32>} : memref<32x128xf32, #tpu.memory_space<vmem>>, vector<32x128xf32>,
    %55 = arith.truncf %43 : vector<32x128xf32> to vector<32x128xbf16>
    %c0_21 = arith.constant 0 : index
    %c0_22 = arith.constant 0 : index
    %56 = vector.load %arg9[%c0_21, %c0_22] : memref<32x128xbf16, #tpu.memory_space<vmem>>, vector<32x128xbf16>
    tpu.vector_store %arg9[%c0_21, %c0_22], %55 {strides = array<i32>} : memref<32x128xbf16, #tpu.memory_space<vmem>>, vector<32x128xbf16>,
    %57 = tpu.iota {dimensions = array<i32: 0>} : vector<32x1xi32>
    %58 = math.log %49 : vector<1x128xf32>
    %59 = arith.sitofp %57 : vector<32x1xi32> to vector<32x1xf32>
    %cst_23 = arith.constant 1.000000e+00 : f32
    %60 = vector.broadcast %cst_23 : f32 to vector<32x1xf32>
    %61 = arith.addf %59, %60 : vector<32x1xf32>
    %62 = vector.broadcast %58 : vector<1x128xf32> to vector<32x128xf32>
    %63 = vector.broadcast %61 : vector<32x1xf32> to vector<32x128xf32>
    %64 = arith.mulf %62, %63 : vector<32x128xf32>
    %65 = math.exp %64 : vector<32x128xf32>
    %cst_24 = arith.constant 1.000000e+00 : f32
    %66 = vector.broadcast %cst_24 : f32 to vector<1x128xf32>
    %67 = arith.mulf %58, %66 : vector<1x128xf32>
    %68 = math.exp %67 : vector<1x128xf32>
    %c1_i32 = arith.constant 1 : i32
    %69 = vector.broadcast %c1_i32 : i32 to vector<32x1xi32>
    %70 = arith.cmpi sge, %57, %69 : vector<32x1xi32>
    %cst_25 = arith.constant 0.000000e+00 : f32
    %71 = vector.shape_cast %70 : vector<32x1xi1> to vector<32x1xi1>
    %72 = vector.broadcast %71 : vector<32x1xi1> to vector<32x128xi1>
    %73 = vector.shape_cast %68 : vector<1x128xf32> to vector<1x128xf32>
    %74 = vector.broadcast %73 : vector<1x128xf32> to vector<32x128xf32>
    %75 = vector.broadcast %cst_25 : f32 to vector<32x128xf32>
    %76 = arith.select %72, %74, %75 : vector<32x128xi1>, vector<32x128xf32>
    %cst_26 = arith.constant 2.000000e+00 : f32
    %77 = vector.broadcast %cst_26 : f32 to vector<1x128xf32>
    %78 = arith.mulf %58, %77 : vector<1x128xf32>
    %79 = math.exp %78 : vector<1x128xf32>
    %c2_i32 = arith.constant 2 : i32
    %80 = vector.broadcast %c2_i32 : i32 to vector<32x1xi32>
    %81 = arith.cmpi sge, %57, %80 : vector<32x1xi32>
    %cst_27 = arith.constant 0.000000e+00 : f32
    %82 = vector.shape_cast %81 : vector<32x1xi1> to vector<32x1xi1>
    %83 = vector.broadcast %82 : vector<32x1xi1> to vector<32x128xi1>
    %84 = vector.shape_cast %79 : vector<1x128xf32> to vector<1x128xf32>
    %85 = vector.broadcast %84 : vector<1x128xf32> to vector<32x128xf32>
    %86 = vector.broadcast %cst_27 : f32 to vector<32x128xf32>
    %87 = arith.select %83, %85, %86 : vector<32x128xi1>, vector<32x128xf32>
    %cst_28 = arith.constant 4.000000e+00 : f32
    %88 = vector.broadcast %cst_28 : f32 to vector<1x128xf32>
    %89 = arith.mulf %58, %88 : vector<1x128xf32>
    %90 = math.exp %89 : vector<1x128xf32>
    %c4_i32 = arith.constant 4 : i32
    %91 = vector.broadcast %c4_i32 : i32 to vector<32x1xi32>
    %92 = arith.cmpi sge, %57, %91 : vector<32x1xi32>
    %cst_29 = arith.constant 0.000000e+00 : f32
    %93 = vector.shape_cast %92 : vector<32x1xi1> to vector<32x1xi1>
    %94 = vector.broadcast %93 : vector<32x1xi1> to vector<32x128xi1>
    %95 = vector.shape_cast %90 : vector<1x128xf32> to vector<1x128xf32>
    %96 = vector.broadcast %95 : vector<1x128xf32> to vector<32x128xf32>
    %97 = vector.broadcast %cst_29 : f32 to vector<32x128xf32>
    %98 = arith.select %94, %96, %97 : vector<32x128xi1>, vector<32x128xf32>
    %cst_30 = arith.constant 8.000000e+00 : f32
    %99 = vector.broadcast %cst_30 : f32 to vector<1x128xf32>
    %100 = arith.mulf %58, %99 : vector<1x128xf32>
    %101 = math.exp %100 : vector<1x128xf32>
    %c8_i32 = arith.constant 8 : i32
    %102 = vector.broadcast %c8_i32 : i32 to vector<32x1xi32>
    %103 = arith.cmpi sge, %57, %102 : vector<32x1xi32>
    %cst_31 = arith.constant 0.000000e+00 : f32
    %104 = vector.shape_cast %103 : vector<32x1xi1> to vector<32x1xi1>
    %105 = vector.broadcast %104 : vector<32x1xi1> to vector<32x128xi1>
    %106 = vector.shape_cast %101 : vector<1x128xf32> to vector<1x128xf32>
    %107 = vector.broadcast %106 : vector<1x128xf32> to vector<32x128xf32>
    %108 = vector.broadcast %cst_31 : f32 to vector<32x128xf32>
    %109 = arith.select %105, %107, %108 : vector<32x128xi1>, vector<32x128xf32>
    %cst_32 = arith.constant 1.600000e+01 : f32
    %110 = vector.broadcast %cst_32 : f32 to vector<1x128xf32>
    %111 = arith.mulf %58, %110 : vector<1x128xf32>
    %112 = math.exp %111 : vector<1x128xf32>
    %c16_i32 = arith.constant 16 : i32
    %113 = vector.broadcast %c16_i32 : i32 to vector<32x1xi32>
    %114 = arith.cmpi sge, %57, %113 : vector<32x1xi32>
    %cst_33 = arith.constant 0.000000e+00 : f32
    %115 = vector.shape_cast %114 : vector<32x1xi1> to vector<32x1xi1>
    %116 = vector.broadcast %115 : vector<32x1xi1> to vector<32x128xi1>
    %117 = vector.shape_cast %112 : vector<1x128xf32> to vector<1x128xf32>
    %118 = vector.broadcast %117 : vector<1x128xf32> to vector<32x128xf32>
    %119 = vector.broadcast %cst_33 : f32 to vector<32x128xf32>
    %120 = arith.select %116, %118, %119 : vector<32x128xi1>, vector<32x128xf32>
    %cst_34 = arith.constant 0.000000e+00 : f32
    %121 = vector.broadcast %cst_34 : f32 to vector<1x128xf32>
    %c0_i32 = arith.constant 0 : i32
    %c32_i32 = arith.constant 32 : i32
    %122 = arith.muli %c0_i32, %c32_i32 : i32
    %123 = tpu.assume_multiple %122, 32 : i32
    %124 = arith.index_cast %123 : i32 to index
    %c0_35 = arith.constant 0 : index
    %125 = vector.load %arg8[%124, %c0_35] : memref<32x128xf32, #tpu.memory_space<vmem>>, vector<32x128xf32>
    %c1_i32_36 = arith.constant 1 : i32
    %126 = tpu.dynamic_rotate %125 by %c1_i32_36 dim 0 : vector<32x128xf32>, i32 -> vector<32x128xf32>
    %127 = arith.mulf %76, %126 : vector<32x128xf32>
    %128 = arith.addf %125, %127 : vector<32x128xf32>
    %c2_i32_37 = arith.constant 2 : i32
    %129 = tpu.dynamic_rotate %128 by %c2_i32_37 dim 0 : vector<32x128xf32>, i32 -> vector<32x128xf32>
    %130 = arith.mulf %87, %129 : vector<32x128xf32>
    %131 = arith.addf %128, %130 : vector<32x128xf32>
    %c4_i32_38 = arith.constant 4 : i32
    %132 = tpu.dynamic_rotate %131 by %c4_i32_38 dim 0 : vector<32x128xf32>, i32 -> vector<32x128xf32>
    %133 = arith.mulf %98, %132 : vector<32x128xf32>
    %134 = arith.addf %131, %133 : vector<32x128xf32>
    %c8_i32_39 = arith.constant 8 : i32
    %135 = tpu.dynamic_rotate %134 by %c8_i32_39 dim 0 : vector<32x128xf32>, i32 -> vector<32x128xf32>
    %136 = arith.mulf %109, %135 : vector<32x128xf32>
    %137 = arith.addf %134, %136 : vector<32x128xf32>
    %c16_i32_40 = arith.constant 16 : i32
    %138 = tpu.dynamic_rotate %137 by %c16_i32_40 dim 0 : vector<32x128xf32>, i32 -> vector<32x128xf32>
    %139 = arith.mulf %120, %138 : vector<32x128xf32>
    %140 = arith.addf %137, %139 : vector<32x128xf32>
    %141 = vector.broadcast %121 : vector<1x128xf32> to vector<32x128xf32>
    %142 = arith.mulf %65, %141 : vector<32x128xf32>
    %143 = arith.addf %140, %142 : vector<32x128xf32>
    %144 = arith.index_cast %123 : i32 to index
    %c0_41 = arith.constant 0 : index
    %145 = vector.load %arg10[%144, %c0_41] : memref<32x128xf32, #tpu.memory_space<vmem>>, vector<32x128xf32>
    tpu.vector_store %arg10[%144, %c0_41], %143 {strides = array<i32>} : memref<32x128xf32, #tpu.memory_space<vmem>>, vector<32x128xf32>,
    %146 = vector.extract_strided_slice %143 {offsets = [31, 0], sizes = [1, 128], strides = [1, 1]} : vector<32x128xf32> to vector<1x128xf32>
    %c1_i32_42 = arith.constant 1 : i32
    %c0_43 = arith.constant 0 : index
    %c0_44 = arith.constant 0 : index
    %147 = vector.load %arg10[%c0_43, %c0_44] : memref<32x128xf32, #tpu.memory_space<vmem>>, vector<32x128xf32>
    %148 = arith.truncf %147 : vector<32x128xf32> to vector<32x128xbf16>
    %c0_45 = arith.constant 0 : index
    %c0_46 = arith.constant 0 : index
    %149 = vector.load %arg9[%c0_45, %c0_46] : memref<32x128xbf16, #tpu.memory_space<vmem>>, vector<32x128xbf16>
    %150 = arith.mulf %148, %149 : vector<32x128xbf16>
    %c0_47 = arith.constant 0 : index
    %c0_48 = arith.constant 0 : index
    %151 = vector.load %arg5[%c0_47, %c0_48] : memref<128x128xbf16, #tpu.memory_space<vmem>>, vector<128x128xbf16>
    %cst_49 = arith.constant dense<0.000000e+00> : vector<32x128xf32>
    %152 = tpu.matmul %150, %151, %cst_49 {dimension_numbers = #tpu.dot_dimension_numbers<[1], [0], [0], [1], [0, 0, 1, 1], [], []>} : vector<32x128xbf16>, vector<128x128xbf16>, vector<32x128xf32> -> vector<32x128xf32>
    %c0_50 = arith.constant 0 : index
    %c0_51 = arith.constant 0 : index
    %c0_52 = arith.constant 0 : index
    %153 = vector.load %arg1[%c0_50, %c0_51, %c0_52] : memref<1x32x128xbf16, #tpu.memory_space<vmem>>, vector<1x32x128xbf16>
    %154 = vector.shape_cast %153 : vector<1x32x128xbf16> to vector<32x128xbf16>
    %155 = arith.extf %154 : vector<32x128xbf16> to vector<32x128xf32>
    %156 = arith.addf %155, %152 : vector<32x128xf32>
    %157 = arith.truncf %156 : vector<32x128xf32> to vector<32x128xbf16>
    %c0_53 = arith.constant 0 : index
    %c0_54 = arith.constant 0 : index
    %c0_55 = arith.constant 0 : index
    %158 = vector.load %arg7[%c0_53, %c0_54, %c0_55] : memref<1x32x128xbf16, #tpu.memory_space<vmem>>, vector<1x32x128xbf16>
    %159 = vector.shape_cast %158 : vector<1x32x128xbf16> to vector<32x128xbf16>
    %160 = vector.shape_cast %157 : vector<32x128xbf16> to vector<1x32x128xbf16>
    tpu.vector_store %arg7[%c0_53, %c0_54, %c0_55], %160 {strides = array<i32>} : memref<1x32x128xbf16, #tpu.memory_space<vmem>>, vector<1x32x128xbf16>,
    return
  }
  func.func @transform_0(%arg0: i32) -> (i32, i32, i32) {
    %c0_i32 = arith.constant 0 : i32
    %c0_i32_0 = arith.constant 0 : i32
    %c0_i32_1 = arith.constant 0 : i32
    return %arg0, %c0_i32, %c0_i32_0 : i32, i32, i32
  }
  func.func @transform_1(%arg0: i32) -> (i32, i32) {
    %c0_i32 = arith.constant 0 : i32
    %c0_i32_0 = arith.constant 0 : i32
    %c0_i32_1 = arith.constant 0 : i32
    return %c0_i32, %c0_i32_0 : i32, i32
  }
  func.func @transform_2(%arg0: i32) -> (i32, i32) {
    %c0_i32 = arith.constant 0 : i32
    %c0_i32_0 = arith.constant 0 : i32
    %c0_i32_1 = arith.constant 0 : i32
    return %c0_i32, %c0_i32_0 : i32, i32
  }
  func.func @transform_3(%arg0: i32) -> (i32, i32) {
    %c0_i32 = arith.constant 0 : i32
    %c0_i32_0 = arith.constant 0 : i32
    %c0_i32_1 = arith.constant 0 : i32
    return %c0_i32, %c0_i32_0 : i32, i32
  }
  func.func @transform_4(%arg0: i32) -> (i32, i32) {
    %c0_i32 = arith.constant 0 : i32
    %c0_i32_0 = arith.constant 0 : i32
    %c0_i32_1 = arith.constant 0 : i32
    return %c0_i32, %c0_i32_0 : i32, i32
  }
  func.func @transform_5(%arg0: i32) -> (i32, i32) {
    %c0_i32 = arith.constant 0 : i32
    %c0_i32_0 = arith.constant 0 : i32
    %c0_i32_1 = arith.constant 0 : i32
    return %c0_i32, %c0_i32_0 : i32, i32
  }
  func.func @transform_6(%arg0: i32) -> (i32, i32, i32) {
    %c0_i32 = arith.constant 0 : i32
    %c0_i32_0 = arith.constant 0 : i32
    %c0_i32_1 = arith.constant 0 : i32
    return %arg0, %c0_i32, %c0_i32_0 : i32, i32, i32
  }
}

module attributes {stable_mosaic.version = 11 : i64} {
  func.func @_resblock_kernel(%arg0: i32, %arg1: memref<1x32x128xbf16, #tpu.memory_space<vmem>>, %arg2: memref<1152x128xbf16, #tpu.memory_space<vmem>>, %arg3: memref<1x128xf32, #tpu.memory_space<vmem>>, %arg4: memref<1152x128xbf16, #tpu.memory_space<vmem>>, %arg5: memref<1x128xf32, #tpu.memory_space<vmem>>, %arg6: memref<1x16x128xbf16, #tpu.memory_space<vmem>>, %arg7: memref<16x1152xbf16, #tpu.memory_space<vmem>>, %arg8: memref<32x128xbf16, #tpu.memory_space<vmem>>) attributes {dimension_semantics = [#tpu.dimension_semantics<parallel>], iteration_bounds = array<i64: 4>, scalar_prefetch = 0 : i64, scratch_operands = 2 : i64, tpu.core_type = #tpu.core_type<tc>, window_params = [{transform_indices = @transform_0, window_bounds = array<i64: 1, 32, 128>}, {pipeline_mode = #tpu.pipeline_mode<synchronous>, transform_indices = @transform_1, window_bounds = array<i64: 1152, 128>}, {pipeline_mode = #tpu.pipeline_mode<synchronous>, transform_indices = @transform_2, window_bounds = array<i64: 1, 128>}, {pipeline_mode = #tpu.pipeline_mode<synchronous>, transform_indices = @transform_3, window_bounds = array<i64: 1152, 128>}, {pipeline_mode = #tpu.pipeline_mode<synchronous>, transform_indices = @transform_4, window_bounds = array<i64: 1, 128>}, {transform_indices = @transform_5, window_bounds = array<i64: 1, 16, 128>}]} {
    %0 = tpu.iota {dimensions = array<i32: 0>} : vector<16x1xi32>
    %c4_i32 = arith.constant 4 : i32
    %c0_i32 = arith.constant 0 : i32
    %1 = arith.cmpi eq, %c4_i32, %c0_i32 : i32
    %c1_i32 = arith.constant 1 : i32
    %2 = arith.select %1, %c1_i32, %c4_i32 : i32
    %3 = vector.broadcast %2 : i32 to vector<16x1xi32>
    %4 = arith.remsi %0, %3 : vector<16x1xi32>
    %c0_i32_0 = arith.constant 0 : i32
    %5 = vector.broadcast %c0_i32_0 : i32 to vector<16x1xi32>
    %6 = arith.cmpi ne, %4, %5 : vector<16x1xi32>
    %c0_i32_1 = arith.constant 0 : i32
    %7 = vector.broadcast %c0_i32_1 : i32 to vector<16x1xi32>
    %8 = arith.cmpi slt, %4, %7 : vector<16x1xi32>
    %c0_i32_2 = arith.constant 0 : i32
    %9 = arith.cmpi slt, %2, %c0_i32_2 : i32
    %10 = vector.broadcast %9 : i1 to vector<16x1xi1>
    %11 = vector.broadcast %10 : vector<16x1xi1> to vector<16x1xi1>
    %12 = arith.xori %8, %11 : vector<16x1xi1>
    %13 = arith.andi %12, %6 : vector<16x1xi1>
    %14 = vector.broadcast %2 : i32 to vector<16x1xi32>
    %15 = arith.addi %4, %14 : vector<16x1xi32>
    %16 = arith.select %13, %15, %4 : vector<16x1xi1>, vector<16x1xi32>
    %c0_i32_3 = arith.constant 0 : i32
    %17 = vector.broadcast %c0_i32_3 : i32 to vector<16x1xi32>
    %18 = arith.cmpi ne, %16, %17 : vector<16x1xi32>
    %19 = arith.extui %18 : vector<16x1xi1> to vector<16x1xi32>
    %20 = arith.sitofp %19 : vector<16x1xi32> to vector<16x1xf32>
    %21 = arith.truncf %20 : vector<16x1xf32> to vector<16x1xbf16>
    %c3_i32 = arith.constant 3 : i32
    %22 = vector.broadcast %c3_i32 : i32 to vector<16x1xi32>
    %23 = arith.cmpi ne, %16, %22 : vector<16x1xi32>
    %24 = arith.extui %23 : vector<16x1xi1> to vector<16x1xi32>
    %25 = arith.sitofp %24 : vector<16x1xi32> to vector<16x1xf32>
    %26 = arith.truncf %25 : vector<16x1xf32> to vector<16x1xbf16>
    %c0 = arith.constant 0 : index
    %c3 = arith.constant 3 : index
    %c0_4 = arith.constant 0 : index
    %27 = vector.load %arg1[%c0, %c3, %c0_4] : memref<1x32x128xbf16, #tpu.memory_space<vmem>>, vector<1x16x128xbf16>
    %28 = vector.shape_cast %27 : vector<1x16x128xbf16> to vector<16x128xbf16>
    %29 = vector.broadcast %21 : vector<16x1xbf16> to vector<16x128xbf16>
    %30 = arith.mulf %28, %29 : vector<16x128xbf16>
    %c0_5 = arith.constant 0 : index
    %c0_6 = arith.constant 0 : index
    %31 = vector.load %arg7[%c0_5, %c0_6] : memref<16x1152xbf16, #tpu.memory_space<vmem>>, vector<16x128xbf16>
    tpu.vector_store %arg7[%c0_5, %c0_6], %30 {strides = array<i32>} : memref<16x1152xbf16, #tpu.memory_space<vmem>>, vector<16x128xbf16>,
    %c0_7 = arith.constant 0 : index
    %c4 = arith.constant 4 : index
    %c0_8 = arith.constant 0 : index
    %32 = vector.load %arg1[%c0_7, %c4, %c0_8] : memref<1x32x128xbf16, #tpu.memory_space<vmem>>, vector<1x16x128xbf16>
    %33 = vector.shape_cast %32 : vector<1x16x128xbf16> to vector<16x128xbf16>
    %c0_9 = arith.constant 0 : index
    %c128 = arith.constant 128 : index
    %34 = vector.load %arg7[%c0_9, %c128] : memref<16x1152xbf16, #tpu.memory_space<vmem>>, vector<16x128xbf16>
    tpu.vector_store %arg7[%c0_9, %c128], %33 {strides = array<i32>} : memref<16x1152xbf16, #tpu.memory_space<vmem>>, vector<16x128xbf16>,
    %c0_10 = arith.constant 0 : index
    %c5 = arith.constant 5 : index
    %c0_11 = arith.constant 0 : index
    %35 = vector.load %arg1[%c0_10, %c5, %c0_11] : memref<1x32x128xbf16, #tpu.memory_space<vmem>>, vector<1x16x128xbf16>
    %36 = vector.shape_cast %35 : vector<1x16x128xbf16> to vector<16x128xbf16>
    %37 = vector.broadcast %26 : vector<16x1xbf16> to vector<16x128xbf16>
    %38 = arith.mulf %36, %37 : vector<16x128xbf16>
    %c0_12 = arith.constant 0 : index
    %c256 = arith.constant 256 : index
    %39 = vector.load %arg7[%c0_12, %c256] : memref<16x1152xbf16, #tpu.memory_space<vmem>>, vector<16x128xbf16>
    tpu.vector_store %arg7[%c0_12, %c256], %38 {strides = array<i32>} : memref<16x1152xbf16, #tpu.memory_space<vmem>>, vector<16x128xbf16>,
    %c0_13 = arith.constant 0 : index
    %c7 = arith.constant 7 : index
    %c0_14 = arith.constant 0 : index
    %40 = vector.load %arg1[%c0_13, %c7, %c0_14] : memref<1x32x128xbf16, #tpu.memory_space<vmem>>, vector<1x16x128xbf16>
    %41 = vector.shape_cast %40 : vector<1x16x128xbf16> to vector<16x128xbf16>
    %42 = vector.broadcast %21 : vector<16x1xbf16> to vector<16x128xbf16>
    %43 = arith.mulf %41, %42 : vector<16x128xbf16>
    %c0_15 = arith.constant 0 : index
    %c384 = arith.constant 384 : index
    %44 = vector.load %arg7[%c0_15, %c384] : memref<16x1152xbf16, #tpu.memory_space<vmem>>, vector<16x128xbf16>
    tpu.vector_store %arg7[%c0_15, %c384], %43 {strides = array<i32>} : memref<16x1152xbf16, #tpu.memory_space<vmem>>, vector<16x128xbf16>,
    %c0_16 = arith.constant 0 : index
    %c8 = arith.constant 8 : index
    %c0_17 = arith.constant 0 : index
    %45 = vector.load %arg1[%c0_16, %c8, %c0_17] : memref<1x32x128xbf16, #tpu.memory_space<vmem>>, vector<1x16x128xbf16>
    %46 = vector.shape_cast %45 : vector<1x16x128xbf16> to vector<16x128xbf16>
    %c0_18 = arith.constant 0 : index
    %c512 = arith.constant 512 : index
    %47 = vector.load %arg7[%c0_18, %c512] : memref<16x1152xbf16, #tpu.memory_space<vmem>>, vector<16x128xbf16>
    tpu.vector_store %arg7[%c0_18, %c512], %46 {strides = array<i32>} : memref<16x1152xbf16, #tpu.memory_space<vmem>>, vector<16x128xbf16>,
    %c0_19 = arith.constant 0 : index
    %c9 = arith.constant 9 : index
    %c0_20 = arith.constant 0 : index
    %48 = vector.load %arg1[%c0_19, %c9, %c0_20] : memref<1x32x128xbf16, #tpu.memory_space<vmem>>, vector<1x16x128xbf16>
    %49 = vector.shape_cast %48 : vector<1x16x128xbf16> to vector<16x128xbf16>
    %50 = vector.broadcast %26 : vector<16x1xbf16> to vector<16x128xbf16>
    %51 = arith.mulf %49, %50 : vector<16x128xbf16>
    %c0_21 = arith.constant 0 : index
    %c640 = arith.constant 640 : index
    %52 = vector.load %arg7[%c0_21, %c640] : memref<16x1152xbf16, #tpu.memory_space<vmem>>, vector<16x128xbf16>
    tpu.vector_store %arg7[%c0_21, %c640], %51 {strides = array<i32>} : memref<16x1152xbf16, #tpu.memory_space<vmem>>, vector<16x128xbf16>,
    %c0_22 = arith.constant 0 : index
    %c11 = arith.constant 11 : index
    %c0_23 = arith.constant 0 : index
    %53 = vector.load %arg1[%c0_22, %c11, %c0_23] : memref<1x32x128xbf16, #tpu.memory_space<vmem>>, vector<1x16x128xbf16>
    %54 = vector.shape_cast %53 : vector<1x16x128xbf16> to vector<16x128xbf16>
    %55 = vector.broadcast %21 : vector<16x1xbf16> to vector<16x128xbf16>
    %56 = arith.mulf %54, %55 : vector<16x128xbf16>
    %c0_24 = arith.constant 0 : index
    %c768 = arith.constant 768 : index
    %57 = vector.load %arg7[%c0_24, %c768] : memref<16x1152xbf16, #tpu.memory_space<vmem>>, vector<16x128xbf16>
    tpu.vector_store %arg7[%c0_24, %c768], %56 {strides = array<i32>} : memref<16x1152xbf16, #tpu.memory_space<vmem>>, vector<16x128xbf16>,
    %c0_25 = arith.constant 0 : index
    %c12 = arith.constant 12 : index
    %c0_26 = arith.constant 0 : index
    %58 = vector.load %arg1[%c0_25, %c12, %c0_26] : memref<1x32x128xbf16, #tpu.memory_space<vmem>>, vector<1x16x128xbf16>
    %59 = vector.shape_cast %58 : vector<1x16x128xbf16> to vector<16x128xbf16>
    %c0_27 = arith.constant 0 : index
    %c896 = arith.constant 896 : index
    %60 = vector.load %arg7[%c0_27, %c896] : memref<16x1152xbf16, #tpu.memory_space<vmem>>, vector<16x128xbf16>
    tpu.vector_store %arg7[%c0_27, %c896], %59 {strides = array<i32>} : memref<16x1152xbf16, #tpu.memory_space<vmem>>, vector<16x128xbf16>,
    %c0_28 = arith.constant 0 : index
    %c13 = arith.constant 13 : index
    %c0_29 = arith.constant 0 : index
    %61 = vector.load %arg1[%c0_28, %c13, %c0_29] : memref<1x32x128xbf16, #tpu.memory_space<vmem>>, vector<1x16x128xbf16>
    %62 = vector.shape_cast %61 : vector<1x16x128xbf16> to vector<16x128xbf16>
    %63 = vector.broadcast %26 : vector<16x1xbf16> to vector<16x128xbf16>
    %64 = arith.mulf %62, %63 : vector<16x128xbf16>
    %c0_30 = arith.constant 0 : index
    %c1024 = arith.constant 1024 : index
    %65 = vector.load %arg7[%c0_30, %c1024] : memref<16x1152xbf16, #tpu.memory_space<vmem>>, vector<16x128xbf16>
    tpu.vector_store %arg7[%c0_30, %c1024], %64 {strides = array<i32>} : memref<16x1152xbf16, #tpu.memory_space<vmem>>, vector<16x128xbf16>,
    %c0_31 = arith.constant 0 : index
    %c0_32 = arith.constant 0 : index
    %66 = vector.load %arg7[%c0_31, %c0_32] : memref<16x1152xbf16, #tpu.memory_space<vmem>>, vector<16x1152xbf16>
    %c0_33 = arith.constant 0 : index
    %c0_34 = arith.constant 0 : index
    %67 = vector.load %arg2[%c0_33, %c0_34] : memref<1152x128xbf16, #tpu.memory_space<vmem>>, vector<1152x128xbf16>
    %cst = arith.constant dense<0.000000e+00> : vector<16x128xf32>
    %68 = tpu.matmul %66, %67, %cst {dimension_numbers = #tpu.dot_dimension_numbers<[1], [0], [0], [1], [0, 0, 1, 1], [], []>} : vector<16x1152xbf16>, vector<1152x128xbf16>, vector<16x128xf32> -> vector<16x128xf32>
    %c0_35 = arith.constant 0 : index
    %c0_36 = arith.constant 0 : index
    %69 = vector.load %arg3[%c0_35, %c0_36] : memref<1x128xf32, #tpu.memory_space<vmem>>, vector<1x128xf32>
    %70 = vector.broadcast %69 : vector<1x128xf32> to vector<16x128xf32>
    %71 = arith.addf %68, %70 : vector<16x128xf32>
    %cst_37 = arith.constant 0.000000e+00 : f32
    %72 = vector.broadcast %cst_37 : f32 to vector<16x128xf32>
    %73 = arith.maximumf %71, %72 : vector<16x128xf32>
    %cst_38 = arith.constant 0.000000e+00 : bf16
    %74 = vector.broadcast %cst_38 : bf16 to vector<8x128xbf16>
    %c0_39 = arith.constant 0 : index
    %c0_40 = arith.constant 0 : index
    %75 = vector.load %arg8[%c0_39, %c0_40] : memref<32x128xbf16, #tpu.memory_space<vmem>>, vector<8x128xbf16>
    tpu.vector_store %arg8[%c0_39, %c0_40], %74 {strides = array<i32>} : memref<32x128xbf16, #tpu.memory_space<vmem>>, vector<8x128xbf16>,
    %76 = arith.truncf %73 : vector<16x128xf32> to vector<16x128xbf16>
    %c8_41 = arith.constant 8 : index
    %c0_42 = arith.constant 0 : index
    %77 = vector.load %arg8[%c8_41, %c0_42] : memref<32x128xbf16, #tpu.memory_space<vmem>>, vector<16x128xbf16>
    tpu.vector_store %arg8[%c8_41, %c0_42], %76 {strides = array<i32>} : memref<32x128xbf16, #tpu.memory_space<vmem>>, vector<16x128xbf16>,
    %cst_43 = arith.constant 0.000000e+00 : bf16
    %78 = vector.broadcast %cst_43 : bf16 to vector<8x128xbf16>
    %c24 = arith.constant 24 : index
    %c0_44 = arith.constant 0 : index
    %79 = vector.load %arg8[%c24, %c0_44] : memref<32x128xbf16, #tpu.memory_space<vmem>>, vector<8x128xbf16>
    tpu.vector_store %arg8[%c24, %c0_44], %78 {strides = array<i32>} : memref<32x128xbf16, #tpu.memory_space<vmem>>, vector<8x128xbf16>,
    %c3_45 = arith.constant 3 : index
    %c0_46 = arith.constant 0 : index
    %80 = vector.load %arg8[%c3_45, %c0_46] : memref<32x128xbf16, #tpu.memory_space<vmem>>, vector<16x128xbf16>
    %81 = vector.broadcast %21 : vector<16x1xbf16> to vector<16x128xbf16>
    %82 = arith.mulf %80, %81 : vector<16x128xbf16>
    %c0_47 = arith.constant 0 : index
    %c0_48 = arith.constant 0 : index
    %83 = vector.load %arg7[%c0_47, %c0_48] : memref<16x1152xbf16, #tpu.memory_space<vmem>>, vector<16x128xbf16>
    tpu.vector_store %arg7[%c0_47, %c0_48], %82 {strides = array<i32>} : memref<16x1152xbf16, #tpu.memory_space<vmem>>, vector<16x128xbf16>,
    %c4_49 = arith.constant 4 : index
    %c0_50 = arith.constant 0 : index
    %84 = vector.load %arg8[%c4_49, %c0_50] : memref<32x128xbf16, #tpu.memory_space<vmem>>, vector<16x128xbf16>
    %c0_51 = arith.constant 0 : index
    %c128_52 = arith.constant 128 : index
    %85 = vector.load %arg7[%c0_51, %c128_52] : memref<16x1152xbf16, #tpu.memory_space<vmem>>, vector<16x128xbf16>
    tpu.vector_store %arg7[%c0_51, %c128_52], %84 {strides = array<i32>} : memref<16x1152xbf16, #tpu.memory_space<vmem>>, vector<16x128xbf16>,
    %c5_53 = arith.constant 5 : index
    %c0_54 = arith.constant 0 : index
    %86 = vector.load %arg8[%c5_53, %c0_54] : memref<32x128xbf16, #tpu.memory_space<vmem>>, vector<16x128xbf16>
    %87 = vector.broadcast %26 : vector<16x1xbf16> to vector<16x128xbf16>
    %88 = arith.mulf %86, %87 : vector<16x128xbf16>
    %c0_55 = arith.constant 0 : index
    %c256_56 = arith.constant 256 : index
    %89 = vector.load %arg7[%c0_55, %c256_56] : memref<16x1152xbf16, #tpu.memory_space<vmem>>, vector<16x128xbf16>
    tpu.vector_store %arg7[%c0_55, %c256_56], %88 {strides = array<i32>} : memref<16x1152xbf16, #tpu.memory_space<vmem>>, vector<16x128xbf16>,
    %c7_57 = arith.constant 7 : index
    %c0_58 = arith.constant 0 : index
    %90 = vector.load %arg8[%c7_57, %c0_58] : memref<32x128xbf16, #tpu.memory_space<vmem>>, vector<16x128xbf16>
    %91 = vector.broadcast %21 : vector<16x1xbf16> to vector<16x128xbf16>
    %92 = arith.mulf %90, %91 : vector<16x128xbf16>
    %c0_59 = arith.constant 0 : index
    %c384_60 = arith.constant 384 : index
    %93 = vector.load %arg7[%c0_59, %c384_60] : memref<16x1152xbf16, #tpu.memory_space<vmem>>, vector<16x128xbf16>
    tpu.vector_store %arg7[%c0_59, %c384_60], %92 {strides = array<i32>} : memref<16x1152xbf16, #tpu.memory_space<vmem>>, vector<16x128xbf16>,
    %c8_61 = arith.constant 8 : index
    %c0_62 = arith.constant 0 : index
    %94 = vector.load %arg8[%c8_61, %c0_62] : memref<32x128xbf16, #tpu.memory_space<vmem>>, vector<16x128xbf16>
    %c0_63 = arith.constant 0 : index
    %c512_64 = arith.constant 512 : index
    %95 = vector.load %arg7[%c0_63, %c512_64] : memref<16x1152xbf16, #tpu.memory_space<vmem>>, vector<16x128xbf16>
    tpu.vector_store %arg7[%c0_63, %c512_64], %94 {strides = array<i32>} : memref<16x1152xbf16, #tpu.memory_space<vmem>>, vector<16x128xbf16>,
    %c9_65 = arith.constant 9 : index
    %c0_66 = arith.constant 0 : index
    %96 = vector.load %arg8[%c9_65, %c0_66] : memref<32x128xbf16, #tpu.memory_space<vmem>>, vector<16x128xbf16>
    %97 = vector.broadcast %26 : vector<16x1xbf16> to vector<16x128xbf16>
    %98 = arith.mulf %96, %97 : vector<16x128xbf16>
    %c0_67 = arith.constant 0 : index
    %c640_68 = arith.constant 640 : index
    %99 = vector.load %arg7[%c0_67, %c640_68] : memref<16x1152xbf16, #tpu.memory_space<vmem>>, vector<16x128xbf16>
    tpu.vector_store %arg7[%c0_67, %c640_68], %98 {strides = array<i32>} : memref<16x1152xbf16, #tpu.memory_space<vmem>>, vector<16x128xbf16>,
    %c11_69 = arith.constant 11 : index
    %c0_70 = arith.constant 0 : index
    %100 = vector.load %arg8[%c11_69, %c0_70] : memref<32x128xbf16, #tpu.memory_space<vmem>>, vector<16x128xbf16>
    %101 = vector.broadcast %21 : vector<16x1xbf16> to vector<16x128xbf16>
    %102 = arith.mulf %100, %101 : vector<16x128xbf16>
    %c0_71 = arith.constant 0 : index
    %c768_72 = arith.constant 768 : index
    %103 = vector.load %arg7[%c0_71, %c768_72] : memref<16x1152xbf16, #tpu.memory_space<vmem>>, vector<16x128xbf16>
    tpu.vector_store %arg7[%c0_71, %c768_72], %102 {strides = array<i32>} : memref<16x1152xbf16, #tpu.memory_space<vmem>>, vector<16x128xbf16>,
    %c12_73 = arith.constant 12 : index
    %c0_74 = arith.constant 0 : index
    %104 = vector.load %arg8[%c12_73, %c0_74] : memref<32x128xbf16, #tpu.memory_space<vmem>>, vector<16x128xbf16>
    %c0_75 = arith.constant 0 : index
    %c896_76 = arith.constant 896 : index
    %105 = vector.load %arg7[%c0_75, %c896_76] : memref<16x1152xbf16, #tpu.memory_space<vmem>>, vector<16x128xbf16>
    tpu.vector_store %arg7[%c0_75, %c896_76], %104 {strides = array<i32>} : memref<16x1152xbf16, #tpu.memory_space<vmem>>, vector<16x128xbf16>,
    %c13_77 = arith.constant 13 : index
    %c0_78 = arith.constant 0 : index
    %106 = vector.load %arg8[%c13_77, %c0_78] : memref<32x128xbf16, #tpu.memory_space<vmem>>, vector<16x128xbf16>
    %107 = vector.broadcast %26 : vector<16x1xbf16> to vector<16x128xbf16>
    %108 = arith.mulf %106, %107 : vector<16x128xbf16>
    %c0_79 = arith.constant 0 : index
    %c1024_80 = arith.constant 1024 : index
    %109 = vector.load %arg7[%c0_79, %c1024_80] : memref<16x1152xbf16, #tpu.memory_space<vmem>>, vector<16x128xbf16>
    tpu.vector_store %arg7[%c0_79, %c1024_80], %108 {strides = array<i32>} : memref<16x1152xbf16, #tpu.memory_space<vmem>>, vector<16x128xbf16>,
    %c0_81 = arith.constant 0 : index
    %c0_82 = arith.constant 0 : index
    %110 = vector.load %arg7[%c0_81, %c0_82] : memref<16x1152xbf16, #tpu.memory_space<vmem>>, vector<16x1152xbf16>
    %c0_83 = arith.constant 0 : index
    %c0_84 = arith.constant 0 : index
    %111 = vector.load %arg4[%c0_83, %c0_84] : memref<1152x128xbf16, #tpu.memory_space<vmem>>, vector<1152x128xbf16>
    %cst_85 = arith.constant dense<0.000000e+00> : vector<16x128xf32>
    %112 = tpu.matmul %110, %111, %cst_85 {dimension_numbers = #tpu.dot_dimension_numbers<[1], [0], [0], [1], [0, 0, 1, 1], [], []>} : vector<16x1152xbf16>, vector<1152x128xbf16>, vector<16x128xf32> -> vector<16x128xf32>
    %c0_86 = arith.constant 0 : index
    %c8_87 = arith.constant 8 : index
    %c0_88 = arith.constant 0 : index
    %113 = vector.load %arg1[%c0_86, %c8_87, %c0_88] : memref<1x32x128xbf16, #tpu.memory_space<vmem>>, vector<1x16x128xbf16>
    %114 = vector.shape_cast %113 : vector<1x16x128xbf16> to vector<16x128xbf16>
    %115 = arith.extf %114 : vector<16x128xbf16> to vector<16x128xf32>
    %c0_89 = arith.constant 0 : index
    %c0_90 = arith.constant 0 : index
    %116 = vector.load %arg5[%c0_89, %c0_90] : memref<1x128xf32, #tpu.memory_space<vmem>>, vector<1x128xf32>
    %117 = vector.broadcast %116 : vector<1x128xf32> to vector<16x128xf32>
    %118 = arith.addf %112, %117 : vector<16x128xf32>
    %119 = arith.addf %118, %115 : vector<16x128xf32>
    %cst_91 = arith.constant 0.000000e+00 : f32
    %120 = vector.broadcast %cst_91 : f32 to vector<16x128xf32>
    %121 = arith.maximumf %119, %120 : vector<16x128xf32>
    %122 = arith.truncf %121 : vector<16x128xf32> to vector<16x128xbf16>
    %c0_92 = arith.constant 0 : index
    %c0_93 = arith.constant 0 : index
    %c0_94 = arith.constant 0 : index
    %123 = vector.load %arg6[%c0_92, %c0_93, %c0_94] : memref<1x16x128xbf16, #tpu.memory_space<vmem>>, vector<1x16x128xbf16>
    %124 = vector.shape_cast %123 : vector<1x16x128xbf16> to vector<16x128xbf16>
    %125 = vector.shape_cast %122 : vector<16x128xbf16> to vector<1x16x128xbf16>
    tpu.vector_store %arg6[%c0_92, %c0_93, %c0_94], %125 {strides = array<i32>} : memref<1x16x128xbf16, #tpu.memory_space<vmem>>, vector<1x16x128xbf16>,
    return
  }
  func.func @transform_0(%arg0: i32) -> (i32, i32, i32) {
    %c0_i32 = arith.constant 0 : i32
    %c0_i32_0 = arith.constant 0 : i32
    %c0_i32_1 = arith.constant 0 : i32
    return %arg0, %c0_i32, %c0_i32_0 : i32, i32, i32
  }
  func.func @transform_1(%arg0: i32) -> (i32, i32) {
    %c0_i32 = arith.constant 0 : i32
    %c0_i32_0 = arith.constant 0 : i32
    %c0_i32_1 = arith.constant 0 : i32
    return %c0_i32, %c0_i32_0 : i32, i32
  }
  func.func @transform_2(%arg0: i32) -> (i32, i32) {
    %c0_i32 = arith.constant 0 : i32
    %c0_i32_0 = arith.constant 0 : i32
    %c0_i32_1 = arith.constant 0 : i32
    return %c0_i32, %c0_i32_0 : i32, i32
  }
  func.func @transform_3(%arg0: i32) -> (i32, i32) {
    %c0_i32 = arith.constant 0 : i32
    %c0_i32_0 = arith.constant 0 : i32
    %c0_i32_1 = arith.constant 0 : i32
    return %c0_i32, %c0_i32_0 : i32, i32
  }
  func.func @transform_4(%arg0: i32) -> (i32, i32) {
    %c0_i32 = arith.constant 0 : i32
    %c0_i32_0 = arith.constant 0 : i32
    %c0_i32_1 = arith.constant 0 : i32
    return %c0_i32, %c0_i32_0 : i32, i32
  }
  func.func @transform_5(%arg0: i32) -> (i32, i32, i32) {
    %c0_i32 = arith.constant 0 : i32
    %c0_i32_0 = arith.constant 0 : i32
    %c0_i32_1 = arith.constant 0 : i32
    return %arg0, %c0_i32, %c0_i32_0 : i32, i32, i32
  }
}

module attributes {stable_mosaic.version = 11 : i64} {
  func.func @_head_kernel(%arg0: i32, %arg1: memref<1x32x128xbf16, #tpu.memory_space<vmem>>, %arg2: memref<1x32x128xbf16, #tpu.memory_space<vmem>>, %arg3: memref<2304x128xbf16, #tpu.memory_space<vmem>>, %arg4: memref<1x128xf32, #tpu.memory_space<vmem>>, %arg5: memref<1x128xf32, #tpu.memory_space<vmem>>, %arg6: memref<1x1xf32, #tpu.memory_space<vmem>>, %arg7: memref<1x16x1xf32, #tpu.memory_space<vmem>>, %arg8: memref<16x2304xbf16, #tpu.memory_space<vmem>>) attributes {dimension_semantics = [#tpu.dimension_semantics<parallel>], iteration_bounds = array<i64: 2>, scalar_prefetch = 0 : i64, scratch_operands = 1 : i64, tpu.core_type = #tpu.core_type<tc>, window_params = [{transform_indices = @transform_0, window_bounds = array<i64: 1, 32, 128>}, {transform_indices = @transform_1, window_bounds = array<i64: 1, 32, 128>}, {pipeline_mode = #tpu.pipeline_mode<synchronous>, transform_indices = @transform_2, window_bounds = array<i64: 2304, 128>}, {pipeline_mode = #tpu.pipeline_mode<synchronous>, transform_indices = @transform_3, window_bounds = array<i64: 1, 128>}, {pipeline_mode = #tpu.pipeline_mode<synchronous>, transform_indices = @transform_4, window_bounds = array<i64: 1, 128>}, {pipeline_mode = #tpu.pipeline_mode<synchronous>, transform_indices = @transform_5, window_bounds = array<i64: 1, 1>}, {transform_indices = @transform_6, window_bounds = array<i64: 1, 16, 1>}]} {
    %0 = tpu.iota {dimensions = array<i32: 0>} : vector<16x1xi32>
    %c4_i32 = arith.constant 4 : i32
    %c0_i32 = arith.constant 0 : i32
    %1 = arith.cmpi eq, %c4_i32, %c0_i32 : i32
    %c1_i32 = arith.constant 1 : i32
    %2 = arith.select %1, %c1_i32, %c4_i32 : i32
    %3 = vector.broadcast %2 : i32 to vector<16x1xi32>
    %4 = arith.remsi %0, %3 : vector<16x1xi32>
    %c0_i32_0 = arith.constant 0 : i32
    %5 = vector.broadcast %c0_i32_0 : i32 to vector<16x1xi32>
    %6 = arith.cmpi ne, %4, %5 : vector<16x1xi32>
    %c0_i32_1 = arith.constant 0 : i32
    %7 = vector.broadcast %c0_i32_1 : i32 to vector<16x1xi32>
    %8 = arith.cmpi slt, %4, %7 : vector<16x1xi32>
    %c0_i32_2 = arith.constant 0 : i32
    %9 = arith.cmpi slt, %2, %c0_i32_2 : i32
    %10 = vector.broadcast %9 : i1 to vector<16x1xi1>
    %11 = vector.broadcast %10 : vector<16x1xi1> to vector<16x1xi1>
    %12 = arith.xori %8, %11 : vector<16x1xi1>
    %13 = arith.andi %12, %6 : vector<16x1xi1>
    %14 = vector.broadcast %2 : i32 to vector<16x1xi32>
    %15 = arith.addi %4, %14 : vector<16x1xi32>
    %16 = arith.select %13, %15, %4 : vector<16x1xi1>, vector<16x1xi32>
    %c0_i32_3 = arith.constant 0 : i32
    %17 = vector.broadcast %c0_i32_3 : i32 to vector<16x1xi32>
    %18 = arith.cmpi ne, %16, %17 : vector<16x1xi32>
    %19 = arith.extui %18 : vector<16x1xi1> to vector<16x1xi32>
    %20 = arith.sitofp %19 : vector<16x1xi32> to vector<16x1xf32>
    %21 = arith.truncf %20 : vector<16x1xf32> to vector<16x1xbf16>
    %c3_i32 = arith.constant 3 : i32
    %22 = vector.broadcast %c3_i32 : i32 to vector<16x1xi32>
    %23 = arith.cmpi ne, %16, %22 : vector<16x1xi32>
    %24 = arith.extui %23 : vector<16x1xi1> to vector<16x1xi32>
    %25 = arith.sitofp %24 : vector<16x1xi32> to vector<16x1xf32>
    %26 = arith.truncf %25 : vector<16x1xf32> to vector<16x1xbf16>
    %c0 = arith.constant 0 : index
    %c3 = arith.constant 3 : index
    %c0_4 = arith.constant 0 : index
    %27 = vector.load %arg1[%c0, %c3, %c0_4] : memref<1x32x128xbf16, #tpu.memory_space<vmem>>, vector<1x16x128xbf16>
    %28 = vector.shape_cast %27 : vector<1x16x128xbf16> to vector<16x128xbf16>
    %29 = vector.broadcast %21 : vector<16x1xbf16> to vector<16x128xbf16>
    %30 = arith.mulf %28, %29 : vector<16x128xbf16>
    %c0_5 = arith.constant 0 : index
    %c0_6 = arith.constant 0 : index
    %31 = vector.load %arg8[%c0_5, %c0_6] : memref<16x2304xbf16, #tpu.memory_space<vmem>>, vector<16x128xbf16>
    tpu.vector_store %arg8[%c0_5, %c0_6], %30 {strides = array<i32>} : memref<16x2304xbf16, #tpu.memory_space<vmem>>, vector<16x128xbf16>,
    %c0_7 = arith.constant 0 : index
    %c4 = arith.constant 4 : index
    %c0_8 = arith.constant 0 : index
    %32 = vector.load %arg1[%c0_7, %c4, %c0_8] : memref<1x32x128xbf16, #tpu.memory_space<vmem>>, vector<1x16x128xbf16>
    %33 = vector.shape_cast %32 : vector<1x16x128xbf16> to vector<16x128xbf16>
    %c0_9 = arith.constant 0 : index
    %c128 = arith.constant 128 : index
    %34 = vector.load %arg8[%c0_9, %c128] : memref<16x2304xbf16, #tpu.memory_space<vmem>>, vector<16x128xbf16>
    tpu.vector_store %arg8[%c0_9, %c128], %33 {strides = array<i32>} : memref<16x2304xbf16, #tpu.memory_space<vmem>>, vector<16x128xbf16>,
    %c0_10 = arith.constant 0 : index
    %c5 = arith.constant 5 : index
    %c0_11 = arith.constant 0 : index
    %35 = vector.load %arg1[%c0_10, %c5, %c0_11] : memref<1x32x128xbf16, #tpu.memory_space<vmem>>, vector<1x16x128xbf16>
    %36 = vector.shape_cast %35 : vector<1x16x128xbf16> to vector<16x128xbf16>
    %37 = vector.broadcast %26 : vector<16x1xbf16> to vector<16x128xbf16>
    %38 = arith.mulf %36, %37 : vector<16x128xbf16>
    %c0_12 = arith.constant 0 : index
    %c256 = arith.constant 256 : index
    %39 = vector.load %arg8[%c0_12, %c256] : memref<16x2304xbf16, #tpu.memory_space<vmem>>, vector<16x128xbf16>
    tpu.vector_store %arg8[%c0_12, %c256], %38 {strides = array<i32>} : memref<16x2304xbf16, #tpu.memory_space<vmem>>, vector<16x128xbf16>,
    %c0_13 = arith.constant 0 : index
    %c7 = arith.constant 7 : index
    %c0_14 = arith.constant 0 : index
    %40 = vector.load %arg1[%c0_13, %c7, %c0_14] : memref<1x32x128xbf16, #tpu.memory_space<vmem>>, vector<1x16x128xbf16>
    %41 = vector.shape_cast %40 : vector<1x16x128xbf16> to vector<16x128xbf16>
    %42 = vector.broadcast %21 : vector<16x1xbf16> to vector<16x128xbf16>
    %43 = arith.mulf %41, %42 : vector<16x128xbf16>
    %c0_15 = arith.constant 0 : index
    %c384 = arith.constant 384 : index
    %44 = vector.load %arg8[%c0_15, %c384] : memref<16x2304xbf16, #tpu.memory_space<vmem>>, vector<16x128xbf16>
    tpu.vector_store %arg8[%c0_15, %c384], %43 {strides = array<i32>} : memref<16x2304xbf16, #tpu.memory_space<vmem>>, vector<16x128xbf16>,
    %c0_16 = arith.constant 0 : index
    %c8 = arith.constant 8 : index
    %c0_17 = arith.constant 0 : index
    %45 = vector.load %arg1[%c0_16, %c8, %c0_17] : memref<1x32x128xbf16, #tpu.memory_space<vmem>>, vector<1x16x128xbf16>
    %46 = vector.shape_cast %45 : vector<1x16x128xbf16> to vector<16x128xbf16>
    %c0_18 = arith.constant 0 : index
    %c512 = arith.constant 512 : index
    %47 = vector.load %arg8[%c0_18, %c512] : memref<16x2304xbf16, #tpu.memory_space<vmem>>, vector<16x128xbf16>
    tpu.vector_store %arg8[%c0_18, %c512], %46 {strides = array<i32>} : memref<16x2304xbf16, #tpu.memory_space<vmem>>, vector<16x128xbf16>,
    %c0_19 = arith.constant 0 : index
    %c9 = arith.constant 9 : index
    %c0_20 = arith.constant 0 : index
    %48 = vector.load %arg1[%c0_19, %c9, %c0_20] : memref<1x32x128xbf16, #tpu.memory_space<vmem>>, vector<1x16x128xbf16>
    %49 = vector.shape_cast %48 : vector<1x16x128xbf16> to vector<16x128xbf16>
    %50 = vector.broadcast %26 : vector<16x1xbf16> to vector<16x128xbf16>
    %51 = arith.mulf %49, %50 : vector<16x128xbf16>
    %c0_21 = arith.constant 0 : index
    %c640 = arith.constant 640 : index
    %52 = vector.load %arg8[%c0_21, %c640] : memref<16x2304xbf16, #tpu.memory_space<vmem>>, vector<16x128xbf16>
    tpu.vector_store %arg8[%c0_21, %c640], %51 {strides = array<i32>} : memref<16x2304xbf16, #tpu.memory_space<vmem>>, vector<16x128xbf16>,
    %c0_22 = arith.constant 0 : index
    %c11 = arith.constant 11 : index
    %c0_23 = arith.constant 0 : index
    %53 = vector.load %arg1[%c0_22, %c11, %c0_23] : memref<1x32x128xbf16, #tpu.memory_space<vmem>>, vector<1x16x128xbf16>
    %54 = vector.shape_cast %53 : vector<1x16x128xbf16> to vector<16x128xbf16>
    %55 = vector.broadcast %21 : vector<16x1xbf16> to vector<16x128xbf16>
    %56 = arith.mulf %54, %55 : vector<16x128xbf16>
    %c0_24 = arith.constant 0 : index
    %c768 = arith.constant 768 : index
    %57 = vector.load %arg8[%c0_24, %c768] : memref<16x2304xbf16, #tpu.memory_space<vmem>>, vector<16x128xbf16>
    tpu.vector_store %arg8[%c0_24, %c768], %56 {strides = array<i32>} : memref<16x2304xbf16, #tpu.memory_space<vmem>>, vector<16x128xbf16>,
    %c0_25 = arith.constant 0 : index
    %c12 = arith.constant 12 : index
    %c0_26 = arith.constant 0 : index
    %58 = vector.load %arg1[%c0_25, %c12, %c0_26] : memref<1x32x128xbf16, #tpu.memory_space<vmem>>, vector<1x16x128xbf16>
    %59 = vector.shape_cast %58 : vector<1x16x128xbf16> to vector<16x128xbf16>
    %c0_27 = arith.constant 0 : index
    %c896 = arith.constant 896 : index
    %60 = vector.load %arg8[%c0_27, %c896] : memref<16x2304xbf16, #tpu.memory_space<vmem>>, vector<16x128xbf16>
    tpu.vector_store %arg8[%c0_27, %c896], %59 {strides = array<i32>} : memref<16x2304xbf16, #tpu.memory_space<vmem>>, vector<16x128xbf16>,
    %c0_28 = arith.constant 0 : index
    %c13 = arith.constant 13 : index
    %c0_29 = arith.constant 0 : index
    %61 = vector.load %arg1[%c0_28, %c13, %c0_29] : memref<1x32x128xbf16, #tpu.memory_space<vmem>>, vector<1x16x128xbf16>
    %62 = vector.shape_cast %61 : vector<1x16x128xbf16> to vector<16x128xbf16>
    %63 = vector.broadcast %26 : vector<16x1xbf16> to vector<16x128xbf16>
    %64 = arith.mulf %62, %63 : vector<16x128xbf16>
    %c0_30 = arith.constant 0 : index
    %c1024 = arith.constant 1024 : index
    %65 = vector.load %arg8[%c0_30, %c1024] : memref<16x2304xbf16, #tpu.memory_space<vmem>>, vector<16x128xbf16>
    tpu.vector_store %arg8[%c0_30, %c1024], %64 {strides = array<i32>} : memref<16x2304xbf16, #tpu.memory_space<vmem>>, vector<16x128xbf16>,
    %c0_31 = arith.constant 0 : index
    %c3_32 = arith.constant 3 : index
    %c0_33 = arith.constant 0 : index
    %66 = vector.load %arg2[%c0_31, %c3_32, %c0_33] : memref<1x32x128xbf16, #tpu.memory_space<vmem>>, vector<1x16x128xbf16>
    %67 = vector.shape_cast %66 : vector<1x16x128xbf16> to vector<16x128xbf16>
    %68 = vector.broadcast %21 : vector<16x1xbf16> to vector<16x128xbf16>
    %69 = arith.mulf %67, %68 : vector<16x128xbf16>
    %c0_34 = arith.constant 0 : index
    %c1152 = arith.constant 1152 : index
    %70 = vector.load %arg8[%c0_34, %c1152] : memref<16x2304xbf16, #tpu.memory_space<vmem>>, vector<16x128xbf16>
    tpu.vector_store %arg8[%c0_34, %c1152], %69 {strides = array<i32>} : memref<16x2304xbf16, #tpu.memory_space<vmem>>, vector<16x128xbf16>,
    %c0_35 = arith.constant 0 : index
    %c4_36 = arith.constant 4 : index
    %c0_37 = arith.constant 0 : index
    %71 = vector.load %arg2[%c0_35, %c4_36, %c0_37] : memref<1x32x128xbf16, #tpu.memory_space<vmem>>, vector<1x16x128xbf16>
    %72 = vector.shape_cast %71 : vector<1x16x128xbf16> to vector<16x128xbf16>
    %c0_38 = arith.constant 0 : index
    %c1280 = arith.constant 1280 : index
    %73 = vector.load %arg8[%c0_38, %c1280] : memref<16x2304xbf16, #tpu.memory_space<vmem>>, vector<16x128xbf16>
    tpu.vector_store %arg8[%c0_38, %c1280], %72 {strides = array<i32>} : memref<16x2304xbf16, #tpu.memory_space<vmem>>, vector<16x128xbf16>,
    %c0_39 = arith.constant 0 : index
    %c5_40 = arith.constant 5 : index
    %c0_41 = arith.constant 0 : index
    %74 = vector.load %arg2[%c0_39, %c5_40, %c0_41] : memref<1x32x128xbf16, #tpu.memory_space<vmem>>, vector<1x16x128xbf16>
    %75 = vector.shape_cast %74 : vector<1x16x128xbf16> to vector<16x128xbf16>
    %76 = vector.broadcast %26 : vector<16x1xbf16> to vector<16x128xbf16>
    %77 = arith.mulf %75, %76 : vector<16x128xbf16>
    %c0_42 = arith.constant 0 : index
    %c1408 = arith.constant 1408 : index
    %78 = vector.load %arg8[%c0_42, %c1408] : memref<16x2304xbf16, #tpu.memory_space<vmem>>, vector<16x128xbf16>
    tpu.vector_store %arg8[%c0_42, %c1408], %77 {strides = array<i32>} : memref<16x2304xbf16, #tpu.memory_space<vmem>>, vector<16x128xbf16>,
    %c0_43 = arith.constant 0 : index
    %c7_44 = arith.constant 7 : index
    %c0_45 = arith.constant 0 : index
    %79 = vector.load %arg2[%c0_43, %c7_44, %c0_45] : memref<1x32x128xbf16, #tpu.memory_space<vmem>>, vector<1x16x128xbf16>
    %80 = vector.shape_cast %79 : vector<1x16x128xbf16> to vector<16x128xbf16>
    %81 = vector.broadcast %21 : vector<16x1xbf16> to vector<16x128xbf16>
    %82 = arith.mulf %80, %81 : vector<16x128xbf16>
    %c0_46 = arith.constant 0 : index
    %c1536 = arith.constant 1536 : index
    %83 = vector.load %arg8[%c0_46, %c1536] : memref<16x2304xbf16, #tpu.memory_space<vmem>>, vector<16x128xbf16>
    tpu.vector_store %arg8[%c0_46, %c1536], %82 {strides = array<i32>} : memref<16x2304xbf16, #tpu.memory_space<vmem>>, vector<16x128xbf16>,
    %c0_47 = arith.constant 0 : index
    %c8_48 = arith.constant 8 : index
    %c0_49 = arith.constant 0 : index
    %84 = vector.load %arg2[%c0_47, %c8_48, %c0_49] : memref<1x32x128xbf16, #tpu.memory_space<vmem>>, vector<1x16x128xbf16>
    %85 = vector.shape_cast %84 : vector<1x16x128xbf16> to vector<16x128xbf16>
    %c0_50 = arith.constant 0 : index
    %c1664 = arith.constant 1664 : index
    %86 = vector.load %arg8[%c0_50, %c1664] : memref<16x2304xbf16, #tpu.memory_space<vmem>>, vector<16x128xbf16>
    tpu.vector_store %arg8[%c0_50, %c1664], %85 {strides = array<i32>} : memref<16x2304xbf16, #tpu.memory_space<vmem>>, vector<16x128xbf16>,
    %c0_51 = arith.constant 0 : index
    %c9_52 = arith.constant 9 : index
    %c0_53 = arith.constant 0 : index
    %87 = vector.load %arg2[%c0_51, %c9_52, %c0_53] : memref<1x32x128xbf16, #tpu.memory_space<vmem>>, vector<1x16x128xbf16>
    %88 = vector.shape_cast %87 : vector<1x16x128xbf16> to vector<16x128xbf16>
    %89 = vector.broadcast %26 : vector<16x1xbf16> to vector<16x128xbf16>
    %90 = arith.mulf %88, %89 : vector<16x128xbf16>
    %c0_54 = arith.constant 0 : index
    %c1792 = arith.constant 1792 : index
    %91 = vector.load %arg8[%c0_54, %c1792] : memref<16x2304xbf16, #tpu.memory_space<vmem>>, vector<16x128xbf16>
    tpu.vector_store %arg8[%c0_54, %c1792], %90 {strides = array<i32>} : memref<16x2304xbf16, #tpu.memory_space<vmem>>, vector<16x128xbf16>,
    %c0_55 = arith.constant 0 : index
    %c11_56 = arith.constant 11 : index
    %c0_57 = arith.constant 0 : index
    %92 = vector.load %arg2[%c0_55, %c11_56, %c0_57] : memref<1x32x128xbf16, #tpu.memory_space<vmem>>, vector<1x16x128xbf16>
    %93 = vector.shape_cast %92 : vector<1x16x128xbf16> to vector<16x128xbf16>
    %94 = vector.broadcast %21 : vector<16x1xbf16> to vector<16x128xbf16>
    %95 = arith.mulf %93, %94 : vector<16x128xbf16>
    %c0_58 = arith.constant 0 : index
    %c1920 = arith.constant 1920 : index
    %96 = vector.load %arg8[%c0_58, %c1920] : memref<16x2304xbf16, #tpu.memory_space<vmem>>, vector<16x128xbf16>
    tpu.vector_store %arg8[%c0_58, %c1920], %95 {strides = array<i32>} : memref<16x2304xbf16, #tpu.memory_space<vmem>>, vector<16x128xbf16>,
    %c0_59 = arith.constant 0 : index
    %c12_60 = arith.constant 12 : index
    %c0_61 = arith.constant 0 : index
    %97 = vector.load %arg2[%c0_59, %c12_60, %c0_61] : memref<1x32x128xbf16, #tpu.memory_space<vmem>>, vector<1x16x128xbf16>
    %98 = vector.shape_cast %97 : vector<1x16x128xbf16> to vector<16x128xbf16>
    %c0_62 = arith.constant 0 : index
    %c2048 = arith.constant 2048 : index
    %99 = vector.load %arg8[%c0_62, %c2048] : memref<16x2304xbf16, #tpu.memory_space<vmem>>, vector<16x128xbf16>
    tpu.vector_store %arg8[%c0_62, %c2048], %98 {strides = array<i32>} : memref<16x2304xbf16, #tpu.memory_space<vmem>>, vector<16x128xbf16>,
    %c0_63 = arith.constant 0 : index
    %c13_64 = arith.constant 13 : index
    %c0_65 = arith.constant 0 : index
    %100 = vector.load %arg2[%c0_63, %c13_64, %c0_65] : memref<1x32x128xbf16, #tpu.memory_space<vmem>>, vector<1x16x128xbf16>
    %101 = vector.shape_cast %100 : vector<1x16x128xbf16> to vector<16x128xbf16>
    %102 = vector.broadcast %26 : vector<16x1xbf16> to vector<16x128xbf16>
    %103 = arith.mulf %101, %102 : vector<16x128xbf16>
    %c0_66 = arith.constant 0 : index
    %c2176 = arith.constant 2176 : index
    %104 = vector.load %arg8[%c0_66, %c2176] : memref<16x2304xbf16, #tpu.memory_space<vmem>>, vector<16x128xbf16>
    tpu.vector_store %arg8[%c0_66, %c2176], %103 {strides = array<i32>} : memref<16x2304xbf16, #tpu.memory_space<vmem>>, vector<16x128xbf16>,
    %c0_67 = arith.constant 0 : index
    %c0_68 = arith.constant 0 : index
    %105 = vector.load %arg8[%c0_67, %c0_68] : memref<16x2304xbf16, #tpu.memory_space<vmem>>, vector<16x2304xbf16>
    %c0_69 = arith.constant 0 : index
    %c0_70 = arith.constant 0 : index
    %106 = vector.load %arg3[%c0_69, %c0_70] : memref<2304x128xbf16, #tpu.memory_space<vmem>>, vector<2304x128xbf16>
    %cst = arith.constant dense<0.000000e+00> : vector<16x128xf32>
    %107 = tpu.matmul %105, %106, %cst {dimension_numbers = #tpu.dot_dimension_numbers<[1], [0], [0], [1], [0, 0, 1, 1], [], []>} : vector<16x2304xbf16>, vector<2304x128xbf16>, vector<16x128xf32> -> vector<16x128xf32>
    %c0_71 = arith.constant 0 : index
    %c0_72 = arith.constant 0 : index
    %108 = vector.load %arg4[%c0_71, %c0_72] : memref<1x128xf32, #tpu.memory_space<vmem>>, vector<1x128xf32>
    %109 = vector.broadcast %108 : vector<1x128xf32> to vector<16x128xf32>
    %110 = arith.addf %107, %109 : vector<16x128xf32>
    %cst_73 = arith.constant 0.000000e+00 : f32
    %111 = vector.broadcast %cst_73 : f32 to vector<16x128xf32>
    %112 = arith.maximumf %110, %111 : vector<16x128xf32>
    %c0_74 = arith.constant 0 : index
    %c0_75 = arith.constant 0 : index
    %113 = vector.load %arg5[%c0_74, %c0_75] : memref<1x128xf32, #tpu.memory_space<vmem>>, vector<1x128xf32>
    %114 = vector.broadcast %113 : vector<1x128xf32> to vector<16x128xf32>
    %115 = arith.mulf %112, %114 : vector<16x128xf32>
    %cst_76 = arith.constant dense<0.000000e+00> : vector<16xf32>
    %116 = vector.multi_reduction <add>, %115, %cst_76 [1] : vector<16x128xf32> to vector<16xf32>
    %117 = vector.shape_cast %116 : vector<16xf32> to vector<16x1xf32>
    %c0_77 = arith.constant 0 : index
    %c0_78 = arith.constant 0 : index
    %118 = vector.load %arg6[%c0_77, %c0_78] : memref<1x1xf32, #tpu.memory_space<vmem>>, vector<1x1xf32>
    %119 = vector.broadcast %118 : vector<1x1xf32> to vector<16x1xf32>
    %120 = arith.addf %117, %119 : vector<16x1xf32>
    %c0_79 = arith.constant 0 : index
    %c0_80 = arith.constant 0 : index
    %c0_81 = arith.constant 0 : index
    %121 = vector.load %arg7[%c0_79, %c0_80, %c0_81] : memref<1x16x1xf32, #tpu.memory_space<vmem>>, vector<1x16x1xf32>
    %122 = vector.shape_cast %121 : vector<1x16x1xf32> to vector<16x1xf32>
    %123 = vector.shape_cast %120 : vector<16x1xf32> to vector<1x16x1xf32>
    tpu.vector_store %arg7[%c0_79, %c0_80, %c0_81], %123 {strides = array<i32>} : memref<1x16x1xf32, #tpu.memory_space<vmem>>, vector<1x16x1xf32>,
    return
  }
  func.func @transform_0(%arg0: i32) -> (i32, i32, i32) {
    %c0_i32 = arith.constant 0 : i32
    %c0_i32_0 = arith.constant 0 : i32
    %c0_i32_1 = arith.constant 0 : i32
    return %arg0, %c0_i32, %c0_i32_0 : i32, i32, i32
  }
  func.func @transform_1(%arg0: i32) -> (i32, i32, i32) {
    %c0_i32 = arith.constant 0 : i32
    %c0_i32_0 = arith.constant 0 : i32
    %c0_i32_1 = arith.constant 0 : i32
    return %arg0, %c0_i32, %c0_i32_0 : i32, i32, i32
  }
  func.func @transform_2(%arg0: i32) -> (i32, i32) {
    %c0_i32 = arith.constant 0 : i32
    %c0_i32_0 = arith.constant 0 : i32
    %c0_i32_1 = arith.constant 0 : i32
    return %c0_i32, %c0_i32_0 : i32, i32
  }
  func.func @transform_3(%arg0: i32) -> (i32, i32) {
    %c0_i32 = arith.constant 0 : i32
    %c0_i32_0 = arith.constant 0 : i32
    %c0_i32_1 = arith.constant 0 : i32
    return %c0_i32, %c0_i32_0 : i32, i32
  }
  func.func @transform_4(%arg0: i32) -> (i32, i32) {
    %c0_i32 = arith.constant 0 : i32
    %c0_i32_0 = arith.constant 0 : i32
    %c0_i32_1 = arith.constant 0 : i32
    return %c0_i32, %c0_i32_0 : i32, i32
  }
  func.func @transform_5(%arg0: i32) -> (i32, i32) {
    %c0_i32 = arith.constant 0 : i32
    %c0_i32_0 = arith.constant 0 : i32
    %c0_i32_1 = arith.constant 0 : i32
    return %c0_i32, %c0_i32_0 : i32, i32
  }
  func.func @transform_6(%arg0: i32) -> (i32, i32, i32) {
    %c0_i32 = arith.constant 0 : i32
    %c0_i32_0 = arith.constant 0 : i32
    %c0_i32_1 = arith.constant 0 : i32
    return %arg0, %c0_i32, %c0_i32_0 : i32, i32, i32
  }
}

</mosaic_0001>

<llo_original>
// kernel: radio_mamba_v2_forward.8
$region0: #{radio_mamba_v2_forward.8}
  #allocation0 [shape = 'u32[]', space=smem, size = 0x4, offset = 0x4, fixed_abs, tag = 'smem constant byte address 0x4 - core index']
  #allocation1 [shape = 'u32[144,128]{1,0:T(1,128)}', space=vmem, size = 0x12000, scoped, tag = 'internal scratch']
  %s0 = inlined_call_operand.vmem [shape: bf16[64,256], index: 0, kind: input, shape index: {}]
  %s1 = inlined_call_operand.vmem [shape: bf16[256,128], index: 1, kind: input, shape index: {}]
  %s2 = inlined_call_operand.vmem [shape: f32[1,128], index: 2, kind: input, shape index: {}]
  %s3 = inlined_call_operand.vmem [shape: bf16[64,128], index: 3, kind: output, shape index: {}]
  %s4 = sld [smem:[#allocation0]]
  $region45: #{radio_mamba_v2_forward.8} parent=0
    _
  %s6 = ssub.s32 1, %s4
  %s7 = scalar_select 0, %s6, %s4
  loop: start=0, step=1, limit=4
  $region2: #{radio_mamba_v2_forward.8} parent=0 // loop_pre_header
    _
  $region3: #{radio_mamba_v2_forward.8} parent=0 // loop_header
    %s9 = sphi 0, %s13
    %p10 = scmp.ge.s32.totalorder %s9, 4
    %s19 = sphi 0, %s21
    %s22 = sphi 0, %s19
    %s23 = sphi 0, %s22
    %s39 = sphi 0, %s23
    %s43 = sphi 0, %s43
    %s45 = sphi 0, %s43
    %s46 = sphi 0, %s45
    %s60 = sphi 0, %s46
    %s64 = sphi 0, %s64
    %s66 = sphi 0, %s64
    %s67 = sphi 0, %s66
    %s81 = sphi 0, %s67
    %s87 = sphi 0, %s89
    %s90 = sphi 0, %s87
    %s91 = sphi 0, %s90
    %s107 = sphi 0, %s91
  $region4: #{radio_mamba_v2_forward.8} parent=0 // loop_header_branch
    %12 = sbr.rel (%p10) target = $region8
  $region5: #{radio_mamba_v2_forward.8} parent=0 // loop_body
    %s14 = ssub.s32 %s9, 1
    %s15 = ssub.s32 %s9, 2
    %s16 = sadd.s32 %s9, 1
    %s17 = ssub.s32 %s9, %s16
    %p18 = scmp.eq.s32.totalorder %s17, 0
    %s20 = sadd.s32 %s19, 1
    %s21 = scalar_select %p18, %s19, %s20
    %p24 = pneg %p18
    %p25 = scmp.eq.s32.totalorder %s9, 1
    %p26 = por %p24, %p25
    %p27 = scmp.ne.s32.totalorder %s19, %s22
    %p28 = scmp.eq.s32.totalorder %s9, 0
    %p29 = por %p27, %p28
    %p30 = scmp.ne.s32.totalorder %s19, %s22
    %p31 = scmp.eq.s32.totalorder %s14, 1
    %p32 = por %p30, %p31
    %p33 = scmp.ne.s32.totalorder %s22, %s23
    %p34 = scmp.eq.s32.totalorder %s14, 0
    %p35 = por %p33, %p34
    %p36 = scmp.ne.s32.totalorder %s22, %s23
    %p37 = scmp.eq.s32.totalorder %s15, 1
    %p38 = por %p36, %p37
    %p40 = scmp.ne.s32.totalorder %s23, %s39
    %p41 = scmp.eq.s32.totalorder %s15, 0
    %p42 = por %p40, %p41
    %s44 = sadd.s32 %s43, 1
    %p47 = scmp.eq.s32.totalorder %s9, 1
    %p48 = scmp.ne.s32.totalorder %s43, %s45
    %p49 = scmp.eq.s32.totalorder %s9, 0
    %p50 = por %p48, %p49
    %p51 = scmp.ne.s32.totalorder %s43, %s45
    %p52 = scmp.eq.s32.totalorder %s14, 1
    %p53 = por %p51, %p52
    %p54 = scmp.ne.s32.totalorder %s45, %s46
    %p55 = scmp.eq.s32.totalorder %s14, 0
    %p56 = por %p54, %p55
    %p57 = scmp.ne.s32.totalorder %s45, %s46
    %p58 = scmp.eq.s32.totalorder %s15, 1
    %p59 = por %p57, %p58
    %p61 = scmp.ne.s32.totalorder %s46, %s60
    %p62 = scmp.eq.s32.totalorder %s15, 0
    %p63 = por %p61, %p62
    %s65 = sadd.s32 %s64, 1
    %p68 = scmp.eq.s32.totalorder %s9, 1
    %p69 = scmp.ne.s32.totalorder %s64, %s66
    %p70 = scmp.eq.s32.totalorder %s9, 0
    %p71 = por %p69, %p70
    %p72 = scmp.ne.s32.totalorder %s64, %s66
    %p73 = scmp.eq.s32.totalorder %s14, 1
    %p74 = por %p72, %p73
    %p75 = scmp.ne.s32.totalorder %s66, %s67
    %p76 = scmp.eq.s32.totalorder %s14, 0
    %p77 = por %p75, %p76
    %p78 = scmp.ne.s32.totalorder %s66, %s67
    %p79 = scmp.eq.s32.totalorder %s15, 1
    %p80 = por %p78, %p79
    %p82 = scmp.ne.s32.totalorder %s67, %s81
    %p83 = scmp.eq.s32.totalorder %s15, 0
    %p84 = por %p82, %p83
    %s85 = ssub.s32 %s9, %s16
    %p86 = scmp.eq.s32.totalorder %s85, 0
    %s88 = sadd.s32 %s87, 1
    %s89 = scalar_select %p86, %s87, %s88
    %p92 = pneg %p86
    %p93 = scmp.eq.s32.totalorder %s9, 1
    %p94 = por %p92, %p93
    %p95 = scmp.ne.s32.totalorder %s87, %s90
    %p96 = scmp.eq.s32.totalorder %s9, 0
    %p97 = por %p95, %p96
    %p98 = scmp.ne.s32.totalorder %s87, %s90
    %p99 = scmp.eq.s32.totalorder %s14, 1
    %p100 = por %p98, %p99
    %p101 = scmp.ne.s32.totalorder %s90, %s91
    %p102 = scmp.eq.s32.totalorder %s14, 0
    %p103 = por %p101, %p102
    %p104 = scmp.ne.s32.totalorder %s90, %s91
    %p105 = scmp.eq.s32.totalorder %s15, 1
    %p106 = por %p104, %p105
    %p108 = scmp.ne.s32.totalorder %s91, %s107
    %p109 = scmp.eq.s32.totalorder %s15, 0
    %p110 = por %p108, %p109
    %p111 = scmp.le.s32.totalorder 1, %s9
    %p112 = scmp.lt.s32.totalorder %s9, 3
    %p113 = pnand %p111, %p112
    %p114 = pneg %p113
    // Predicated region
    $region9: #{radio_mamba_v2_forward.8} parent=5 // pred_check
      _
    $region10: #{radio_mamba_v2_forward.8} parent=5 // pred_check_branch
      %116 = sbr.rel (%p113) target = $region12
    $region11: #{radio_mamba_v2_forward.8} parent=5 // pred_region
      %s117 = ssub.s32 %s9, 1
      // Predicated region
      $region13: #{radio_mamba_v2_forward.8} parent=11 // pred_check
        %p118 = pneg %p56
      $region14: #{radio_mamba_v2_forward.8} parent=11 // pred_check_branch
        %120 = sbr.rel (%p118) target = $region16
      $region15: #{radio_mamba_v2_forward.8} parent=11 // pred_region
        _
      $region16: #{radio_mamba_v2_forward.8} parent=11 // pred_fallthru
        _
      // Predicated region
      $region17: #{radio_mamba_v2_forward.8} parent=11 // pred_check
        %p121 = pneg %p77
      $region18: #{radio_mamba_v2_forward.8} parent=11 // pred_check_branch
        %123 = sbr.rel (%p121) target = $region20
      $region19: #{radio_mamba_v2_forward.8} parent=11 // pred_region
        _
      $region20: #{radio_mamba_v2_forward.8} parent=11 // pred_fallthru
        _
    $region12: #{radio_mamba_v2_forward.8} parent=5 // pred_fallthru
      _
    %p124 = scmp.lt.s32.totalorder %s9, 2
    // Predicated region
    $region21: #{radio_mamba_v2_forward.8} parent=5 // pred_check
      %p125 = pneg %p124
    $region22: #{radio_mamba_v2_forward.8} parent=5 // pred_check_branch
      %127 = sbr.rel (%p125) target = $region24
    $region23: #{radio_mamba_v2_forward.8} parent=5 // pred_region
      // Predicated region
      $region25: #{radio_mamba_v2_forward.8} parent=23 // pred_check
        %p128 = pneg %p29
      $region26: #{radio_mamba_v2_forward.8} parent=23 // pred_check_branch
        %130 = sbr.rel (%p128) target = $region28
      $region27: #{radio_mamba_v2_forward.8} parent=23 // pred_region
        %s131 = smul.u32 4, %s9
        %p132 = scmp.lt.s32.totalorder %s131, 7
        %s133 = scalar_select %p132, %s131, 7
        %s134 = smul.addr %s133, 2
        %s135 = smul.addr %s134, 4
        %s136 = scalar_lea.vmem %s0, %s135
        %s137 = smul.u32 4, %s9
      $region28: #{radio_mamba_v2_forward.8} parent=23 // pred_fallthru
        _
    $region24: #{radio_mamba_v2_forward.8} parent=5 // pred_fallthru
      _
    %p138 = scmp.le.s32.totalorder 1, %s9
    %p139 = scmp.lt.s32.totalorder %s9, 3
    %p140 = pnand %p138, %p139
    %p141 = pneg %p140
    // Predicated region
    $region29: #{radio_mamba_v2_forward.8} parent=5 // pred_check
      _
    $region30: #{radio_mamba_v2_forward.8} parent=5 // pred_check_branch
      %143 = sbr.rel (%p140) target = $region32
    $region31: #{radio_mamba_v2_forward.8} parent=5 // pred_region
      %s144 = ssub.s32 %s9, 1
      %s145 = smul.u32 4, %s14
      %p146 = scmp.lt.s32.totalorder %s145, 7
      %s147 = scalar_select %p146, %s145, 7
      %s148 = smul.addr %s147, 2
      %s149 = smul.addr %s148, 4
      %s150 = scalar_lea.vmem %s0, %s149
      %p151 = pneg %p35
      %p152 = pneg %p32
      %p153 = pneg %p56
      %p154 = pneg %p53
      %p155 = pneg %p77
      %p156 = pneg %p74
      %p157 = pneg %p103
      %p158 = pneg %p100
      %s159 = smul.u32 4, %s14
      %p160 = scmp.lt.s32.totalorder %s159, 7
      %s161 = scalar_select %p160, %s159, 7
      %s162 = smul.addr %s161, 4
      %s163 = scalar_lea.vmem %s3, %s162
      %s164 = smul.u32 4, %s14
      %p165 = scmp.lt.s32.totalorder %s164, 7
      %s166 = scalar_select %p165, %s164, 7
      %s167 = smul.addr %s166, 2
      %s168 = smul.addr %s167, 4
      %s169 = scalar_lea.vmem %s0, %s168
      %s170 = smul.u32 4, %s14
      %s171 = smul.u32 4, %s14
      %p172 = scmp.lt.s32.totalorder %s171, 7
      %s173 = scalar_select %p172, %s171, 7
      %s174 = smul.addr %s173, 4
      %s175 = scalar_lea.vmem %s3, %s174
      %s176 = smul.u32 4, %s14
      %v178 = vld [vmem:[%s169] sm:$0xff]
      %v179 = vld [vmem:[%s169 + $0x8] sm:$0xff]
      %v180 = vld [vmem:[%s169 + $0x10] sm:$0xff]
      %v181 = vld [vmem:[%s169 + $0x18] sm:$0xff]
      %v182 = vld [vmem:[%s1] sm:$0xf]
      %v183 = vld [vmem:[%s1 + $0x4] sm:$0xf]
      %v184 = vld [vmem:[%s1 + $0x8] sm:$0xf]
      %v185 = vld [vmem:[%s1 + $0xc] sm:$0xf]
      %v186 = vld [vmem:[%s1 + $0x10] sm:$0xf]
      %v187 = vld [vmem:[%s1 + $0x14] sm:$0xf]
      %v188 = vld [vmem:[%s1 + $0x18] sm:$0xf]
      %v189 = vld [vmem:[%s1 + $0x1c] sm:$0xf]
      %v190 = vld [vmem:[%s1 + $0x20] sm:$0xf]
      %v191 = vld [vmem:[%s1 + $0x24] sm:$0xf]
      %v192 = vld [vmem:[%s1 + $0x28] sm:$0xf]
      %v193 = vld [vmem:[%s1 + $0x2c] sm:$0xf]
      %v194 = vld [vmem:[%s1 + $0x30] sm:$0xf]
      %v195 = vld [vmem:[%s1 + $0x34] sm:$0xf]
      %v196 = vld [vmem:[%s1 + $0x38] sm:$0xf]
      %v197 = vld [vmem:[%s1 + $0x3c] sm:$0xf]
      %v198 = vld [vmem:[%s1 + $0x40] sm:$0xf]
      %v199 = vld [vmem:[%s1 + $0x44] sm:$0xf]
      %v200 = vld [vmem:[%s1 + $0x48] sm:$0xf]
      %v201 = vld [vmem:[%s1 + $0x4c] sm:$0xf]
      %v202 = vld [vmem:[%s1 + $0x50] sm:$0xf]
      %v203 = vld [vmem:[%s1 + $0x54] sm:$0xf]
      %v204 = vld [vmem:[%s1 + $0x58] sm:$0xf]
      %v205 = vld [vmem:[%s1 + $0x5c] sm:$0xf]
      %v206 = vld [vmem:[%s1 + $0x60] sm:$0xf]
      %v207 = vld [vmem:[%s1 + $0x64] sm:$0xf]
      %v208 = vld [vmem:[%s1 + $0x68] sm:$0xf]
      %v209 = vld [vmem:[%s1 + $0x6c] sm:$0xf]
      %v210 = vld [vmem:[%s1 + $0x70] sm:$0xf]
      %v211 = vld [vmem:[%s1 + $0x74] sm:$0xf]
      %v212 = vld [vmem:[%s1 + $0x78] sm:$0xf]
      %v213 = vld [vmem:[%s1 + $0x7c] sm:$0xf]
      %v214 = vld [vmem:[%s2] sm:$0x1]
      %v216 = vlaneseq
      %v217 = vshrl.u32 %v216, 7
      %v218 = vsub.s32 0, %v217
      %v219 = vrot.slane %v214, %v218
      %v225 = vunpack.c.l.b16 %v178
      %v226 = vunpack.c.h.b16 %v178
      %v227 = vunpack.c.l.b16 %v179
      %v228 = vunpack.c.h.b16 %v179
      %v229 = vunpack.c.l.b16 %v180
      %v230 = vunpack.c.h.b16 %v180
      %v231 = vunpack.c.l.b16 %v181
      %v232 = vunpack.c.h.b16 %v181
      %v233 = vpack.c.b16 %v227, %v225
      %v234 = vpack.c.b16 %v228, %v226
      %v235 = vpack.c.b16 %v231, %v229
      %v236 = vpack.c.b16 %v232, %v230
      %v273 = vunpack.c.l.b16 %v182
      %v274 = vunpack.c.l.b16 %v183
      %v275 = vunpack.c.l.b16 %v184
      %v276 = vunpack.c.l.b16 %v185
      %v277 = vunpack.c.l.b16 %v186
      %v278 = vunpack.c.l.b16 %v187
      %v279 = vunpack.c.l.b16 %v188
      %v280 = vunpack.c.l.b16 %v189
      %v281 = vunpack.c.l.b16 %v190
      %v282 = vunpack.c.l.b16 %v191
      %v283 = vunpack.c.l.b16 %v192
      %v284 = vunpack.c.l.b16 %v193
      %v285 = vunpack.c.l.b16 %v194
      %v286 = vunpack.c.l.b16 %v195
      %v287 = vunpack.c.l.b16 %v196
      %v288 = vunpack.c.l.b16 %v197
      %v289 = vunpack.c.l.b16 %v198
      %v290 = vunpack.c.l.b16 %v199
      %v291 = vunpack.c.l.b16 %v200
      %v292 = vunpack.c.l.b16 %v201
      %v293 = vunpack.c.l.b16 %v202
      %v294 = vunpack.c.l.b16 %v203
      %v295 = vunpack.c.l.b16 %v204
      %v296 = vunpack.c.l.b16 %v205
      %v297 = vunpack.c.l.b16 %v206
      %v298 = vunpack.c.l.b16 %v207
      %v299 = vunpack.c.l.b16 %v208
      %v300 = vunpack.c.l.b16 %v209
      %v301 = vunpack.c.l.b16 %v210
      %v302 = vunpack.c.l.b16 %v211
      %v303 = vunpack.c.l.b16 %v212
      %v304 = vunpack.c.l.b16 %v213
      %v305 = vpack.c.b16 %v274, %v273
      %v306 = vpack.c.b16 %v276, %v275
      %v307 = vpack.c.b16 %v278, %v277
      %v308 = vpack.c.b16 %v280, %v279
      %v309 = vpack.c.b16 %v282, %v281
      %v310 = vpack.c.b16 %v284, %v283
      %v311 = vpack.c.b16 %v286, %v285
      %v312 = vpack.c.b16 %v288, %v287
      %v313 = vpack.c.b16 %v290, %v289
      %v314 = vpack.c.b16 %v292, %v291
      %v315 = vpack.c.b16 %v294, %v293
      %v316 = vpack.c.b16 %v296, %v295
      %v317 = vpack.c.b16 %v298, %v297
      %v318 = vpack.c.b16 %v300, %v299
      %v319 = vpack.c.b16 %v302, %v301
      %v320 = vpack.c.b16 %v304, %v303
      %337 = vmatprep.subr.bf16.mxu0 0
      %338 = vmatpush1.bf16.msra.mxu0 %v305
      %339 = vmatprep.subr.bf16.mxu0 0
      %340 = vmatpush1.bf16.msra.mxu0 %v306
      %341 = vmatprep.subr.bf16.mxu0 0
      %342 = vmatpush1.bf16.msra.mxu0 %v307
      %343 = vmatprep.subr.bf16.mxu0 0
      %344 = vmatpush1.bf16.msra.mxu0 %v308
      %345 = vmatprep.subr.bf16.mxu0 0
      %346 = vmatpush1.bf16.msra.mxu0 %v309
      %347 = vmatprep.subr.bf16.mxu0 0
      %348 = vmatpush1.bf16.msra.mxu0 %v310
      %349 = vmatprep.subr.bf16.mxu0 0
      %350 = vmatpush1.bf16.msra.mxu0 %v311
      %351 = vmatprep.subr.bf16.mxu0 0
      %352 = vmatpush1.bf16.msra.mxu0 %v312
      %353 = vmatprep.subr.bf16.mxu0 0
      %354 = vmatpush1.bf16.msra.mxu0 %v313
      %355 = vmatprep.subr.bf16.mxu0 0
      %356 = vmatpush1.bf16.msra.mxu0 %v314
      %357 = vmatprep.subr.bf16.mxu0 0
      %358 = vmatpush1.bf16.msra.mxu0 %v315
      %359 = vmatprep.subr.bf16.mxu0 0
      %360 = vmatpush1.bf16.msra.mxu0 %v316
      %361 = vmatprep.subr.bf16.mxu0 0
      %362 = vmatpush1.bf16.msra.mxu0 %v317
      %363 = vmatprep.subr.bf16.mxu0 0
      %364 = vmatpush1.bf16.msra.mxu0 %v318
      %365 = vmatprep.subr.bf16.mxu0 0
      %366 = vmatpush1.bf16.msra.mxu0 %v319
      %367 = vmatprep.subr.bf16.mxu0 0
      %368 = vmatpush1.bf16.msra.mxu0 %v320
      %369 = vmatprep.mubr.bf16.mxu0 %v234
      %370 = vmatmul.mubr.bf16.gmra.mrb[0].mxu0 %v233
      %v371 = vpop.f32.mrb[0].mxu0
      %v372 = vadd.f32 %v219, %v371
      %v373 = vpop.f32.mrb[0].mxu0
      %v374 = vpop.f32.mrb[0].mxu0
      %v375 = vadd.f32 %v219, %v374
      %v376 = vpop.f32.mrb[0].mxu0
      %377 = vmatprep.mubr.bf16.mxu0 %v236
      %378 = vmatmul.mubr.bf16.gmra.mrb[0].mxu0 %v235
      %v379 = vpop.f32.mrb[0].mxu0
      %v380 = vadd.f32 %v219, %v379
      %v381 = vpop.f32.mrb[0].mxu0
      %v382 = vpop.f32.mrb[0].mxu0
      %v383 = vadd.f32 %v219, %v382
      %v384 = vpop.f32.mrb[0].mxu0
      %385 = vdwg.mxu0
      %v386 = vpack.c.bf16 %v375, %v372
      %v387 = vpack.c.bf16 %v383, %v380
      %v390 = vunpack.c.l.b16 %v386
      %v391 = vunpack.c.h.b16 %v386
      %v392 = vunpack.c.l.b16 %v387
      %v393 = vunpack.c.h.b16 %v387
      %v394 = vpack.c.b16 %v390, %v390
      %v395 = vpack.c.b16 %v391, %v391
      %v396 = vpack.c.b16 %v392, %v392
      %v397 = vpack.c.b16 %v393, %v393
      %402 = vst [vmem:[%s175] sm:$0xf] %v394
      %403 = vst [vmem:[%s175 + $0x4] sm:$0xf] %v395
      %404 = vst [vmem:[%s175 + $0x8] sm:$0xf] %v396
      %405 = vst [vmem:[%s175 + $0xc] sm:$0xf] %v397
      %s406 = smul.u32 4, %s14
      %p407 = scmp.lt.s32.totalorder %s406, 7
      %s408 = scalar_select %p407, %s406, 7
      %s409 = smul.addr %s408, 4
      %s410 = scalar_lea.vmem %s3, %s409
      // Predicated region
      $region33: #{radio_mamba_v2_forward.8} parent=31 // pred_check
        %p411 = pneg %p100
      $region34: #{radio_mamba_v2_forward.8} parent=31 // pred_check_branch
        %413 = sbr.rel (%p411) target = $region36
      $region35: #{radio_mamba_v2_forward.8} parent=31 // pred_region
        %s414 = smul.u32 4, %s14
      $region36: #{radio_mamba_v2_forward.8} parent=31 // pred_fallthru
        _
    $region32: #{radio_mamba_v2_forward.8} parent=5 // pred_fallthru
      _
    %p415 = scmp.le.s32.totalorder 2, %s9
    // Predicated region
    $region37: #{radio_mamba_v2_forward.8} parent=5 // pred_check
      %p416 = pneg %p415
    $region38: #{radio_mamba_v2_forward.8} parent=5 // pred_check_branch
      %418 = sbr.rel (%p416) target = $region40
    $region39: #{radio_mamba_v2_forward.8} parent=5 // pred_region
      %s419 = ssub.s32 %s9, 2
      // Predicated region
      $region41: #{radio_mamba_v2_forward.8} parent=39 // pred_check
        %p420 = pneg %p106
      $region42: #{radio_mamba_v2_forward.8} parent=39 // pred_check_branch
        %422 = sbr.rel (%p420) target = $region44
      $region43: #{radio_mamba_v2_forward.8} parent=39 // pred_region
        %s423 = smul.u32 4, %s15
        %p424 = scmp.lt.s32.totalorder %s423, 7
        %s425 = scalar_select %p424, %s423, 7
        %s426 = smul.addr %s425, 4
        %s427 = scalar_lea.vmem %s3, %s426
      $region44: #{radio_mamba_v2_forward.8} parent=39 // pred_fallthru
        _
    $region40: #{radio_mamba_v2_forward.8} parent=5 // pred_fallthru
      _
  $region6: #{radio_mamba_v2_forward.8} parent=0 // loop_footer
    %s13 = sadd.s32 1, %s9
  $region7: #{radio_mamba_v2_forward.8} parent=0 // loop_footer_branch
    %8 = sbr.rel target = $region3
  $region8: #{radio_mamba_v2_forward.8} parent=0 // loop_exit
    _

// kernel: radio_mamba_v2_forward.9
$region0: #{radio_mamba_v2_forward.9}
  #allocation0 [shape = 'u32[]', space=smem, size = 0x4, offset = 0x4, fixed_abs, tag = 'smem constant byte address 0x4 - core index']
  #allocation1 [shape = 'u32[144,128]{1,0:T(1,128)}', space=vmem, size = 0x12000, scoped, tag = 'internal scratch']
  #allocation2 [shape = 'f32[32,128]{1,0:T(8,128)}', space=vmem, size = 0x4000, scoped, tag = 'scratch operand']
  #allocation3 [shape = 'bf16[32,128]{1,0:T(16,128)(2,1)}', space=vmem, size = 0x2000, scoped, tag = 'scratch operand']
  #allocation4 [shape = 'f32[32,128]{1,0:T(8,128)}', space=vmem, size = 0x4000, scoped, tag = 'scratch operand']
  %s0 = inlined_call_operand.vmem [shape: bf16[2,32,128], index: 0, kind: input, shape index: {}]
  %s1 = inlined_call_operand.vmem [shape: f32[1,128], index: 1, kind: input, shape index: {}]
  %s2 = inlined_call_operand.vmem [shape: f32[1,128], index: 2, kind: input, shape index: {}]
  %s3 = inlined_call_operand.vmem [shape: bf16[128,256], index: 3, kind: input, shape index: {}]
  %s4 = inlined_call_operand.vmem [shape: bf16[128,128], index: 4, kind: input, shape index: {}]
  %s5 = inlined_call_operand.vmem [shape: f32[1,128], index: 5, kind: input, shape index: {}]
  %s6 = inlined_call_operand.vmem [shape: bf16[2,32,128], index: 6, kind: output, shape index: {}]
  %s7 = sld [smem:[#allocation0]]
  $region57: #{radio_mamba_v2_forward.9} parent=0
    _
  %s9 = ssub.s32 1, %s7
  %s10 = scalar_select 0, %s9, %s7
  loop: start=0, step=1, limit=4
  $region2: #{radio_mamba_v2_forward.9} parent=0 // loop_pre_header
    _
  $region3: #{radio_mamba_v2_forward.9} parent=0 // loop_header
    %s12 = sphi 0, %s16
    %p13 = scmp.ge.s32.totalorder %s12, 4
    %s22 = sphi 0, %s24
    %s25 = sphi 0, %s22
    %s26 = sphi 0, %s25
    %s42 = sphi 0, %s26
    %s46 = sphi 0, %s46
    %s48 = sphi 0, %s46
    %s49 = sphi 0, %s48
    %s63 = sphi 0, %s49
    %s67 = sphi 0, %s67
    %s69 = sphi 0, %s67
    %s70 = sphi 0, %s69
    %s84 = sphi 0, %s70
    %s88 = sphi 0, %s88
    %s90 = sphi 0, %s88
    %s91 = sphi 0, %s90
    %s105 = sphi 0, %s91
    %s109 = sphi 0, %s109
    %s111 = sphi 0, %s109
    %s112 = sphi 0, %s111
    %s126 = sphi 0, %s112
    %s130 = sphi 0, %s130
    %s132 = sphi 0, %s130
    %s133 = sphi 0, %s132
    %s147 = sphi 0, %s133
    %s153 = sphi 0, %s155
    %s156 = sphi 0, %s153
    %s157 = sphi 0, %s156
    %s173 = sphi 0, %s157
  $region4: #{radio_mamba_v2_forward.9} parent=0 // loop_header_branch
    %15 = sbr.rel (%p13) target = $region8
  $region5: #{radio_mamba_v2_forward.9} parent=0 // loop_body
    %s17 = ssub.s32 %s12, 1
    %s18 = ssub.s32 %s12, 2
    %s19 = sadd.s32 %s12, 1
    %s20 = ssub.s32 %s12, %s19
    %p21 = scmp.eq.s32.totalorder %s20, 0
    %s23 = sadd.s32 %s22, 1
    %s24 = scalar_select %p21, %s22, %s23
    %p27 = pneg %p21
    %p28 = scmp.eq.s32.totalorder %s12, 1
    %p29 = por %p27, %p28
    %p30 = scmp.ne.s32.totalorder %s22, %s25
    %p31 = scmp.eq.s32.totalorder %s12, 0
    %p32 = por %p30, %p31
    %p33 = scmp.ne.s32.totalorder %s22, %s25
    %p34 = scmp.eq.s32.totalorder %s17, 1
    %p35 = por %p33, %p34
    %p36 = scmp.ne.s32.totalorder %s25, %s26
    %p37 = scmp.eq.s32.totalorder %s17, 0
    %p38 = por %p36, %p37
    %p39 = scmp.ne.s32.totalorder %s25, %s26
    %p40 = scmp.eq.s32.totalorder %s18, 1
    %p41 = por %p39, %p40
    %p43 = scmp.ne.s32.totalorder %s26, %s42
    %p44 = scmp.eq.s32.totalorder %s18, 0
    %p45 = por %p43, %p44
    %s47 = sadd.s32 %s46, 1
    %p50 = scmp.eq.s32.totalorder %s12, 1
    %p51 = scmp.ne.s32.totalorder %s46, %s48
    %p52 = scmp.eq.s32.totalorder %s12, 0
    %p53 = por %p51, %p52
    %p54 = scmp.ne.s32.totalorder %s46, %s48
    %p55 = scmp.eq.s32.totalorder %s17, 1
    %p56 = por %p54, %p55
    %p57 = scmp.ne.s32.totalorder %s48, %s49
    %p58 = scmp.eq.s32.totalorder %s17, 0
    %p59 = por %p57, %p58
    %p60 = scmp.ne.s32.totalorder %s48, %s49
    %p61 = scmp.eq.s32.totalorder %s18, 1
    %p62 = por %p60, %p61
    %p64 = scmp.ne.s32.totalorder %s49, %s63
    %p65 = scmp.eq.s32.totalorder %s18, 0
    %p66 = por %p64, %p65
    %s68 = sadd.s32 %s67, 1
    %p71 = scmp.eq.s32.totalorder %s12, 1
    %p72 = scmp.ne.s32.totalorder %s67, %s69
    %p73 = scmp.eq.s32.totalorder %s12, 0
    %p74 = por %p72, %p73
    %p75 = scmp.ne.s32.totalorder %s67, %s69
    %p76 = scmp.eq.s32.totalorder %s17, 1
    %p77 = por %p75, %p76
    %p78 = scmp.ne.s32.totalorder %s69, %s70
    %p79 = scmp.eq.s32.totalorder %s17, 0
    %p80 = por %p78, %p79
    %p81 = scmp.ne.s32.totalorder %s69, %s70
    %p82 = scmp.eq.s32.totalorder %s18, 1
    %p83 = por %p81, %p82
    %p85 = scmp.ne.s32.totalorder %s70, %s84
    %p86 = scmp.eq.s32.totalorder %s18, 0
    %p87 = por %p85, %p86
    %s89 = sadd.s32 %s88, 1
    %p92 = scmp.eq.s32.totalorder %s12, 1
    %p93 = scmp.ne.s32.totalorder %s88, %s90
    %p94 = scmp.eq.s32.totalorder %s12, 0
    %p95 = por %p93, %p94
    %p96 = scmp.ne.s32.totalorder %s88, %s90
    %p97 = scmp.eq.s32.totalorder %s17, 1
    %p98 = por %p96, %p97
    %p99 = scmp.ne.s32.totalorder %s90, %s91
    %p100 = scmp.eq.s32.totalorder %s17, 0
    %p101 = por %p99, %p100
    %p102 = scmp.ne.s32.totalorder %s90, %s91
    %p103 = scmp.eq.s32.totalorder %s18, 1
    %p104 = por %p102, %p103
    %p106 = scmp.ne.s32.totalorder %s91, %s105
    %p107 = scmp.eq.s32.totalorder %s18, 0
    %p108 = por %p106, %p107
    %s110 = sadd.s32 %s109, 1
    %p113 = scmp.eq.s32.totalorder %s12, 1
    %p114 = scmp.ne.s32.totalorder %s109, %s111
    %p115 = scmp.eq.s32.totalorder %s12, 0
    %p116 = por %p114, %p115
    %p117 = scmp.ne.s32.totalorder %s109, %s111
    %p118 = scmp.eq.s32.totalorder %s17, 1
    %p119 = por %p117, %p118
    %p120 = scmp.ne.s32.totalorder %s111, %s112
    %p121 = scmp.eq.s32.totalorder %s17, 0
    %p122 = por %p120, %p121
    %p123 = scmp.ne.s32.totalorder %s111, %s112
    %p124 = scmp.eq.s32.totalorder %s18, 1
    %p125 = por %p123, %p124
    %p127 = scmp.ne.s32.totalorder %s112, %s126
    %p128 = scmp.eq.s32.totalorder %s18, 0
    %p129 = por %p127, %p128
    %s131 = sadd.s32 %s130, 1
    %p134 = scmp.eq.s32.totalorder %s12, 1
    %p135 = scmp.ne.s32.totalorder %s130, %s132
    %p136 = scmp.eq.s32.totalorder %s12, 0
    %p137 = por %p135, %p136
    %p138 = scmp.ne.s32.totalorder %s130, %s132
    %p139 = scmp.eq.s32.totalorder %s17, 1
    %p140 = por %p138, %p139
    %p141 = scmp.ne.s32.totalorder %s132, %s133
    %p142 = scmp.eq.s32.totalorder %s17, 0
    %p143 = por %p141, %p142
    %p144 = scmp.ne.s32.totalorder %s132, %s133
    %p145 = scmp.eq.s32.totalorder %s18, 1
    %p146 = por %p144, %p145
    %p148 = scmp.ne.s32.totalorder %s133, %s147
    %p149 = scmp.eq.s32.totalorder %s18, 0
    %p150 = por %p148, %p149
    %s151 = ssub.s32 %s12, %s19
    %p152 = scmp.eq.s32.totalorder %s151, 0
    %s154 = sadd.s32 %s153, 1
    %s155 = scalar_select %p152, %s153, %s154
    %p158 = pneg %p152
    %p159 = scmp.eq.s32.totalorder %s12, 1
    %p160 = por %p158, %p159
    %p161 = scmp.ne.s32.totalorder %s153, %s156
    %p162 = scmp.eq.s32.totalorder %s12, 0
    %p163 = por %p161, %p162
    %p164 = scmp.ne.s32.totalorder %s153, %s156
    %p165 = scmp.eq.s32.totalorder %s17, 1
    %p166 = por %p164, %p165
    %p167 = scmp.ne.s32.totalorder %s156, %s157
    %p168 = scmp.eq.s32.totalorder %s17, 0
    %p169 = por %p167, %p168
    %p170 = scmp.ne.s32.totalorder %s156, %s157
    %p171 = scmp.eq.s32.totalorder %s18, 1
    %p172 = por %p170, %p171
    %p174 = scmp.ne.s32.totalorder %s157, %s173
    %p175 = scmp.eq.s32.totalorder %s18, 0
    %p176 = por %p174, %p175
    %p177 = scmp.le.s32.totalorder 1, %s12
    %p178 = scmp.lt.s32.totalorder %s12, 3
    %p179 = pnand %p177, %p178
    %p180 = pneg %p179
    // Predicated region
    $region9: #{radio_mamba_v2_forward.9} parent=5 // pred_check
      _
    $region10: #{radio_mamba_v2_forward.9} parent=5 // pred_check_branch
      %182 = sbr.rel (%p179) target = $region12
    $region11: #{radio_mamba_v2_forward.9} parent=5 // pred_region
      %s183 = ssub.s32 %s12, 1
      // Predicated region
      $region13: #{radio_mamba_v2_forward.9} parent=11 // pred_check
        %p184 = pneg %p59
      $region14: #{radio_mamba_v2_forward.9} parent=11 // pred_check_branch
        %186 = sbr.rel (%p184) target = $region16
      $region15: #{radio_mamba_v2_forward.9} parent=11 // pred_region
        _
      $region16: #{radio_mamba_v2_forward.9} parent=11 // pred_fallthru
        _
      // Predicated region
      $region17: #{radio_mamba_v2_forward.9} parent=11 // pred_check
        %p187 = pneg %p80
      $region18: #{radio_mamba_v2_forward.9} parent=11 // pred_check_branch
        %189 = sbr.rel (%p187) target = $region20
      $region19: #{radio_mamba_v2_forward.9} parent=11 // pred_region
        _
      $region20: #{radio_mamba_v2_forward.9} parent=11 // pred_fallthru
        _
      // Predicated region
      $region21: #{radio_mamba_v2_forward.9} parent=11 // pred_check
        %p190 = pneg %p101
      $region22: #{radio_mamba_v2_forward.9} parent=11 // pred_check_branch
        %192 = sbr.rel (%p190) target = $region24
      $region23: #{radio_mamba_v2_forward.9} parent=11 // pred_region
        _
      $region24: #{radio_mamba_v2_forward.9} parent=11 // pred_fallthru
        _
      // Predicated region
      $region25: #{radio_mamba_v2_forward.9} parent=11 // pred_check
        %p193 = pneg %p122
      $region26: #{radio_mamba_v2_forward.9} parent=11 // pred_check_branch
        %195 = sbr.rel (%p193) target = $region28
      $region27: #{radio_mamba_v2_forward.9} parent=11 // pred_region
        _
      $region28: #{radio_mamba_v2_forward.9} parent=11 // pred_fallthru
        _
      // Predicated region
      $region29: #{radio_mamba_v2_forward.9} parent=11 // pred_check
        %p196 = pneg %p143
      $region30: #{radio_mamba_v2_forward.9} parent=11 // pred_check_branch
        %198 = sbr.rel (%p196) target = $region32
      $region31: #{radio_mamba_v2_forward.9} parent=11 // pred_region
        _
      $region32: #{radio_mamba_v2_forward.9} parent=11 // pred_fallthru
        _
    $region12: #{radio_mamba_v2_forward.9} parent=5 // pred_fallthru
      _
    %p199 = scmp.lt.s32.totalorder %s12, 2
    // Predicated region
    $region33: #{radio_mamba_v2_forward.9} parent=5 // pred_check
      %p200 = pneg %p199
    $region34: #{radio_mamba_v2_forward.9} parent=5 // pred_check_branch
      %202 = sbr.rel (%p200) target = $region36
    $region35: #{radio_mamba_v2_forward.9} parent=5 // pred_region
      // Predicated region
      $region37: #{radio_mamba_v2_forward.9} parent=35 // pred_check
        %p203 = pneg %p32
      $region38: #{radio_mamba_v2_forward.9} parent=35 // pred_check_branch
        %205 = sbr.rel (%p203) target = $region40
      $region39: #{radio_mamba_v2_forward.9} parent=35 // pred_region
        %p206 = scmp.lt.s32.totalorder %s12, 1
        %s207 = scalar_select %p206, %s12, 1
        %s208 = smul.addr %s207, 4
        %s209 = smul.addr %s208, 4
        %s210 = scalar_lea.vmem %s0, %s209
      $region40: #{radio_mamba_v2_forward.9} parent=35 // pred_fallthru
        _
    $region36: #{radio_mamba_v2_forward.9} parent=5 // pred_fallthru
      _
    %p211 = scmp.le.s32.totalorder 1, %s12
    %p212 = scmp.lt.s32.totalorder %s12, 3
    %p213 = pnand %p211, %p212
    %p214 = pneg %p213
    // Predicated region
    $region41: #{radio_mamba_v2_forward.9} parent=5 // pred_check
      _
    $region42: #{radio_mamba_v2_forward.9} parent=5 // pred_check_branch
      %216 = sbr.rel (%p213) target = $region44
    $region43: #{radio_mamba_v2_forward.9} parent=5 // pred_region
      %s217 = ssub.s32 %s12, 1
      %p218 = scmp.lt.s32.totalorder %s17, 1
      %s219 = scalar_select %p218, %s17, 1
      %s220 = smul.addr %s219, 4
      %s221 = smul.addr %s220, 4
      %s222 = scalar_lea.vmem %s0, %s221
      %p223 = pneg %p38
      %p224 = pneg %p35
      %p225 = pneg %p59
      %p226 = pneg %p56
      %p227 = pneg %p80
      %p228 = pneg %p77
      %p229 = pneg %p101
      %p230 = pneg %p98
      %p231 = pneg %p122
      %p232 = pneg %p119
      %p233 = pneg %p143
      %p234 = pneg %p140
      %p235 = pneg %p169
      %p236 = pneg %p166
      %p237 = scmp.lt.s32.totalorder %s17, 1
      %s238 = scalar_select %p237, %s17, 1
      %s239 = smul.addr %s238, 4
      %s240 = smul.addr %s239, 4
      %s241 = scalar_lea.vmem %s6, %s240
      %p242 = scmp.lt.s32.totalorder %s17, 1
      %s243 = scalar_select %p242, %s17, 1
      %s244 = smul.addr %s243, 4
      %s245 = smul.addr %s244, 4
      %s246 = scalar_lea.vmem %s0, %s245
      %p247 = scmp.lt.s32.totalorder %s17, 1
      %s248 = scalar_select %p247, %s17, 1
      %s249 = smul.addr %s248, 4
      %s250 = smul.addr %s249, 4
      %s251 = scalar_lea.vmem %s6, %s250
      %v253 = vld [vmem:[%s246] sm:$0xf]
      %v254 = vld [vmem:[%s246 + $0x4] sm:$0xf]
      %v255 = vld [vmem:[%s246 + $0x8] sm:$0xf]
      %v256 = vld [vmem:[%s246 + $0xc] sm:$0xf]
      %v257 = vunpack.c.l.bf16 %v253
      %v258 = vunpack.c.l.bf16 %v254
      %v259 = vunpack.c.l.bf16 %v255
      %v260 = vunpack.c.l.bf16 %v256
      %261 = vadd.xlane.f32.xlu0 %v257
      %v262 = vpop.xlane.xlu0 %261
      %263 = vadd.xlane.f32.xlu0 %v258
      %v264 = vpop.xlane.xlu0 %263
      %265 = vadd.xlane.f32.xlu0 %v259
      %v266 = vpop.xlane.xlu0 %265
      %267 = vadd.xlane.f32.xlu0 %v260
      %v268 = vpop.xlane.xlu0 %267
      %v269 = vrcp.pop 128.0
      %v270 = vmul.f32 %v262, %v269
      %v271 = vmul.f32 %v264, %v269
      %v272 = vmul.f32 %v266, %v269
      %v273 = vmul.f32 %v268, %v269
      %v274 = vsub.f32 %v257, %v270
      %v275 = vsub.f32 %v258, %v271
      %v276 = vsub.f32 %v259, %v272
      %v277 = vsub.f32 %v260, %v273
      %v278 = vmul.f32 %v274, %v274
      %v279 = vmul.f32 %v275, %v275
      %v280 = vmul.f32 %v276, %v276
      %v281 = vmul.f32 %v277, %v277
      %282 = vadd.xlane.f32.xlu0 %v278
      %v283 = vpop.xlane.xlu0 %282
      %284 = vadd.xlane.f32.xlu0 %v279
      %v285 = vpop.xlane.xlu0 %284
      %286 = vadd.xlane.f32.xlu0 %v280
      %v287 = vpop.xlane.xlu0 %286
      %288 = vadd.xlane.f32.xlu0 %v281
      %v289 = vpop.xlane.xlu0 %288
      %v290 = vmul.f32 %v283, %v269
      %v291 = vmul.f32 %v285, %v269
      %v292 = vmul.f32 %v287, %v269
      %v293 = vmul.f32 %v289, %v269
      %v294 = vadd.f32 %v290, 1e-05
      %v295 = vadd.f32 %v291, 1e-05
      %v296 = vadd.f32 %v292, 1e-05
      %v297 = vadd.f32 %v293, 1e-05
      %v298 = vrsqrt.pop %v294
      %v299 = vrsqrt.pop %v295
      %v300 = vrsqrt.pop %v296
      %v301 = vrsqrt.pop %v297
      %v302 = vmul.f32 %v274, %v298
      %v303 = vmul.f32 %v275, %v299
      %v304 = vmul.f32 %v276, %v300
      %v305 = vmul.f32 %v277, %v301
      %v306 = vld [vmem:[%s1] sm:$0x1]
      %v308 = vlaneseq
      %v309 = vshrl.u32 %v308, 7
      %v310 = vsub.s32 0, %v309
      %v311 = vrot.slane %v306, %v310
      %v313 = vmul.f32 %v302, %v311
      %v314 = vmul.f32 %v303, %v311
      %v315 = vmul.f32 %v304, %v311
      %v316 = vmul.f32 %v305, %v311
      %v317 = vld [vmem:[%s2] sm:$0x1]
      %v319 = vlaneseq
      %v320 = vshrl.u32 %v319, 7
      %v321 = vsub.s32 0, %v320
      %v322 = vrot.slane %v317, %v321
      %v324 = vadd.f32 %v313, %v322
      %v325 = vadd.f32 %v314, %v322
      %v326 = vadd.f32 %v315, %v322
      %v327 = vadd.f32 %v316, %v322
      %v328 = vpack.c.bf16 %v325, %v324
      %v329 = vpack.c.bf16 %v327, %v326
      %v330 = vld [vmem:[%s3] sm:$0xff]
      %v331 = vld [vmem:[%s3 + $0x8] sm:$0xff]
      %v332 = vld [vmem:[%s3 + $0x10] sm:$0xff]
      %v333 = vld [vmem:[%s3 + $0x18] sm:$0xff]
      %v334 = vld [vmem:[%s3 + $0x20] sm:$0xff]
      %v335 = vld [vmem:[%s3 + $0x28] sm:$0xff]
      %v336 = vld [vmem:[%s3 + $0x30] sm:$0xff]
      %v337 = vld [vmem:[%s3 + $0x38] sm:$0xff]
      %v338 = vld [vmem:[%s3 + $0x40] sm:$0xff]
      %v339 = vld [vmem:[%s3 + $0x48] sm:$0xff]
      %v340 = vld [vmem:[%s3 + $0x50] sm:$0xff]
      %v341 = vld [vmem:[%s3 + $0x58] sm:$0xff]
      %v342 = vld [vmem:[%s3 + $0x60] sm:$0xff]
      %v343 = vld [vmem:[%s3 + $0x68] sm:$0xff]
      %v344 = vld [vmem:[%s3 + $0x70] sm:$0xff]
      %v345 = vld [vmem:[%s3 + $0x78] sm:$0xff]
      %v362 = vunpack.c.l.b16 %v330
      %v363 = vunpack.c.h.b16 %v330
      %v364 = vunpack.c.l.b16 %v331
      %v365 = vunpack.c.h.b16 %v331
      %v366 = vunpack.c.l.b16 %v332
      %v367 = vunpack.c.h.b16 %v332
      %v368 = vunpack.c.l.b16 %v333
      %v369 = vunpack.c.h.b16 %v333
      %v370 = vunpack.c.l.b16 %v334
      %v371 = vunpack.c.h.b16 %v334
      %v372 = vunpack.c.l.b16 %v335
      %v373 = vunpack.c.h.b16 %v335
      %v374 = vunpack.c.l.b16 %v336
      %v375 = vunpack.c.h.b16 %v336
      %v376 = vunpack.c.l.b16 %v337
      %v377 = vunpack.c.h.b16 %v337
      %v378 = vunpack.c.l.b16 %v338
      %v379 = vunpack.c.h.b16 %v338
      %v380 = vunpack.c.l.b16 %v339
      %v381 = vunpack.c.h.b16 %v339
      %v382 = vunpack.c.l.b16 %v340
      %v383 = vunpack.c.h.b16 %v340
      %v384 = vunpack.c.l.b16 %v341
      %v385 = vunpack.c.h.b16 %v341
      %v386 = vunpack.c.l.b16 %v342
      %v387 = vunpack.c.h.b16 %v342
      %v388 = vunpack.c.l.b16 %v343
      %v389 = vunpack.c.h.b16 %v343
      %v390 = vunpack.c.l.b16 %v344
      %v391 = vunpack.c.h.b16 %v344
      %v392 = vunpack.c.l.b16 %v345
      %v393 = vunpack.c.h.b16 %v345
      %v394 = vpack.c.b16 %v364, %v362
      %v395 = vpack.c.b16 %v365, %v363
      %v396 = vpack.c.b16 %v368, %v366
      %v397 = vpack.c.b16 %v369, %v367
      %v398 = vpack.c.b16 %v372, %v370
      %v399 = vpack.c.b16 %v373, %v371
      %v400 = vpack.c.b16 %v376, %v374
      %v401 = vpack.c.b16 %v377, %v375
      %v402 = vpack.c.b16 %v380, %v378
      %v403 = vpack.c.b16 %v381, %v379
      %v404 = vpack.c.b16 %v384, %v382
      %v405 = vpack.c.b16 %v385, %v383
      %v406 = vpack.c.b16 %v388, %v386
      %v407 = vpack.c.b16 %v389, %v387
      %v408 = vpack.c.b16 %v392, %v390
      %v409 = vpack.c.b16 %v393, %v391
      %426 = vmatprep.subr.bf16.mxu0 %v395
      %427 = vmatpush1.bf16.msra.mxu0 %v394
      %428 = vmatprep.subr.bf16.mxu0 %v397
      %429 = vmatpush1.bf16.msra.mxu0 %v396
      %430 = vmatprep.subr.bf16.mxu0 %v399
      %431 = vmatpush1.bf16.msra.mxu0 %v398
      %432 = vmatprep.subr.bf16.mxu0 %v401
      %433 = vmatpush1.bf16.msra.mxu0 %v400
      %434 = vmatprep.subr.bf16.mxu0 %v403
      %435 = vmatpush1.bf16.msra.mxu0 %v402
      %436 = vmatprep.subr.bf16.mxu0 %v405
      %437 = vmatpush1.bf16.msra.mxu0 %v404
      %438 = vmatprep.subr.bf16.mxu0 %v407
      %439 = vmatpush1.bf16.msra.mxu0 %v406
      %440 = vmatprep.subr.bf16.mxu0 %v409
      %441 = vmatpush1.bf16.msra.mxu0 %v408
      %442 = vmatprep.subr.bf16.mxu0 0
      %443 = vmatpush1.bf16.msra.mxu0 0
      %444 = vmatprep.subr.bf16.mxu0 0
      %445 = vmatpush1.bf16.msra.mxu0 0
      %446 = vmatprep.subr.bf16.mxu0 0
      %447 = vmatpush1.bf16.msra.mxu0 0
      %448 = vmatprep.subr.bf16.mxu0 0
      %449 = vmatpush1.bf16.msra.mxu0 0
      %450 = vmatprep.subr.bf16.mxu0 0
      %451 = vmatpush1.bf16.msra.mxu0 0
      %452 = vmatprep.subr.bf16.mxu0 0
      %453 = vmatpush1.bf16.msra.mxu0 0
      %454 = vmatprep.subr.bf16.mxu0 0
      %455 = vmatpush1.bf16.msra.mxu0 0
      %456 = vmatprep.subr.bf16.mxu0 0
      %457 = vmatpush1.bf16.msra.mxu0 0
      %458 = vmatprep.mubr.bf16.mxu0 0
      %459 = vmatmul.mubr.bf16.gmra.mrb[0].mxu0 %v328
      %v460 = vpop.f32.mrb[0].mxu0
      %v461 = vadd.f32 0.0, %v460
      %v462 = vpop.f32.mrb[0].mxu0
      %v463 = vadd.f32 0.0, %v462
      %v464 = vpop.f32.mrb[0].mxu0
      %v465 = vadd.f32 0.0, %v464
      %v466 = vpop.f32.mrb[0].mxu0
      %v467 = vadd.f32 0.0, %v466
      %468 = vmatprep.mubr.bf16.mxu0 0
      %469 = vmatmul.mubr.bf16.gmra.mrb[0].mxu0 %v329
      %v470 = vpop.f32.mrb[0].mxu0
      %v471 = vadd.f32 0.0, %v470
      %v472 = vpop.f32.mrb[0].mxu0
      %v473 = vadd.f32 0.0, %v472
      %v474 = vpop.f32.mrb[0].mxu0
      %v475 = vadd.f32 0.0, %v474
      %v476 = vpop.f32.mrb[0].mxu0
      %v477 = vadd.f32 0.0, %v476
      %478 = vdwg.mxu0
      %v479 = vxor.u32 %v461, 2147483648
      %v480 = vxor.u32 %v465, 2147483648
      %v481 = vxor.u32 %v471, 2147483648
      %v482 = vxor.u32 %v475, 2147483648
      %v483 = vmul.f32 %v479, 1.442695
      %v484 = vpow.pop %v483
      %v485 = vmul.f32 %v480, 1.442695
      %v486 = vpow.pop %v485
      %v487 = vmul.f32 %v481, 1.442695
      %v488 = vpow.pop %v487
      %v489 = vmul.f32 %v482, 1.442695
      %v490 = vpow.pop %v489
      %v491 = vadd.f32 %v484, 1.0
      %v492 = vadd.f32 %v486, 1.0
      %v493 = vadd.f32 %v488, 1.0
      %v494 = vadd.f32 %v490, 1.0
      %v495 = vrcp.pop %v491
      %v496 = vmul.f32 1.0, %v495
      %v497 = vrcp.pop %v492
      %v498 = vmul.f32 1.0, %v497
      %v499 = vrcp.pop %v493
      %v500 = vmul.f32 1.0, %v499
      %v501 = vrcp.pop %v494
      %v502 = vmul.f32 1.0, %v501
      %v503 = vmul.f32 %v461, %v496
      %v504 = vmul.f32 %v465, %v498
      %v505 = vmul.f32 %v471, %v500
      %v506 = vmul.f32 %v475, %v502
      %v507 = vxor.u32 %v463, 2147483648
      %v508 = vxor.u32 %v467, 2147483648
      %v509 = vxor.u32 %v473, 2147483648
      %v510 = vxor.u32 %v477, 2147483648
      %v511 = vmul.f32 %v507, 1.442695
      %v512 = vpow.pop %v511
      %v513 = vmul.f32 %v508, 1.442695
      %v514 = vpow.pop %v513
      %v515 = vmul.f32 %v509, 1.442695
      %v516 = vpow.pop %v515
      %v517 = vmul.f32 %v510, 1.442695
      %v518 = vpow.pop %v517
      %v519 = vadd.f32 %v512, 1.0
      %v520 = vadd.f32 %v514, 1.0
      %v521 = vadd.f32 %v516, 1.0
      %v522 = vadd.f32 %v518, 1.0
      %v523 = vrcp.pop %v519
      %v524 = vmul.f32 1.0, %v523
      %v525 = vrcp.pop %v520
      %v526 = vmul.f32 1.0, %v525
      %v527 = vrcp.pop %v521
      %v528 = vmul.f32 1.0, %v527
      %v529 = vrcp.pop %v522
      %v530 = vmul.f32 1.0, %v529
      %v531 = vmul.f32 %v463, %v524
      %v532 = vmul.f32 %v467, %v526
      %v533 = vmul.f32 %v473, %v528
      %v534 = vmul.f32 %v477, %v530
      %v535 = vld [vmem:[%s5] sm:$0x1]
      %v536 = vxor.u32 %v535, 2147483648
      %v537 = vmul.f32 %v536, 1.442695
      %v538 = vpow.pop %v537
      %v539 = vadd.f32 %v538, 1.0
      %v540 = vrcp.pop %v539
      %v541 = vmul.f32 1.0, %v540
      %v542 = vsub.f32 1.0, %v541
      %v544 = vlaneseq
      %v545 = vshrl.u32 %v544, 7
      %v546 = vsub.s32 0, %v545
      %v547 = vrot.slane %v542, %v546
      %v549 = vmul.f32 %v547, %v503
      %v550 = vmul.f32 %v547, %v504
      %v551 = vmul.f32 %v547, %v505
      %v552 = vmul.f32 %v547, %v506
      %553 = vst [vmem:[#allocation2] sm:$0xff] %v549
      %554 = vst [vmem:[#allocation2 + $0x8] sm:$0xff] %v550
      %555 = vst [vmem:[#allocation2 + $0x10] sm:$0xff] %v551
      %556 = vst [vmem:[#allocation2 + $0x18] sm:$0xff] %v552
      %v557 = vpack.c.bf16 %v532, %v531
      %v558 = vpack.c.bf16 %v534, %v533
      %559 = vst [vmem:[#allocation3] sm:$0xff] %v557
      %560 = vst [vmem:[#allocation3 + $0x8] sm:$0xff] %v558
      %v561 = vlaneseq
      %v562 = vshrl.u32 %v561, 7
      %v563 = vadd.s32 %v562, 8
      %v564 = vadd.s32 %v562, 16
      %v565 = vadd.s32 %v562, 24
      %v566 = vlog2.pop %v541
      %v567 = vmul.f32 %v566, 0.6931472
      %v568 = vcvt.s32.f32 %v562
      %v569 = vcvt.s32.f32 %v563
      %v570 = vcvt.s32.f32 %v564
      %v571 = vcvt.s32.f32 %v565
      %v572 = vadd.f32 %v568, 1.0
      %v573 = vadd.f32 %v569, 1.0
      %v574 = vadd.f32 %v570, 1.0
      %v575 = vadd.f32 %v571, 1.0
      %v577 = vlaneseq
      %v578 = vshrl.u32 %v577, 7
      %v579 = vsub.s32 0, %v578
      %v580 = vrot.slane %v567, %v579
      %v582 = vmul.f32 %v580, %v572
      %v583 = vmul.f32 %v580, %v573
      %v584 = vmul.f32 %v580, %v574
      %v585 = vmul.f32 %v580, %v575
      %v586 = vmul.f32 %v582, 1.442695
      %v587 = vpow.pop %v586
      %v588 = vmul.f32 %v583, 1.442695
      %v589 = vpow.pop %v588
      %v590 = vmul.f32 %v584, 1.442695
      %v591 = vpow.pop %v590
      %v592 = vmul.f32 %v585, 1.442695
      %v593 = vpow.pop %v592
      %v594 = vmul.f32 %v567, 1.442695
      %v595 = vpow.pop %v594
      %vm596 = vcmp.ge.s32.totalorder %v562, 1
      %vm597 = vcmp.ge.s32.totalorder %v563, 1
      %vm598 = vcmp.ge.s32.totalorder %v564, 1
      %vm599 = vcmp.ge.s32.totalorder %v565, 1
      %v600 = vsel %vm596, 1, 0
      %v601 = vsel %vm597, 1, 0
      %v602 = vsel %vm598, 1, 0
      %v603 = vsel %vm599, 1, 0
      %vm604 = vcmp.eq.s32.totalorder %v600, 1
      %vm605 = vcmp.eq.s32.totalorder %v601, 1
      %vm606 = vcmp.eq.s32.totalorder %v602, 1
      %vm607 = vcmp.eq.s32.totalorder %v603, 1
      %v609 = vlaneseq
      %v610 = vshrl.u32 %v609, 7
      %v611 = vsub.s32 0, %v610
      %v612 = vrot.slane %v595, %v611
      %v614 = vsel %vm604, %v612, 0.0
      %v615 = vsel %vm605, %v612, 0.0
      %v616 = vsel %vm606, %v612, 0.0
      %v617 = vsel %vm607, %v612, 0.0
      %v618 = vmul.f32 %v567, 2.0
      %v619 = vmul.f32 %v618, 1.442695
      %v620 = vpow.pop %v619
      %vm621 = vcmp.ge.s32.totalorder %v562, 2
      %vm622 = vcmp.ge.s32.totalorder %v563, 2
      %vm623 = vcmp.ge.s32.totalorder %v564, 2
      %vm624 = vcmp.ge.s32.totalorder %v565, 2
      %v625 = vsel %vm621, 1, 0
      %v626 = vsel %vm622, 1, 0
      %v627 = vsel %vm623, 1, 0
      %v628 = vsel %vm624, 1, 0
      %vm629 = vcmp.eq.s32.totalorder %v625, 1
      %vm630 = vcmp.eq.s32.totalorder %v626, 1
      %vm631 = vcmp.eq.s32.totalorder %v627, 1
      %vm632 = vcmp.eq.s32.totalorder %v628, 1
      %v634 = vlaneseq
      %v635 = vshrl.u32 %v634, 7
      %v636 = vsub.s32 0, %v635
      %v637 = vrot.slane %v620, %v636
      %v639 = vsel %vm629, %v637, 0.0
      %v640 = vsel %vm630, %v637, 0.0
      %v641 = vsel %vm631, %v637, 0.0
      %v642 = vsel %vm632, %v637, 0.0
      %v643 = vmul.f32 %v567, 4.0
      %v644 = vmul.f32 %v643, 1.442695
      %v645 = vpow.pop %v644
      %vm646 = vcmp.ge.s32.totalorder %v562, 4
      %vm647 = vcmp.ge.s32.totalorder %v563, 4
      %vm648 = vcmp.ge.s32.totalorder %v564, 4
      %vm649 = vcmp.ge.s32.totalorder %v565, 4
      %v650 = vsel %vm646, 1, 0
      %v651 = vsel %vm647, 1, 0
      %v652 = vsel %vm648, 1, 0
      %v653 = vsel %vm649, 1, 0
      %vm654 = vcmp.eq.s32.totalorder %v650, 1
      %vm655 = vcmp.eq.s32.totalorder %v651, 1
      %vm656 = vcmp.eq.s32.totalorder %v652, 1
      %vm657 = vcmp.eq.s32.totalorder %v653, 1
      %v659 = vlaneseq
      %v660 = vshrl.u32 %v659, 7
      %v661 = vsub.s32 0, %v660
      %v662 = vrot.slane %v645, %v661
      %v664 = vsel %vm654, %v662, 0.0
      %v665 = vsel %vm655, %v662, 0.0
      %v666 = vsel %vm656, %v662, 0.0
      %v667 = vsel %vm657, %v662, 0.0
      %v668 = vmul.f32 %v567, 8.0
      %v669 = vmul.f32 %v668, 1.442695
      %v670 = vpow.pop %v669
      %vm671 = vcmp.ge.s32.totalorder %v562, 8
      %vm672 = vcmp.ge.s32.totalorder %v563, 8
      %vm673 = vcmp.ge.s32.totalorder %v564, 8
      %vm674 = vcmp.ge.s32.totalorder %v565, 8
      %v675 = vsel %vm671, 1, 0
      %v676 = vsel %vm672, 1, 0
      %v677 = vsel %vm673, 1, 0
      %v678 = vsel %vm674, 1, 0
      %vm679 = vcmp.eq.s32.totalorder %v675, 1
      %vm680 = vcmp.eq.s32.totalorder %v676, 1
      %vm681 = vcmp.eq.s32.totalorder %v677, 1
      %vm682 = vcmp.eq.s32.totalorder %v678, 1
      %v684 = vlaneseq
      %v685 = vshrl.u32 %v684, 7
      %v686 = vsub.s32 0, %v685
      %v687 = vrot.slane %v670, %v686
      %v689 = vsel %vm679, %v687, 0.0
      %v690 = vsel %vm680, %v687, 0.0
      %v691 = vsel %vm681, %v687, 0.0
      %v692 = vsel %vm682, %v687, 0.0
      %v693 = vmul.f32 %v567, 16.0
      %v694 = vmul.f32 %v693, 1.442695
      %v695 = vpow.pop %v694
      %vm696 = vcmp.ge.s32.totalorder %v562, 16
      %vm697 = vcmp.ge.s32.totalorder %v563, 16
      %vm698 = vcmp.ge.s32.totalorder %v564, 16
      %vm699 = vcmp.ge.s32.totalorder %v565, 16
      %v700 = vsel %vm696, 1, 0
      %v701 = vsel %vm697, 1, 0
      %v702 = vsel %vm698, 1, 0
      %v703 = vsel %vm699, 1, 0
      %vm704 = vcmp.eq.s32.totalorder %v700, 1
      %vm705 = vcmp.eq.s32.totalorder %v701, 1
      %vm706 = vcmp.eq.s32.totalorder %v702, 1
      %vm707 = vcmp.eq.s32.totalorder %v703, 1
      %v709 = vlaneseq
      %v710 = vshrl.u32 %v709, 7
      %v711 = vsub.s32 0, %v710
      %v712 = vrot.slane %v695, %v711
      %v714 = vsel %vm704, %v712, 0.0
      %v715 = vsel %vm705, %v712, 0.0
      %v716 = vsel %vm706, %v712, 0.0
      %v717 = vsel %vm707, %v712, 0.0
      %v718 = vld [vmem:[#allocation2] sm:$0xff]
      %v719 = vld [vmem:[#allocation2 + $0x8] sm:$0xff]
      %v720 = vld [vmem:[#allocation2 + $0x10] sm:$0xff]
      %v721 = vld [vmem:[#allocation2 + $0x18] sm:$0xff]
      %v722 = vrot.slane %v718, 7
      %v723 = vrot.slane %v719, 7
      %v724 = vrot.slane %v720, 7
      %v725 = vrot.slane %v721, 7
      %vm726 = vcmp.lt.s32.totalorder %v562, 1
      %v727 = vsel %vm726, %v724, %v725
      %v728 = vsel %vm726, %v723, %v724
      %v729 = vsel %vm726, %v722, %v723
      %v730 = vsel %vm726, %v725, %v722
      %v731 = vmul.f32 %v614, %v730
      %v732 = vmul.f32 %v615, %v729
      %v733 = vmul.f32 %v616, %v728
      %v734 = vmul.f32 %v617, %v727
      %v735 = vadd.f32 %v718, %v731
      %v736 = vadd.f32 %v719, %v732
      %v737 = vadd.f32 %v720, %v733
      %v738 = vadd.f32 %v721, %v734
      %v739 = vrot.slane %v735, 6
      %v740 = vrot.slane %v736, 6
      %v741 = vrot.slane %v737, 6
      %v742 = vrot.slane %v738, 6
      %vm743 = vcmp.lt.s32.totalorder %v562, 2
      %v744 = vsel %vm743, %v741, %v742
      %v745 = vsel %vm743, %v740, %v741
      %v746 = vsel %vm743, %v739, %v740
      %v747 = vsel %vm743, %v742, %v739
      %v748 = vmul.f32 %v639, %v747
      %v749 = vmul.f32 %v640, %v746
      %v750 = vmul.f32 %v641, %v745
      %v751 = vmul.f32 %v642, %v744
      %v752 = vadd.f32 %v735, %v748
      %v753 = vadd.f32 %v736, %v749
      %v754 = vadd.f32 %v737, %v750
      %v755 = vadd.f32 %v738, %v751
      %v756 = vrot.slane %v752, 4
      %v757 = vrot.slane %v753, 4
      %v758 = vrot.slane %v754, 4
      %v759 = vrot.slane %v755, 4
      %vm760 = vcmp.lt.s32.totalorder %v562, 4
      %v761 = vsel %vm760, %v758, %v759
      %v762 = vsel %vm760, %v757, %v758
      %v763 = vsel %vm760, %v756, %v757
      %v764 = vsel %vm760, %v759, %v756
      %v765 = vmul.f32 %v664, %v764
      %v766 = vmul.f32 %v665, %v763
      %v767 = vmul.f32 %v666, %v762
      %v768 = vmul.f32 %v667, %v761
      %v769 = vadd.f32 %v752, %v765
      %v770 = vadd.f32 %v753, %v766
      %v771 = vadd.f32 %v754, %v767
      %v772 = vadd.f32 %v755, %v768
      %v773 = vmul.f32 %v689, %v772
      %v774 = vmul.f32 %v690, %v769
      %v775 = vmul.f32 %v691, %v770
      %v776 = vmul.f32 %v692, %v771
      %v777 = vadd.f32 %v769, %v773
      %v778 = vadd.f32 %v770, %v774
      %v779 = vadd.f32 %v771, %v775
      %v780 = vadd.f32 %v772, %v776
      %v781 = vmul.f32 %v714, %v779
      %v782 = vmul.f32 %v715, %v780
      %v783 = vmul.f32 %v716, %v777
      %v784 = vmul.f32 %v717, %v778
      %v785 = vadd.f32 %v777, %v781
      %v786 = vadd.f32 %v778, %v782
      %v787 = vadd.f32 %v779, %v783
      %v788 = vadd.f32 %v780, %v784
      %v789 = vmul.f32 %v587, 0.0
      %v790 = vmul.f32 %v589, 0.0
      %v791 = vmul.f32 %v591, 0.0
      %v792 = vmul.f32 %v593, 0.0
      %v793 = vadd.f32 %v785, %v789
      %v794 = vadd.f32 %v786, %v790
      %v795 = vadd.f32 %v787, %v791
      %v796 = vadd.f32 %v788, %v792
      %797 = vst [vmem:[#allocation4] sm:$0xff] %v793
      %798 = vst [vmem:[#allocation4 + $0x8] sm:$0xff] %v794
      %799 = vst [vmem:[#allocation4 + $0x10] sm:$0xff] %v795
      %800 = vst [vmem:[#allocation4 + $0x18] sm:$0xff] %v796
      %v801 = vld [vmem:[#allocation4] sm:$0xff]
      %v802 = vld [vmem:[#allocation4 + $0x8] sm:$0xff]
      %v803 = vld [vmem:[#allocation4 + $0x10] sm:$0xff]
      %v804 = vld [vmem:[#allocation4 + $0x18] sm:$0xff]
      %v805 = vpack.c.bf16 %v802, %v801
      %v806 = vpack.c.bf16 %v804, %v803
      %v807 = vld [vmem:[#allocation3] sm:$0xff]
      %v808 = vld [vmem:[#allocation3 + $0x8] sm:$0xff]
      %v809 = vmul.bf16 %v805, %v807
      %v810 = vmul.bf16 %v806, %v808
      %v811 = vld [vmem:[%s4] sm:$0xf]
      %v812 = vld [vmem:[%s4 + $0x4] sm:$0xf]
      %v813 = vld [vmem:[%s4 + $0x8] sm:$0xf]
      %v814 = vld [vmem:[%s4 + $0xc] sm:$0xf]
      %v815 = vld [vmem:[%s4 + $0x10] sm:$0xf]
      %v816 = vld [vmem:[%s4 + $0x14] sm:$0xf]
      %v817 = vld [vmem:[%s4 + $0x18] sm:$0xf]
      %v818 = vld [vmem:[%s4 + $0x1c] sm:$0xf]
      %v819 = vld [vmem:[%s4 + $0x20] sm:$0xf]
      %v820 = vld [vmem:[%s4 + $0x24] sm:$0xf]
      %v821 = vld [vmem:[%s4 + $0x28] sm:$0xf]
      %v822 = vld [vmem:[%s4 + $0x2c] sm:$0xf]
      %v823 = vld [vmem:[%s4 + $0x30] sm:$0xf]
      %v824 = vld [vmem:[%s4 + $0x34] sm:$0xf]
      %v825 = vld [vmem:[%s4 + $0x38] sm:$0xf]
      %v826 = vld [vmem:[%s4 + $0x3c] sm:$0xf]
      %v843 = vunpack.c.l.b16 %v811
      %v844 = vunpack.c.l.b16 %v812
      %v845 = vunpack.c.l.b16 %v813
      %v846 = vunpack.c.l.b16 %v814
      %v847 = vunpack.c.l.b16 %v815
      %v848 = vunpack.c.l.b16 %v816
      %v849 = vunpack.c.l.b16 %v817
      %v850 = vunpack.c.l.b16 %v818
      %v851 = vunpack.c.l.b16 %v819
      %v852 = vunpack.c.l.b16 %v820
      %v853 = vunpack.c.l.b16 %v821
      %v854 = vunpack.c.l.b16 %v822
      %v855 = vunpack.c.l.b16 %v823
      %v856 = vunpack.c.l.b16 %v824
      %v857 = vunpack.c.l.b16 %v825
      %v858 = vunpack.c.l.b16 %v826
      %v859 = vpack.c.b16 %v844, %v843
      %v860 = vpack.c.b16 %v846, %v845
      %v861 = vpack.c.b16 %v848, %v847
      %v862 = vpack.c.b16 %v850, %v849
      %v863 = vpack.c.b16 %v852, %v851
      %v864 = vpack.c.b16 %v854, %v853
      %v865 = vpack.c.b16 %v856, %v855
      %v866 = vpack.c.b16 %v858, %v857
      %875 = vmatprep.subr.bf16.mxu0 0
      %876 = vmatpush1.bf16.msra.mxu0 %v859
      %877 = vmatprep.subr.bf16.mxu0 0
      %878 = vmatpush1.bf16.msra.mxu0 %v860
      %879 = vmatprep.subr.bf16.mxu0 0
      %880 = vmatpush1.bf16.msra.mxu0 %v861
      %881 = vmatprep.subr.bf16.mxu0 0
      %882 = vmatpush1.bf16.msra.mxu0 %v862
      %883 = vmatprep.subr.bf16.mxu0 0
      %884 = vmatpush1.bf16.msra.mxu0 %v863
      %885 = vmatprep.subr.bf16.mxu0 0
      %886 = vmatpush1.bf16.msra.mxu0 %v864
      %887 = vmatprep.subr.bf16.mxu0 0
      %888 = vmatpush1.bf16.msra.mxu0 %v865
      %889 = vmatprep.subr.bf16.mxu0 0
      %890 = vmatpush1.bf16.msra.mxu0 %v866
      %891 = vmatprep.subr.bf16.mxu0 0
      %892 = vmatpush1.bf16.msra.mxu0 0
      %893 = vmatprep.subr.bf16.mxu0 0
      %894 = vmatpush1.bf16.msra.mxu0 0
      %895 = vmatprep.subr.bf16.mxu0 0
      %896 = vmatpush1.bf16.msra.mxu0 0
      %897 = vmatprep.subr.bf16.mxu0 0
      %898 = vmatpush1.bf16.msra.mxu0 0
      %899 = vmatprep.subr.bf16.mxu0 0
      %900 = vmatpush1.bf16.msra.mxu0 0
      %901 = vmatprep.subr.bf16.mxu0 0
      %902 = vmatpush1.bf16.msra.mxu0 0
      %903 = vmatprep.subr.bf16.mxu0 0
      %904 = vmatpush1.bf16.msra.mxu0 0
      %905 = vmatprep.subr.bf16.mxu0 0
      %906 = vmatpush1.bf16.msra.mxu0 0
      %907 = vmatprep.mubr.bf16.mxu0 0
      %908 = vmatmul.mubr.bf16.gmra.mrb[0].mxu0 %v809
      %v909 = vpop.f32.mrb[0].mxu0
      %v910 = vadd.f32 0.0, %v909
      %v911 = vpop.f32.mrb[0].mxu0
      %v912 = vpop.f32.mrb[0].mxu0
      %v913 = vadd.f32 0.0, %v912
      %v914 = vpop.f32.mrb[0].mxu0
      %915 = vmatprep.mubr.bf16.mxu0 0
      %916 = vmatmul.mubr.bf16.gmra.mrb[0].mxu0 %v810
      %v917 = vpop.f32.mrb[0].mxu0
      %v918 = vadd.f32 0.0, %v917
      %v919 = vpop.f32.mrb[0].mxu0
      %v920 = vpop.f32.mrb[0].mxu0
      %v921 = vadd.f32 0.0, %v920
      %v922 = vpop.f32.mrb[0].mxu0
      %923 = vdwg.mxu0
      %v924 = vld [vmem:[%s246] sm:$0xf]
      %v925 = vld [vmem:[%s246 + $0x4] sm:$0xf]
      %v926 = vld [vmem:[%s246 + $0x8] sm:$0xf]
      %v927 = vld [vmem:[%s246 + $0xc] sm:$0xf]
      %v928 = vunpack.c.l.bf16 %v924
      %v929 = vunpack.c.l.bf16 %v925
      %v930 = vunpack.c.l.bf16 %v926
      %v931 = vunpack.c.l.bf16 %v927
      %v932 = vadd.f32 %v928, %v910
      %v933 = vadd.f32 %v929, %v913
      %v934 = vadd.f32 %v930, %v918
      %v935 = vadd.f32 %v931, %v921
      %v936 = vpack.c.bf16 %v933, %v932
      %v937 = vpack.c.bf16 %v935, %v934
      %v940 = vunpack.c.l.b16 %v936
      %v941 = vunpack.c.h.b16 %v936
      %v942 = vunpack.c.l.b16 %v937
      %v943 = vunpack.c.h.b16 %v937
      %v944 = vpack.c.b16 %v940, %v940
      %v945 = vpack.c.b16 %v941, %v941
      %v946 = vpack.c.b16 %v942, %v942
      %v947 = vpack.c.b16 %v943, %v943
      %952 = vst [vmem:[%s251] sm:$0xf] %v944
      %953 = vst [vmem:[%s251 + $0x4] sm:$0xf] %v945
      %954 = vst [vmem:[%s251 + $0x8] sm:$0xf] %v946
      %955 = vst [vmem:[%s251 + $0xc] sm:$0xf] %v947
      %p956 = scmp.lt.s32.totalorder %s17, 1
      %s957 = scalar_select %p956, %s17, 1
      %s958 = smul.addr %s957, 4
      %s959 = smul.addr %s958, 4
      %s960 = scalar_lea.vmem %s6, %s959
      // Predicated region
      $region45: #{radio_mamba_v2_forward.9} parent=43 // pred_check
        %p961 = pneg %p166
      $region46: #{radio_mamba_v2_forward.9} parent=43 // pred_check_branch
        %963 = sbr.rel (%p961) target = $region48
      $region47: #{radio_mamba_v2_forward.9} parent=43 // pred_region
        _
      $region48: #{radio_mamba_v2_forward.9} parent=43 // pred_fallthru
        _
    $region44: #{radio_mamba_v2_forward.9} parent=5 // pred_fallthru
      _
    %p964 = scmp.le.s32.totalorder 2, %s12
    // Predicated region
    $region49: #{radio_mamba_v2_forward.9} parent=5 // pred_check
      %p965 = pneg %p964
    $region50: #{radio_mamba_v2_forward.9} parent=5 // pred_check_branch
      %967 = sbr.rel (%p965) target = $region52
    $region51: #{radio_mamba_v2_forward.9} parent=5 // pred_region
      %s968 = ssub.s32 %s12, 2
      // Predicated region
      $region53: #{radio_mamba_v2_forward.9} parent=51 // pred_check
        %p969 = pneg %p172
      $region54: #{radio_mamba_v2_forward.9} parent=51 // pred_check_branch
        %971 = sbr.rel (%p969) target = $region56
      $region55: #{radio_mamba_v2_forward.9} parent=51 // pred_region
        %p972 = scmp.lt.s32.totalorder %s18, 1
        %s973 = scalar_select %p972, %s18, 1
        %s974 = smul.addr %s973, 4
        %s975 = smul.addr %s974, 4
        %s976 = scalar_lea.vmem %s6, %s975
      $region56: #{radio_mamba_v2_forward.9} parent=51 // pred_fallthru
        _
    $region52: #{radio_mamba_v2_forward.9} parent=5 // pred_fallthru
      _
  $region6: #{radio_mamba_v2_forward.9} parent=0 // loop_footer
    %s16 = sadd.s32 1, %s12
  $region7: #{radio_mamba_v2_forward.9} parent=0 // loop_footer_branch
    %11 = sbr.rel target = $region3
  $region8: #{radio_mamba_v2_forward.9} parent=0 // loop_exit
    _

// kernel: radio_mamba_v2_forward.6
$region0: #{radio_mamba_v2_forward.6}
  #allocation0 [shape = 'u32[]', space=smem, size = 0x4, offset = 0x4, fixed_abs, tag = 'smem constant byte address 0x4 - core index']
  #allocation1 [shape = 'u32[144,128]{1,0:T(1,128)}', space=vmem, size = 0x12000, scoped, tag = 'internal scratch']
  #allocation2 [shape = 'bf16[16,768]{1,0:T(16,128)(2,1)}', space=vmem, size = 0x6000, scoped, tag = 'scratch operand']
  %s0 = inlined_call_operand.vmem [shape: bf16[32,768], index: 0, kind: input, shape index: {}]
  %s1 = inlined_call_operand.vmem [shape: bf16[768,768], index: 1, kind: input, shape index: {}]
  %s2 = inlined_call_operand.vmem [shape: f32[1,768], index: 2, kind: input, shape index: {}]
  %s3 = inlined_call_operand.vmem [shape: bf16[768,256], index: 3, kind: input, shape index: {}]
  %s4 = inlined_call_operand.vmem [shape: f32[1,256], index: 4, kind: input, shape index: {}]
  %s5 = inlined_call_operand.vmem [shape: bf16[32,256], index: 5, kind: output, shape index: {}]
  %s6 = sld [smem:[#allocation0]]
  $region53: #{radio_mamba_v2_forward.6} parent=0
    _
  %s8 = ssub.s32 1, %s6
  %s9 = scalar_select 0, %s8, %s6
  loop: start=0, step=1, limit=4
  $region2: #{radio_mamba_v2_forward.6} parent=0 // loop_pre_header
    _
  $region3: #{radio_mamba_v2_forward.6} parent=0 // loop_header
    %s11 = sphi 0, %s15
    %p12 = scmp.ge.s32.totalorder %s11, 4
    %s21 = sphi 0, %s23
    %s24 = sphi 0, %s21
    %s25 = sphi 0, %s24
    %s41 = sphi 0, %s25
    %s45 = sphi 0, %s45
    %s47 = sphi 0, %s45
    %s48 = sphi 0, %s47
    %s62 = sphi 0, %s48
    %s66 = sphi 0, %s66
    %s68 = sphi 0, %s66
    %s69 = sphi 0, %s68
    %s83 = sphi 0, %s69
    %s87 = sphi 0, %s87
    %s89 = sphi 0, %s87
    %s90 = sphi 0, %s89
    %s104 = sphi 0, %s90
    %s108 = sphi 0, %s108
    %s110 = sphi 0, %s108
    %s111 = sphi 0, %s110
    %s125 = sphi 0, %s111
    %s131 = sphi 0, %s133
    %s134 = sphi 0, %s131
    %s135 = sphi 0, %s134
    %s151 = sphi 0, %s135
  $region4: #{radio_mamba_v2_forward.6} parent=0 // loop_header_branch
    %14 = sbr.rel (%p12) target = $region8
  $region5: #{radio_mamba_v2_forward.6} parent=0 // loop_body
    %s16 = ssub.s32 %s11, 1
    %s17 = ssub.s32 %s11, 2
    %s18 = sadd.s32 %s11, 1
    %s19 = ssub.s32 %s11, %s18
    %p20 = scmp.eq.s32.totalorder %s19, 0
    %s22 = sadd.s32 %s21, 1
    %s23 = scalar_select %p20, %s21, %s22
    %p26 = pneg %p20
    %p27 = scmp.eq.s32.totalorder %s11, 1
    %p28 = por %p26, %p27
    %p29 = scmp.ne.s32.totalorder %s21, %s24
    %p30 = scmp.eq.s32.totalorder %s11, 0
    %p31 = por %p29, %p30
    %p32 = scmp.ne.s32.totalorder %s21, %s24
    %p33 = scmp.eq.s32.totalorder %s16, 1
    %p34 = por %p32, %p33
    %p35 = scmp.ne.s32.totalorder %s24, %s25
    %p36 = scmp.eq.s32.totalorder %s16, 0
    %p37 = por %p35, %p36
    %p38 = scmp.ne.s32.totalorder %s24, %s25
    %p39 = scmp.eq.s32.totalorder %s17, 1
    %p40 = por %p38, %p39
    %p42 = scmp.ne.s32.totalorder %s25, %s41
    %p43 = scmp.eq.s32.totalorder %s17, 0
    %p44 = por %p42, %p43
    %s46 = sadd.s32 %s45, 1
    %p49 = scmp.eq.s32.totalorder %s11, 1
    %p50 = scmp.ne.s32.totalorder %s45, %s47
    %p51 = scmp.eq.s32.totalorder %s11, 0
    %p52 = por %p50, %p51
    %p53 = scmp.ne.s32.totalorder %s45, %s47
    %p54 = scmp.eq.s32.totalorder %s16, 1
    %p55 = por %p53, %p54
    %p56 = scmp.ne.s32.totalorder %s47, %s48
    %p57 = scmp.eq.s32.totalorder %s16, 0
    %p58 = por %p56, %p57
    %p59 = scmp.ne.s32.totalorder %s47, %s48
    %p60 = scmp.eq.s32.totalorder %s17, 1
    %p61 = por %p59, %p60
    %p63 = scmp.ne.s32.totalorder %s48, %s62
    %p64 = scmp.eq.s32.totalorder %s17, 0
    %p65 = por %p63, %p64
    %s67 = sadd.s32 %s66, 1
    %p70 = scmp.eq.s32.totalorder %s11, 1
    %p71 = scmp.ne.s32.totalorder %s66, %s68
    %p72 = scmp.eq.s32.totalorder %s11, 0
    %p73 = por %p71, %p72
    %p74 = scmp.ne.s32.totalorder %s66, %s68
    %p75 = scmp.eq.s32.totalorder %s16, 1
    %p76 = por %p74, %p75
    %p77 = scmp.ne.s32.totalorder %s68, %s69
    %p78 = scmp.eq.s32.totalorder %s16, 0
    %p79 = por %p77, %p78
    %p80 = scmp.ne.s32.totalorder %s68, %s69
    %p81 = scmp.eq.s32.totalorder %s17, 1
    %p82 = por %p80, %p81
    %p84 = scmp.ne.s32.totalorder %s69, %s83
    %p85 = scmp.eq.s32.totalorder %s17, 0
    %p86 = por %p84, %p85
    %s88 = sadd.s32 %s87, 1
    %p91 = scmp.eq.s32.totalorder %s11, 1
    %p92 = scmp.ne.s32.totalorder %s87, %s89
    %p93 = scmp.eq.s32.totalorder %s11, 0
    %p94 = por %p92, %p93
    %p95 = scmp.ne.s32.totalorder %s87, %s89
    %p96 = scmp.eq.s32.totalorder %s16, 1
    %p97 = por %p95, %p96
    %p98 = scmp.ne.s32.totalorder %s89, %s90
    %p99 = scmp.eq.s32.totalorder %s16, 0
    %p100 = por %p98, %p99
    %p101 = scmp.ne.s32.totalorder %s89, %s90
    %p102 = scmp.eq.s32.totalorder %s17, 1
    %p103 = por %p101, %p102
    %p105 = scmp.ne.s32.totalorder %s90, %s104
    %p106 = scmp.eq.s32.totalorder %s17, 0
    %p107 = por %p105, %p106
    %s109 = sadd.s32 %s108, 1
    %p112 = scmp.eq.s32.totalorder %s11, 1
    %p113 = scmp.ne.s32.totalorder %s108, %s110
    %p114 = scmp.eq.s32.totalorder %s11, 0
    %p115 = por %p113, %p114
    %p116 = scmp.ne.s32.totalorder %s108, %s110
    %p117 = scmp.eq.s32.totalorder %s16, 1
    %p118 = por %p116, %p117
    %p119 = scmp.ne.s32.totalorder %s110, %s111
    %p120 = scmp.eq.s32.totalorder %s16, 0
    %p121 = por %p119, %p120
    %p122 = scmp.ne.s32.totalorder %s110, %s111
    %p123 = scmp.eq.s32.totalorder %s17, 1
    %p124 = por %p122, %p123
    %p126 = scmp.ne.s32.totalorder %s111, %s125
    %p127 = scmp.eq.s32.totalorder %s17, 0
    %p128 = por %p126, %p127
    %s129 = ssub.s32 %s11, %s18
    %p130 = scmp.eq.s32.totalorder %s129, 0
    %s132 = sadd.s32 %s131, 1
    %s133 = scalar_select %p130, %s131, %s132
    %p136 = pneg %p130
    %p137 = scmp.eq.s32.totalorder %s11, 1
    %p138 = por %p136, %p137
    %p139 = scmp.ne.s32.totalorder %s131, %s134
    %p140 = scmp.eq.s32.totalorder %s11, 0
    %p141 = por %p139, %p140
    %p142 = scmp.ne.s32.totalorder %s131, %s134
    %p143 = scmp.eq.s32.totalorder %s16, 1
    %p144 = por %p142, %p143
    %p145 = scmp.ne.s32.totalorder %s134, %s135
    %p146 = scmp.eq.s32.totalorder %s16, 0
    %p147 = por %p145, %p146
    %p148 = scmp.ne.s32.totalorder %s134, %s135
    %p149 = scmp.eq.s32.totalorder %s17, 1
    %p150 = por %p148, %p149
    %p152 = scmp.ne.s32.totalorder %s135, %s151
    %p153 = scmp.eq.s32.totalorder %s17, 0
    %p154 = por %p152, %p153
    %p155 = scmp.le.s32.totalorder 1, %s11
    %p156 = scmp.lt.s32.totalorder %s11, 3
    %p157 = pnand %p155, %p156
    %p158 = pneg %p157
    // Predicated region
    $region9: #{radio_mamba_v2_forward.6} parent=5 // pred_check
      _
    $region10: #{radio_mamba_v2_forward.6} parent=5 // pred_check_branch
      %160 = sbr.rel (%p157) target = $region12
    $region11: #{radio_mamba_v2_forward.6} parent=5 // pred_region
      %s161 = ssub.s32 %s11, 1
      // Predicated region
      $region13: #{radio_mamba_v2_forward.6} parent=11 // pred_check
        %p162 = pneg %p58
      $region14: #{radio_mamba_v2_forward.6} parent=11 // pred_check_branch
        %164 = sbr.rel (%p162) target = $region16
      $region15: #{radio_mamba_v2_forward.6} parent=11 // pred_region
        _
      $region16: #{radio_mamba_v2_forward.6} parent=11 // pred_fallthru
        _
      // Predicated region
      $region17: #{radio_mamba_v2_forward.6} parent=11 // pred_check
        %p165 = pneg %p79
      $region18: #{radio_mamba_v2_forward.6} parent=11 // pred_check_branch
        %167 = sbr.rel (%p165) target = $region20
      $region19: #{radio_mamba_v2_forward.6} parent=11 // pred_region
        _
      $region20: #{radio_mamba_v2_forward.6} parent=11 // pred_fallthru
        _
      // Predicated region
      $region21: #{radio_mamba_v2_forward.6} parent=11 // pred_check
        %p168 = pneg %p100
      $region22: #{radio_mamba_v2_forward.6} parent=11 // pred_check_branch
        %170 = sbr.rel (%p168) target = $region24
      $region23: #{radio_mamba_v2_forward.6} parent=11 // pred_region
        _
      $region24: #{radio_mamba_v2_forward.6} parent=11 // pred_fallthru
        _
      // Predicated region
      $region25: #{radio_mamba_v2_forward.6} parent=11 // pred_check
        %p171 = pneg %p121
      $region26: #{radio_mamba_v2_forward.6} parent=11 // pred_check_branch
        %173 = sbr.rel (%p171) target = $region28
      $region27: #{radio_mamba_v2_forward.6} parent=11 // pred_region
        _
      $region28: #{radio_mamba_v2_forward.6} parent=11 // pred_fallthru
        _
    $region12: #{radio_mamba_v2_forward.6} parent=5 // pred_fallthru
      _
    %p174 = scmp.lt.s32.totalorder %s11, 2
    // Predicated region
    $region29: #{radio_mamba_v2_forward.6} parent=5 // pred_check
      %p175 = pneg %p174
    $region30: #{radio_mamba_v2_forward.6} parent=5 // pred_check_branch
      %177 = sbr.rel (%p175) target = $region32
    $region31: #{radio_mamba_v2_forward.6} parent=5 // pred_region
      // Predicated region
      $region33: #{radio_mamba_v2_forward.6} parent=31 // pred_check
        %p178 = pneg %p31
      $region34: #{radio_mamba_v2_forward.6} parent=31 // pred_check_branch
        %180 = sbr.rel (%p178) target = $region36
      $region35: #{radio_mamba_v2_forward.6} parent=31 // pred_region
        %s181 = smul.u32 2, %s11
        %p182 = scmp.lt.s32.totalorder %s181, 3
        %s183 = scalar_select %p182, %s181, 3
        %s184 = smul.addr %s183, 6
        %s185 = smul.addr %s184, 4
        %s186 = scalar_lea.vmem %s0, %s185
        %s187 = smul.u32 2, %s11
      $region36: #{radio_mamba_v2_forward.6} parent=31 // pred_fallthru
        _
    $region32: #{radio_mamba_v2_forward.6} parent=5 // pred_fallthru
      _
    %p188 = scmp.le.s32.totalorder 1, %s11
    %p189 = scmp.lt.s32.totalorder %s11, 3
    %p190 = pnand %p188, %p189
    %p191 = pneg %p190
    // Predicated region
    $region37: #{radio_mamba_v2_forward.6} parent=5 // pred_check
      _
    $region38: #{radio_mamba_v2_forward.6} parent=5 // pred_check_branch
      %193 = sbr.rel (%p190) target = $region40
    $region39: #{radio_mamba_v2_forward.6} parent=5 // pred_region
      %s194 = ssub.s32 %s11, 1
      %s195 = smul.u32 2, %s16
      %p196 = scmp.lt.s32.totalorder %s195, 3
      %s197 = scalar_select %p196, %s195, 3
      %s198 = smul.addr %s197, 6
      %s199 = smul.addr %s198, 4
      %s200 = scalar_lea.vmem %s0, %s199
      %p201 = pneg %p37
      %p202 = pneg %p34
      %p203 = pneg %p58
      %p204 = pneg %p55
      %p205 = pneg %p79
      %p206 = pneg %p76
      %p207 = pneg %p100
      %p208 = pneg %p97
      %p209 = pneg %p121
      %p210 = pneg %p118
      %p211 = pneg %p147
      %p212 = pneg %p144
      %s213 = smul.u32 2, %s16
      %p214 = scmp.lt.s32.totalorder %s213, 3
      %s215 = scalar_select %p214, %s213, 3
      %s216 = smul.addr %s215, 2
      %s217 = smul.addr %s216, 4
      %s218 = scalar_lea.vmem %s5, %s217
      %s219 = smul.u32 2, %s16
      %p220 = scmp.lt.s32.totalorder %s219, 3
      %s221 = scalar_select %p220, %s219, 3
      %s222 = smul.addr %s221, 6
      %s223 = smul.addr %s222, 4
      %s224 = scalar_lea.vmem %s0, %s223
      %s225 = smul.u32 2, %s16
      %s226 = smul.u32 2, %s16
      %p227 = scmp.lt.s32.totalorder %s226, 3
      %s228 = scalar_select %p227, %s226, 3
      %s229 = smul.addr %s228, 2
      %s230 = smul.addr %s229, 4
      %s231 = scalar_lea.vmem %s5, %s230
      %s232 = smul.u32 2, %s16
      %v233 = vld [vmem:[%s224] sm:$0xff]
      %v234 = vld [vmem:[%s224 + $0x8] sm:$0xff]
      %v235 = vld [vmem:[%s224 + $0x10] sm:$0xff]
      %v236 = vld [vmem:[%s224 + $0x18] sm:$0xff]
      %v237 = vld [vmem:[%s224 + $0x20] sm:$0xff]
      %v238 = vld [vmem:[%s224 + $0x28] sm:$0xff]
      %v239 = vld [vmem:[%s1] sm:$0xff]
      %v240 = vld [vmem:[%s1 + $0x8] sm:$0xff]
      %v241 = vld [vmem:[%s1 + $0x10] sm:$0xff]
      %v242 = vld [vmem:[%s1 + $0x18] sm:$0xff]
      %v243 = vld [vmem:[%s1 + $0x20] sm:$0xff]
      %v244 = vld [vmem:[%s1 + $0x28] sm:$0xff]
      %v245 = vld [vmem:[%s1 + $0x30] sm:$0xff]
      %v246 = vld [vmem:[%s1 + $0x38] sm:$0xff]
      %v247 = vld [vmem:[%s1 + $0x40] sm:$0xff]
      %v248 = vld [vmem:[%s1 + $0x48] sm:$0xff]
      %v249 = vld [vmem:[%s1 + $0x50] sm:$0xff]
      %v250 = vld [vmem:[%s1 + $0x58] sm:$0xff]
      %v251 = vld [vmem:[%s1 + $0x60] sm:$0xff]
      %v252 = vld [vmem:[%s1 + $0x68] sm:$0xff]
      %v253 = vld [vmem:[%s1 + $0x70] sm:$0xff]
      %v254 = vld [vmem:[%s1 + $0x78] sm:$0xff]
      %v255 = vld [vmem:[%s1 + $0x80] sm:$0xff]
      %v256 = vld [vmem:[%s1 + $0x88] sm:$0xff]
      %v257 = vld [vmem:[%s1 + $0x90] sm:$0xff]
      %v258 = vld [vmem:[%s1 + $0x98] sm:$0xff]
      %v259 = vld [vmem:[%s1 + $0xa0] sm:$0xff]
      %v260 = vld [vmem:[%s1 + $0xa8] sm:$0xff]
      %v261 = vld [vmem:[%s1 + $0xb0] sm:$0xff]
      %v262 = vld [vmem:[%s1 + $0xb8] sm:$0xff]
      %v263 = vld [vmem:[%s1 + $0xc0] sm:$0xff]
      %v264 = vld [vmem:[%s1 + $0xc8] sm:$0xff]
      %v265 = vld [vmem:[%s1 + $0xd0] sm:$0xff]
      %v266 = vld [vmem:[%s1 + $0xd8] sm:$0xff]
      %v267 = vld [vmem:[%s1 + $0xe0] sm:$0xff]
      %v268 = vld [vmem:[%s1 + $0xe8] sm:$0xff]
      %v269 = vld [vmem:[%s1 + $0xf0] sm:$0xff]
      %v270 = vld [vmem:[%s1 + $0xf8] sm:$0xff]
      %v271 = vld [vmem:[%s1 + $0x100] sm:$0xff]
      %v272 = vld [vmem:[%s1 + $0x108] sm:$0xff]
      %v273 = vld [vmem:[%s1 + $0x110] sm:$0xff]
      %v274 = vld [vmem:[%s1 + $0x118] sm:$0xff]
      %v275 = vld [vmem:[%s1 + $0x120] sm:$0xff]
      %v276 = vld [vmem:[%s1 + $0x128] sm:$0xff]
      %v277 = vld [vmem:[%s1 + $0x130] sm:$0xff]
      %v278 = vld [vmem:[%s1 + $0x138] sm:$0xff]
      %v279 = vld [vmem:[%s1 + $0x140] sm:$0xff]
      %v280 = vld [vmem:[%s1 + $0x148] sm:$0xff]
      %v281 = vld [vmem:[%s1 + $0x150] sm:$0xff]
      %v282 = vld [vmem:[%s1 + $0x158] sm:$0xff]
      %v283 = vld [vmem:[%s1 + $0x160] sm:$0xff]
      %v284 = vld [vmem:[%s1 + $0x168] sm:$0xff]
      %v285 = vld [vmem:[%s1 + $0x170] sm:$0xff]
      %v286 = vld [vmem:[%s1 + $0x178] sm:$0xff]
      %v287 = vld [vmem:[%s1 + $0x180] sm:$0xff]
      %v288 = vld [vmem:[%s1 + $0x188] sm:$0xff]
      %v289 = vld [vmem:[%s1 + $0x190] sm:$0xff]
      %v290 = vld [vmem:[%s1 + $0x198] sm:$0xff]
      %v291 = vld [vmem:[%s1 + $0x1a0] sm:$0xff]
      %v292 = vld [vmem:[%s1 + $0x1a8] sm:$0xff]
      %v293 = vld [vmem:[%s1 + $0x1b0] sm:$0xff]
      %v294 = vld [vmem:[%s1 + $0x1b8] sm:$0xff]
      %v295 = vld [vmem:[%s1 + $0x1c0] sm:$0xff]
      %v296 = vld [vmem:[%s1 + $0x1c8] sm:$0xff]
      %v297 = vld [vmem:[%s1 + $0x1d0] sm:$0xff]
      %v298 = vld [vmem:[%s1 + $0x1d8] sm:$0xff]
      %v299 = vld [vmem:[%s1 + $0x1e0] sm:$0xff]
      %v300 = vld [vmem:[%s1 + $0x1e8] sm:$0xff]
      %v301 = vld [vmem:[%s1 + $0x1f0] sm:$0xff]
      %v302 = vld [vmem:[%s1 + $0x1f8] sm:$0xff]
      %v303 = vld [vmem:[%s1 + $0x200] sm:$0xff]
      %v304 = vld [vmem:[%s1 + $0x208] sm:$0xff]
      %v305 = vld [vmem:[%s1 + $0x210] sm:$0xff]
      %v306 = vld [vmem:[%s1 + $0x218] sm:$0xff]
      %v307 = vld [vmem:[%s1 + $0x220] sm:$0xff]
      %v308 = vld [vmem:[%s1 + $0x228] sm:$0xff]
      %v309 = vld [vmem:[%s1 + $0x230] sm:$0xff]
      %v310 = vld [vmem:[%s1 + $0x238] sm:$0xff]
      %v311 = vld [vmem:[%s1 + $0x240] sm:$0xff]
      %v312 = vld [vmem:[%s1 + $0x248] sm:$0xff]
      %v313 = vld [vmem:[%s1 + $0x250] sm:$0xff]
      %v314 = vld [vmem:[%s1 + $0x258] sm:$0xff]
      %v315 = vld [vmem:[%s1 + $0x260] sm:$0xff]
      %v316 = vld [vmem:[%s1 + $0x268] sm:$0xff]
      %v317 = vld [vmem:[%s1 + $0x270] sm:$0xff]
      %v318 = vld [vmem:[%s1 + $0x278] sm:$0xff]
      %v319 = vld [vmem:[%s1 + $0x280] sm:$0xff]
      %v320 = vld [vmem:[%s1 + $0x288] sm:$0xff]
      %v321 = vld [vmem:[%s1 + $0x290] sm:$0xff]
      %v322 = vld [vmem:[%s1 + $0x298] sm:$0xff]
      %v323 = vld [vmem:[%s1 + $0x2a0] sm:$0xff]
      %v324 = vld [vmem:[%s1 + $0x2a8] sm:$0xff]
      %v325 = vld [vmem:[%s1 + $0x2b0] sm:$0xff]
      %v326 = vld [vmem:[%s1 + $0x2b8] sm:$0xff]
      %v327 = vld [vmem:[%s1 + $0x2c0] sm:$0xff]
      %v328 = vld [vmem:[%s1 + $0x2c8] sm:$0xff]
      %v329 = vld [vmem:[%s1 + $0x2d0] sm:$0xff]
      %v330 = vld [vmem:[%s1 + $0x2d8] sm:$0xff]
      %v331 = vld [vmem:[%s1 + $0x2e0] sm:$0xff]
      %v332 = vld [vmem:[%s1 + $0x2e8] sm:$0xff]
      %v333 = vld [vmem:[%s1 + $0x2f0] sm:$0xff]
      %v334 = vld [vmem:[%s1 + $0x2f8] sm:$0xff]
      %v335 = vld [vmem:[%s1 + $0x300] sm:$0xff]
      %v336 = vld [vmem:[%s1 + $0x308] sm:$0xff]
      %v337 = vld [vmem:[%s1 + $0x310] sm:$0xff]
      %v338 = vld [vmem:[%s1 + $0x318] sm:$0xff]
      %v339 = vld [vmem:[%s1 + $0x320] sm:$0xff]
      %v340 = vld [vmem:[%s1 + $0x328] sm:$0xff]
      %v341 = vld [vmem:[%s1 + $0x330] sm:$0xff]
      %v342 = vld [vmem:[%s1 + $0x338] sm:$0xff]
      %v343 = vld [vmem:[%s1 + $0x340] sm:$0xff]
      %v344 = vld [vmem:[%s1 + $0x348] sm:$0xff]
      %v345 = vld [vmem:[%s1 + $0x350] sm:$0xff]
      %v346 = vld [vmem:[%s1 + $0x358] sm:$0xff]
      %v347 = vld [vmem:[%s1 + $0x360] sm:$0xff]
      %v348 = vld [vmem:[%s1 + $0x368] sm:$0xff]
      %v349 = vld [vmem:[%s1 + $0x370] sm:$0xff]
      %v350 = vld [vmem:[%s1 + $0x378] sm:$0xff]
      %v351 = vld [vmem:[%s1 + $0x380] sm:$0xff]
      %v352 = vld [vmem:[%s1 + $0x388] sm:$0xff]
      %v353 = vld [vmem:[%s1 + $0x390] sm:$0xff]
      %v354 = vld [vmem:[%s1 + $0x398] sm:$0xff]
      %v355 = vld [vmem:[%s1 + $0x3a0] sm:$0xff]
      %v356 = vld [vmem:[%s1 + $0x3a8] sm:$0xff]
      %v357 = vld [vmem:[%s1 + $0x3b0] sm:$0xff]
      %v358 = vld [vmem:[%s1 + $0x3b8] sm:$0xff]
      %v359 = vld [vmem:[%s1 + $0x3c0] sm:$0xff]
      %v360 = vld [vmem:[%s1 + $0x3c8] sm:$0xff]
      %v361 = vld [vmem:[%s1 + $0x3d0] sm:$0xff]
      %v362 = vld [vmem:[%s1 + $0x3d8] sm:$0xff]
      %v363 = vld [vmem:[%s1 + $0x3e0] sm:$0xff]
      %v364 = vld [vmem:[%s1 + $0x3e8] sm:$0xff]
      %v365 = vld [vmem:[%s1 + $0x3f0] sm:$0xff]
      %v366 = vld [vmem:[%s1 + $0x3f8] sm:$0xff]
      %v367 = vld [vmem:[%s1 + $0x400] sm:$0xff]
      %v368 = vld [vmem:[%s1 + $0x408] sm:$0xff]
      %v369 = vld [vmem:[%s1 + $0x410] sm:$0xff]
      %v370 = vld [vmem:[%s1 + $0x418] sm:$0xff]
      %v371 = vld [vmem:[%s1 + $0x420] sm:$0xff]
      %v372 = vld [vmem:[%s1 + $0x428] sm:$0xff]
      %v373 = vld [vmem:[%s1 + $0x430] sm:$0xff]
      %v374 = vld [vmem:[%s1 + $0x438] sm:$0xff]
      %v375 = vld [vmem:[%s1 + $0x440] sm:$0xff]
      %v376 = vld [vmem:[%s1 + $0x448] sm:$0xff]
      %v377 = vld [vmem:[%s1 + $0x450] sm:$0xff]
      %v378 = vld [vmem:[%s1 + $0x458] sm:$0xff]
      %v379 = vld [vmem:[%s1 + $0x460] sm:$0xff]
      %v380 = vld [vmem:[%s1 + $0x468] sm:$0xff]
      %v381 = vld [vmem:[%s1 + $0x470] sm:$0xff]
      %v382 = vld [vmem:[%s1 + $0x478] sm:$0xff]
      %v383 = vld [vmem:[%s1 + $0x480] sm:$0xff]
      %v384 = vld [vmem:[%s1 + $0x488] sm:$0xff]
      %v385 = vld [vmem:[%s1 + $0x490] sm:$0xff]
      %v386 = vld [vmem:[%s1 + $0x498] sm:$0xff]
      %v387 = vld [vmem:[%s1 + $0x4a0] sm:$0xff]
      %v388 = vld [vmem:[%s1 + $0x4a8] sm:$0xff]
      %v389 = vld [vmem:[%s1 + $0x4b0] sm:$0xff]
      %v390 = vld [vmem:[%s1 + $0x4b8] sm:$0xff]
      %v391 = vld [vmem:[%s1 + $0x4c0] sm:$0xff]
      %v392 = vld [vmem:[%s1 + $0x4c8] sm:$0xff]
      %v393 = vld [vmem:[%s1 + $0x4d0] sm:$0xff]
      %v394 = vld [vmem:[%s1 + $0x4d8] sm:$0xff]
      %v395 = vld [vmem:[%s1 + $0x4e0] sm:$0xff]
      %v396 = vld [vmem:[%s1 + $0x4e8] sm:$0xff]
      %v397 = vld [vmem:[%s1 + $0x4f0] sm:$0xff]
      %v398 = vld [vmem:[%s1 + $0x4f8] sm:$0xff]
      %v399 = vld [vmem:[%s1 + $0x500] sm:$0xff]
      %v400 = vld [vmem:[%s1 + $0x508] sm:$0xff]
      %v401 = vld [vmem:[%s1 + $0x510] sm:$0xff]
      %v402 = vld [vmem:[%s1 + $0x518] sm:$0xff]
      %v403 = vld [vmem:[%s1 + $0x520] sm:$0xff]
      %v404 = vld [vmem:[%s1 + $0x528] sm:$0xff]
      %v405 = vld [vmem:[%s1 + $0x530] sm:$0xff]
      %v406 = vld [vmem:[%s1 + $0x538] sm:$0xff]
      %v407 = vld [vmem:[%s1 + $0x540] sm:$0xff]
      %v408 = vld [vmem:[%s1 + $0x548] sm:$0xff]
      %v409 = vld [vmem:[%s1 + $0x550] sm:$0xff]
      %v410 = vld [vmem:[%s1 + $0x558] sm:$0xff]
      %v411 = vld [vmem:[%s1 + $0x560] sm:$0xff]
      %v412 = vld [vmem:[%s1 + $0x568] sm:$0xff]
      %v413 = vld [vmem:[%s1 + $0x570] sm:$0xff]
      %v414 = vld [vmem:[%s1 + $0x578] sm:$0xff]
      %v415 = vld [vmem:[%s1 + $0x580] sm:$0xff]
      %v416 = vld [vmem:[%s1 + $0x588] sm:$0xff]
      %v417 = vld [vmem:[%s1 + $0x590] sm:$0xff]
      %v418 = vld [vmem:[%s1 + $0x598] sm:$0xff]
      %v419 = vld [vmem:[%s1 + $0x5a0] sm:$0xff]
      %v420 = vld [vmem:[%s1 + $0x5a8] sm:$0xff]
      %v421 = vld [vmem:[%s1 + $0x5b0] sm:$0xff]
      %v422 = vld [vmem:[%s1 + $0x5b8] sm:$0xff]
      %v423 = vld [vmem:[%s1 + $0x5c0] sm:$0xff]
      %v424 = vld [vmem:[%s1 + $0x5c8] sm:$0xff]
      %v425 = vld [vmem:[%s1 + $0x5d0] sm:$0xff]
      %v426 = vld [vmem:[%s1 + $0x5d8] sm:$0xff]
      %v427 = vld [vmem:[%s1 + $0x5e0] sm:$0xff]
      %v428 = vld [vmem:[%s1 + $0x5e8] sm:$0xff]
      %v429 = vld [vmem:[%s1 + $0x5f0] sm:$0xff]
      %v430 = vld [vmem:[%s1 + $0x5f8] sm:$0xff]
      %v431 = vld [vmem:[%s1 + $0x600] sm:$0xff]
      %v432 = vld [vmem:[%s1 + $0x608] sm:$0xff]
      %v433 = vld [vmem:[%s1 + $0x610] sm:$0xff]
      %v434 = vld [vmem:[%s1 + $0x618] sm:$0xff]
      %v435 = vld [vmem:[%s1 + $0x620] sm:$0xff]
      %v436 = vld [vmem:[%s1 + $0x628] sm:$0xff]
      %v437 = vld [vmem:[%s1 + $0x630] sm:$0xff]
      %v438 = vld [vmem:[%s1 + $0x638] sm:$0xff]
      %v439 = vld [vmem:[%s1 + $0x640] sm:$0xff]
      %v440 = vld [vmem:[%s1 + $0x648] sm:$0xff]
      %v441 = vld [vmem:[%s1 + $0x650] sm:$0xff]
      %v442 = vld [vmem:[%s1 + $0x658] sm:$0xff]
      %v443 = vld [vmem:[%s1 + $0x660] sm:$0xff]
      %v444 = vld [vmem:[%s1 + $0x668] sm:$0xff]
      %v445 = vld [vmem:[%s1 + $0x670] sm:$0xff]
      %v446 = vld [vmem:[%s1 + $0x678] sm:$0xff]
      %v447 = vld [vmem:[%s1 + $0x680] sm:$0xff]
      %v448 = vld [vmem:[%s1 + $0x688] sm:$0xff]
      %v449 = vld [vmem:[%s1 + $0x690] sm:$0xff]
      %v450 = vld [vmem:[%s1 + $0x698] sm:$0xff]
      %v451 = vld [vmem:[%s1 + $0x6a0] sm:$0xff]
      %v452 = vld [vmem:[%s1 + $0x6a8] sm:$0xff]
      %v453 = vld [vmem:[%s1 + $0x6b0] sm:$0xff]
      %v454 = vld [vmem:[%s1 + $0x6b8] sm:$0xff]
      %v455 = vld [vmem:[%s1 + $0x6c0] sm:$0xff]
      %v456 = vld [vmem:[%s1 + $0x6c8] sm:$0xff]
      %v457 = vld [vmem:[%s1 + $0x6d0] sm:$0xff]
      %v458 = vld [vmem:[%s1 + $0x6d8] sm:$0xff]
      %v459 = vld [vmem:[%s1 + $0x6e0] sm:$0xff]
      %v460 = vld [vmem:[%s1 + $0x6e8] sm:$0xff]
      %v461 = vld [vmem:[%s1 + $0x6f0] sm:$0xff]
      %v462 = vld [vmem:[%s1 + $0x6f8] sm:$0xff]
      %v463 = vld [vmem:[%s1 + $0x700] sm:$0xff]
      %v464 = vld [vmem:[%s1 + $0x708] sm:$0xff]
      %v465 = vld [vmem:[%s1 + $0x710] sm:$0xff]
      %v466 = vld [vmem:[%s1 + $0x718] sm:$0xff]
      %v467 = vld [vmem:[%s1 + $0x720] sm:$0xff]
      %v468 = vld [vmem:[%s1 + $0x728] sm:$0xff]
      %v469 = vld [vmem:[%s1 + $0x730] sm:$0xff]
      %v470 = vld [vmem:[%s1 + $0x738] sm:$0xff]
      %v471 = vld [vmem:[%s1 + $0x740] sm:$0xff]
      %v472 = vld [vmem:[%s1 + $0x748] sm:$0xff]
      %v473 = vld [vmem:[%s1 + $0x750] sm:$0xff]
      %v474 = vld [vmem:[%s1 + $0x758] sm:$0xff]
      %v475 = vld [vmem:[%s1 + $0x760] sm:$0xff]
      %v476 = vld [vmem:[%s1 + $0x768] sm:$0xff]
      %v477 = vld [vmem:[%s1 + $0x770] sm:$0xff]
      %v478 = vld [vmem:[%s1 + $0x778] sm:$0xff]
      %v479 = vld [vmem:[%s1 + $0x780] sm:$0xff]
      %v480 = vld [vmem:[%s1 + $0x788] sm:$0xff]
      %v481 = vld [vmem:[%s1 + $0x790] sm:$0xff]
      %v482 = vld [vmem:[%s1 + $0x798] sm:$0xff]
      %v483 = vld [vmem:[%s1 + $0x7a0] sm:$0xff]
      %v484 = vld [vmem:[%s1 + $0x7a8] sm:$0xff]
      %v485 = vld [vmem:[%s1 + $0x7b0] sm:$0xff]
      %v486 = vld [vmem:[%s1 + $0x7b8] sm:$0xff]
      %v487 = vld [vmem:[%s1 + $0x7c0] sm:$0xff]
      %v488 = vld [vmem:[%s1 + $0x7c8] sm:$0xff]
      %v489 = vld [vmem:[%s1 + $0x7d0] sm:$0xff]
      %v490 = vld [vmem:[%s1 + $0x7d8] sm:$0xff]
      %v491 = vld [vmem:[%s1 + $0x7e0] sm:$0xff]
      %v492 = vld [vmem:[%s1 + $0x7e8] sm:$0xff]
      %v493 = vld [vmem:[%s1 + $0x7f0] sm:$0xff]
      %v494 = vld [vmem:[%s1 + $0x7f8] sm:$0xff]
      %v495 = vld [vmem:[%s1 + $0x800] sm:$0xff]
      %v496 = vld [vmem:[%s1 + $0x808] sm:$0xff]
      %v497 = vld [vmem:[%s1 + $0x810] sm:$0xff]
      %v498 = vld [vmem:[%s1 + $0x818] sm:$0xff]
      %v499 = vld [vmem:[%s1 + $0x820] sm:$0xff]
      %v500 = vld [vmem:[%s1 + $0x828] sm:$0xff]
      %v501 = vld [vmem:[%s1 + $0x830] sm:$0xff]
      %v502 = vld [vmem:[%s1 + $0x838] sm:$0xff]
      %v503 = vld [vmem:[%s1 + $0x840] sm:$0xff]
      %v504 = vld [vmem:[%s1 + $0x848] sm:$0xff]
      %v505 = vld [vmem:[%s1 + $0x850] sm:$0xff]
      %v506 = vld [vmem:[%s1 + $0x858] sm:$0xff]
      %v507 = vld [vmem:[%s1 + $0x860] sm:$0xff]
      %v508 = vld [vmem:[%s1 + $0x868] sm:$0xff]
      %v509 = vld [vmem:[%s1 + $0x870] sm:$0xff]
      %v510 = vld [vmem:[%s1 + $0x878] sm:$0xff]
      %v511 = vld [vmem:[%s1 + $0x880] sm:$0xff]
      %v512 = vld [vmem:[%s1 + $0x888] sm:$0xff]
      %v513 = vld [vmem:[%s1 + $0x890] sm:$0xff]
      %v514 = vld [vmem:[%s1 + $0x898] sm:$0xff]
      %v515 = vld [vmem:[%s1 + $0x8a0] sm:$0xff]
      %v516 = vld [vmem:[%s1 + $0x8a8] sm:$0xff]
      %v517 = vld [vmem:[%s1 + $0x8b0] sm:$0xff]
      %v518 = vld [vmem:[%s1 + $0x8b8] sm:$0xff]
      %v519 = vld [vmem:[%s1 + $0x8c0] sm:$0xff]
      %v520 = vld [vmem:[%s1 + $0x8c8] sm:$0xff]
      %v521 = vld [vmem:[%s1 + $0x8d0] sm:$0xff]
      %v522 = vld [vmem:[%s1 + $0x8d8] sm:$0xff]
      %v523 = vld [vmem:[%s1 + $0x8e0] sm:$0xff]
      %v524 = vld [vmem:[%s1 + $0x8e8] sm:$0xff]
      %v525 = vld [vmem:[%s1 + $0x8f0] sm:$0xff]
      %v526 = vld [vmem:[%s1 + $0x8f8] sm:$0xff]
      %v527 = vld [vmem:[%s2] sm:$0x3f]
      %v529 = vlaneseq
      %v530 = vshrl.u32 %v529, 7
      %v531 = vsub.s32 0, %v530
      %v532 = vrot.slane %v527, %v531
      %v533 = vlaneseq
      %v534 = vshrl.u32 %v533, 7
      %v535 = vsub.s32 1, %v534
      %v536 = vrot.slane %v527, %v535
      %v537 = vlaneseq
      %v538 = vshrl.u32 %v537, 7
      %v539 = vsub.s32 2, %v538
      %v540 = vrot.slane %v527, %v539
      %v541 = vlaneseq
      %v542 = vshrl.u32 %v541, 7
      %v543 = vsub.s32 3, %v542
      %v544 = vrot.slane %v527, %v543
      %v545 = vlaneseq
      %v546 = vshrl.u32 %v545, 7
      %v547 = vsub.s32 4, %v546
      %v548 = vrot.slane %v527, %v547
      %v549 = vlaneseq
      %v550 = vshrl.u32 %v549, 7
      %v551 = vsub.s32 5, %v550
      %v552 = vrot.slane %v527, %v551
      %v565 = vunpack.c.l.b16 %v233
      %v566 = vunpack.c.h.b16 %v233
      %v567 = vunpack.c.l.b16 %v234
      %v568 = vunpack.c.h.b16 %v234
      %v569 = vunpack.c.l.b16 %v235
      %v570 = vunpack.c.h.b16 %v235
      %v571 = vunpack.c.l.b16 %v236
      %v572 = vunpack.c.h.b16 %v236
      %v573 = vunpack.c.l.b16 %v237
      %v574 = vunpack.c.h.b16 %v237
      %v575 = vunpack.c.l.b16 %v238
      %v576 = vunpack.c.h.b16 %v238
      %v577 = vpack.c.b16 %v571, %v565
      %v578 = vpack.c.b16 %v572, %v566
      %v579 = vpack.c.b16 %v573, %v567
      %v580 = vpack.c.b16 %v574, %v568
      %v581 = vpack.c.b16 %v575, %v569
      %v582 = vpack.c.b16 %v576, %v570
      %v877 = vunpack.c.l.b16 %v239
      %v878 = vunpack.c.h.b16 %v239
      %v879 = vunpack.c.l.b16 %v240
      %v880 = vunpack.c.h.b16 %v240
      %v881 = vunpack.c.l.b16 %v241
      %v882 = vunpack.c.h.b16 %v241
      %v883 = vunpack.c.l.b16 %v242
      %v884 = vunpack.c.h.b16 %v242
      %v885 = vunpack.c.l.b16 %v243
      %v886 = vunpack.c.h.b16 %v243
      %v887 = vunpack.c.l.b16 %v244
      %v888 = vunpack.c.h.b16 %v244
      %v889 = vunpack.c.l.b16 %v245
      %v890 = vunpack.c.h.b16 %v245
      %v891 = vunpack.c.l.b16 %v246
      %v892 = vunpack.c.h.b16 %v246
      %v893 = vunpack.c.l.b16 %v247
      %v894 = vunpack.c.h.b16 %v247
      %v895 = vunpack.c.l.b16 %v248
      %v896 = vunpack.c.h.b16 %v248
      %v897 = vunpack.c.l.b16 %v249
      %v898 = vunpack.c.h.b16 %v249
      %v899 = vunpack.c.l.b16 %v250
      %v900 = vunpack.c.h.b16 %v250
      %v901 = vunpack.c.l.b16 %v251
      %v902 = vunpack.c.h.b16 %v251
      %v903 = vunpack.c.l.b16 %v252
      %v904 = vunpack.c.h.b16 %v252
      %v905 = vunpack.c.l.b16 %v253
      %v906 = vunpack.c.h.b16 %v253
      %v907 = vunpack.c.l.b16 %v254
      %v908 = vunpack.c.h.b16 %v254
      %v909 = vunpack.c.l.b16 %v255
      %v910 = vunpack.c.h.b16 %v255
      %v911 = vunpack.c.l.b16 %v256
      %v912 = vunpack.c.h.b16 %v256
      %v913 = vunpack.c.l.b16 %v257
      %v914 = vunpack.c.h.b16 %v257
      %v915 = vunpack.c.l.b16 %v258
      %v916 = vunpack.c.h.b16 %v258
      %v917 = vunpack.c.l.b16 %v259
      %v918 = vunpack.c.h.b16 %v259
      %v919 = vunpack.c.l.b16 %v260
      %v920 = vunpack.c.h.b16 %v260
      %v921 = vunpack.c.l.b16 %v261
      %v922 = vunpack.c.h.b16 %v261
      %v923 = vunpack.c.l.b16 %v262
      %v924 = vunpack.c.h.b16 %v262
      %v925 = vunpack.c.l.b16 %v263
      %v926 = vunpack.c.h.b16 %v263
      %v927 = vunpack.c.l.b16 %v264
      %v928 = vunpack.c.h.b16 %v264
      %v929 = vunpack.c.l.b16 %v265
      %v930 = vunpack.c.h.b16 %v265
      %v931 = vunpack.c.l.b16 %v266
      %v932 = vunpack.c.h.b16 %v266
      %v933 = vunpack.c.l.b16 %v267
      %v934 = vunpack.c.h.b16 %v267
      %v935 = vunpack.c.l.b16 %v268
      %v936 = vunpack.c.h.b16 %v268
      %v937 = vunpack.c.l.b16 %v269
      %v938 = vunpack.c.h.b16 %v269
      %v939 = vunpack.c.l.b16 %v270
      %v940 = vunpack.c.h.b16 %v270
      %v941 = vunpack.c.l.b16 %v271
      %v942 = vunpack.c.h.b16 %v271
      %v943 = vunpack.c.l.b16 %v272
      %v944 = vunpack.c.h.b16 %v272
      %v945 = vunpack.c.l.b16 %v273
      %v946 = vunpack.c.h.b16 %v273
      %v947 = vunpack.c.l.b16 %v274
      %v948 = vunpack.c.h.b16 %v274
      %v949 = vunpack.c.l.b16 %v275
      %v950 = vunpack.c.h.b16 %v275
      %v951 = vunpack.c.l.b16 %v276
      %v952 = vunpack.c.h.b16 %v276
      %v953 = vunpack.c.l.b16 %v277
      %v954 = vunpack.c.h.b16 %v277
      %v955 = vunpack.c.l.b16 %v278
      %v956 = vunpack.c.h.b16 %v278
      %v957 = vunpack.c.l.b16 %v279
      %v958 = vunpack.c.h.b16 %v279
      %v959 = vunpack.c.l.b16 %v280
      %v960 = vunpack.c.h.b16 %v280
      %v961 = vunpack.c.l.b16 %v281
      %v962 = vunpack.c.h.b16 %v281
      %v963 = vunpack.c.l.b16 %v282
      %v964 = vunpack.c.h.b16 %v282
      %v965 = vunpack.c.l.b16 %v283
      %v966 = vunpack.c.h.b16 %v283
      %v967 = vunpack.c.l.b16 %v284
      %v968 = vunpack.c.h.b16 %v284
      %v969 = vunpack.c.l.b16 %v285
      %v970 = vunpack.c.h.b16 %v285
      %v971 = vunpack.c.l.b16 %v286
      %v972 = vunpack.c.h.b16 %v286
      %v973 = vunpack.c.l.b16 %v287
      %v974 = vunpack.c.h.b16 %v287
      %v975 = vunpack.c.l.b16 %v288
      %v976 = vunpack.c.h.b16 %v288
      %v977 = vunpack.c.l.b16 %v289
      %v978 = vunpack.c.h.b16 %v289
      %v979 = vunpack.c.l.b16 %v290
      %v980 = vunpack.c.h.b16 %v290
      %v981 = vunpack.c.l.b16 %v291
      %v982 = vunpack.c.h.b16 %v291
      %v983 = vunpack.c.l.b16 %v292
      %v984 = vunpack.c.h.b16 %v292
      %v985 = vunpack.c.l.b16 %v293
      %v986 = vunpack.c.h.b16 %v293
      %v987 = vunpack.c.l.b16 %v294
      %v988 = vunpack.c.h.b16 %v294
      %v989 = vunpack.c.l.b16 %v295
      %v990 = vunpack.c.h.b16 %v295
      %v991 = vunpack.c.l.b16 %v296
      %v992 = vunpack.c.h.b16 %v296
      %v993 = vunpack.c.l.b16 %v297
      %v994 = vunpack.c.h.b16 %v297
      %v995 = vunpack.c.l.b16 %v298
      %v996 = vunpack.c.h.b16 %v298
      %v997 = vunpack.c.l.b16 %v299
      %v998 = vunpack.c.h.b16 %v299
      %v999 = vunpack.c.l.b16 %v300
      %v1000 = vunpack.c.h.b16 %v300
      %v1001 = vunpack.c.l.b16 %v301
      %v1002 = vunpack.c.h.b16 %v301
      %v1003 = vunpack.c.l.b16 %v302
      %v1004 = vunpack.c.h.b16 %v302
      %v1005 = vunpack.c.l.b16 %v303
      %v1006 = vunpack.c.h.b16 %v303
      %v1007 = vunpack.c.l.b16 %v304
      %v1008 = vunpack.c.h.b16 %v304
      %v1009 = vunpack.c.l.b16 %v305
      %v1010 = vunpack.c.h.b16 %v305
      %v1011 = vunpack.c.l.b16 %v306
      %v1012 = vunpack.c.h.b16 %v306
      %v1013 = vunpack.c.l.b16 %v307
      %v1014 = vunpack.c.h.b16 %v307
      %v1015 = vunpack.c.l.b16 %v308
      %v1016 = vunpack.c.h.b16 %v308
      %v1017 = vunpack.c.l.b16 %v309
      %v1018 = vunpack.c.h.b16 %v309
      %v1019 = vunpack.c.l.b16 %v310
      %v1020 = vunpack.c.h.b16 %v310
      %v1021 = vunpack.c.l.b16 %v311
      %v1022 = vunpack.c.h.b16 %v311
      %v1023 = vunpack.c.l.b16 %v312
      %v1024 = vunpack.c.h.b16 %v312
      %v1025 = vunpack.c.l.b16 %v313
      %v1026 = vunpack.c.h.b16 %v313
      %v1027 = vunpack.c.l.b16 %v314
      %v1028 = vunpack.c.h.b16 %v314
      %v1029 = vunpack.c.l.b16 %v315
      %v1030 = vunpack.c.h.b16 %v315
      %v1031 = vunpack.c.l.b16 %v316
      %v1032 = vunpack.c.h.b16 %v316
      %v1033 = vunpack.c.l.b16 %v317
      %v1034 = vunpack.c.h.b16 %v317
      %v1035 = vunpack.c.l.b16 %v318
      %v1036 = vunpack.c.h.b16 %v318
      %v1037 = vunpack.c.l.b16 %v319
      %v1038 = vunpack.c.h.b16 %v319
      %v1039 = vunpack.c.l.b16 %v320
      %v1040 = vunpack.c.h.b16 %v320
      %v1041 = vunpack.c.l.b16 %v321
      %v1042 = vunpack.c.h.b16 %v321
      %v1043 = vunpack.c.l.b16 %v322
      %v1044 = vunpack.c.h.b16 %v322
      %v1045 = vunpack.c.l.b16 %v323
      %v1046 = vunpack.c.h.b16 %v323
      %v1047 = vunpack.c.l.b16 %v324
      %v1048 = vunpack.c.h.b16 %v324
      %v1049 = vunpack.c.l.b16 %v325
      %v1050 = vunpack.c.h.b16 %v325
      %v1051 = vunpack.c.l.b16 %v326
      %v1052 = vunpack.c.h.b16 %v326
      %v1053 = vunpack.c.l.b16 %v327
      %v1054 = vunpack.c.h.b16 %v327
      %v1055 = vunpack.c.l.b16 %v328
      %v1056 = vunpack.c.h.b16 %v328
      %v1057 = vunpack.c.l.b16 %v329
      %v1058 = vunpack.c.h.b16 %v329
      %v1059 = vunpack.c.l.b16 %v330
      %v1060 = vunpack.c.h.b16 %v330
      %v1061 = vunpack.c.l.b16 %v331
      %v1062 = vunpack.c.h.b16 %v331
      %v1063 = vunpack.c.l.b16 %v332
      %v1064 = vunpack.c.h.b16 %v332
      %v1065 = vunpack.c.l.b16 %v333
      %v1066 = vunpack.c.h.b16 %v333
      %v1067 = vunpack.c.l.b16 %v334
      %v1068 = vunpack.c.h.b16 %v334
      %v1069 = vunpack.c.l.b16 %v335
      %v1070 = vunpack.c.h.b16 %v335
      %v1071 = vunpack.c.l.b16 %v336
      %v1072 = vunpack.c.h.b16 %v336
      %v1073 = vunpack.c.l.b16 %v337
      %v1074 = vunpack.c.h.b16 %v337
      %v1075 = vunpack.c.l.b16 %v338
      %v1076 = vunpack.c.h.b16 %v338
      %v1077 = vunpack.c.l.b16 %v339
      %v1078 = vunpack.c.h.b16 %v339
      %v1079 = vunpack.c.l.b16 %v340
      %v1080 = vunpack.c.h.b16 %v340
      %v1081 = vunpack.c.l.b16 %v341
      %v1082 = vunpack.c.h.b16 %v341
      %v1083 = vunpack.c.l.b16 %v342
      %v1084 = vunpack.c.h.b16 %v342
      %v1085 = vunpack.c.l.b16 %v343
      %v1086 = vunpack.c.h.b16 %v343
      %v1087 = vunpack.c.l.b16 %v344
      %v1088 = vunpack.c.h.b16 %v344
      %v1089 = vunpack.c.l.b16 %v345
      %v1090 = vunpack.c.h.b16 %v345
      %v1091 = vunpack.c.l.b16 %v346
      %v1092 = vunpack.c.h.b16 %v346
      %v1093 = vunpack.c.l.b16 %v347
      %v1094 = vunpack.c.h.b16 %v347
      %v1095 = vunpack.c.l.b16 %v348
      %v1096 = vunpack.c.h.b16 %v348
      %v1097 = vunpack.c.l.b16 %v349
      %v1098 = vunpack.c.h.b16 %v349
      %v1099 = vunpack.c.l.b16 %v350
      %v1100 = vunpack.c.h.b16 %v350
      %v1101 = vunpack.c.l.b16 %v351
      %v1102 = vunpack.c.h.b16 %v351
      %v1103 = vunpack.c.l.b16 %v352
      %v1104 = vunpack.c.h.b16 %v352
      %v1105 = vunpack.c.l.b16 %v353
      %v1106 = vunpack.c.h.b16 %v353
      %v1107 = vunpack.c.l.b16 %v354
      %v1108 = vunpack.c.h.b16 %v354
      %v1109 = vunpack.c.l.b16 %v355
      %v1110 = vunpack.c.h.b16 %v355
      %v1111 = vunpack.c.l.b16 %v356
      %v1112 = vunpack.c.h.b16 %v356
      %v1113 = vunpack.c.l.b16 %v357
      %v1114 = vunpack.c.h.b16 %v357
      %v1115 = vunpack.c.l.b16 %v358
      %v1116 = vunpack.c.h.b16 %v358
      %v1117 = vunpack.c.l.b16 %v359
      %v1118 = vunpack.c.h.b16 %v359
      %v1119 = vunpack.c.l.b16 %v360
      %v1120 = vunpack.c.h.b16 %v360
      %v1121 = vunpack.c.l.b16 %v361
      %v1122 = vunpack.c.h.b16 %v361
      %v1123 = vunpack.c.l.b16 %v362
      %v1124 = vunpack.c.h.b16 %v362
      %v1125 = vunpack.c.l.b16 %v363
      %v1126 = vunpack.c.h.b16 %v363
      %v1127 = vunpack.c.l.b16 %v364
      %v1128 = vunpack.c.h.b16 %v364
      %v1129 = vunpack.c.l.b16 %v365
      %v1130 = vunpack.c.h.b16 %v365
      %v1131 = vunpack.c.l.b16 %v366
      %v1132 = vunpack.c.h.b16 %v366
      %v1133 = vunpack.c.l.b16 %v367
      %v1134 = vunpack.c.h.b16 %v367
      %v1135 = vunpack.c.l.b16 %v368
      %v1136 = vunpack.c.h.b16 %v368
      %v1137 = vunpack.c.l.b16 %v369
      %v1138 = vunpack.c.h.b16 %v369
      %v1139 = vunpack.c.l.b16 %v370
      %v1140 = vunpack.c.h.b16 %v370
      %v1141 = vunpack.c.l.b16 %v371
      %v1142 = vunpack.c.h.b16 %v371
      %v1143 = vunpack.c.l.b16 %v372
      %v1144 = vunpack.c.h.b16 %v372
      %v1145 = vunpack.c.l.b16 %v373
      %v1146 = vunpack.c.h.b16 %v373
      %v1147 = vunpack.c.l.b16 %v374
      %v1148 = vunpack.c.h.b16 %v374
      %v1149 = vunpack.c.l.b16 %v375
      %v1150 = vunpack.c.h.b16 %v375
      %v1151 = vunpack.c.l.b16 %v376
      %v1152 = vunpack.c.h.b16 %v376
      %v1153 = vunpack.c.l.b16 %v377
      %v1154 = vunpack.c.h.b16 %v377
      %v1155 = vunpack.c.l.b16 %v378
      %v1156 = vunpack.c.h.b16 %v378
      %v1157 = vunpack.c.l.b16 %v379
      %v1158 = vunpack.c.h.b16 %v379
      %v1159 = vunpack.c.l.b16 %v380
      %v1160 = vunpack.c.h.b16 %v380
      %v1161 = vunpack.c.l.b16 %v381
      %v1162 = vunpack.c.h.b16 %v381
      %v1163 = vunpack.c.l.b16 %v382
      %v1164 = vunpack.c.h.b16 %v382
      %v1165 = vunpack.c.l.b16 %v383
      %v1166 = vunpack.c.h.b16 %v383
      %v1167 = vunpack.c.l.b16 %v384
      %v1168 = vunpack.c.h.b16 %v384
      %v1169 = vunpack.c.l.b16 %v385
      %v1170 = vunpack.c.h.b16 %v385
      %v1171 = vunpack.c.l.b16 %v386
      %v1172 = vunpack.c.h.b16 %v386
      %v1173 = vunpack.c.l.b16 %v387
      %v1174 = vunpack.c.h.b16 %v387
      %v1175 = vunpack.c.l.b16 %v388
      %v1176 = vunpack.c.h.b16 %v388
      %v1177 = vunpack.c.l.b16 %v389
      %v1178 = vunpack.c.h.b16 %v389
      %v1179 = vunpack.c.l.b16 %v390
      %v1180 = vunpack.c.h.b16 %v390
      %v1181 = vunpack.c.l.b16 %v391
      %v1182 = vunpack.c.h.b16 %v391
      %v1183 = vunpack.c.l.b16 %v392
      %v1184 = vunpack.c.h.b16 %v392
      %v1185 = vunpack.c.l.b16 %v393
      %v1186 = vunpack.c.h.b16 %v393
      %v1187 = vunpack.c.l.b16 %v394
      %v1188 = vunpack.c.h.b16 %v394
      %v1189 = vunpack.c.l.b16 %v395
      %v1190 = vunpack.c.h.b16 %v395
      %v1191 = vunpack.c.l.b16 %v396
      %v1192 = vunpack.c.h.b16 %v396
      %v1193 = vunpack.c.l.b16 %v397
      %v1194 = vunpack.c.h.b16 %v397
      %v1195 = vunpack.c.l.b16 %v398
      %v1196 = vunpack.c.h.b16 %v398
      %v1197 = vunpack.c.l.b16 %v399
      %v1198 = vunpack.c.h.b16 %v399
      %v1199 = vunpack.c.l.b16 %v400
      %v1200 = vunpack.c.h.b16 %v400
      %v1201 = vunpack.c.l.b16 %v401
      %v1202 = vunpack.c.h.b16 %v401
      %v1203 = vunpack.c.l.b16 %v402
      %v1204 = vunpack.c.h.b16 %v402
      %v1205 = vunpack.c.l.b16 %v403
      %v1206 = vunpack.c.h.b16 %v403
      %v1207 = vunpack.c.l.b16 %v404
      %v1208 = vunpack.c.h.b16 %v404
      %v1209 = vunpack.c.l.b16 %v405
      %v1210 = vunpack.c.h.b16 %v405
      %v1211 = vunpack.c.l.b16 %v406
      %v1212 = vunpack.c.h.b16 %v406
      %v1213 = vunpack.c.l.b16 %v407
      %v1214 = vunpack.c.h.b16 %v407
      %v1215 = vunpack.c.l.b16 %v408
      %v1216 = vunpack.c.h.b16 %v408
      %v1217 = vunpack.c.l.b16 %v409
      %v1218 = vunpack.c.h.b16 %v409
      %v1219 = vunpack.c.l.b16 %v410
      %v1220 = vunpack.c.h.b16 %v410
      %v1221 = vunpack.c.l.b16 %v411
      %v1222 = vunpack.c.h.b16 %v411
      %v1223 = vunpack.c.l.b16 %v412
      %v1224 = vunpack.c.h.b16 %v412
      %v1225 = vunpack.c.l.b16 %v413
      %v1226 = vunpack.c.h.b16 %v413
      %v1227 = vunpack.c.l.b16 %v414
      %v1228 = vunpack.c.h.b16 %v414
      %v1229 = vunpack.c.l.b16 %v415
      %v1230 = vunpack.c.h.b16 %v415
      %v1231 = vunpack.c.l.b16 %v416
      %v1232 = vunpack.c.h.b16 %v416
      %v1233 = vunpack.c.l.b16 %v417
      %v1234 = vunpack.c.h.b16 %v417
      %v1235 = vunpack.c.l.b16 %v418
      %v1236 = vunpack.c.h.b16 %v418
      %v1237 = vunpack.c.l.b16 %v419
      %v1238 = vunpack.c.h.b16 %v419
      %v1239 = vunpack.c.l.b16 %v420
      %v1240 = vunpack.c.h.b16 %v420
      %v1241 = vunpack.c.l.b16 %v421
      %v1242 = vunpack.c.h.b16 %v421
      %v1243 = vunpack.c.l.b16 %v422
      %v1244 = vunpack.c.h.b16 %v422
      %v1245 = vunpack.c.l.b16 %v423
      %v1246 = vunpack.c.h.b16 %v423
      %v1247 = vunpack.c.l.b16 %v424
      %v1248 = vunpack.c.h.b16 %v424
      %v1249 = vunpack.c.l.b16 %v425
      %v1250 = vunpack.c.h.b16 %v425
      %v1251 = vunpack.c.l.b16 %v426
      %v1252 = vunpack.c.h.b16 %v426
      %v1253 = vunpack.c.l.b16 %v427
      %v1254 = vunpack.c.h.b16 %v427
      %v1255 = vunpack.c.l.b16 %v428
      %v1256 = vunpack.c.h.b16 %v428
      %v1257 = vunpack.c.l.b16 %v429
      %v1258 = vunpack.c.h.b16 %v429
      %v1259 = vunpack.c.l.b16 %v430
      %v1260 = vunpack.c.h.b16 %v430
      %v1261 = vunpack.c.l.b16 %v431
      %v1262 = vunpack.c.h.b16 %v431
      %v1263 = vunpack.c.l.b16 %v432
      %v1264 = vunpack.c.h.b16 %v432
      %v1265 = vunpack.c.l.b16 %v433
      %v1266 = vunpack.c.h.b16 %v433
      %v1267 = vunpack.c.l.b16 %v434
      %v1268 = vunpack.c.h.b16 %v434
      %v1269 = vunpack.c.l.b16 %v435
      %v1270 = vunpack.c.h.b16 %v435
      %v1271 = vunpack.c.l.b16 %v436
      %v1272 = vunpack.c.h.b16 %v436
      %v1273 = vunpack.c.l.b16 %v437
      %v1274 = vunpack.c.h.b16 %v437
      %v1275 = vunpack.c.l.b16 %v438
      %v1276 = vunpack.c.h.b16 %v438
      %v1277 = vunpack.c.l.b16 %v439
      %v1278 = vunpack.c.h.b16 %v439
      %v1279 = vunpack.c.l.b16 %v440
      %v1280 = vunpack.c.h.b16 %v440
      %v1281 = vunpack.c.l.b16 %v441
      %v1282 = vunpack.c.h.b16 %v441
      %v1283 = vunpack.c.l.b16 %v442
      %v1284 = vunpack.c.h.b16 %v442
      %v1285 = vunpack.c.l.b16 %v443
      %v1286 = vunpack.c.h.b16 %v443
      %v1287 = vunpack.c.l.b16 %v444
      %v1288 = vunpack.c.h.b16 %v444
      %v1289 = vunpack.c.l.b16 %v445
      %v1290 = vunpack.c.h.b16 %v445
      %v1291 = vunpack.c.l.b16 %v446
      %v1292 = vunpack.c.h.b16 %v446
      %v1293 = vunpack.c.l.b16 %v447
      %v1294 = vunpack.c.h.b16 %v447
      %v1295 = vunpack.c.l.b16 %v448
      %v1296 = vunpack.c.h.b16 %v448
      %v1297 = vunpack.c.l.b16 %v449
      %v1298 = vunpack.c.h.b16 %v449
      %v1299 = vunpack.c.l.b16 %v450
      %v1300 = vunpack.c.h.b16 %v450
      %v1301 = vunpack.c.l.b16 %v451
      %v1302 = vunpack.c.h.b16 %v451
      %v1303 = vunpack.c.l.b16 %v452
      %v1304 = vunpack.c.h.b16 %v452
      %v1305 = vunpack.c.l.b16 %v453
      %v1306 = vunpack.c.h.b16 %v453
      %v1307 = vunpack.c.l.b16 %v454
      %v1308 = vunpack.c.h.b16 %v454
      %v1309 = vunpack.c.l.b16 %v455
      %v1310 = vunpack.c.h.b16 %v455
      %v1311 = vunpack.c.l.b16 %v456
      %v1312 = vunpack.c.h.b16 %v456
      %v1313 = vunpack.c.l.b16 %v457
      %v1314 = vunpack.c.h.b16 %v457
      %v1315 = vunpack.c.l.b16 %v458
      %v1316 = vunpack.c.h.b16 %v458
      %v1317 = vunpack.c.l.b16 %v459
      %v1318 = vunpack.c.h.b16 %v459
      %v1319 = vunpack.c.l.b16 %v460
      %v1320 = vunpack.c.h.b16 %v460
      %v1321 = vunpack.c.l.b16 %v461
      %v1322 = vunpack.c.h.b16 %v461
      %v1323 = vunpack.c.l.b16 %v462
      %v1324 = vunpack.c.h.b16 %v462
      %v1325 = vunpack.c.l.b16 %v463
      %v1326 = vunpack.c.h.b16 %v463
      %v1327 = vunpack.c.l.b16 %v464
      %v1328 = vunpack.c.h.b16 %v464
      %v1329 = vunpack.c.l.b16 %v465
      %v1330 = vunpack.c.h.b16 %v465
      %v1331 = vunpack.c.l.b16 %v466
      %v1332 = vunpack.c.h.b16 %v466
      %v1333 = vunpack.c.l.b16 %v467
      %v1334 = vunpack.c.h.b16 %v467
      %v1335 = vunpack.c.l.b16 %v468
      %v1336 = vunpack.c.h.b16 %v468
      %v1337 = vunpack.c.l.b16 %v469
      %v1338 = vunpack.c.h.b16 %v469
      %v1339 = vunpack.c.l.b16 %v470
      %v1340 = vunpack.c.h.b16 %v470
      %v1341 = vunpack.c.l.b16 %v471
      %v1342 = vunpack.c.h.b16 %v471
      %v1343 = vunpack.c.l.b16 %v472
      %v1344 = vunpack.c.h.b16 %v472
      %v1345 = vunpack.c.l.b16 %v473
      %v1346 = vunpack.c.h.b16 %v473
      %v1347 = vunpack.c.l.b16 %v474
      %v1348 = vunpack.c.h.b16 %v474
      %v1349 = vunpack.c.l.b16 %v475
      %v1350 = vunpack.c.h.b16 %v475
      %v1351 = vunpack.c.l.b16 %v476
      %v1352 = vunpack.c.h.b16 %v476
      %v1353 = vunpack.c.l.b16 %v477
      %v1354 = vunpack.c.h.b16 %v477
      %v1355 = vunpack.c.l.b16 %v478
      %v1356 = vunpack.c.h.b16 %v478
      %v1357 = vunpack.c.l.b16 %v479
      %v1358 = vunpack.c.h.b16 %v479
      %v1359 = vunpack.c.l.b16 %v480
      %v1360 = vunpack.c.h.b16 %v480
      %v1361 = vunpack.c.l.b16 %v481
      %v1362 = vunpack.c.h.b16 %v481
      %v1363 = vunpack.c.l.b16 %v482
      %v1364 = vunpack.c.h.b16 %v482
      %v1365 = vunpack.c.l.b16 %v483
      %v1366 = vunpack.c.h.b16 %v483
      %v1367 = vunpack.c.l.b16 %v484
      %v1368 = vunpack.c.h.b16 %v484
      %v1369 = vunpack.c.l.b16 %v485
      %v1370 = vunpack.c.h.b16 %v485
      %v1371 = vunpack.c.l.b16 %v486
      %v1372 = vunpack.c.h.b16 %v486
      %v1373 = vunpack.c.l.b16 %v487
      %v1374 = vunpack.c.h.b16 %v487
      %v1375 = vunpack.c.l.b16 %v488
      %v1376 = vunpack.c.h.b16 %v488
      %v1377 = vunpack.c.l.b16 %v489
      %v1378 = vunpack.c.h.b16 %v489
      %v1379 = vunpack.c.l.b16 %v490
      %v1380 = vunpack.c.h.b16 %v490
      %v1381 = vunpack.c.l.b16 %v491
      %v1382 = vunpack.c.h.b16 %v491
      %v1383 = vunpack.c.l.b16 %v492
      %v1384 = vunpack.c.h.b16 %v492
      %v1385 = vunpack.c.l.b16 %v493
      %v1386 = vunpack.c.h.b16 %v493
      %v1387 = vunpack.c.l.b16 %v494
      %v1388 = vunpack.c.h.b16 %v494
      %v1389 = vunpack.c.l.b16 %v495
      %v1390 = vunpack.c.h.b16 %v495
      %v1391 = vunpack.c.l.b16 %v496
      %v1392 = vunpack.c.h.b16 %v496
      %v1393 = vunpack.c.l.b16 %v497
      %v1394 = vunpack.c.h.b16 %v497
      %v1395 = vunpack.c.l.b16 %v498
      %v1396 = vunpack.c.h.b16 %v498
      %v1397 = vunpack.c.l.b16 %v499
      %v1398 = vunpack.c.h.b16 %v499
      %v1399 = vunpack.c.l.b16 %v500
      %v1400 = vunpack.c.h.b16 %v500
      %v1401 = vunpack.c.l.b16 %v501
      %v1402 = vunpack.c.h.b16 %v501
      %v1403 = vunpack.c.l.b16 %v502
      %v1404 = vunpack.c.h.b16 %v502
      %v1405 = vunpack.c.l.b16 %v503
      %v1406 = vunpack.c.h.b16 %v503
      %v1407 = vunpack.c.l.b16 %v504
      %v1408 = vunpack.c.h.b16 %v504
      %v1409 = vunpack.c.l.b16 %v505
      %v1410 = vunpack.c.h.b16 %v505
      %v1411 = vunpack.c.l.b16 %v506
      %v1412 = vunpack.c.h.b16 %v506
      %v1413 = vunpack.c.l.b16 %v507
      %v1414 = vunpack.c.h.b16 %v507
      %v1415 = vunpack.c.l.b16 %v508
      %v1416 = vunpack.c.h.b16 %v508
      %v1417 = vunpack.c.l.b16 %v509
      %v1418 = vunpack.c.h.b16 %v509
      %v1419 = vunpack.c.l.b16 %v510
      %v1420 = vunpack.c.h.b16 %v510
      %v1421 = vunpack.c.l.b16 %v511
      %v1422 = vunpack.c.h.b16 %v511
      %v1423 = vunpack.c.l.b16 %v512
      %v1424 = vunpack.c.h.b16 %v512
      %v1425 = vunpack.c.l.b16 %v513
      %v1426 = vunpack.c.h.b16 %v513
      %v1427 = vunpack.c.l.b16 %v514
      %v1428 = vunpack.c.h.b16 %v514
      %v1429 = vunpack.c.l.b16 %v515
      %v1430 = vunpack.c.h.b16 %v515
      %v1431 = vunpack.c.l.b16 %v516
      %v1432 = vunpack.c.h.b16 %v516
      %v1433 = vunpack.c.l.b16 %v517
      %v1434 = vunpack.c.h.b16 %v517
      %v1435 = vunpack.c.l.b16 %v518
      %v1436 = vunpack.c.h.b16 %v518
      %v1437 = vunpack.c.l.b16 %v519
      %v1438 = vunpack.c.h.b16 %v519
      %v1439 = vunpack.c.l.b16 %v520
      %v1440 = vunpack.c.h.b16 %v520
      %v1441 = vunpack.c.l.b16 %v521
      %v1442 = vunpack.c.h.b16 %v521
      %v1443 = vunpack.c.l.b16 %v522
      %v1444 = vunpack.c.h.b16 %v522
      %v1445 = vunpack.c.l.b16 %v523
      %v1446 = vunpack.c.h.b16 %v523
      %v1447 = vunpack.c.l.b16 %v524
      %v1448 = vunpack.c.h.b16 %v524
      %v1449 = vunpack.c.l.b16 %v525
      %v1450 = vunpack.c.h.b16 %v525
      %v1451 = vunpack.c.l.b16 %v526
      %v1452 = vunpack.c.h.b16 %v526
      %v1453 = vpack.c.b16 %v883, %v877
      %v1454 = vpack.c.b16 %v884, %v878
      %v1455 = vpack.c.b16 %v885, %v879
      %v1456 = vpack.c.b16 %v886, %v880
      %v1457 = vpack.c.b16 %v887, %v881
      %v1458 = vpack.c.b16 %v888, %v882
      %v1459 = vpack.c.b16 %v895, %v889
      %v1460 = vpack.c.b16 %v896, %v890
      %v1461 = vpack.c.b16 %v897, %v891
      %v1462 = vpack.c.b16 %v898, %v892
      %v1463 = vpack.c.b16 %v899, %v893
      %v1464 = vpack.c.b16 %v900, %v894
      %v1465 = vpack.c.b16 %v907, %v901
      %v1466 = vpack.c.b16 %v908, %v902
      %v1467 = vpack.c.b16 %v909, %v903
      %v1468 = vpack.c.b16 %v910, %v904
      %v1469 = vpack.c.b16 %v911, %v905
      %v1470 = vpack.c.b16 %v912, %v906
      %v1471 = vpack.c.b16 %v919, %v913
      %v1472 = vpack.c.b16 %v920, %v914
      %v1473 = vpack.c.b16 %v921, %v915
      %v1474 = vpack.c.b16 %v922, %v916
      %v1475 = vpack.c.b16 %v923, %v917
      %v1476 = vpack.c.b16 %v924, %v918
      %v1477 = vpack.c.b16 %v931, %v925
      %v1478 = vpack.c.b16 %v932, %v926
      %v1479 = vpack.c.b16 %v933, %v927
      %v1480 = vpack.c.b16 %v934, %v928
      %v1481 = vpack.c.b16 %v935, %v929
      %v1482 = vpack.c.b16 %v936, %v930
      %v1483 = vpack.c.b16 %v943, %v937
      %v1484 = vpack.c.b16 %v944, %v938
      %v1485 = vpack.c.b16 %v945, %v939
      %v1486 = vpack.c.b16 %v946, %v940
      %v1487 = vpack.c.b16 %v947, %v941
      %v1488 = vpack.c.b16 %v948, %v942
      %v1489 = vpack.c.b16 %v955, %v949
      %v1490 = vpack.c.b16 %v956, %v950
      %v1491 = vpack.c.b16 %v957, %v951
      %v1492 = vpack.c.b16 %v958, %v952
      %v1493 = vpack.c.b16 %v959, %v953
      %v1494 = vpack.c.b16 %v960, %v954
      %v1495 = vpack.c.b16 %v967, %v961
      %v1496 = vpack.c.b16 %v968, %v962
      %v1497 = vpack.c.b16 %v969, %v963
      %v1498 = vpack.c.b16 %v970, %v964
      %v1499 = vpack.c.b16 %v971, %v965
      %v1500 = vpack.c.b16 %v972, %v966
      %v1501 = vpack.c.b16 %v979, %v973
      %v1502 = vpack.c.b16 %v980, %v974
      %v1503 = vpack.c.b16 %v981, %v975
      %v1504 = vpack.c.b16 %v982, %v976
      %v1505 = vpack.c.b16 %v983, %v977
      %v1506 = vpack.c.b16 %v984, %v978
      %v1507 = vpack.c.b16 %v991, %v985
      %v1508 = vpack.c.b16 %v992, %v986
      %v1509 = vpack.c.b16 %v993, %v987
      %v1510 = vpack.c.b16 %v994, %v988
      %v1511 = vpack.c.b16 %v995, %v989
      %v1512 = vpack.c.b16 %v996, %v990
      %v1513 = vpack.c.b16 %v1003, %v997
      %v1514 = vpack.c.b16 %v1004, %v998
      %v1515 = vpack.c.b16 %v1005, %v999
      %v1516 = vpack.c.b16 %v1006, %v1000
      %v1517 = vpack.c.b16 %v1007, %v1001
      %v1518 = vpack.c.b16 %v1008, %v1002
      %v1519 = vpack.c.b16 %v1015, %v1009
      %v1520 = vpack.c.b16 %v1016, %v1010
      %v1521 = vpack.c.b16 %v1017, %v1011
      %v1522 = vpack.c.b16 %v1018, %v1012
      %v1523 = vpack.c.b16 %v1019, %v1013
      %v1524 = vpack.c.b16 %v1020, %v1014
      %v1525 = vpack.c.b16 %v1027, %v1021
      %v1526 = vpack.c.b16 %v1028, %v1022
      %v1527 = vpack.c.b16 %v1029, %v1023
      %v1528 = vpack.c.b16 %v1030, %v1024
      %v1529 = vpack.c.b16 %v1031, %v1025
      %v1530 = vpack.c.b16 %v1032, %v1026
      %v1531 = vpack.c.b16 %v1039, %v1033
      %v1532 = vpack.c.b16 %v1040, %v1034
      %v1533 = vpack.c.b16 %v1041, %v1035
      %v1534 = vpack.c.b16 %v1042, %v1036
      %v1535 = vpack.c.b16 %v1043, %v1037
      %v1536 = vpack.c.b16 %v1044, %v1038
      %v1537 = vpack.c.b16 %v1051, %v1045
      %v1538 = vpack.c.b16 %v1052, %v1046
      %v1539 = vpack.c.b16 %v1053, %v1047
      %v1540 = vpack.c.b16 %v1054, %v1048
      %v1541 = vpack.c.b16 %v1055, %v1049
      %v1542 = vpack.c.b16 %v1056, %v1050
      %v1543 = vpack.c.b16 %v1063, %v1057
      %v1544 = vpack.c.b16 %v1064, %v1058
      %v1545 = vpack.c.b16 %v1065, %v1059
      %v1546 = vpack.c.b16 %v1066, %v1060
      %v1547 = vpack.c.b16 %v1067, %v1061
      %v1548 = vpack.c.b16 %v1068, %v1062
      %v1549 = vpack.c.b16 %v1075, %v1069
      %v1550 = vpack.c.b16 %v1076, %v1070
      %v1551 = vpack.c.b16 %v1077, %v1071
      %v1552 = vpack.c.b16 %v1078, %v1072
      %v1553 = vpack.c.b16 %v1079, %v1073
      %v1554 = vpack.c.b16 %v1080, %v1074
      %v1555 = vpack.c.b16 %v1087, %v1081
      %v1556 = vpack.c.b16 %v1088, %v1082
      %v1557 = vpack.c.b16 %v1089, %v1083
      %v1558 = vpack.c.b16 %v1090, %v1084
      %v1559 = vpack.c.b16 %v1091, %v1085
      %v1560 = vpack.c.b16 %v1092, %v1086
      %v1561 = vpack.c.b16 %v1099, %v1093
      %v1562 = vpack.c.b16 %v1100, %v1094
      %v1563 = vpack.c.b16 %v1101, %v1095
      %v1564 = vpack.c.b16 %v1102, %v1096
      %v1565 = vpack.c.b16 %v1103, %v1097
      %v1566 = vpack.c.b16 %v1104, %v1098
      %v1567 = vpack.c.b16 %v1111, %v1105
      %v1568 = vpack.c.b16 %v1112, %v1106
      %v1569 = vpack.c.b16 %v1113, %v1107
      %v1570 = vpack.c.b16 %v1114, %v1108
      %v1571 = vpack.c.b16 %v1115, %v1109
      %v1572 = vpack.c.b16 %v1116, %v1110
      %v1573 = vpack.c.b16 %v1123, %v1117
      %v1574 = vpack.c.b16 %v1124, %v1118
      %v1575 = vpack.c.b16 %v1125, %v1119
      %v1576 = vpack.c.b16 %v1126, %v1120
      %v1577 = vpack.c.b16 %v1127, %v1121
      %v1578 = vpack.c.b16 %v1128, %v1122
      %v1579 = vpack.c.b16 %v1135, %v1129
      %v1580 = vpack.c.b16 %v1136, %v1130
      %v1581 = vpack.c.b16 %v1137, %v1131
      %v1582 = vpack.c.b16 %v1138, %v1132
      %v1583 = vpack.c.b16 %v1139, %v1133
      %v1584 = vpack.c.b16 %v1140, %v1134
      %v1585 = vpack.c.b16 %v1147, %v1141
      %v1586 = vpack.c.b16 %v1148, %v1142
      %v1587 = vpack.c.b16 %v1149, %v1143
      %v1588 = vpack.c.b16 %v1150, %v1144
      %v1589 = vpack.c.b16 %v1151, %v1145
      %v1590 = vpack.c.b16 %v1152, %v1146
      %v1591 = vpack.c.b16 %v1159, %v1153
      %v1592 = vpack.c.b16 %v1160, %v1154
      %v1593 = vpack.c.b16 %v1161, %v1155
      %v1594 = vpack.c.b16 %v1162, %v1156
      %v1595 = vpack.c.b16 %v1163, %v1157
      %v1596 = vpack.c.b16 %v1164, %v1158
      %v1597 = vpack.c.b16 %v1171, %v1165
      %v1598 = vpack.c.b16 %v1172, %v1166
      %v1599 = vpack.c.b16 %v1173, %v1167
      %v1600 = vpack.c.b16 %v1174, %v1168
      %v1601 = vpack.c.b16 %v1175, %v1169
      %v1602 = vpack.c.b16 %v1176, %v1170
      %v1603 = vpack.c.b16 %v1183, %v1177
      %v1604 = vpack.c.b16 %v1184, %v1178
      %v1605 = vpack.c.b16 %v1185, %v1179
      %v1606 = vpack.c.b16 %v1186, %v1180
      %v1607 = vpack.c.b16 %v1187, %v1181
      %v1608 = vpack.c.b16 %v1188, %v1182
      %v1609 = vpack.c.b16 %v1195, %v1189
      %v1610 = vpack.c.b16 %v1196, %v1190
      %v1611 = vpack.c.b16 %v1197, %v1191
      %v1612 = vpack.c.b16 %v1198, %v1192
      %v1613 = vpack.c.b16 %v1199, %v1193
      %v1614 = vpack.c.b16 %v1200, %v1194
      %v1615 = vpack.c.b16 %v1207, %v1201
      %v1616 = vpack.c.b16 %v1208, %v1202
      %v1617 = vpack.c.b16 %v1209, %v1203
      %v1618 = vpack.c.b16 %v1210, %v1204
      %v1619 = vpack.c.b16 %v1211, %v1205
      %v1620 = vpack.c.b16 %v1212, %v1206
      %v1621 = vpack.c.b16 %v1219, %v1213
      %v1622 = vpack.c.b16 %v1220, %v1214
      %v1623 = vpack.c.b16 %v1221, %v1215
      %v1624 = vpack.c.b16 %v1222, %v1216
      %v1625 = vpack.c.b16 %v1223, %v1217
      %v1626 = vpack.c.b16 %v1224, %v1218
      %v1627 = vpack.c.b16 %v1231, %v1225
      %v1628 = vpack.c.b16 %v1232, %v1226
      %v1629 = vpack.c.b16 %v1233, %v1227
      %v1630 = vpack.c.b16 %v1234, %v1228
      %v1631 = vpack.c.b16 %v1235, %v1229
      %v1632 = vpack.c.b16 %v1236, %v1230
      %v1633 = vpack.c.b16 %v1243, %v1237
      %v1634 = vpack.c.b16 %v1244, %v1238
      %v1635 = vpack.c.b16 %v1245, %v1239
      %v1636 = vpack.c.b16 %v1246, %v1240
      %v1637 = vpack.c.b16 %v1247, %v1241
      %v1638 = vpack.c.b16 %v1248, %v1242
      %v1639 = vpack.c.b16 %v1255, %v1249
      %v1640 = vpack.c.b16 %v1256, %v1250
      %v1641 = vpack.c.b16 %v1257, %v1251
      %v1642 = vpack.c.b16 %v1258, %v1252
      %v1643 = vpack.c.b16 %v1259, %v1253
      %v1644 = vpack.c.b16 %v1260, %v1254
      %v1645 = vpack.c.b16 %v1267, %v1261
      %v1646 = vpack.c.b16 %v1268, %v1262
      %v1647 = vpack.c.b16 %v1269, %v1263
      %v1648 = vpack.c.b16 %v1270, %v1264
      %v1649 = vpack.c.b16 %v1271, %v1265
      %v1650 = vpack.c.b16 %v1272, %v1266
      %v1651 = vpack.c.b16 %v1279, %v1273
      %v1652 = vpack.c.b16 %v1280, %v1274
      %v1653 = vpack.c.b16 %v1281, %v1275
      %v1654 = vpack.c.b16 %v1282, %v1276
      %v1655 = vpack.c.b16 %v1283, %v1277
      %v1656 = vpack.c.b16 %v1284, %v1278
      %v1657 = vpack.c.b16 %v1291, %v1285
      %v1658 = vpack.c.b16 %v1292, %v1286
      %v1659 = vpack.c.b16 %v1293, %v1287
      %v1660 = vpack.c.b16 %v1294, %v1288
      %v1661 = vpack.c.b16 %v1295, %v1289
      %v1662 = vpack.c.b16 %v1296, %v1290
      %v1663 = vpack.c.b16 %v1303, %v1297
      %v1664 = vpack.c.b16 %v1304, %v1298
      %v1665 = vpack.c.b16 %v1305, %v1299
      %v1666 = vpack.c.b16 %v1306, %v1300
      %v1667 = vpack.c.b16 %v1307, %v1301
      %v1668 = vpack.c.b16 %v1308, %v1302
      %v1669 = vpack.c.b16 %v1315, %v1309
      %v1670 = vpack.c.b16 %v1316, %v1310
      %v1671 = vpack.c.b16 %v1317, %v1311
      %v1672 = vpack.c.b16 %v1318, %v1312
      %v1673 = vpack.c.b16 %v1319, %v1313
      %v1674 = vpack.c.b16 %v1320, %v1314
      %v1675 = vpack.c.b16 %v1327, %v1321
      %v1676 = vpack.c.b16 %v1328, %v1322
      %v1677 = vpack.c.b16 %v1329, %v1323
      %v1678 = vpack.c.b16 %v1330, %v1324
      %v1679 = vpack.c.b16 %v1331, %v1325
      %v1680 = vpack.c.b16 %v1332, %v1326
      %v1681 = vpack.c.b16 %v1339, %v1333
      %v1682 = vpack.c.b16 %v1340, %v1334
      %v1683 = vpack.c.b16 %v1341, %v1335
      %v1684 = vpack.c.b16 %v1342, %v1336
      %v1685 = vpack.c.b16 %v1343, %v1337
      %v1686 = vpack.c.b16 %v1344, %v1338
      %v1687 = vpack.c.b16 %v1351, %v1345
      %v1688 = vpack.c.b16 %v1352, %v1346
      %v1689 = vpack.c.b16 %v1353, %v1347
      %v1690 = vpack.c.b16 %v1354, %v1348
      %v1691 = vpack.c.b16 %v1355, %v1349
      %v1692 = vpack.c.b16 %v1356, %v1350
      %v1693 = vpack.c.b16 %v1363, %v1357
      %v1694 = vpack.c.b16 %v1364, %v1358
      %v1695 = vpack.c.b16 %v1365, %v1359
      %v1696 = vpack.c.b16 %v1366, %v1360
      %v1697 = vpack.c.b16 %v1367, %v1361
      %v1698 = vpack.c.b16 %v1368, %v1362
      %v1699 = vpack.c.b16 %v1375, %v1369
      %v1700 = vpack.c.b16 %v1376, %v1370
      %v1701 = vpack.c.b16 %v1377, %v1371
      %v1702 = vpack.c.b16 %v1378, %v1372
      %v1703 = vpack.c.b16 %v1379, %v1373
      %v1704 = vpack.c.b16 %v1380, %v1374
      %v1705 = vpack.c.b16 %v1387, %v1381
      %v1706 = vpack.c.b16 %v1388, %v1382
      %v1707 = vpack.c.b16 %v1389, %v1383
      %v1708 = vpack.c.b16 %v1390, %v1384
      %v1709 = vpack.c.b16 %v1391, %v1385
      %v1710 = vpack.c.b16 %v1392, %v1386
      %v1711 = vpack.c.b16 %v1399, %v1393
      %v1712 = vpack.c.b16 %v1400, %v1394
      %v1713 = vpack.c.b16 %v1401, %v1395
      %v1714 = vpack.c.b16 %v1402, %v1396
      %v1715 = vpack.c.b16 %v1403, %v1397
      %v1716 = vpack.c.b16 %v1404, %v1398
      %v1717 = vpack.c.b16 %v1411, %v1405
      %v1718 = vpack.c.b16 %v1412, %v1406
      %v1719 = vpack.c.b16 %v1413, %v1407
      %v1720 = vpack.c.b16 %v1414, %v1408
      %v1721 = vpack.c.b16 %v1415, %v1409
      %v1722 = vpack.c.b16 %v1416, %v1410
      %v1723 = vpack.c.b16 %v1423, %v1417
      %v1724 = vpack.c.b16 %v1424, %v1418
      %v1725 = vpack.c.b16 %v1425, %v1419
      %v1726 = vpack.c.b16 %v1426, %v1420
      %v1727 = vpack.c.b16 %v1427, %v1421
      %v1728 = vpack.c.b16 %v1428, %v1422
      %v1729 = vpack.c.b16 %v1435, %v1429
      %v1730 = vpack.c.b16 %v1436, %v1430
      %v1731 = vpack.c.b16 %v1437, %v1431
      %v1732 = vpack.c.b16 %v1438, %v1432
      %v1733 = vpack.c.b16 %v1439, %v1433
      %v1734 = vpack.c.b16 %v1440, %v1434
      %v1735 = vpack.c.b16 %v1447, %v1441
      %v1736 = vpack.c.b16 %v1448, %v1442
      %v1737 = vpack.c.b16 %v1449, %v1443
      %v1738 = vpack.c.b16 %v1450, %v1444
      %v1739 = vpack.c.b16 %v1451, %v1445
      %v1740 = vpack.c.b16 %v1452, %v1446
      %2029 = vmatprep.subr.bf16.mxu0 %v1454
      %2030 = vmatpush1.bf16.msra.mxu0 %v1453
      %2031 = vmatprep.subr.bf16.mxu0 %v1460
      %2032 = vmatpush1.bf16.msra.mxu0 %v1459
      %2033 = vmatprep.subr.bf16.mxu0 %v1466
      %2034 = vmatpush1.bf16.msra.mxu0 %v1465
      %2035 = vmatprep.subr.bf16.mxu0 %v1472
      %2036 = vmatpush1.bf16.msra.mxu0 %v1471
      %2037 = vmatprep.subr.bf16.mxu0 %v1478
      %2038 = vmatpush1.bf16.msra.mxu0 %v1477
      %2039 = vmatprep.subr.bf16.mxu0 %v1484
      %2040 = vmatpush1.bf16.msra.mxu0 %v1483
      %2041 = vmatprep.subr.bf16.mxu0 %v1490
      %2042 = vmatpush1.bf16.msra.mxu0 %v1489
      %2043 = vmatprep.subr.bf16.mxu0 %v1496
      %2044 = vmatpush1.bf16.msra.mxu0 %v1495
      %2045 = vmatprep.subr.bf16.mxu0 %v1502
      %2046 = vmatpush1.bf16.msra.mxu0 %v1501
      %2047 = vmatprep.subr.bf16.mxu0 %v1508
      %2048 = vmatpush1.bf16.msra.mxu0 %v1507
      %2049 = vmatprep.subr.bf16.mxu0 %v1514
      %2050 = vmatpush1.bf16.msra.mxu0 %v1513
      %2051 = vmatprep.subr.bf16.mxu0 %v1520
      %2052 = vmatpush1.bf16.msra.mxu0 %v1519
      %2053 = vmatprep.subr.bf16.mxu0 %v1526
      %2054 = vmatpush1.bf16.msra.mxu0 %v1525
      %2055 = vmatprep.subr.bf16.mxu0 %v1532
      %2056 = vmatpush1.bf16.msra.mxu0 %v1531
      %2057 = vmatprep.subr.bf16.mxu0 %v1538
      %2058 = vmatpush1.bf16.msra.mxu0 %v1537
      %2059 = vmatprep.subr.bf16.mxu0 %v1544
      %2060 = vmatpush1.bf16.msra.mxu0 %v1543
      %2061 = vmatprep.mubr.bf16.mxu0 %v578
      %2062 = vmatmul.mubr.bf16.gmra.mrb[0].mxu0 %v577
      %v2063 = vpop.f32.mrb[0].mxu0
      %v2064 = vadd.f32 %v532, %v2063
      %v2065 = vpop.f32.mrb[0].mxu0
      %v2066 = vadd.f32 %v536, %v2065
      %v2067 = vpop.f32.mrb[0].mxu0
      %v2068 = vadd.f32 %v532, %v2067
      %v2069 = vpop.f32.mrb[0].mxu0
      %v2070 = vadd.f32 %v536, %v2069
      %2071 = vdwg.mxu0
      %2072 = vmatprep.subr.bf16.mxu0 %v1550
      %2073 = vmatpush1.bf16.msra.mxu0 %v1549
      %2074 = vmatprep.subr.bf16.mxu0 %v1556
      %2075 = vmatpush1.bf16.msra.mxu0 %v1555
      %2076 = vmatprep.subr.bf16.mxu0 %v1562
      %2077 = vmatpush1.bf16.msra.mxu0 %v1561
      %2078 = vmatprep.subr.bf16.mxu0 %v1568
      %2079 = vmatpush1.bf16.msra.mxu0 %v1567
      %2080 = vmatprep.subr.bf16.mxu0 %v1574
      %2081 = vmatpush1.bf16.msra.mxu0 %v1573
      %2082 = vmatprep.subr.bf16.mxu0 %v1580
      %2083 = vmatpush1.bf16.msra.mxu0 %v1579
      %2084 = vmatprep.subr.bf16.mxu0 %v1586
      %2085 = vmatpush1.bf16.msra.mxu0 %v1585
      %2086 = vmatprep.subr.bf16.mxu0 %v1592
      %2087 = vmatpush1.bf16.msra.mxu0 %v1591
      %2088 = vmatprep.subr.bf16.mxu0 %v1598
      %2089 = vmatpush1.bf16.msra.mxu0 %v1597
      %2090 = vmatprep.subr.bf16.mxu0 %v1604
      %2091 = vmatpush1.bf16.msra.mxu0 %v1603
      %2092 = vmatprep.subr.bf16.mxu0 %v1610
      %2093 = vmatpush1.bf16.msra.mxu0 %v1609
      %2094 = vmatprep.subr.bf16.mxu0 %v1616
      %2095 = vmatpush1.bf16.msra.mxu0 %v1615
      %2096 = vmatprep.subr.bf16.mxu0 %v1622
      %2097 = vmatpush1.bf16.msra.mxu0 %v1621
      %2098 = vmatprep.subr.bf16.mxu0 %v1628
      %2099 = vmatpush1.bf16.msra.mxu0 %v1627
      %2100 = vmatprep.subr.bf16.mxu0 %v1634
      %2101 = vmatpush1.bf16.msra.mxu0 %v1633
      %2102 = vmatprep.subr.bf16.mxu0 %v1640
      %2103 = vmatpush1.bf16.msra.mxu0 %v1639
      %2104 = vmatprep.mubr.bf16.mxu0 %v580
      %2105 = vmatmul.mubr.bf16.gmra.mrb[0].mxu0 %v579
      %v2106 = vpop.f32.mrb[0].mxu0
      %v2107 = vadd.f32 %v2064, %v2106
      %v2108 = vpop.f32.mrb[0].mxu0
      %v2109 = vadd.f32 %v2066, %v2108
      %v2110 = vpop.f32.mrb[0].mxu0
      %v2111 = vadd.f32 %v2068, %v2110
      %v2112 = vpop.f32.mrb[0].mxu0
      %v2113 = vadd.f32 %v2070, %v2112
      %2114 = vdwg.mxu0
      %2115 = vmatprep.subr.bf16.mxu0 %v1646
      %2116 = vmatpush1.bf16.msra.mxu0 %v1645
      %2117 = vmatprep.subr.bf16.mxu0 %v1652
      %2118 = vmatpush1.bf16.msra.mxu0 %v1651
      %2119 = vmatprep.subr.bf16.mxu0 %v1658
      %2120 = vmatpush1.bf16.msra.mxu0 %v1657
      %2121 = vmatprep.subr.bf16.mxu0 %v1664
      %2122 = vmatpush1.bf16.msra.mxu0 %v1663
      %2123 = vmatprep.subr.bf16.mxu0 %v1670
      %2124 = vmatpush1.bf16.msra.mxu0 %v1669
      %2125 = vmatprep.subr.bf16.mxu0 %v1676
      %2126 = vmatpush1.bf16.msra.mxu0 %v1675
      %2127 = vmatprep.subr.bf16.mxu0 %v1682
      %2128 = vmatpush1.bf16.msra.mxu0 %v1681
      %2129 = vmatprep.subr.bf16.mxu0 %v1688
      %2130 = vmatpush1.bf16.msra.mxu0 %v1687
      %2131 = vmatprep.subr.bf16.mxu0 %v1694
      %2132 = vmatpush1.bf16.msra.mxu0 %v1693
      %2133 = vmatprep.subr.bf16.mxu0 %v1700
      %2134 = vmatpush1.bf16.msra.mxu0 %v1699
      %2135 = vmatprep.subr.bf16.mxu0 %v1706
      %2136 = vmatpush1.bf16.msra.mxu0 %v1705
      %2137 = vmatprep.subr.bf16.mxu0 %v1712
      %2138 = vmatpush1.bf16.msra.mxu0 %v1711
      %2139 = vmatprep.subr.bf16.mxu0 %v1718
      %2140 = vmatpush1.bf16.msra.mxu0 %v1717
      %2141 = vmatprep.subr.bf16.mxu0 %v1724
      %2142 = vmatpush1.bf16.msra.mxu0 %v1723
      %2143 = vmatprep.subr.bf16.mxu0 %v1730
      %2144 = vmatpush1.bf16.msra.mxu0 %v1729
      %2145 = vmatprep.subr.bf16.mxu0 %v1736
      %2146 = vmatpush1.bf16.msra.mxu0 %v1735
      %2147 = vmatprep.mubr.bf16.mxu0 %v582
      %2148 = vmatmul.mubr.bf16.gmra.mrb[0].mxu0 %v581
      %v2149 = vpop.f32.mrb[0].mxu0
      %v2150 = vadd.f32 %v2107, %v2149
      %v2151 = vpop.f32.mrb[0].mxu0
      %v2152 = vadd.f32 %v2109, %v2151
      %v2153 = vpop.f32.mrb[0].mxu0
      %v2154 = vadd.f32 %v2111, %v2153
      %v2155 = vpop.f32.mrb[0].mxu0
      %v2156 = vadd.f32 %v2113, %v2155
      %2157 = vdwg.mxu0
      %2158 = vmatprep.subr.bf16.mxu0 %v1456
      %2159 = vmatpush1.bf16.msra.mxu0 %v1455
      %2160 = vmatprep.subr.bf16.mxu0 %v1462
      %2161 = vmatpush1.bf16.msra.mxu0 %v1461
      %2162 = vmatprep.subr.bf16.mxu0 %v1468
      %2163 = vmatpush1.bf16.msra.mxu0 %v1467
      %2164 = vmatprep.subr.bf16.mxu0 %v1474
      %2165 = vmatpush1.bf16.msra.mxu0 %v1473
      %2166 = vmatprep.subr.bf16.mxu0 %v1480
      %2167 = vmatpush1.bf16.msra.mxu0 %v1479
      %2168 = vmatprep.subr.bf16.mxu0 %v1486
      %2169 = vmatpush1.bf16.msra.mxu0 %v1485
      %2170 = vmatprep.subr.bf16.mxu0 %v1492
      %2171 = vmatpush1.bf16.msra.mxu0 %v1491
      %2172 = vmatprep.subr.bf16.mxu0 %v1498
      %2173 = vmatpush1.bf16.msra.mxu0 %v1497
      %2174 = vmatprep.subr.bf16.mxu0 %v1504
      %2175 = vmatpush1.bf16.msra.mxu0 %v1503
      %2176 = vmatprep.subr.bf16.mxu0 %v1510
      %2177 = vmatpush1.bf16.msra.mxu0 %v1509
      %2178 = vmatprep.subr.bf16.mxu0 %v1516
      %2179 = vmatpush1.bf16.msra.mxu0 %v1515
      %2180 = vmatprep.subr.bf16.mxu0 %v1522
      %2181 = vmatpush1.bf16.msra.mxu0 %v1521
      %2182 = vmatprep.subr.bf16.mxu0 %v1528
      %2183 = vmatpush1.bf16.msra.mxu0 %v1527
      %2184 = vmatprep.subr.bf16.mxu0 %v1534
      %2185 = vmatpush1.bf16.msra.mxu0 %v1533
      %2186 = vmatprep.subr.bf16.mxu0 %v1540
      %2187 = vmatpush1.bf16.msra.mxu0 %v1539
      %2188 = vmatprep.subr.bf16.mxu0 %v1546
      %2189 = vmatpush1.bf16.msra.mxu0 %v1545
      %2190 = vmatprep.mubr.bf16.mxu0 %v578
      %2191 = vmatmul.mubr.bf16.gmra.mrb[0].mxu0 %v577
      %v2192 = vpop.f32.mrb[0].mxu0
      %v2193 = vadd.f32 %v540, %v2192
      %v2194 = vpop.f32.mrb[0].mxu0
      %v2195 = vadd.f32 %v544, %v2194
      %v2196 = vpop.f32.mrb[0].mxu0
      %v2197 = vadd.f32 %v540, %v2196
      %v2198 = vpop.f32.mrb[0].mxu0
      %v2199 = vadd.f32 %v544, %v2198
      %2200 = vdwg.mxu0
      %2201 = vmatprep.subr.bf16.mxu0 %v1552
      %2202 = vmatpush1.bf16.msra.mxu0 %v1551
      %2203 = vmatprep.subr.bf16.mxu0 %v1558
      %2204 = vmatpush1.bf16.msra.mxu0 %v1557
      %2205 = vmatprep.subr.bf16.mxu0 %v1564
      %2206 = vmatpush1.bf16.msra.mxu0 %v1563
      %2207 = vmatprep.subr.bf16.mxu0 %v1570
      %2208 = vmatpush1.bf16.msra.mxu0 %v1569
      %2209 = vmatprep.subr.bf16.mxu0 %v1576
      %2210 = vmatpush1.bf16.msra.mxu0 %v1575
      %2211 = vmatprep.subr.bf16.mxu0 %v1582
      %2212 = vmatpush1.bf16.msra.mxu0 %v1581
      %2213 = vmatprep.subr.bf16.mxu0 %v1588
      %2214 = vmatpush1.bf16.msra.mxu0 %v1587
      %2215 = vmatprep.subr.bf16.mxu0 %v1594
      %2216 = vmatpush1.bf16.msra.mxu0 %v1593
      %2217 = vmatprep.subr.bf16.mxu0 %v1600
      %2218 = vmatpush1.bf16.msra.mxu0 %v1599
      %2219 = vmatprep.subr.bf16.mxu0 %v1606
      %2220 = vmatpush1.bf16.msra.mxu0 %v1605
      %2221 = vmatprep.subr.bf16.mxu0 %v1612
      %2222 = vmatpush1.bf16.msra.mxu0 %v1611
      %2223 = vmatprep.subr.bf16.mxu0 %v1618
      %2224 = vmatpush1.bf16.msra.mxu0 %v1617
      %2225 = vmatprep.subr.bf16.mxu0 %v1624
      %2226 = vmatpush1.bf16.msra.mxu0 %v1623
      %2227 = vmatprep.subr.bf16.mxu0 %v1630
      %2228 = vmatpush1.bf16.msra.mxu0 %v1629
      %2229 = vmatprep.subr.bf16.mxu0 %v1636
      %2230 = vmatpush1.bf16.msra.mxu0 %v1635
      %2231 = vmatprep.subr.bf16.mxu0 %v1642
      %2232 = vmatpush1.bf16.msra.mxu0 %v1641
      %2233 = vmatprep.mubr.bf16.mxu0 %v580
      %2234 = vmatmul.mubr.bf16.gmra.mrb[0].mxu0 %v579
      %v2235 = vpop.f32.mrb[0].mxu0
      %v2236 = vadd.f32 %v2193, %v2235
      %v2237 = vpop.f32.mrb[0].mxu0
      %v2238 = vadd.f32 %v2195, %v2237
      %v2239 = vpop.f32.mrb[0].mxu0
      %v2240 = vadd.f32 %v2197, %v2239
      %v2241 = vpop.f32.mrb[0].mxu0
      %v2242 = vadd.f32 %v2199, %v2241
      %2243 = vdwg.mxu0
      %2244 = vmatprep.subr.bf16.mxu0 %v1648
      %2245 = vmatpush1.bf16.msra.mxu0 %v1647
      %2246 = vmatprep.subr.bf16.mxu0 %v1654
      %2247 = vmatpush1.bf16.msra.mxu0 %v1653
      %2248 = vmatprep.subr.bf16.mxu0 %v1660
      %2249 = vmatpush1.bf16.msra.mxu0 %v1659
      %2250 = vmatprep.subr.bf16.mxu0 %v1666
      %2251 = vmatpush1.bf16.msra.mxu0 %v1665
      %2252 = vmatprep.subr.bf16.mxu0 %v1672
      %2253 = vmatpush1.bf16.msra.mxu0 %v1671
      %2254 = vmatprep.subr.bf16.mxu0 %v1678
      %2255 = vmatpush1.bf16.msra.mxu0 %v1677
      %2256 = vmatprep.subr.bf16.mxu0 %v1684
      %2257 = vmatpush1.bf16.msra.mxu0 %v1683
      %2258 = vmatprep.subr.bf16.mxu0 %v1690
      %2259 = vmatpush1.bf16.msra.mxu0 %v1689
      %2260 = vmatprep.subr.bf16.mxu0 %v1696
      %2261 = vmatpush1.bf16.msra.mxu0 %v1695
      %2262 = vmatprep.subr.bf16.mxu0 %v1702
      %2263 = vmatpush1.bf16.msra.mxu0 %v1701
      %2264 = vmatprep.subr.bf16.mxu0 %v1708
      %2265 = vmatpush1.bf16.msra.mxu0 %v1707
      %2266 = vmatprep.subr.bf16.mxu0 %v1714
      %2267 = vmatpush1.bf16.msra.mxu0 %v1713
      %2268 = vmatprep.subr.bf16.mxu0 %v1720
      %2269 = vmatpush1.bf16.msra.mxu0 %v1719
      %2270 = vmatprep.subr.bf16.mxu0 %v1726
      %2271 = vmatpush1.bf16.msra.mxu0 %v1725
      %2272 = vmatprep.subr.bf16.mxu0 %v1732
      %2273 = vmatpush1.bf16.msra.mxu0 %v1731
      %2274 = vmatprep.subr.bf16.mxu0 %v1738
      %2275 = vmatpush1.bf16.msra.mxu0 %v1737
      %2276 = vmatprep.mubr.bf16.mxu0 %v582
      %2277 = vmatmul.mubr.bf16.gmra.mrb[0].mxu0 %v581
      %v2278 = vpop.f32.mrb[0].mxu0
      %v2279 = vadd.f32 %v2236, %v2278
      %v2280 = vpop.f32.mrb[0].mxu0
      %v2281 = vadd.f32 %v2238, %v2280
      %v2282 = vpop.f32.mrb[0].mxu0
      %v2283 = vadd.f32 %v2240, %v2282
      %v2284 = vpop.f32.mrb[0].mxu0
      %v2285 = vadd.f32 %v2242, %v2284
      %2286 = vdwg.mxu0
      %2287 = vmatprep.subr.bf16.mxu0 %v1458
      %2288 = vmatpush1.bf16.msra.mxu0 %v1457
      %2289 = vmatprep.subr.bf16.mxu0 %v1464
      %2290 = vmatpush1.bf16.msra.mxu0 %v1463
      %2291 = vmatprep.subr.bf16.mxu0 %v1470
      %2292 = vmatpush1.bf16.msra.mxu0 %v1469
      %2293 = vmatprep.subr.bf16.mxu0 %v1476
      %2294 = vmatpush1.bf16.msra.mxu0 %v1475
      %2295 = vmatprep.subr.bf16.mxu0 %v1482
      %2296 = vmatpush1.bf16.msra.mxu0 %v1481
      %2297 = vmatprep.subr.bf16.mxu0 %v1488
      %2298 = vmatpush1.bf16.msra.mxu0 %v1487
      %2299 = vmatprep.subr.bf16.mxu0 %v1494
      %2300 = vmatpush1.bf16.msra.mxu0 %v1493
      %2301 = vmatprep.subr.bf16.mxu0 %v1500
      %2302 = vmatpush1.bf16.msra.mxu0 %v1499
      %2303 = vmatprep.subr.bf16.mxu0 %v1506
      %2304 = vmatpush1.bf16.msra.mxu0 %v1505
      %2305 = vmatprep.subr.bf16.mxu0 %v1512
      %2306 = vmatpush1.bf16.msra.mxu0 %v1511
      %2307 = vmatprep.subr.bf16.mxu0 %v1518
      %2308 = vmatpush1.bf16.msra.mxu0 %v1517
      %2309 = vmatprep.subr.bf16.mxu0 %v1524
      %2310 = vmatpush1.bf16.msra.mxu0 %v1523
      %2311 = vmatprep.subr.bf16.mxu0 %v1530
      %2312 = vmatpush1.bf16.msra.mxu0 %v1529
      %2313 = vmatprep.subr.bf16.mxu0 %v1536
      %2314 = vmatpush1.bf16.msra.mxu0 %v1535
      %2315 = vmatprep.subr.bf16.mxu0 %v1542
      %2316 = vmatpush1.bf16.msra.mxu0 %v1541
      %2317 = vmatprep.subr.bf16.mxu0 %v1548
      %2318 = vmatpush1.bf16.msra.mxu0 %v1547
      %2319 = vmatprep.mubr.bf16.mxu0 %v578
      %2320 = vmatmul.mubr.bf16.gmra.mrb[0].mxu0 %v577
      %v2321 = vpop.f32.mrb[0].mxu0
      %v2322 = vadd.f32 %v548, %v2321
      %v2323 = vpop.f32.mrb[0].mxu0
      %v2324 = vadd.f32 %v552, %v2323
      %v2325 = vpop.f32.mrb[0].mxu0
      %v2326 = vadd.f32 %v548, %v2325
      %v2327 = vpop.f32.mrb[0].mxu0
      %v2328 = vadd.f32 %v552, %v2327
      %2329 = vdwg.mxu0
      %2330 = vmatprep.subr.bf16.mxu0 %v1554
      %2331 = vmatpush1.bf16.msra.mxu0 %v1553
      %2332 = vmatprep.subr.bf16.mxu0 %v1560
      %2333 = vmatpush1.bf16.msra.mxu0 %v1559
      %2334 = vmatprep.subr.bf16.mxu0 %v1566
      %2335 = vmatpush1.bf16.msra.mxu0 %v1565
      %2336 = vmatprep.subr.bf16.mxu0 %v1572
      %2337 = vmatpush1.bf16.msra.mxu0 %v1571
      %2338 = vmatprep.subr.bf16.mxu0 %v1578
      %2339 = vmatpush1.bf16.msra.mxu0 %v1577
      %2340 = vmatprep.subr.bf16.mxu0 %v1584
      %2341 = vmatpush1.bf16.msra.mxu0 %v1583
      %2342 = vmatprep.subr.bf16.mxu0 %v1590
      %2343 = vmatpush1.bf16.msra.mxu0 %v1589
      %2344 = vmatprep.subr.bf16.mxu0 %v1596
      %2345 = vmatpush1.bf16.msra.mxu0 %v1595
      %2346 = vmatprep.subr.bf16.mxu0 %v1602
      %2347 = vmatpush1.bf16.msra.mxu0 %v1601
      %2348 = vmatprep.subr.bf16.mxu0 %v1608
      %2349 = vmatpush1.bf16.msra.mxu0 %v1607
      %2350 = vmatprep.subr.bf16.mxu0 %v1614
      %2351 = vmatpush1.bf16.msra.mxu0 %v1613
      %2352 = vmatprep.subr.bf16.mxu0 %v1620
      %2353 = vmatpush1.bf16.msra.mxu0 %v1619
      %2354 = vmatprep.subr.bf16.mxu0 %v1626
      %2355 = vmatpush1.bf16.msra.mxu0 %v1625
      %2356 = vmatprep.subr.bf16.mxu0 %v1632
      %2357 = vmatpush1.bf16.msra.mxu0 %v1631
      %2358 = vmatprep.subr.bf16.mxu0 %v1638
      %2359 = vmatpush1.bf16.msra.mxu0 %v1637
      %2360 = vmatprep.subr.bf16.mxu0 %v1644
      %2361 = vmatpush1.bf16.msra.mxu0 %v1643
      %2362 = vmatprep.mubr.bf16.mxu0 %v580
      %2363 = vmatmul.mubr.bf16.gmra.mrb[0].mxu0 %v579
      %v2364 = vpop.f32.mrb[0].mxu0
      %v2365 = vadd.f32 %v2322, %v2364
      %v2366 = vpop.f32.mrb[0].mxu0
      %v2367 = vadd.f32 %v2324, %v2366
      %v2368 = vpop.f32.mrb[0].mxu0
      %v2369 = vadd.f32 %v2326, %v2368
      %v2370 = vpop.f32.mrb[0].mxu0
      %v2371 = vadd.f32 %v2328, %v2370
      %2372 = vdwg.mxu0
      %2373 = vmatprep.subr.bf16.mxu0 %v1650
      %2374 = vmatpush1.bf16.msra.mxu0 %v1649
      %2375 = vmatprep.subr.bf16.mxu0 %v1656
      %2376 = vmatpush1.bf16.msra.mxu0 %v1655
      %2377 = vmatprep.subr.bf16.mxu0 %v1662
      %2378 = vmatpush1.bf16.msra.mxu0 %v1661
      %2379 = vmatprep.subr.bf16.mxu0 %v1668
      %2380 = vmatpush1.bf16.msra.mxu0 %v1667
      %2381 = vmatprep.subr.bf16.mxu0 %v1674
      %2382 = vmatpush1.bf16.msra.mxu0 %v1673
      %2383 = vmatprep.subr.bf16.mxu0 %v1680
      %2384 = vmatpush1.bf16.msra.mxu0 %v1679
      %2385 = vmatprep.subr.bf16.mxu0 %v1686
      %2386 = vmatpush1.bf16.msra.mxu0 %v1685
      %2387 = vmatprep.subr.bf16.mxu0 %v1692
      %2388 = vmatpush1.bf16.msra.mxu0 %v1691
      %2389 = vmatprep.subr.bf16.mxu0 %v1698
      %2390 = vmatpush1.bf16.msra.mxu0 %v1697
      %2391 = vmatprep.subr.bf16.mxu0 %v1704
      %2392 = vmatpush1.bf16.msra.mxu0 %v1703
      %2393 = vmatprep.subr.bf16.mxu0 %v1710
      %2394 = vmatpush1.bf16.msra.mxu0 %v1709
      %2395 = vmatprep.subr.bf16.mxu0 %v1716
      %2396 = vmatpush1.bf16.msra.mxu0 %v1715
      %2397 = vmatprep.subr.bf16.mxu0 %v1722
      %2398 = vmatpush1.bf16.msra.mxu0 %v1721
      %2399 = vmatprep.subr.bf16.mxu0 %v1728
      %2400 = vmatpush1.bf16.msra.mxu0 %v1727
      %2401 = vmatprep.subr.bf16.mxu0 %v1734
      %2402 = vmatpush1.bf16.msra.mxu0 %v1733
      %2403 = vmatprep.subr.bf16.mxu0 %v1740
      %2404 = vmatpush1.bf16.msra.mxu0 %v1739
      %2405 = vmatprep.mubr.bf16.mxu0 %v582
      %2406 = vmatmul.mubr.bf16.gmra.mrb[0].mxu0 %v581
      %v2407 = vpop.f32.mrb[0].mxu0
      %v2408 = vadd.f32 %v2365, %v2407
      %v2409 = vpop.f32.mrb[0].mxu0
      %v2410 = vadd.f32 %v2367, %v2409
      %v2411 = vpop.f32.mrb[0].mxu0
      %v2412 = vadd.f32 %v2369, %v2411
      %v2413 = vpop.f32.mrb[0].mxu0
      %v2414 = vadd.f32 %v2371, %v2413
      %2415 = vdwg.mxu0
      %v2416 = vpack.c.bf16 %v2154, %v2150
      %v2417 = vpack.c.bf16 %v2156, %v2152
      %v2418 = vpack.c.bf16 %v2283, %v2279
      %v2419 = vpack.c.bf16 %v2285, %v2281
      %v2420 = vpack.c.bf16 %v2412, %v2408
      %v2421 = vpack.c.bf16 %v2414, %v2410
      %2422 = vst [vmem:[#allocation2] sm:$0xff] %v2416
      %2423 = vst [vmem:[#allocation2 + $0x8] sm:$0xff] %v2417
      %2424 = vst [vmem:[#allocation2 + $0x10] sm:$0xff] %v2418
      %2425 = vst [vmem:[#allocation2 + $0x18] sm:$0xff] %v2419
      %2426 = vst [vmem:[#allocation2 + $0x20] sm:$0xff] %v2420
      %2427 = vst [vmem:[#allocation2 + $0x28] sm:$0xff] %v2421
      %v2428 = vld [vmem:[#allocation2] sm:$0xff]
      %v2429 = vld [vmem:[#allocation2 + $0x8] sm:$0xff]
      %v2430 = vld [vmem:[#allocation2 + $0x10] sm:$0xff]
      %v2431 = vld [vmem:[#allocation2 + $0x18] sm:$0xff]
      %v2432 = vld [vmem:[#allocation2 + $0x20] sm:$0xff]
      %v2433 = vld [vmem:[#allocation2 + $0x28] sm:$0xff]
      %v2434 = vld [vmem:[%s3] sm:$0xff]
      %v2435 = vld [vmem:[%s3 + $0x8] sm:$0xff]
      %v2436 = vld [vmem:[%s3 + $0x10] sm:$0xff]
      %v2437 = vld [vmem:[%s3 + $0x18] sm:$0xff]
      %v2438 = vld [vmem:[%s3 + $0x20] sm:$0xff]
      %v2439 = vld [vmem:[%s3 + $0x28] sm:$0xff]
      %v2440 = vld [vmem:[%s3 + $0x30] sm:$0xff]
      %v2441 = vld [vmem:[%s3 + $0x38] sm:$0xff]
      %v2442 = vld [vmem:[%s3 + $0x40] sm:$0xff]
      %v2443 = vld [vmem:[%s3 + $0x48] sm:$0xff]
      %v2444 = vld [vmem:[%s3 + $0x50] sm:$0xff]
      %v2445 = vld [vmem:[%s3 + $0x58] sm:$0xff]
      %v2446 = vld [vmem:[%s3 + $0x60] sm:$0xff]
      %v2447 = vld [vmem:[%s3 + $0x68] sm:$0xff]
      %v2448 = vld [vmem:[%s3 + $0x70] sm:$0xff]
      %v2449 = vld [vmem:[%s3 + $0x78] sm:$0xff]
      %v2450 = vld [vmem:[%s3 + $0x80] sm:$0xff]
      %v2451 = vld [vmem:[%s3 + $0x88] sm:$0xff]
      %v2452 = vld [vmem:[%s3 + $0x90] sm:$0xff]
      %v2453 = vld [vmem:[%s3 + $0x98] sm:$0xff]
      %v2454 = vld [vmem:[%s3 + $0xa0] sm:$0xff]
      %v2455 = vld [vmem:[%s3 + $0xa8] sm:$0xff]
      %v2456 = vld [vmem:[%s3 + $0xb0] sm:$0xff]
      %v2457 = vld [vmem:[%s3 + $0xb8] sm:$0xff]
      %v2458 = vld [vmem:[%s3 + $0xc0] sm:$0xff]
      %v2459 = vld [vmem:[%s3 + $0xc8] sm:$0xff]
      %v2460 = vld [vmem:[%s3 + $0xd0] sm:$0xff]
      %v2461 = vld [vmem:[%s3 + $0xd8] sm:$0xff]
      %v2462 = vld [vmem:[%s3 + $0xe0] sm:$0xff]
      %v2463 = vld [vmem:[%s3 + $0xe8] sm:$0xff]
      %v2464 = vld [vmem:[%s3 + $0xf0] sm:$0xff]
      %v2465 = vld [vmem:[%s3 + $0xf8] sm:$0xff]
      %v2466 = vld [vmem:[%s3 + $0x100] sm:$0xff]
      %v2467 = vld [vmem:[%s3 + $0x108] sm:$0xff]
      %v2468 = vld [vmem:[%s3 + $0x110] sm:$0xff]
      %v2469 = vld [vmem:[%s3 + $0x118] sm:$0xff]
      %v2470 = vld [vmem:[%s3 + $0x120] sm:$0xff]
      %v2471 = vld [vmem:[%s3 + $0x128] sm:$0xff]
      %v2472 = vld [vmem:[%s3 + $0x130] sm:$0xff]
      %v2473 = vld [vmem:[%s3 + $0x138] sm:$0xff]
      %v2474 = vld [vmem:[%s3 + $0x140] sm:$0xff]
      %v2475 = vld [vmem:[%s3 + $0x148] sm:$0xff]
      %v2476 = vld [vmem:[%s3 + $0x150] sm:$0xff]
      %v2477 = vld [vmem:[%s3 + $0x158] sm:$0xff]
      %v2478 = vld [vmem:[%s3 + $0x160] sm:$0xff]
      %v2479 = vld [vmem:[%s3 + $0x168] sm:$0xff]
      %v2480 = vld [vmem:[%s3 + $0x170] sm:$0xff]
      %v2481 = vld [vmem:[%s3 + $0x178] sm:$0xff]
      %v2482 = vld [vmem:[%s3 + $0x180] sm:$0xff]
      %v2483 = vld [vmem:[%s3 + $0x188] sm:$0xff]
      %v2484 = vld [vmem:[%s3 + $0x190] sm:$0xff]
      %v2485 = vld [vmem:[%s3 + $0x198] sm:$0xff]
      %v2486 = vld [vmem:[%s3 + $0x1a0] sm:$0xff]
      %v2487 = vld [vmem:[%s3 + $0x1a8] sm:$0xff]
      %v2488 = vld [vmem:[%s3 + $0x1b0] sm:$0xff]
      %v2489 = vld [vmem:[%s3 + $0x1b8] sm:$0xff]
      %v2490 = vld [vmem:[%s3 + $0x1c0] sm:$0xff]
      %v2491 = vld [vmem:[%s3 + $0x1c8] sm:$0xff]
      %v2492 = vld [vmem:[%s3 + $0x1d0] sm:$0xff]
      %v2493 = vld [vmem:[%s3 + $0x1d8] sm:$0xff]
      %v2494 = vld [vmem:[%s3 + $0x1e0] sm:$0xff]
      %v2495 = vld [vmem:[%s3 + $0x1e8] sm:$0xff]
      %v2496 = vld [vmem:[%s3 + $0x1f0] sm:$0xff]
      %v2497 = vld [vmem:[%s3 + $0x1f8] sm:$0xff]
      %v2498 = vld [vmem:[%s3 + $0x200] sm:$0xff]
      %v2499 = vld [vmem:[%s3 + $0x208] sm:$0xff]
      %v2500 = vld [vmem:[%s3 + $0x210] sm:$0xff]
      %v2501 = vld [vmem:[%s3 + $0x218] sm:$0xff]
      %v2502 = vld [vmem:[%s3 + $0x220] sm:$0xff]
      %v2503 = vld [vmem:[%s3 + $0x228] sm:$0xff]
      %v2504 = vld [vmem:[%s3 + $0x230] sm:$0xff]
      %v2505 = vld [vmem:[%s3 + $0x238] sm:$0xff]
      %v2506 = vld [vmem:[%s3 + $0x240] sm:$0xff]
      %v2507 = vld [vmem:[%s3 + $0x248] sm:$0xff]
      %v2508 = vld [vmem:[%s3 + $0x250] sm:$0xff]
      %v2509 = vld [vmem:[%s3 + $0x258] sm:$0xff]
      %v2510 = vld [vmem:[%s3 + $0x260] sm:$0xff]
      %v2511 = vld [vmem:[%s3 + $0x268] sm:$0xff]
      %v2512 = vld [vmem:[%s3 + $0x270] sm:$0xff]
      %v2513 = vld [vmem:[%s3 + $0x278] sm:$0xff]
      %v2514 = vld [vmem:[%s3 + $0x280] sm:$0xff]
      %v2515 = vld [vmem:[%s3 + $0x288] sm:$0xff]
      %v2516 = vld [vmem:[%s3 + $0x290] sm:$0xff]
      %v2517 = vld [vmem:[%s3 + $0x298] sm:$0xff]
      %v2518 = vld [vmem:[%s3 + $0x2a0] sm:$0xff]
      %v2519 = vld [vmem:[%s3 + $0x2a8] sm:$0xff]
      %v2520 = vld [vmem:[%s3 + $0x2b0] sm:$0xff]
      %v2521 = vld [vmem:[%s3 + $0x2b8] sm:$0xff]
      %v2522 = vld [vmem:[%s3 + $0x2c0] sm:$0xff]
      %v2523 = vld [vmem:[%s3 + $0x2c8] sm:$0xff]
      %v2524 = vld [vmem:[%s3 + $0x2d0] sm:$0xff]
      %v2525 = vld [vmem:[%s3 + $0x2d8] sm:$0xff]
      %v2526 = vld [vmem:[%s3 + $0x2e0] sm:$0xff]
      %v2527 = vld [vmem:[%s3 + $0x2e8] sm:$0xff]
      %v2528 = vld [vmem:[%s3 + $0x2f0] sm:$0xff]
      %v2529 = vld [vmem:[%s3 + $0x2f8] sm:$0xff]
      %v2530 = vld [vmem:[%s4] sm:$0x3]
      %v2532 = vlaneseq
      %v2533 = vshrl.u32 %v2532, 7
      %v2534 = vsub.s32 0, %v2533
      %v2535 = vrot.slane %v2530, %v2534
      %v2536 = vlaneseq
      %v2537 = vshrl.u32 %v2536, 7
      %v2538 = vsub.s32 1, %v2537
      %v2539 = vrot.slane %v2530, %v2538
      %v2638 = vunpack.c.l.b16 %v2434
      %v2639 = vunpack.c.h.b16 %v2434
      %v2640 = vunpack.c.l.b16 %v2435
      %v2641 = vunpack.c.h.b16 %v2435
      %v2642 = vunpack.c.l.b16 %v2436
      %v2643 = vunpack.c.h.b16 %v2436
      %v2644 = vunpack.c.l.b16 %v2437
      %v2645 = vunpack.c.h.b16 %v2437
      %v2646 = vunpack.c.l.b16 %v2438
      %v2647 = vunpack.c.h.b16 %v2438
      %v2648 = vunpack.c.l.b16 %v2439
      %v2649 = vunpack.c.h.b16 %v2439
      %v2650 = vunpack.c.l.b16 %v2440
      %v2651 = vunpack.c.h.b16 %v2440
      %v2652 = vunpack.c.l.b16 %v2441
      %v2653 = vunpack.c.h.b16 %v2441
      %v2654 = vunpack.c.l.b16 %v2442
      %v2655 = vunpack.c.h.b16 %v2442
      %v2656 = vunpack.c.l.b16 %v2443
      %v2657 = vunpack.c.h.b16 %v2443
      %v2658 = vunpack.c.l.b16 %v2444
      %v2659 = vunpack.c.h.b16 %v2444
      %v2660 = vunpack.c.l.b16 %v2445
      %v2661 = vunpack.c.h.b16 %v2445
      %v2662 = vunpack.c.l.b16 %v2446
      %v2663 = vunpack.c.h.b16 %v2446
      %v2664 = vunpack.c.l.b16 %v2447
      %v2665 = vunpack.c.h.b16 %v2447
      %v2666 = vunpack.c.l.b16 %v2448
      %v2667 = vunpack.c.h.b16 %v2448
      %v2668 = vunpack.c.l.b16 %v2449
      %v2669 = vunpack.c.h.b16 %v2449
      %v2670 = vunpack.c.l.b16 %v2450
      %v2671 = vunpack.c.h.b16 %v2450
      %v2672 = vunpack.c.l.b16 %v2451
      %v2673 = vunpack.c.h.b16 %v2451
      %v2674 = vunpack.c.l.b16 %v2452
      %v2675 = vunpack.c.h.b16 %v2452
      %v2676 = vunpack.c.l.b16 %v2453
      %v2677 = vunpack.c.h.b16 %v2453
      %v2678 = vunpack.c.l.b16 %v2454
      %v2679 = vunpack.c.h.b16 %v2454
      %v2680 = vunpack.c.l.b16 %v2455
      %v2681 = vunpack.c.h.b16 %v2455
      %v2682 = vunpack.c.l.b16 %v2456
      %v2683 = vunpack.c.h.b16 %v2456
      %v2684 = vunpack.c.l.b16 %v2457
      %v2685 = vunpack.c.h.b16 %v2457
      %v2686 = vunpack.c.l.b16 %v2458
      %v2687 = vunpack.c.h.b16 %v2458
      %v2688 = vunpack.c.l.b16 %v2459
      %v2689 = vunpack.c.h.b16 %v2459
      %v2690 = vunpack.c.l.b16 %v2460
      %v2691 = vunpack.c.h.b16 %v2460
      %v2692 = vunpack.c.l.b16 %v2461
      %v2693 = vunpack.c.h.b16 %v2461
      %v2694 = vunpack.c.l.b16 %v2462
      %v2695 = vunpack.c.h.b16 %v2462
      %v2696 = vunpack.c.l.b16 %v2463
      %v2697 = vunpack.c.h.b16 %v2463
      %v2698 = vunpack.c.l.b16 %v2464
      %v2699 = vunpack.c.h.b16 %v2464
      %v2700 = vunpack.c.l.b16 %v2465
      %v2701 = vunpack.c.h.b16 %v2465
      %v2702 = vunpack.c.l.b16 %v2466
      %v2703 = vunpack.c.h.b16 %v2466
      %v2704 = vunpack.c.l.b16 %v2467
      %v2705 = vunpack.c.h.b16 %v2467
      %v2706 = vunpack.c.l.b16 %v2468
      %v2707 = vunpack.c.h.b16 %v2468
      %v2708 = vunpack.c.l.b16 %v2469
      %v2709 = vunpack.c.h.b16 %v2469
      %v2710 = vunpack.c.l.b16 %v2470
      %v2711 = vunpack.c.h.b16 %v2470
      %v2712 = vunpack.c.l.b16 %v2471
      %v2713 = vunpack.c.h.b16 %v2471
      %v2714 = vunpack.c.l.b16 %v2472
      %v2715 = vunpack.c.h.b16 %v2472
      %v2716 = vunpack.c.l.b16 %v2473
      %v2717 = vunpack.c.h.b16 %v2473
      %v2718 = vunpack.c.l.b16 %v2474
      %v2719 = vunpack.c.h.b16 %v2474
      %v2720 = vunpack.c.l.b16 %v2475
      %v2721 = vunpack.c.h.b16 %v2475
      %v2722 = vunpack.c.l.b16 %v2476
      %v2723 = vunpack.c.h.b16 %v2476
      %v2724 = vunpack.c.l.b16 %v2477
      %v2725 = vunpack.c.h.b16 %v2477
      %v2726 = vunpack.c.l.b16 %v2478
      %v2727 = vunpack.c.h.b16 %v2478
      %v2728 = vunpack.c.l.b16 %v2479
      %v2729 = vunpack.c.h.b16 %v2479
      %v2730 = vunpack.c.l.b16 %v2480
      %v2731 = vunpack.c.h.b16 %v2480
      %v2732 = vunpack.c.l.b16 %v2481
      %v2733 = vunpack.c.h.b16 %v2481
      %v2734 = vunpack.c.l.b16 %v2482
      %v2735 = vunpack.c.h.b16 %v2482
      %v2736 = vunpack.c.l.b16 %v2483
      %v2737 = vunpack.c.h.b16 %v2483
      %v2738 = vunpack.c.l.b16 %v2484
      %v2739 = vunpack.c.h.b16 %v2484
      %v2740 = vunpack.c.l.b16 %v2485
      %v2741 = vunpack.c.h.b16 %v2485
      %v2742 = vunpack.c.l.b16 %v2486
      %v2743 = vunpack.c.h.b16 %v2486
      %v2744 = vunpack.c.l.b16 %v2487
      %v2745 = vunpack.c.h.b16 %v2487
      %v2746 = vunpack.c.l.b16 %v2488
      %v2747 = vunpack.c.h.b16 %v2488
      %v2748 = vunpack.c.l.b16 %v2489
      %v2749 = vunpack.c.h.b16 %v2489
      %v2750 = vunpack.c.l.b16 %v2490
      %v2751 = vunpack.c.h.b16 %v2490
      %v2752 = vunpack.c.l.b16 %v2491
      %v2753 = vunpack.c.h.b16 %v2491
      %v2754 = vunpack.c.l.b16 %v2492
      %v2755 = vunpack.c.h.b16 %v2492
      %v2756 = vunpack.c.l.b16 %v2493
      %v2757 = vunpack.c.h.b16 %v2493
      %v2758 = vunpack.c.l.b16 %v2494
      %v2759 = vunpack.c.h.b16 %v2494
      %v2760 = vunpack.c.l.b16 %v2495
      %v2761 = vunpack.c.h.b16 %v2495
      %v2762 = vunpack.c.l.b16 %v2496
      %v2763 = vunpack.c.h.b16 %v2496
      %v2764 = vunpack.c.l.b16 %v2497
      %v2765 = vunpack.c.h.b16 %v2497
      %v2766 = vunpack.c.l.b16 %v2498
      %v2767 = vunpack.c.h.b16 %v2498
      %v2768 = vunpack.c.l.b16 %v2499
      %v2769 = vunpack.c.h.b16 %v2499
      %v2770 = vunpack.c.l.b16 %v2500
      %v2771 = vunpack.c.h.b16 %v2500
      %v2772 = vunpack.c.l.b16 %v2501
      %v2773 = vunpack.c.h.b16 %v2501
      %v2774 = vunpack.c.l.b16 %v2502
      %v2775 = vunpack.c.h.b16 %v2502
      %v2776 = vunpack.c.l.b16 %v2503
      %v2777 = vunpack.c.h.b16 %v2503
      %v2778 = vunpack.c.l.b16 %v2504
      %v2779 = vunpack.c.h.b16 %v2504
      %v2780 = vunpack.c.l.b16 %v2505
      %v2781 = vunpack.c.h.b16 %v2505
      %v2782 = vunpack.c.l.b16 %v2506
      %v2783 = vunpack.c.h.b16 %v2506
      %v2784 = vunpack.c.l.b16 %v2507
      %v2785 = vunpack.c.h.b16 %v2507
      %v2786 = vunpack.c.l.b16 %v2508
      %v2787 = vunpack.c.h.b16 %v2508
      %v2788 = vunpack.c.l.b16 %v2509
      %v2789 = vunpack.c.h.b16 %v2509
      %v2790 = vunpack.c.l.b16 %v2510
      %v2791 = vunpack.c.h.b16 %v2510
      %v2792 = vunpack.c.l.b16 %v2511
      %v2793 = vunpack.c.h.b16 %v2511
      %v2794 = vunpack.c.l.b16 %v2512
      %v2795 = vunpack.c.h.b16 %v2512
      %v2796 = vunpack.c.l.b16 %v2513
      %v2797 = vunpack.c.h.b16 %v2513
      %v2798 = vunpack.c.l.b16 %v2514
      %v2799 = vunpack.c.h.b16 %v2514
      %v2800 = vunpack.c.l.b16 %v2515
      %v2801 = vunpack.c.h.b16 %v2515
      %v2802 = vunpack.c.l.b16 %v2516
      %v2803 = vunpack.c.h.b16 %v2516
      %v2804 = vunpack.c.l.b16 %v2517
      %v2805 = vunpack.c.h.b16 %v2517
      %v2806 = vunpack.c.l.b16 %v2518
      %v2807 = vunpack.c.h.b16 %v2518
      %v2808 = vunpack.c.l.b16 %v2519
      %v2809 = vunpack.c.h.b16 %v2519
      %v2810 = vunpack.c.l.b16 %v2520
      %v2811 = vunpack.c.h.b16 %v2520
      %v2812 = vunpack.c.l.b16 %v2521
      %v2813 = vunpack.c.h.b16 %v2521
      %v2814 = vunpack.c.l.b16 %v2522
      %v2815 = vunpack.c.h.b16 %v2522
      %v2816 = vunpack.c.l.b16 %v2523
      %v2817 = vunpack.c.h.b16 %v2523
      %v2818 = vunpack.c.l.b16 %v2524
      %v2819 = vunpack.c.h.b16 %v2524
      %v2820 = vunpack.c.l.b16 %v2525
      %v2821 = vunpack.c.h.b16 %v2525
      %v2822 = vunpack.c.l.b16 %v2526
      %v2823 = vunpack.c.h.b16 %v2526
      %v2824 = vunpack.c.l.b16 %v2527
      %v2825 = vunpack.c.h.b16 %v2527
      %v2826 = vunpack.c.l.b16 %v2528
      %v2827 = vunpack.c.h.b16 %v2528
      %v2828 = vunpack.c.l.b16 %v2529
      %v2829 = vunpack.c.h.b16 %v2529
      %v2830 = vpack.c.b16 %v2640, %v2638
      %v2831 = vpack.c.b16 %v2641, %v2639
      %v2832 = vpack.c.b16 %v2644, %v2642
      %v2833 = vpack.c.b16 %v2645, %v2643
      %v2834 = vpack.c.b16 %v2648, %v2646
      %v2835 = vpack.c.b16 %v2649, %v2647
      %v2836 = vpack.c.b16 %v2652, %v2650
      %v2837 = vpack.c.b16 %v2653, %v2651
      %v2838 = vpack.c.b16 %v2656, %v2654
      %v2839 = vpack.c.b16 %v2657, %v2655
      %v2840 = vpack.c.b16 %v2660, %v2658
      %v2841 = vpack.c.b16 %v2661, %v2659
      %v2842 = vpack.c.b16 %v2664, %v2662
      %v2843 = vpack.c.b16 %v2665, %v2663
      %v2844 = vpack.c.b16 %v2668, %v2666
      %v2845 = vpack.c.b16 %v2669, %v2667
      %v2846 = vpack.c.b16 %v2672, %v2670
      %v2847 = vpack.c.b16 %v2673, %v2671
      %v2848 = vpack.c.b16 %v2676, %v2674
      %v2849 = vpack.c.b16 %v2677, %v2675
      %v2850 = vpack.c.b16 %v2680, %v2678
      %v2851 = vpack.c.b16 %v2681, %v2679
      %v2852 = vpack.c.b16 %v2684, %v2682
      %v2853 = vpack.c.b16 %v2685, %v2683
      %v2854 = vpack.c.b16 %v2688, %v2686
      %v2855 = vpack.c.b16 %v2689, %v2687
      %v2856 = vpack.c.b16 %v2692, %v2690
      %v2857 = vpack.c.b16 %v2693, %v2691
      %v2858 = vpack.c.b16 %v2696, %v2694
      %v2859 = vpack.c.b16 %v2697, %v2695
      %v2860 = vpack.c.b16 %v2700, %v2698
      %v2861 = vpack.c.b16 %v2701, %v2699
      %v2862 = vpack.c.b16 %v2704, %v2702
      %v2863 = vpack.c.b16 %v2705, %v2703
      %v2864 = vpack.c.b16 %v2708, %v2706
      %v2865 = vpack.c.b16 %v2709, %v2707
      %v2866 = vpack.c.b16 %v2712, %v2710
      %v2867 = vpack.c.b16 %v2713, %v2711
      %v2868 = vpack.c.b16 %v2716, %v2714
      %v2869 = vpack.c.b16 %v2717, %v2715
      %v2870 = vpack.c.b16 %v2720, %v2718
      %v2871 = vpack.c.b16 %v2721, %v2719
      %v2872 = vpack.c.b16 %v2724, %v2722
      %v2873 = vpack.c.b16 %v2725, %v2723
      %v2874 = vpack.c.b16 %v2728, %v2726
      %v2875 = vpack.c.b16 %v2729, %v2727
      %v2876 = vpack.c.b16 %v2732, %v2730
      %v2877 = vpack.c.b16 %v2733, %v2731
      %v2878 = vpack.c.b16 %v2736, %v2734
      %v2879 = vpack.c.b16 %v2737, %v2735
      %v2880 = vpack.c.b16 %v2740, %v2738
      %v2881 = vpack.c.b16 %v2741, %v2739
      %v2882 = vpack.c.b16 %v2744, %v2742
      %v2883 = vpack.c.b16 %v2745, %v2743
      %v2884 = vpack.c.b16 %v2748, %v2746
      %v2885 = vpack.c.b16 %v2749, %v2747
      %v2886 = vpack.c.b16 %v2752, %v2750
      %v2887 = vpack.c.b16 %v2753, %v2751
      %v2888 = vpack.c.b16 %v2756, %v2754
      %v2889 = vpack.c.b16 %v2757, %v2755
      %v2890 = vpack.c.b16 %v2760, %v2758
      %v2891 = vpack.c.b16 %v2761, %v2759
      %v2892 = vpack.c.b16 %v2764, %v2762
      %v2893 = vpack.c.b16 %v2765, %v2763
      %v2894 = vpack.c.b16 %v2768, %v2766
      %v2895 = vpack.c.b16 %v2769, %v2767
      %v2896 = vpack.c.b16 %v2772, %v2770
      %v2897 = vpack.c.b16 %v2773, %v2771
      %v2898 = vpack.c.b16 %v2776, %v2774
      %v2899 = vpack.c.b16 %v2777, %v2775
      %v2900 = vpack.c.b16 %v2780, %v2778
      %v2901 = vpack.c.b16 %v2781, %v2779
      %v2902 = vpack.c.b16 %v2784, %v2782
      %v2903 = vpack.c.b16 %v2785, %v2783
      %v2904 = vpack.c.b16 %v2788, %v2786
      %v2905 = vpack.c.b16 %v2789, %v2787
      %v2906 = vpack.c.b16 %v2792, %v2790
      %v2907 = vpack.c.b16 %v2793, %v2791
      %v2908 = vpack.c.b16 %v2796, %v2794
      %v2909 = vpack.c.b16 %v2797, %v2795
      %v2910 = vpack.c.b16 %v2800, %v2798
      %v2911 = vpack.c.b16 %v2801, %v2799
      %v2912 = vpack.c.b16 %v2804, %v2802
      %v2913 = vpack.c.b16 %v2805, %v2803
      %v2914 = vpack.c.b16 %v2808, %v2806
      %v2915 = vpack.c.b16 %v2809, %v2807
      %v2916 = vpack.c.b16 %v2812, %v2810
      %v2917 = vpack.c.b16 %v2813, %v2811
      %v2918 = vpack.c.b16 %v2816, %v2814
      %v2919 = vpack.c.b16 %v2817, %v2815
      %v2920 = vpack.c.b16 %v2820, %v2818
      %v2921 = vpack.c.b16 %v2821, %v2819
      %v2922 = vpack.c.b16 %v2824, %v2822
      %v2923 = vpack.c.b16 %v2825, %v2823
      %v2924 = vpack.c.b16 %v2828, %v2826
      %v2925 = vpack.c.b16 %v2829, %v2827
      %3022 = vmatprep.subr.bf16.mxu0 %v2831
      %3023 = vmatpush1.bf16.msra.mxu0 %v2830
      %3024 = vmatprep.subr.bf16.mxu0 %v2833
      %3025 = vmatpush1.bf16.msra.mxu0 %v2832
      %3026 = vmatprep.subr.bf16.mxu0 %v2835
      %3027 = vmatpush1.bf16.msra.mxu0 %v2834
      %3028 = vmatprep.subr.bf16.mxu0 %v2837
      %3029 = vmatpush1.bf16.msra.mxu0 %v2836
      %3030 = vmatprep.subr.bf16.mxu0 %v2839
      %3031 = vmatpush1.bf16.msra.mxu0 %v2838
      %3032 = vmatprep.subr.bf16.mxu0 %v2841
      %3033 = vmatpush1.bf16.msra.mxu0 %v2840
      %3034 = vmatprep.subr.bf16.mxu0 %v2843
      %3035 = vmatpush1.bf16.msra.mxu0 %v2842
      %3036 = vmatprep.subr.bf16.mxu0 %v2845
      %3037 = vmatpush1.bf16.msra.mxu0 %v2844
      %3038 = vmatprep.subr.bf16.mxu0 %v2847
      %3039 = vmatpush1.bf16.msra.mxu0 %v2846
      %3040 = vmatprep.subr.bf16.mxu0 %v2849
      %3041 = vmatpush1.bf16.msra.mxu0 %v2848
      %3042 = vmatprep.subr.bf16.mxu0 %v2851
      %3043 = vmatpush1.bf16.msra.mxu0 %v2850
      %3044 = vmatprep.subr.bf16.mxu0 %v2853
      %3045 = vmatpush1.bf16.msra.mxu0 %v2852
      %3046 = vmatprep.subr.bf16.mxu0 %v2855
      %3047 = vmatpush1.bf16.msra.mxu0 %v2854
      %3048 = vmatprep.subr.bf16.mxu0 %v2857
      %3049 = vmatpush1.bf16.msra.mxu0 %v2856
      %3050 = vmatprep.subr.bf16.mxu0 %v2859
      %3051 = vmatpush1.bf16.msra.mxu0 %v2858
      %3052 = vmatprep.subr.bf16.mxu0 %v2861
      %3053 = vmatpush1.bf16.msra.mxu0 %v2860
      %3054 = vmatprep.mubr.bf16.mxu0 %v2429
      %3055 = vmatmul.mubr.bf16.gmra.mrb[0].mxu0 %v2428
      %v3056 = vpop.f32.mrb[0].mxu0
      %v3057 = vadd.f32 %v2535, %v3056
      %v3058 = vpop.f32.mrb[0].mxu0
      %v3059 = vadd.f32 %v2539, %v3058
      %v3060 = vpop.f32.mrb[0].mxu0
      %v3061 = vadd.f32 %v2535, %v3060
      %v3062 = vpop.f32.mrb[0].mxu0
      %v3063 = vadd.f32 %v2539, %v3062
      %3064 = vdwg.mxu0
      %3065 = vmatprep.subr.bf16.mxu0 %v2863
      %3066 = vmatpush1.bf16.msra.mxu0 %v2862
      %3067 = vmatprep.subr.bf16.mxu0 %v2865
      %3068 = vmatpush1.bf16.msra.mxu0 %v2864
      %3069 = vmatprep.subr.bf16.mxu0 %v2867
      %3070 = vmatpush1.bf16.msra.mxu0 %v2866
      %3071 = vmatprep.subr.bf16.mxu0 %v2869
      %3072 = vmatpush1.bf16.msra.mxu0 %v2868
      %3073 = vmatprep.subr.bf16.mxu0 %v2871
      %3074 = vmatpush1.bf16.msra.mxu0 %v2870
      %3075 = vmatprep.subr.bf16.mxu0 %v2873
      %3076 = vmatpush1.bf16.msra.mxu0 %v2872
      %3077 = vmatprep.subr.bf16.mxu0 %v2875
      %3078 = vmatpush1.bf16.msra.mxu0 %v2874
      %3079 = vmatprep.subr.bf16.mxu0 %v2877
      %3080 = vmatpush1.bf16.msra.mxu0 %v2876
      %3081 = vmatprep.subr.bf16.mxu0 %v2879
      %3082 = vmatpush1.bf16.msra.mxu0 %v2878
      %3083 = vmatprep.subr.bf16.mxu0 %v2881
      %3084 = vmatpush1.bf16.msra.mxu0 %v2880
      %3085 = vmatprep.subr.bf16.mxu0 %v2883
      %3086 = vmatpush1.bf16.msra.mxu0 %v2882
      %3087 = vmatprep.subr.bf16.mxu0 %v2885
      %3088 = vmatpush1.bf16.msra.mxu0 %v2884
      %3089 = vmatprep.subr.bf16.mxu0 %v2887
      %3090 = vmatpush1.bf16.msra.mxu0 %v2886
      %3091 = vmatprep.subr.bf16.mxu0 %v2889
      %3092 = vmatpush1.bf16.msra.mxu0 %v2888
      %3093 = vmatprep.subr.bf16.mxu0 %v2891
      %3094 = vmatpush1.bf16.msra.mxu0 %v2890
      %3095 = vmatprep.subr.bf16.mxu0 %v2893
      %3096 = vmatpush1.bf16.msra.mxu0 %v2892
      %3097 = vmatprep.mubr.bf16.mxu0 %v2431
      %3098 = vmatmul.mubr.bf16.gmra.mrb[0].mxu0 %v2430
      %v3099 = vpop.f32.mrb[0].mxu0
      %v3100 = vadd.f32 %v3057, %v3099
      %v3101 = vpop.f32.mrb[0].mxu0
      %v3102 = vadd.f32 %v3059, %v3101
      %v3103 = vpop.f32.mrb[0].mxu0
      %v3104 = vadd.f32 %v3061, %v3103
      %v3105 = vpop.f32.mrb[0].mxu0
      %v3106 = vadd.f32 %v3063, %v3105
      %3107 = vdwg.mxu0
      %3108 = vmatprep.subr.bf16.mxu0 %v2895
      %3109 = vmatpush1.bf16.msra.mxu0 %v2894
      %3110 = vmatprep.subr.bf16.mxu0 %v2897
      %3111 = vmatpush1.bf16.msra.mxu0 %v2896
      %3112 = vmatprep.subr.bf16.mxu0 %v2899
      %3113 = vmatpush1.bf16.msra.mxu0 %v2898
      %3114 = vmatprep.subr.bf16.mxu0 %v2901
      %3115 = vmatpush1.bf16.msra.mxu0 %v2900
      %3116 = vmatprep.subr.bf16.mxu0 %v2903
      %3117 = vmatpush1.bf16.msra.mxu0 %v2902
      %3118 = vmatprep.subr.bf16.mxu0 %v2905
      %3119 = vmatpush1.bf16.msra.mxu0 %v2904
      %3120 = vmatprep.subr.bf16.mxu0 %v2907
      %3121 = vmatpush1.bf16.msra.mxu0 %v2906
      %3122 = vmatprep.subr.bf16.mxu0 %v2909
      %3123 = vmatpush1.bf16.msra.mxu0 %v2908
      %3124 = vmatprep.subr.bf16.mxu0 %v2911
      %3125 = vmatpush1.bf16.msra.mxu0 %v2910
      %3126 = vmatprep.subr.bf16.mxu0 %v2913
      %3127 = vmatpush1.bf16.msra.mxu0 %v2912
      %3128 = vmatprep.subr.bf16.mxu0 %v2915
      %3129 = vmatpush1.bf16.msra.mxu0 %v2914
      %3130 = vmatprep.subr.bf16.mxu0 %v2917
      %3131 = vmatpush1.bf16.msra.mxu0 %v2916
      %3132 = vmatprep.subr.bf16.mxu0 %v2919
      %3133 = vmatpush1.bf16.msra.mxu0 %v2918
      %3134 = vmatprep.subr.bf16.mxu0 %v2921
      %3135 = vmatpush1.bf16.msra.mxu0 %v2920
      %3136 = vmatprep.subr.bf16.mxu0 %v2923
      %3137 = vmatpush1.bf16.msra.mxu0 %v2922
      %3138 = vmatprep.subr.bf16.mxu0 %v2925
      %3139 = vmatpush1.bf16.msra.mxu0 %v2924
      %3140 = vmatprep.mubr.bf16.mxu0 %v2433
      %3141 = vmatmul.mubr.bf16.gmra.mrb[0].mxu0 %v2432
      %v3142 = vpop.f32.mrb[0].mxu0
      %v3143 = vadd.f32 %v3100, %v3142
      %v3144 = vpop.f32.mrb[0].mxu0
      %v3145 = vadd.f32 %v3102, %v3144
      %v3146 = vpop.f32.mrb[0].mxu0
      %v3147 = vadd.f32 %v3104, %v3146
      %v3148 = vpop.f32.mrb[0].mxu0
      %v3149 = vadd.f32 %v3106, %v3148
      %3150 = vdwg.mxu0
      %v3151 = vmax.f32 %v3143, 0.0
      %v3152 = vmax.f32 %v3145, 0.0
      %v3153 = vmax.f32 %v3147, 0.0
      %v3154 = vmax.f32 %v3149, 0.0
      %v3155 = vpack.c.bf16 %v3153, %v3151
      %v3156 = vpack.c.bf16 %v3154, %v3152
      %v3159 = vunpack.c.l.b16 %v3155
      %v3160 = vunpack.c.l.b16 %v3156
      %v3161 = vunpack.c.h.b16 %v3155
      %v3162 = vunpack.c.h.b16 %v3156
      %v3163 = vpack.c.b16 %v3160, %v3159
      %v3164 = vpack.c.b16 %v3162, %v3161
      %3167 = vst [vmem:[%s231] sm:$0xff] %v3163
      %3168 = vst [vmem:[%s231 + $0x8] sm:$0xff] %v3164
      %s3169 = smul.u32 2, %s16
      %p3170 = scmp.lt.s32.totalorder %s3169, 3
      %s3171 = scalar_select %p3170, %s3169, 3
      %s3172 = smul.addr %s3171, 2
      %s3173 = smul.addr %s3172, 4
      %s3174 = scalar_lea.vmem %s5, %s3173
      // Predicated region
      $region41: #{radio_mamba_v2_forward.6} parent=39 // pred_check
        %p3175 = pneg %p144
      $region42: #{radio_mamba_v2_forward.6} parent=39 // pred_check_branch
        %3177 = sbr.rel (%p3175) target = $region44
      $region43: #{radio_mamba_v2_forward.6} parent=39 // pred_region
        %s3178 = smul.u32 2, %s16
      $region44: #{radio_mamba_v2_forward.6} parent=39 // pred_fallthru
        _
    $region40: #{radio_mamba_v2_forward.6} parent=5 // pred_fallthru
      _
    %p3179 = scmp.le.s32.totalorder 2, %s11
    // Predicated region
    $region45: #{radio_mamba_v2_forward.6} parent=5 // pred_check
      %p3180 = pneg %p3179
    $region46: #{radio_mamba_v2_forward.6} parent=5 // pred_check_branch
      %3182 = sbr.rel (%p3180) target = $region48
    $region47: #{radio_mamba_v2_forward.6} parent=5 // pred_region
      %s3183 = ssub.s32 %s11, 2
      // Predicated region
      $region49: #{radio_mamba_v2_forward.6} parent=47 // pred_check
        %p3184 = pneg %p150
      $region50: #{radio_mamba_v2_forward.6} parent=47 // pred_check_branch
        %3186 = sbr.rel (%p3184) target = $region52
      $region51: #{radio_mamba_v2_forward.6} parent=47 // pred_region
        %s3187 = smul.u32 2, %s17
        %p3188 = scmp.lt.s32.totalorder %s3187, 3
        %s3189 = scalar_select %p3188, %s3187, 3
        %s3190 = smul.addr %s3189, 2
        %s3191 = smul.addr %s3190, 4
        %s3192 = scalar_lea.vmem %s5, %s3191
      $region52: #{radio_mamba_v2_forward.6} parent=47 // pred_fallthru
        _
    $region48: #{radio_mamba_v2_forward.6} parent=5 // pred_fallthru
      _
  $region6: #{radio_mamba_v2_forward.6} parent=0 // loop_footer
    %s15 = sadd.s32 1, %s11
  $region7: #{radio_mamba_v2_forward.6} parent=0 // loop_footer_branch
    %10 = sbr.rel target = $region3
  $region8: #{radio_mamba_v2_forward.6} parent=0 // loop_exit
    _

// kernel: radio_mamba_v2_forward.10
$region0: #{radio_mamba_v2_forward.10}
  #allocation0 [shape = 'u32[]', space=smem, size = 0x4, offset = 0x4, fixed_abs, tag = 'smem constant byte address 0x4 - core index']
  #allocation1 [shape = 'u32[144,128]{1,0:T(1,128)}', space=vmem, size = 0x12000, scoped, tag = 'internal scratch']
  #allocation2 [shape = 'bf16[16,1152]{1,0:T(16,128)(2,1)}', space=vmem, size = 0x9000, scoped, tag = 'scratch operand']
  #allocation3 [shape = 'bf16[32,128]{1,0:T(16,128)(2,1)}', space=vmem, size = 0x2000, scoped, tag = 'scratch operand']
  %s0 = inlined_call_operand.vmem [shape: bf16[4,32,128], index: 0, kind: input, shape index: {}]
  %s1 = inlined_call_operand.vmem [shape: bf16[1152,128], index: 1, kind: input, shape index: {}]
  %s2 = inlined_call_operand.vmem [shape: f32[1,128], index: 2, kind: input, shape index: {}]
  %s3 = inlined_call_operand.vmem [shape: bf16[1152,128], index: 3, kind: input, shape index: {}]
  %s4 = inlined_call_operand.vmem [shape: f32[1,128], index: 4, kind: input, shape index: {}]
  %s5 = inlined_call_operand.vmem [shape: bf16[4,16,128], index: 5, kind: output, shape index: {}]
  %s6 = sld [smem:[#allocation0]]
  $region53: #{radio_mamba_v2_forward.10} parent=0
    _
  %s8 = ssub.s32 1, %s6
  %s9 = scalar_select 0, %s8, %s6
  loop: start=0, step=1, limit=6
  $region2: #{radio_mamba_v2_forward.10} parent=0 // loop_pre_header
    _
  $region3: #{radio_mamba_v2_forward.10} parent=0 // loop_header
    %s11 = sphi 0, %s15
    %p12 = scmp.ge.s32.totalorder %s11, 6
    %s21 = sphi 0, %s23
    %s24 = sphi 0, %s21
    %s25 = sphi 0, %s24
    %s41 = sphi 0, %s25
    %s45 = sphi 0, %s45
    %s47 = sphi 0, %s45
    %s48 = sphi 0, %s47
    %s62 = sphi 0, %s48
    %s66 = sphi 0, %s66
    %s68 = sphi 0, %s66
    %s69 = sphi 0, %s68
    %s83 = sphi 0, %s69
    %s87 = sphi 0, %s87
    %s89 = sphi 0, %s87
    %s90 = sphi 0, %s89
    %s104 = sphi 0, %s90
    %s108 = sphi 0, %s108
    %s110 = sphi 0, %s108
    %s111 = sphi 0, %s110
    %s125 = sphi 0, %s111
    %s131 = sphi 0, %s133
    %s134 = sphi 0, %s131
    %s135 = sphi 0, %s134
    %s151 = sphi 0, %s135
  $region4: #{radio_mamba_v2_forward.10} parent=0 // loop_header_branch
    %14 = sbr.rel (%p12) target = $region8
  $region5: #{radio_mamba_v2_forward.10} parent=0 // loop_body
    %s16 = ssub.s32 %s11, 1
    %s17 = ssub.s32 %s11, 2
    %s18 = sadd.s32 %s11, 1
    %s19 = ssub.s32 %s11, %s18
    %p20 = scmp.eq.s32.totalorder %s19, 0
    %s22 = sadd.s32 %s21, 1
    %s23 = scalar_select %p20, %s21, %s22
    %p26 = pneg %p20
    %p27 = scmp.eq.s32.totalorder %s11, 3
    %p28 = por %p26, %p27
    %p29 = scmp.ne.s32.totalorder %s21, %s24
    %p30 = scmp.eq.s32.totalorder %s11, 0
    %p31 = por %p29, %p30
    %p32 = scmp.ne.s32.totalorder %s21, %s24
    %p33 = scmp.eq.s32.totalorder %s16, 3
    %p34 = por %p32, %p33
    %p35 = scmp.ne.s32.totalorder %s24, %s25
    %p36 = scmp.eq.s32.totalorder %s16, 0
    %p37 = por %p35, %p36
    %p38 = scmp.ne.s32.totalorder %s24, %s25
    %p39 = scmp.eq.s32.totalorder %s17, 3
    %p40 = por %p38, %p39
    %p42 = scmp.ne.s32.totalorder %s25, %s41
    %p43 = scmp.eq.s32.totalorder %s17, 0
    %p44 = por %p42, %p43
    %s46 = sadd.s32 %s45, 1
    %p49 = scmp.eq.s32.totalorder %s11, 3
    %p50 = scmp.ne.s32.totalorder %s45, %s47
    %p51 = scmp.eq.s32.totalorder %s11, 0
    %p52 = por %p50, %p51
    %p53 = scmp.ne.s32.totalorder %s45, %s47
    %p54 = scmp.eq.s32.totalorder %s16, 3
    %p55 = por %p53, %p54
    %p56 = scmp.ne.s32.totalorder %s47, %s48
    %p57 = scmp.eq.s32.totalorder %s16, 0
    %p58 = por %p56, %p57
    %p59 = scmp.ne.s32.totalorder %s47, %s48
    %p60 = scmp.eq.s32.totalorder %s17, 3
    %p61 = por %p59, %p60
    %p63 = scmp.ne.s32.totalorder %s48, %s62
    %p64 = scmp.eq.s32.totalorder %s17, 0
    %p65 = por %p63, %p64
    %s67 = sadd.s32 %s66, 1
    %p70 = scmp.eq.s32.totalorder %s11, 3
    %p71 = scmp.ne.s32.totalorder %s66, %s68
    %p72 = scmp.eq.s32.totalorder %s11, 0
    %p73 = por %p71, %p72
    %p74 = scmp.ne.s32.totalorder %s66, %s68
    %p75 = scmp.eq.s32.totalorder %s16, 3
    %p76 = por %p74, %p75
    %p77 = scmp.ne.s32.totalorder %s68, %s69
    %p78 = scmp.eq.s32.totalorder %s16, 0
    %p79 = por %p77, %p78
    %p80 = scmp.ne.s32.totalorder %s68, %s69
    %p81 = scmp.eq.s32.totalorder %s17, 3
    %p82 = por %p80, %p81
    %p84 = scmp.ne.s32.totalorder %s69, %s83
    %p85 = scmp.eq.s32.totalorder %s17, 0
    %p86 = por %p84, %p85
    %s88 = sadd.s32 %s87, 1
    %p91 = scmp.eq.s32.totalorder %s11, 3
    %p92 = scmp.ne.s32.totalorder %s87, %s89
    %p93 = scmp.eq.s32.totalorder %s11, 0
    %p94 = por %p92, %p93
    %p95 = scmp.ne.s32.totalorder %s87, %s89
    %p96 = scmp.eq.s32.totalorder %s16, 3
    %p97 = por %p95, %p96
    %p98 = scmp.ne.s32.totalorder %s89, %s90
    %p99 = scmp.eq.s32.totalorder %s16, 0
    %p100 = por %p98, %p99
    %p101 = scmp.ne.s32.totalorder %s89, %s90
    %p102 = scmp.eq.s32.totalorder %s17, 3
    %p103 = por %p101, %p102
    %p105 = scmp.ne.s32.totalorder %s90, %s104
    %p106 = scmp.eq.s32.totalorder %s17, 0
    %p107 = por %p105, %p106
    %s109 = sadd.s32 %s108, 1
    %p112 = scmp.eq.s32.totalorder %s11, 3
    %p113 = scmp.ne.s32.totalorder %s108, %s110
    %p114 = scmp.eq.s32.totalorder %s11, 0
    %p115 = por %p113, %p114
    %p116 = scmp.ne.s32.totalorder %s108, %s110
    %p117 = scmp.eq.s32.totalorder %s16, 3
    %p118 = por %p116, %p117
    %p119 = scmp.ne.s32.totalorder %s110, %s111
    %p120 = scmp.eq.s32.totalorder %s16, 0
    %p121 = por %p119, %p120
    %p122 = scmp.ne.s32.totalorder %s110, %s111
    %p123 = scmp.eq.s32.totalorder %s17, 3
    %p124 = por %p122, %p123
    %p126 = scmp.ne.s32.totalorder %s111, %s125
    %p127 = scmp.eq.s32.totalorder %s17, 0
    %p128 = por %p126, %p127
    %s129 = ssub.s32 %s11, %s18
    %p130 = scmp.eq.s32.totalorder %s129, 0
    %s132 = sadd.s32 %s131, 1
    %s133 = scalar_select %p130, %s131, %s132
    %p136 = pneg %p130
    %p137 = scmp.eq.s32.totalorder %s11, 3
    %p138 = por %p136, %p137
    %p139 = scmp.ne.s32.totalorder %s131, %s134
    %p140 = scmp.eq.s32.totalorder %s11, 0
    %p141 = por %p139, %p140
    %p142 = scmp.ne.s32.totalorder %s131, %s134
    %p143 = scmp.eq.s32.totalorder %s16, 3
    %p144 = por %p142, %p143
    %p145 = scmp.ne.s32.totalorder %s134, %s135
    %p146 = scmp.eq.s32.totalorder %s16, 0
    %p147 = por %p145, %p146
    %p148 = scmp.ne.s32.totalorder %s134, %s135
    %p149 = scmp.eq.s32.totalorder %s17, 3
    %p150 = por %p148, %p149
    %p152 = scmp.ne.s32.totalorder %s135, %s151
    %p153 = scmp.eq.s32.totalorder %s17, 0
    %p154 = por %p152, %p153
    %p155 = scmp.le.s32.totalorder 1, %s11
    %p156 = scmp.lt.s32.totalorder %s11, 5
    %p157 = pnand %p155, %p156
    %p158 = pneg %p157
    // Predicated region
    $region9: #{radio_mamba_v2_forward.10} parent=5 // pred_check
      _
    $region10: #{radio_mamba_v2_forward.10} parent=5 // pred_check_branch
      %160 = sbr.rel (%p157) target = $region12
    $region11: #{radio_mamba_v2_forward.10} parent=5 // pred_region
      %s161 = ssub.s32 %s11, 1
      // Predicated region
      $region13: #{radio_mamba_v2_forward.10} parent=11 // pred_check
        %p162 = pneg %p58
      $region14: #{radio_mamba_v2_forward.10} parent=11 // pred_check_branch
        %164 = sbr.rel (%p162) target = $region16
      $region15: #{radio_mamba_v2_forward.10} parent=11 // pred_region
        _
      $region16: #{radio_mamba_v2_forward.10} parent=11 // pred_fallthru
        _
      // Predicated region
      $region17: #{radio_mamba_v2_forward.10} parent=11 // pred_check
        %p165 = pneg %p79
      $region18: #{radio_mamba_v2_forward.10} parent=11 // pred_check_branch
        %167 = sbr.rel (%p165) target = $region20
      $region19: #{radio_mamba_v2_forward.10} parent=11 // pred_region
        _
      $region20: #{radio_mamba_v2_forward.10} parent=11 // pred_fallthru
        _
      // Predicated region
      $region21: #{radio_mamba_v2_forward.10} parent=11 // pred_check
        %p168 = pneg %p100
      $region22: #{radio_mamba_v2_forward.10} parent=11 // pred_check_branch
        %170 = sbr.rel (%p168) target = $region24
      $region23: #{radio_mamba_v2_forward.10} parent=11 // pred_region
        _
      $region24: #{radio_mamba_v2_forward.10} parent=11 // pred_fallthru
        _
      // Predicated region
      $region25: #{radio_mamba_v2_forward.10} parent=11 // pred_check
        %p171 = pneg %p121
      $region26: #{radio_mamba_v2_forward.10} parent=11 // pred_check_branch
        %173 = sbr.rel (%p171) target = $region28
      $region27: #{radio_mamba_v2_forward.10} parent=11 // pred_region
        _
      $region28: #{radio_mamba_v2_forward.10} parent=11 // pred_fallthru
        _
    $region12: #{radio_mamba_v2_forward.10} parent=5 // pred_fallthru
      _
    %p174 = scmp.lt.s32.totalorder %s11, 4
    // Predicated region
    $region29: #{radio_mamba_v2_forward.10} parent=5 // pred_check
      %p175 = pneg %p174
    $region30: #{radio_mamba_v2_forward.10} parent=5 // pred_check_branch
      %177 = sbr.rel (%p175) target = $region32
    $region31: #{radio_mamba_v2_forward.10} parent=5 // pred_region
      // Predicated region
      $region33: #{radio_mamba_v2_forward.10} parent=31 // pred_check
        %p178 = pneg %p31
      $region34: #{radio_mamba_v2_forward.10} parent=31 // pred_check_branch
        %180 = sbr.rel (%p178) target = $region36
      $region35: #{radio_mamba_v2_forward.10} parent=31 // pred_region
        %p181 = scmp.lt.s32.totalorder %s11, 3
        %s182 = scalar_select %p181, %s11, 3
        %s183 = smul.addr %s182, 4
        %s184 = smul.addr %s183, 4
        %s185 = scalar_lea.vmem %s0, %s184
      $region36: #{radio_mamba_v2_forward.10} parent=31 // pred_fallthru
        _
    $region32: #{radio_mamba_v2_forward.10} parent=5 // pred_fallthru
      _
    %p186 = scmp.le.s32.totalorder 1, %s11
    %p187 = scmp.lt.s32.totalorder %s11, 5
    %p188 = pnand %p186, %p187
    %p189 = pneg %p188
    // Predicated region
    $region37: #{radio_mamba_v2_forward.10} parent=5 // pred_check
      _
    $region38: #{radio_mamba_v2_forward.10} parent=5 // pred_check_branch
      %191 = sbr.rel (%p188) target = $region40
    $region39: #{radio_mamba_v2_forward.10} parent=5 // pred_region
      %s192 = ssub.s32 %s11, 1
      %p193 = scmp.lt.s32.totalorder %s16, 3
      %s194 = scalar_select %p193, %s16, 3
      %s195 = smul.addr %s194, 4
      %s196 = smul.addr %s195, 4
      %s197 = scalar_lea.vmem %s0, %s196
      %p198 = pneg %p37
      %p199 = pneg %p34
      %p200 = pneg %p58
      %p201 = pneg %p55
      %p202 = pneg %p79
      %p203 = pneg %p76
      %p204 = pneg %p100
      %p205 = pneg %p97
      %p206 = pneg %p121
      %p207 = pneg %p118
      %p208 = pneg %p147
      %p209 = pneg %p144
      %p210 = scmp.lt.s32.totalorder %s16, 3
      %s211 = scalar_select %p210, %s16, 3
      %s212 = smul.addr %s211, 2
      %s213 = smul.addr %s212, 4
      %s214 = scalar_lea.vmem %s5, %s213
      %p215 = scmp.lt.s32.totalorder %s16, 3
      %s216 = scalar_select %p215, %s16, 3
      %s217 = smul.addr %s216, 4
      %s218 = smul.addr %s217, 4
      %s219 = scalar_lea.vmem %s0, %s218
      %p220 = scmp.lt.s32.totalorder %s16, 3
      %s221 = scalar_select %p220, %s16, 3
      %s222 = smul.addr %s221, 2
      %s223 = smul.addr %s222, 4
      %s224 = scalar_lea.vmem %s5, %s223
      %v226 = vlaneseq
      %v227 = vshrl.u32 %v226, 7
      %v228 = vadd.s32 %v227, 8
      %vm229 = vcmp.lt.s32.totalorder %v227, 0
      %v230 = vsub.s32 0, %v227
      %v231 = vsel %vm229, %v230, %v227
      %v232 = vshrl.u32 %v231, 2
      %v233 = vand.u32 %v231, 3
      %v234 = vsub.s32 0, %v233
      %v235 = vsel %vm229, %v234, %v233
      %vm236 = vcmp.lt.s32.totalorder %v228, 0
      %v237 = vsub.s32 0, %v228
      %v238 = vsel %vm236, %v237, %v228
      %v239 = vshrl.u32 %v238, 2
      %v240 = vand.u32 %v238, 3
      %v241 = vsub.s32 0, %v240
      %v242 = vsel %vm236, %v241, %v240
      %vm243 = vcmp.ne.s32.totalorder %v235, 0
      %vm244 = vcmp.ne.s32.totalorder %v242, 0
      %vm245 = vcmp.lt.s32.totalorder %v235, 0
      %vm246 = vcmp.lt.s32.totalorder %v242, 0
      %vm247 = vmand %vm245, %vm243
      %vm248 = vmand %vm246, %vm244
      %v249 = vadd.s32 %v235, 4
      %v250 = vadd.s32 %v242, 4
      %v251 = vsel %vm247, %v249, %v235
      %v252 = vsel %vm248, %v250, %v242
      %vm253 = vcmp.ne.s32.totalorder %v251, 0
      %vm254 = vcmp.ne.s32.totalorder %v252, 0
      %v255 = vsel %vm253, 1, 0
      %v256 = vsel %vm254, 1, 0
      %v257 = vcvt.s32.f32 %v255
      %v258 = vcvt.s32.f32 %v256
      %v259 = vpack.c.bf16 %v258, %v257
      %vm260 = vcmp.ne.s32.totalorder %v251, 3
      %vm261 = vcmp.ne.s32.totalorder %v252, 3
      %v262 = vsel %vm260, 1, 0
      %v263 = vsel %vm261, 1, 0
      %v264 = vcvt.s32.f32 %v262
      %v265 = vcvt.s32.f32 %v263
      %v266 = vpack.c.bf16 %v265, %v264
      %v267 = vld [vmem:[%s219] sm:$0xe]
      %v268 = vld [vmem:[%s219 + $0x4] sm:$0xf]
      %v269 = vld [vmem:[%s219 + $0x8] sm:$0x3]
      %v272 = vunpack.c.l.s4 839922192
      %v273 = vunpack.c.0.s8 %v272
      %v274 = vlaneseq
      %v275 = vshrl.u32 %v274, 7
      %v276 = vsub.s32 %v273, %v275
      %v277 = vrot.slane %v259, %v276
      %v279 = vunpack.c.l.s4 1985246804
      %v280 = vunpack.c.0.s8 %v279
      %v281 = vlaneseq
      %v282 = vshrl.u32 %v281, 7
      %v283 = vsub.s32 %v280, %v282
      %v284 = vrot.slane %v259, %v283
      %vm285 = vsmask.f32 1280
      %vm286 = vsmask.f32 5392
      %vm287 = vmor %vm285, %vm286
      %v289 = vshrl.u32 %v277, 16
      %v291 = vrot.slane %v289, 6
      %v292 = vshll.u32 %v277, 16
      %v294 = vrot.slane %v292, 7
      %v295 = vor.u32 %v291, %v294
      %v296 = vrot.slane %v295, 4
      %v298 = vshrl.u32 %v284, 16
      %v300 = vrot.slane %v298, 6
      %v301 = vshll.u32 %v284, 16
      %v303 = vrot.slane %v301, 7
      %v304 = vor.u32 %v300, %v303
      %v305 = vsel %vm287, %v296, %v304
      %v306 = vrot.slane %v304, 4
      %v310 = vmul.bf16 %v267, %v295
      %v311 = vmul.bf16 %v268, %v305
      %v312 = vmul.bf16 %v269, %v306
      %v316 = vunpack.c.l.b16 %v310
      %v317 = vunpack.c.l.b16 %v311
      %v318 = vunpack.c.l.b16 %v312
      %v319 = vpack.c.b16 %v317, %v316
      %v320 = vpack.c.b16 %v318, %v318
      %vm321 = vsmask.f32 6400
      %v323 = vshrl.u32 %v319, 16
      %v325 = vrot.slane %v323, 1
      %v326 = vshll.u32 %v319, 16
      %v328 = vrot.slane %v326, 2
      %v329 = vor.u32 %v325, %v328
      %v331 = vshrl.u32 %v320, 16
      %v333 = vrot.slane %v331, 1
      %v334 = vshll.u32 %v320, 16
      %v336 = vrot.slane %v334, 2
      %v337 = vor.u32 %v333, %v336
      %v338 = vsel %vm321, %v329, %v337
      %340 = vst [vmem:[#allocation2] sm:$0xff] %v338
      %v341 = vld [vmem:[%s219] sm:$0xc]
      %v342 = vld [vmem:[%s219 + $0x4] sm:$0xf]
      %v343 = vld [vmem:[%s219 + $0x8] sm:$0x3]
      %v347 = vunpack.c.l.b16 %v341
      %v348 = vunpack.c.l.b16 %v342
      %v349 = vunpack.c.l.b16 %v343
      %v350 = vpack.c.b16 %v348, %v347
      %v351 = vpack.c.b16 %v349, %v349
      %vm352 = vcmask 1045504
      %v353 = vrot.slane %v350, 2
      %v354 = vrot.slane %v351, 2
      %v355 = vsel %vm352, %v353, %v354
      %357 = vst [vmem:[#allocation2 + $0x8] sm:$0xff] %v355
      %v358 = vld [vmem:[%s219] sm:$0xc]
      %v359 = vld [vmem:[%s219 + $0x4] sm:$0xf]
      %v360 = vld [vmem:[%s219 + $0x8] sm:$0x7]
      %v363 = vunpack.c.l.s4 839922192
      %v364 = vunpack.c.0.s8 %v363
      %v365 = vlaneseq
      %v366 = vshrl.u32 %v365, 7
      %v367 = vsub.s32 %v364, %v366
      %v368 = vrot.slane %v266, %v367
      %v370 = vunpack.c.l.s4 1985246804
      %v371 = vunpack.c.0.s8 %v370
      %v372 = vlaneseq
      %v373 = vshrl.u32 %v372, 7
      %v374 = vsub.s32 %v371, %v373
      %v375 = vrot.slane %v266, %v374
      %vm376 = vsmask.f32 2304
      %vm377 = vsmask.f32 6416
      %vm378 = vmor %vm376, %vm377
      %v380 = vshrl.u32 %v368, 16
      %v382 = vrot.slane %v380, 5
      %v383 = vshll.u32 %v368, 16
      %v385 = vrot.slane %v383, 6
      %v386 = vor.u32 %v382, %v385
      %v387 = vrot.slane %v386, 4
      %v389 = vshrl.u32 %v375, 16
      %v391 = vrot.slane %v389, 5
      %v392 = vshll.u32 %v375, 16
      %v394 = vrot.slane %v392, 6
      %v395 = vor.u32 %v391, %v394
      %v396 = vsel %vm378, %v387, %v395
      %v397 = vrot.slane %v395, 4
      %v401 = vmul.bf16 %v358, %v386
      %v402 = vmul.bf16 %v359, %v396
      %v403 = vmul.bf16 %v360, %v397
      %v407 = vunpack.c.l.b16 %v401
      %v408 = vunpack.c.l.b16 %v402
      %v409 = vunpack.c.l.b16 %v403
      %v410 = vpack.c.b16 %v408, %v407
      %v411 = vpack.c.b16 %v409, %v409
      %vm412 = vsmask.f32 5376
      %v414 = vshrl.u32 %v410, 16
      %v416 = vrot.slane %v414, 2
      %v417 = vshll.u32 %v410, 16
      %v419 = vrot.slane %v417, 3
      %v420 = vor.u32 %v416, %v419
      %v422 = vshrl.u32 %v411, 16
      %v424 = vrot.slane %v422, 2
      %v425 = vshll.u32 %v411, 16
      %v427 = vrot.slane %v425, 3
      %v428 = vor.u32 %v424, %v427
      %v429 = vsel %vm412, %v420, %v428
      %431 = vst [vmem:[#allocation2 + $0x10] sm:$0xff] %v429
      %v432 = vld [vmem:[%s219] sm:$0x8]
      %v433 = vld [vmem:[%s219 + $0x4] sm:$0xf]
      %v434 = vld [vmem:[%s219 + $0x8] sm:$0xf]
      %vm435 = vsmask.f32 3328
      %vm436 = vsmask.f32 7440
      %vm437 = vmor %vm435, %vm436
      %v438 = vrot.slane %v292, 5
      %v439 = vrot.slane %v289, 4
      %v440 = vor.u32 %v439, %v438
      %v441 = vrot.slane %v440, 4
      %v442 = vrot.slane %v301, 5
      %v443 = vsel %vm437, %v441, %v442
      %v444 = vrot.slane %v298, 4
      %v445 = vor.u32 %v444, %v442
      %v446 = vrot.slane %v445, 4
      %v450 = vmul.bf16 %v432, %v438
      %v451 = vmul.bf16 %v433, %v443
      %v452 = vmul.bf16 %v434, %v446
      %v456 = vunpack.c.l.b16 %v450
      %v457 = vunpack.c.l.b16 %v451
      %v458 = vunpack.c.l.b16 %v452
      %v459 = vpack.c.b16 %v457, %v456
      %v460 = vpack.c.b16 %v458, %v458
      %vm461 = vsmask.f32 4352
      %v463 = vshrl.u32 %v459, 16
      %v465 = vrot.slane %v463, 3
      %v466 = vshll.u32 %v459, 16
      %v468 = vrot.slane %v466, 4
      %v469 = vor.u32 %v465, %v468
      %v471 = vshrl.u32 %v460, 16
      %v473 = vrot.slane %v471, 3
      %v474 = vshll.u32 %v460, 16
      %v476 = vrot.slane %v474, 4
      %v477 = vor.u32 %v473, %v476
      %v478 = vsel %vm461, %v469, %v477
      %480 = vst [vmem:[#allocation2 + $0x18] sm:$0xff] %v478
      %v481 = vld [vmem:[%s219 + $0x4] sm:$0xf]
      %v482 = vld [vmem:[%s219 + $0x8] sm:$0xf]
      %v485 = vunpack.c.l.b16 %v481
      %v486 = vunpack.c.l.b16 %v482
      %v487 = vpack.c.b16 %v486, %v485
      %489 = vst [vmem:[#allocation2 + $0x20] sm:$0xff] %v487
      %v490 = vld [vmem:[%s219 + $0x4] sm:$0xf]
      %v491 = vld [vmem:[%s219 + $0x8] sm:$0xf]
      %v492 = vld [vmem:[%s219 + $0xc] sm:$0x1]
      %vm493 = vsmask.f32 256
      %vm494 = vsmask.f32 4368
      %vm495 = vmor %vm493, %vm494
      %v496 = vrot.slane %v380, 7
      %v497 = vor.u32 %v496, %v383
      %v498 = vrot.slane %v496, 4
      %v499 = vrot.slane %v389, 7
      %v500 = vor.u32 %v499, %v392
      %v501 = vsel %vm495, %v498, %v500
      %v502 = vrot.slane %v499, 4
      %v506 = vmul.bf16 %v490, %v497
      %v507 = vmul.bf16 %v491, %v501
      %v508 = vmul.bf16 %v492, %v502
      %v512 = vunpack.c.l.b16 %v506
      %v513 = vunpack.c.l.b16 %v507
      %v514 = vunpack.c.l.b16 %v508
      %v515 = vpack.c.b16 %v513, %v512
      %v516 = vpack.c.b16 %v514, %v514
      %vm517 = vsmask.f32 7424
      %v519 = vshrl.u32 %v515, 16
      %v521 = vshll.u32 %v515, 16
      %v523 = vrot.slane %v521, 1
      %v524 = vor.u32 %v519, %v523
      %v526 = vshll.u32 %v516, 16
      %v528 = vrot.slane %v526, 1
      %v529 = vsel %vm517, %v524, %v528
      %531 = vst [vmem:[#allocation2 + $0x28] sm:$0xff] %v529
      %v532 = vld [vmem:[%s219 + $0x4] sm:$0xe]
      %v533 = vld [vmem:[%s219 + $0x8] sm:$0xf]
      %v534 = vld [vmem:[%s219 + $0xc] sm:$0x3]
      %v535 = vmul.bf16 %v532, %v295
      %v536 = vmul.bf16 %v533, %v305
      %v537 = vmul.bf16 %v534, %v306
      %v541 = vunpack.c.l.b16 %v535
      %v542 = vunpack.c.l.b16 %v536
      %v543 = vunpack.c.l.b16 %v537
      %v544 = vpack.c.b16 %v542, %v541
      %v545 = vpack.c.b16 %v543, %v543
      %v547 = vshrl.u32 %v544, 16
      %v549 = vrot.slane %v547, 1
      %v550 = vshll.u32 %v544, 16
      %v552 = vrot.slane %v550, 2
      %v553 = vor.u32 %v549, %v552
      %v555 = vshrl.u32 %v545, 16
      %v557 = vrot.slane %v555, 1
      %v558 = vshll.u32 %v545, 16
      %v560 = vrot.slane %v558, 2
      %v561 = vor.u32 %v557, %v560
      %v562 = vsel %vm321, %v553, %v561
      %564 = vst [vmem:[#allocation2 + $0x30] sm:$0xff] %v562
      %v565 = vld [vmem:[%s219 + $0x4] sm:$0xc]
      %v566 = vld [vmem:[%s219 + $0x8] sm:$0xf]
      %v567 = vld [vmem:[%s219 + $0xc] sm:$0x3]
      %v571 = vunpack.c.l.b16 %v565
      %v572 = vunpack.c.l.b16 %v566
      %v573 = vunpack.c.l.b16 %v567
      %v574 = vpack.c.b16 %v572, %v571
      %v575 = vpack.c.b16 %v573, %v573
      %v576 = vrot.slane %v574, 2
      %v577 = vrot.slane %v575, 2
      %v578 = vsel %vm352, %v576, %v577
      %580 = vst [vmem:[#allocation2 + $0x38] sm:$0xff] %v578
      %v581 = vld [vmem:[%s219 + $0x4] sm:$0xc]
      %v582 = vld [vmem:[%s219 + $0x8] sm:$0xf]
      %v583 = vld [vmem:[%s219 + $0xc] sm:$0x7]
      %v584 = vmul.bf16 %v581, %v386
      %v585 = vmul.bf16 %v582, %v396
      %v586 = vmul.bf16 %v583, %v397
      %v590 = vunpack.c.l.b16 %v584
      %v591 = vunpack.c.l.b16 %v585
      %v592 = vunpack.c.l.b16 %v586
      %v593 = vpack.c.b16 %v591, %v590
      %v594 = vpack.c.b16 %v592, %v592
      %v596 = vshrl.u32 %v593, 16
      %v598 = vrot.slane %v596, 2
      %v599 = vshll.u32 %v593, 16
      %v601 = vrot.slane %v599, 3
      %v602 = vor.u32 %v598, %v601
      %v604 = vshrl.u32 %v594, 16
      %v606 = vrot.slane %v604, 2
      %v607 = vshll.u32 %v594, 16
      %v609 = vrot.slane %v607, 3
      %v610 = vor.u32 %v606, %v609
      %v611 = vsel %vm412, %v602, %v610
      %613 = vst [vmem:[#allocation2 + $0x40] sm:$0xff] %v611
      %v614 = vld [vmem:[#allocation2] sm:$0xff]
      %v615 = vld [vmem:[#allocation2 + $0x8] sm:$0xff]
      %v616 = vld [vmem:[#allocation2 + $0x10] sm:$0xff]
      %v617 = vld [vmem:[#allocation2 + $0x18] sm:$0xff]
      %v618 = vld [vmem:[#allocation2 + $0x20] sm:$0xff]
      %v619 = vld [vmem:[#allocation2 + $0x28] sm:$0xff]
      %v620 = vld [vmem:[#allocation2 + $0x30] sm:$0xff]
      %v621 = vld [vmem:[#allocation2 + $0x38] sm:$0xff]
      %v622 = vld [vmem:[#allocation2 + $0x40] sm:$0xff]
      %v623 = vld [vmem:[%s1] sm:$0xf]
      %v624 = vld [vmem:[%s1 + $0x4] sm:$0xf]
      %v625 = vld [vmem:[%s1 + $0x8] sm:$0xf]
      %v626 = vld [vmem:[%s1 + $0xc] sm:$0xf]
      %v627 = vld [vmem:[%s1 + $0x10] sm:$0xf]
      %v628 = vld [vmem:[%s1 + $0x14] sm:$0xf]
      %v629 = vld [vmem:[%s1 + $0x18] sm:$0xf]
      %v630 = vld [vmem:[%s1 + $0x1c] sm:$0xf]
      %v631 = vld [vmem:[%s1 + $0x20] sm:$0xf]
      %v632 = vld [vmem:[%s1 + $0x24] sm:$0xf]
      %v633 = vld [vmem:[%s1 + $0x28] sm:$0xf]
      %v634 = vld [vmem:[%s1 + $0x2c] sm:$0xf]
      %v635 = vld [vmem:[%s1 + $0x30] sm:$0xf]
      %v636 = vld [vmem:[%s1 + $0x34] sm:$0xf]
      %v637 = vld [vmem:[%s1 + $0x38] sm:$0xf]
      %v638 = vld [vmem:[%s1 + $0x3c] sm:$0xf]
      %v639 = vld [vmem:[%s1 + $0x40] sm:$0xf]
      %v640 = vld [vmem:[%s1 + $0x44] sm:$0xf]
      %v641 = vld [vmem:[%s1 + $0x48] sm:$0xf]
      %v642 = vld [vmem:[%s1 + $0x4c] sm:$0xf]
      %v643 = vld [vmem:[%s1 + $0x50] sm:$0xf]
      %v644 = vld [vmem:[%s1 + $0x54] sm:$0xf]
      %v645 = vld [vmem:[%s1 + $0x58] sm:$0xf]
      %v646 = vld [vmem:[%s1 + $0x5c] sm:$0xf]
      %v647 = vld [vmem:[%s1 + $0x60] sm:$0xf]
      %v648 = vld [vmem:[%s1 + $0x64] sm:$0xf]
      %v649 = vld [vmem:[%s1 + $0x68] sm:$0xf]
      %v650 = vld [vmem:[%s1 + $0x6c] sm:$0xf]
      %v651 = vld [vmem:[%s1 + $0x70] sm:$0xf]
      %v652 = vld [vmem:[%s1 + $0x74] sm:$0xf]
      %v653 = vld [vmem:[%s1 + $0x78] sm:$0xf]
      %v654 = vld [vmem:[%s1 + $0x7c] sm:$0xf]
      %v655 = vld [vmem:[%s1 + $0x80] sm:$0xf]
      %v656 = vld [vmem:[%s1 + $0x84] sm:$0xf]
      %v657 = vld [vmem:[%s1 + $0x88] sm:$0xf]
      %v658 = vld [vmem:[%s1 + $0x8c] sm:$0xf]
      %v659 = vld [vmem:[%s1 + $0x90] sm:$0xf]
      %v660 = vld [vmem:[%s1 + $0x94] sm:$0xf]
      %v661 = vld [vmem:[%s1 + $0x98] sm:$0xf]
      %v662 = vld [vmem:[%s1 + $0x9c] sm:$0xf]
      %v663 = vld [vmem:[%s1 + $0xa0] sm:$0xf]
      %v664 = vld [vmem:[%s1 + $0xa4] sm:$0xf]
      %v665 = vld [vmem:[%s1 + $0xa8] sm:$0xf]
      %v666 = vld [vmem:[%s1 + $0xac] sm:$0xf]
      %v667 = vld [vmem:[%s1 + $0xb0] sm:$0xf]
      %v668 = vld [vmem:[%s1 + $0xb4] sm:$0xf]
      %v669 = vld [vmem:[%s1 + $0xb8] sm:$0xf]
      %v670 = vld [vmem:[%s1 + $0xbc] sm:$0xf]
      %v671 = vld [vmem:[%s1 + $0xc0] sm:$0xf]
      %v672 = vld [vmem:[%s1 + $0xc4] sm:$0xf]
      %v673 = vld [vmem:[%s1 + $0xc8] sm:$0xf]
      %v674 = vld [vmem:[%s1 + $0xcc] sm:$0xf]
      %v675 = vld [vmem:[%s1 + $0xd0] sm:$0xf]
      %v676 = vld [vmem:[%s1 + $0xd4] sm:$0xf]
      %v677 = vld [vmem:[%s1 + $0xd8] sm:$0xf]
      %v678 = vld [vmem:[%s1 + $0xdc] sm:$0xf]
      %v679 = vld [vmem:[%s1 + $0xe0] sm:$0xf]
      %v680 = vld [vmem:[%s1 + $0xe4] sm:$0xf]
      %v681 = vld [vmem:[%s1 + $0xe8] sm:$0xf]
      %v682 = vld [vmem:[%s1 + $0xec] sm:$0xf]
      %v683 = vld [vmem:[%s1 + $0xf0] sm:$0xf]
      %v684 = vld [vmem:[%s1 + $0xf4] sm:$0xf]
      %v685 = vld [vmem:[%s1 + $0xf8] sm:$0xf]
      %v686 = vld [vmem:[%s1 + $0xfc] sm:$0xf]
      %v687 = vld [vmem:[%s1 + $0x100] sm:$0xf]
      %v688 = vld [vmem:[%s1 + $0x104] sm:$0xf]
      %v689 = vld [vmem:[%s1 + $0x108] sm:$0xf]
      %v690 = vld [vmem:[%s1 + $0x10c] sm:$0xf]
      %v691 = vld [vmem:[%s1 + $0x110] sm:$0xf]
      %v692 = vld [vmem:[%s1 + $0x114] sm:$0xf]
      %v693 = vld [vmem:[%s1 + $0x118] sm:$0xf]
      %v694 = vld [vmem:[%s1 + $0x11c] sm:$0xf]
      %v695 = vld [vmem:[%s1 + $0x120] sm:$0xf]
      %v696 = vld [vmem:[%s1 + $0x124] sm:$0xf]
      %v697 = vld [vmem:[%s1 + $0x128] sm:$0xf]
      %v698 = vld [vmem:[%s1 + $0x12c] sm:$0xf]
      %v699 = vld [vmem:[%s1 + $0x130] sm:$0xf]
      %v700 = vld [vmem:[%s1 + $0x134] sm:$0xf]
      %v701 = vld [vmem:[%s1 + $0x138] sm:$0xf]
      %v702 = vld [vmem:[%s1 + $0x13c] sm:$0xf]
      %v703 = vld [vmem:[%s1 + $0x140] sm:$0xf]
      %v704 = vld [vmem:[%s1 + $0x144] sm:$0xf]
      %v705 = vld [vmem:[%s1 + $0x148] sm:$0xf]
      %v706 = vld [vmem:[%s1 + $0x14c] sm:$0xf]
      %v707 = vld [vmem:[%s1 + $0x150] sm:$0xf]
      %v708 = vld [vmem:[%s1 + $0x154] sm:$0xf]
      %v709 = vld [vmem:[%s1 + $0x158] sm:$0xf]
      %v710 = vld [vmem:[%s1 + $0x15c] sm:$0xf]
      %v711 = vld [vmem:[%s1 + $0x160] sm:$0xf]
      %v712 = vld [vmem:[%s1 + $0x164] sm:$0xf]
      %v713 = vld [vmem:[%s1 + $0x168] sm:$0xf]
      %v714 = vld [vmem:[%s1 + $0x16c] sm:$0xf]
      %v715 = vld [vmem:[%s1 + $0x170] sm:$0xf]
      %v716 = vld [vmem:[%s1 + $0x174] sm:$0xf]
      %v717 = vld [vmem:[%s1 + $0x178] sm:$0xf]
      %v718 = vld [vmem:[%s1 + $0x17c] sm:$0xf]
      %v719 = vld [vmem:[%s1 + $0x180] sm:$0xf]
      %v720 = vld [vmem:[%s1 + $0x184] sm:$0xf]
      %v721 = vld [vmem:[%s1 + $0x188] sm:$0xf]
      %v722 = vld [vmem:[%s1 + $0x18c] sm:$0xf]
      %v723 = vld [vmem:[%s1 + $0x190] sm:$0xf]
      %v724 = vld [vmem:[%s1 + $0x194] sm:$0xf]
      %v725 = vld [vmem:[%s1 + $0x198] sm:$0xf]
      %v726 = vld [vmem:[%s1 + $0x19c] sm:$0xf]
      %v727 = vld [vmem:[%s1 + $0x1a0] sm:$0xf]
      %v728 = vld [vmem:[%s1 + $0x1a4] sm:$0xf]
      %v729 = vld [vmem:[%s1 + $0x1a8] sm:$0xf]
      %v730 = vld [vmem:[%s1 + $0x1ac] sm:$0xf]
      %v731 = vld [vmem:[%s1 + $0x1b0] sm:$0xf]
      %v732 = vld [vmem:[%s1 + $0x1b4] sm:$0xf]
      %v733 = vld [vmem:[%s1 + $0x1b8] sm:$0xf]
      %v734 = vld [vmem:[%s1 + $0x1bc] sm:$0xf]
      %v735 = vld [vmem:[%s1 + $0x1c0] sm:$0xf]
      %v736 = vld [vmem:[%s1 + $0x1c4] sm:$0xf]
      %v737 = vld [vmem:[%s1 + $0x1c8] sm:$0xf]
      %v738 = vld [vmem:[%s1 + $0x1cc] sm:$0xf]
      %v739 = vld [vmem:[%s1 + $0x1d0] sm:$0xf]
      %v740 = vld [vmem:[%s1 + $0x1d4] sm:$0xf]
      %v741 = vld [vmem:[%s1 + $0x1d8] sm:$0xf]
      %v742 = vld [vmem:[%s1 + $0x1dc] sm:$0xf]
      %v743 = vld [vmem:[%s1 + $0x1e0] sm:$0xf]
      %v744 = vld [vmem:[%s1 + $0x1e4] sm:$0xf]
      %v745 = vld [vmem:[%s1 + $0x1e8] sm:$0xf]
      %v746 = vld [vmem:[%s1 + $0x1ec] sm:$0xf]
      %v747 = vld [vmem:[%s1 + $0x1f0] sm:$0xf]
      %v748 = vld [vmem:[%s1 + $0x1f4] sm:$0xf]
      %v749 = vld [vmem:[%s1 + $0x1f8] sm:$0xf]
      %v750 = vld [vmem:[%s1 + $0x1fc] sm:$0xf]
      %v751 = vld [vmem:[%s1 + $0x200] sm:$0xf]
      %v752 = vld [vmem:[%s1 + $0x204] sm:$0xf]
      %v753 = vld [vmem:[%s1 + $0x208] sm:$0xf]
      %v754 = vld [vmem:[%s1 + $0x20c] sm:$0xf]
      %v755 = vld [vmem:[%s1 + $0x210] sm:$0xf]
      %v756 = vld [vmem:[%s1 + $0x214] sm:$0xf]
      %v757 = vld [vmem:[%s1 + $0x218] sm:$0xf]
      %v758 = vld [vmem:[%s1 + $0x21c] sm:$0xf]
      %v759 = vld [vmem:[%s1 + $0x220] sm:$0xf]
      %v760 = vld [vmem:[%s1 + $0x224] sm:$0xf]
      %v761 = vld [vmem:[%s1 + $0x228] sm:$0xf]
      %v762 = vld [vmem:[%s1 + $0x22c] sm:$0xf]
      %v763 = vld [vmem:[%s1 + $0x230] sm:$0xf]
      %v764 = vld [vmem:[%s1 + $0x234] sm:$0xf]
      %v765 = vld [vmem:[%s1 + $0x238] sm:$0xf]
      %v766 = vld [vmem:[%s1 + $0x23c] sm:$0xf]
      %v767 = vld [vmem:[%s2] sm:$0x1]
      %v769 = vlaneseq
      %v770 = vshrl.u32 %v769, 7
      %v771 = vsub.s32 0, %v770
      %v772 = vrot.slane %v767, %v771
      %v918 = vunpack.c.l.b16 %v623
      %v919 = vunpack.c.l.b16 %v624
      %v920 = vunpack.c.l.b16 %v625
      %v921 = vunpack.c.l.b16 %v626
      %v922 = vunpack.c.l.b16 %v627
      %v923 = vunpack.c.l.b16 %v628
      %v924 = vunpack.c.l.b16 %v629
      %v925 = vunpack.c.l.b16 %v630
      %v926 = vunpack.c.l.b16 %v631
      %v927 = vunpack.c.l.b16 %v632
      %v928 = vunpack.c.l.b16 %v633
      %v929 = vunpack.c.l.b16 %v634
      %v930 = vunpack.c.l.b16 %v635
      %v931 = vunpack.c.l.b16 %v636
      %v932 = vunpack.c.l.b16 %v637
      %v933 = vunpack.c.l.b16 %v638
      %v934 = vunpack.c.l.b16 %v639
      %v935 = vunpack.c.l.b16 %v640
      %v936 = vunpack.c.l.b16 %v641
      %v937 = vunpack.c.l.b16 %v642
      %v938 = vunpack.c.l.b16 %v643
      %v939 = vunpack.c.l.b16 %v644
      %v940 = vunpack.c.l.b16 %v645
      %v941 = vunpack.c.l.b16 %v646
      %v942 = vunpack.c.l.b16 %v647
      %v943 = vunpack.c.l.b16 %v648
      %v944 = vunpack.c.l.b16 %v649
      %v945 = vunpack.c.l.b16 %v650
      %v946 = vunpack.c.l.b16 %v651
      %v947 = vunpack.c.l.b16 %v652
      %v948 = vunpack.c.l.b16 %v653
      %v949 = vunpack.c.l.b16 %v654
      %v950 = vunpack.c.l.b16 %v655
      %v951 = vunpack.c.l.b16 %v656
      %v952 = vunpack.c.l.b16 %v657
      %v953 = vunpack.c.l.b16 %v658
      %v954 = vunpack.c.l.b16 %v659
      %v955 = vunpack.c.l.b16 %v660
      %v956 = vunpack.c.l.b16 %v661
      %v957 = vunpack.c.l.b16 %v662
      %v958 = vunpack.c.l.b16 %v663
      %v959 = vunpack.c.l.b16 %v664
      %v960 = vunpack.c.l.b16 %v665
      %v961 = vunpack.c.l.b16 %v666
      %v962 = vunpack.c.l.b16 %v667
      %v963 = vunpack.c.l.b16 %v668
      %v964 = vunpack.c.l.b16 %v669
      %v965 = vunpack.c.l.b16 %v670
      %v966 = vunpack.c.l.b16 %v671
      %v967 = vunpack.c.l.b16 %v672
      %v968 = vunpack.c.l.b16 %v673
      %v969 = vunpack.c.l.b16 %v674
      %v970 = vunpack.c.l.b16 %v675
      %v971 = vunpack.c.l.b16 %v676
      %v972 = vunpack.c.l.b16 %v677
      %v973 = vunpack.c.l.b16 %v678
      %v974 = vunpack.c.l.b16 %v679
      %v975 = vunpack.c.l.b16 %v680
      %v976 = vunpack.c.l.b16 %v681
      %v977 = vunpack.c.l.b16 %v682
      %v978 = vunpack.c.l.b16 %v683
      %v979 = vunpack.c.l.b16 %v684
      %v980 = vunpack.c.l.b16 %v685
      %v981 = vunpack.c.l.b16 %v686
      %v982 = vunpack.c.l.b16 %v687
      %v983 = vunpack.c.l.b16 %v688
      %v984 = vunpack.c.l.b16 %v689
      %v985 = vunpack.c.l.b16 %v690
      %v986 = vunpack.c.l.b16 %v691
      %v987 = vunpack.c.l.b16 %v692
      %v988 = vunpack.c.l.b16 %v693
      %v989 = vunpack.c.l.b16 %v694
      %v990 = vunpack.c.l.b16 %v695
      %v991 = vunpack.c.l.b16 %v696
      %v992 = vunpack.c.l.b16 %v697
      %v993 = vunpack.c.l.b16 %v698
      %v994 = vunpack.c.l.b16 %v699
      %v995 = vunpack.c.l.b16 %v700
      %v996 = vunpack.c.l.b16 %v701
      %v997 = vunpack.c.l.b16 %v702
      %v998 = vunpack.c.l.b16 %v703
      %v999 = vunpack.c.l.b16 %v704
      %v1000 = vunpack.c.l.b16 %v705
      %v1001 = vunpack.c.l.b16 %v706
      %v1002 = vunpack.c.l.b16 %v707
      %v1003 = vunpack.c.l.b16 %v708
      %v1004 = vunpack.c.l.b16 %v709
      %v1005 = vunpack.c.l.b16 %v710
      %v1006 = vunpack.c.l.b16 %v711
      %v1007 = vunpack.c.l.b16 %v712
      %v1008 = vunpack.c.l.b16 %v713
      %v1009 = vunpack.c.l.b16 %v714
      %v1010 = vunpack.c.l.b16 %v715
      %v1011 = vunpack.c.l.b16 %v716
      %v1012 = vunpack.c.l.b16 %v717
      %v1013 = vunpack.c.l.b16 %v718
      %v1014 = vunpack.c.l.b16 %v719
      %v1015 = vunpack.c.l.b16 %v720
      %v1016 = vunpack.c.l.b16 %v721
      %v1017 = vunpack.c.l.b16 %v722
      %v1018 = vunpack.c.l.b16 %v723
      %v1019 = vunpack.c.l.b16 %v724
      %v1020 = vunpack.c.l.b16 %v725
      %v1021 = vunpack.c.l.b16 %v726
      %v1022 = vunpack.c.l.b16 %v727
      %v1023 = vunpack.c.l.b16 %v728
      %v1024 = vunpack.c.l.b16 %v729
      %v1025 = vunpack.c.l.b16 %v730
      %v1026 = vunpack.c.l.b16 %v731
      %v1027 = vunpack.c.l.b16 %v732
      %v1028 = vunpack.c.l.b16 %v733
      %v1029 = vunpack.c.l.b16 %v734
      %v1030 = vunpack.c.l.b16 %v735
      %v1031 = vunpack.c.l.b16 %v736
      %v1032 = vunpack.c.l.b16 %v737
      %v1033 = vunpack.c.l.b16 %v738
      %v1034 = vunpack.c.l.b16 %v739
      %v1035 = vunpack.c.l.b16 %v740
      %v1036 = vunpack.c.l.b16 %v741
      %v1037 = vunpack.c.l.b16 %v742
      %v1038 = vunpack.c.l.b16 %v743
      %v1039 = vunpack.c.l.b16 %v744
      %v1040 = vunpack.c.l.b16 %v745
      %v1041 = vunpack.c.l.b16 %v746
      %v1042 = vunpack.c.l.b16 %v747
      %v1043 = vunpack.c.l.b16 %v748
      %v1044 = vunpack.c.l.b16 %v749
      %v1045 = vunpack.c.l.b16 %v750
      %v1046 = vunpack.c.l.b16 %v751
      %v1047 = vunpack.c.l.b16 %v752
      %v1048 = vunpack.c.l.b16 %v753
      %v1049 = vunpack.c.l.b16 %v754
      %v1050 = vunpack.c.l.b16 %v755
      %v1051 = vunpack.c.l.b16 %v756
      %v1052 = vunpack.c.l.b16 %v757
      %v1053 = vunpack.c.l.b16 %v758
      %v1054 = vunpack.c.l.b16 %v759
      %v1055 = vunpack.c.l.b16 %v760
      %v1056 = vunpack.c.l.b16 %v761
      %v1057 = vunpack.c.l.b16 %v762
      %v1058 = vunpack.c.l.b16 %v763
      %v1059 = vunpack.c.l.b16 %v764
      %v1060 = vunpack.c.l.b16 %v765
      %v1061 = vunpack.c.l.b16 %v766
      %v1062 = vpack.c.b16 %v919, %v918
      %v1063 = vpack.c.b16 %v921, %v920
      %v1064 = vpack.c.b16 %v923, %v922
      %v1065 = vpack.c.b16 %v925, %v924
      %v1066 = vpack.c.b16 %v927, %v926
      %v1067 = vpack.c.b16 %v929, %v928
      %v1068 = vpack.c.b16 %v931, %v930
      %v1069 = vpack.c.b16 %v933, %v932
      %v1070 = vpack.c.b16 %v935, %v934
      %v1071 = vpack.c.b16 %v937, %v936
      %v1072 = vpack.c.b16 %v939, %v938
      %v1073 = vpack.c.b16 %v941, %v940
      %v1074 = vpack.c.b16 %v943, %v942
      %v1075 = vpack.c.b16 %v945, %v944
      %v1076 = vpack.c.b16 %v947, %v946
      %v1077 = vpack.c.b16 %v949, %v948
      %v1078 = vpack.c.b16 %v951, %v950
      %v1079 = vpack.c.b16 %v953, %v952
      %v1080 = vpack.c.b16 %v955, %v954
      %v1081 = vpack.c.b16 %v957, %v956
      %v1082 = vpack.c.b16 %v959, %v958
      %v1083 = vpack.c.b16 %v961, %v960
      %v1084 = vpack.c.b16 %v963, %v962
      %v1085 = vpack.c.b16 %v965, %v964
      %v1086 = vpack.c.b16 %v967, %v966
      %v1087 = vpack.c.b16 %v969, %v968
      %v1088 = vpack.c.b16 %v971, %v970
      %v1089 = vpack.c.b16 %v973, %v972
      %v1090 = vpack.c.b16 %v975, %v974
      %v1091 = vpack.c.b16 %v977, %v976
      %v1092 = vpack.c.b16 %v979, %v978
      %v1093 = vpack.c.b16 %v981, %v980
      %v1094 = vpack.c.b16 %v983, %v982
      %v1095 = vpack.c.b16 %v985, %v984
      %v1096 = vpack.c.b16 %v987, %v986
      %v1097 = vpack.c.b16 %v989, %v988
      %v1098 = vpack.c.b16 %v991, %v990
      %v1099 = vpack.c.b16 %v993, %v992
      %v1100 = vpack.c.b16 %v995, %v994
      %v1101 = vpack.c.b16 %v997, %v996
      %v1102 = vpack.c.b16 %v999, %v998
      %v1103 = vpack.c.b16 %v1001, %v1000
      %v1104 = vpack.c.b16 %v1003, %v1002
      %v1105 = vpack.c.b16 %v1005, %v1004
      %v1106 = vpack.c.b16 %v1007, %v1006
      %v1107 = vpack.c.b16 %v1009, %v1008
      %v1108 = vpack.c.b16 %v1011, %v1010
      %v1109 = vpack.c.b16 %v1013, %v1012
      %v1110 = vpack.c.b16 %v1015, %v1014
      %v1111 = vpack.c.b16 %v1017, %v1016
      %v1112 = vpack.c.b16 %v1019, %v1018
      %v1113 = vpack.c.b16 %v1021, %v1020
      %v1114 = vpack.c.b16 %v1023, %v1022
      %v1115 = vpack.c.b16 %v1025, %v1024
      %v1116 = vpack.c.b16 %v1027, %v1026
      %v1117 = vpack.c.b16 %v1029, %v1028
      %v1118 = vpack.c.b16 %v1031, %v1030
      %v1119 = vpack.c.b16 %v1033, %v1032
      %v1120 = vpack.c.b16 %v1035, %v1034
      %v1121 = vpack.c.b16 %v1037, %v1036
      %v1122 = vpack.c.b16 %v1039, %v1038
      %v1123 = vpack.c.b16 %v1041, %v1040
      %v1124 = vpack.c.b16 %v1043, %v1042
      %v1125 = vpack.c.b16 %v1045, %v1044
      %v1126 = vpack.c.b16 %v1047, %v1046
      %v1127 = vpack.c.b16 %v1049, %v1048
      %v1128 = vpack.c.b16 %v1051, %v1050
      %v1129 = vpack.c.b16 %v1053, %v1052
      %v1130 = vpack.c.b16 %v1055, %v1054
      %v1131 = vpack.c.b16 %v1057, %v1056
      %v1132 = vpack.c.b16 %v1059, %v1058
      %v1133 = vpack.c.b16 %v1061, %v1060
      %1206 = vmatprep.subr.bf16.mxu0 0
      %1207 = vmatpush1.bf16.msra.mxu0 %v1062
      %1208 = vmatprep.subr.bf16.mxu0 0
      %1209 = vmatpush1.bf16.msra.mxu0 %v1063
      %1210 = vmatprep.subr.bf16.mxu0 0
      %1211 = vmatpush1.bf16.msra.mxu0 %v1064
      %1212 = vmatprep.subr.bf16.mxu0 0
      %1213 = vmatpush1.bf16.msra.mxu0 %v1065
      %1214 = vmatprep.subr.bf16.mxu0 0
      %1215 = vmatpush1.bf16.msra.mxu0 %v1066
      %1216 = vmatprep.subr.bf16.mxu0 0
      %1217 = vmatpush1.bf16.msra.mxu0 %v1067
      %1218 = vmatprep.subr.bf16.mxu0 0
      %1219 = vmatpush1.bf16.msra.mxu0 %v1068
      %1220 = vmatprep.subr.bf16.mxu0 0
      %1221 = vmatpush1.bf16.msra.mxu0 %v1069
      %1222 = vmatprep.subr.bf16.mxu0 0
      %1223 = vmatpush1.bf16.msra.mxu0 %v1070
      %1224 = vmatprep.subr.bf16.mxu0 0
      %1225 = vmatpush1.bf16.msra.mxu0 %v1071
      %1226 = vmatprep.subr.bf16.mxu0 0
      %1227 = vmatpush1.bf16.msra.mxu0 %v1072
      %1228 = vmatprep.subr.bf16.mxu0 0
      %1229 = vmatpush1.bf16.msra.mxu0 %v1073
      %1230 = vmatprep.subr.bf16.mxu0 0
      %1231 = vmatpush1.bf16.msra.mxu0 %v1074
      %1232 = vmatprep.subr.bf16.mxu0 0
      %1233 = vmatpush1.bf16.msra.mxu0 %v1075
      %1234 = vmatprep.subr.bf16.mxu0 0
      %1235 = vmatpush1.bf16.msra.mxu0 %v1076
      %1236 = vmatprep.subr.bf16.mxu0 0
      %1237 = vmatpush1.bf16.msra.mxu0 %v1077
      %1238 = vmatprep.mubr.bf16.mxu0 %v615
      %1239 = vmatmul.mubr.bf16.gmra.mrb[0].mxu0 %v614
      %v1240 = vpop.f32.mrb[0].mxu0
      %v1241 = vadd.f32 %v772, %v1240
      %v1242 = vpop.f32.mrb[0].mxu0
      %v1243 = vpop.f32.mrb[0].mxu0
      %v1244 = vadd.f32 %v772, %v1243
      %v1245 = vpop.f32.mrb[0].mxu0
      %1246 = vdwg.mxu0
      %1247 = vmatprep.subr.bf16.mxu0 0
      %1248 = vmatpush1.bf16.msra.mxu0 %v1078
      %1249 = vmatprep.subr.bf16.mxu0 0
      %1250 = vmatpush1.bf16.msra.mxu0 %v1079
      %1251 = vmatprep.subr.bf16.mxu0 0
      %1252 = vmatpush1.bf16.msra.mxu0 %v1080
      %1253 = vmatprep.subr.bf16.mxu0 0
      %1254 = vmatpush1.bf16.msra.mxu0 %v1081
      %1255 = vmatprep.subr.bf16.mxu0 0
      %1256 = vmatpush1.bf16.msra.mxu0 %v1082
      %1257 = vmatprep.subr.bf16.mxu0 0
      %1258 = vmatpush1.bf16.msra.mxu0 %v1083
      %1259 = vmatprep.subr.bf16.mxu0 0
      %1260 = vmatpush1.bf16.msra.mxu0 %v1084
      %1261 = vmatprep.subr.bf16.mxu0 0
      %1262 = vmatpush1.bf16.msra.mxu0 %v1085
      %1263 = vmatprep.subr.bf16.mxu0 0
      %1264 = vmatpush1.bf16.msra.mxu0 %v1086
      %1265 = vmatprep.subr.bf16.mxu0 0
      %1266 = vmatpush1.bf16.msra.mxu0 %v1087
      %1267 = vmatprep.subr.bf16.mxu0 0
      %1268 = vmatpush1.bf16.msra.mxu0 %v1088
      %1269 = vmatprep.subr.bf16.mxu0 0
      %1270 = vmatpush1.bf16.msra.mxu0 %v1089
      %1271 = vmatprep.subr.bf16.mxu0 0
      %1272 = vmatpush1.bf16.msra.mxu0 %v1090
      %1273 = vmatprep.subr.bf16.mxu0 0
      %1274 = vmatpush1.bf16.msra.mxu0 %v1091
      %1275 = vmatprep.subr.bf16.mxu0 0
      %1276 = vmatpush1.bf16.msra.mxu0 %v1092
      %1277 = vmatprep.subr.bf16.mxu0 0
      %1278 = vmatpush1.bf16.msra.mxu0 %v1093
      %1279 = vmatprep.mubr.bf16.mxu0 %v617
      %1280 = vmatmul.mubr.bf16.gmra.mrb[0].mxu0 %v616
      %v1281 = vpop.f32.mrb[0].mxu0
      %v1282 = vadd.f32 %v1241, %v1281
      %v1283 = vpop.f32.mrb[0].mxu0
      %v1284 = vpop.f32.mrb[0].mxu0
      %v1285 = vadd.f32 %v1244, %v1284
      %v1286 = vpop.f32.mrb[0].mxu0
      %1287 = vdwg.mxu0
      %1288 = vmatprep.subr.bf16.mxu0 0
      %1289 = vmatpush1.bf16.msra.mxu0 %v1094
      %1290 = vmatprep.subr.bf16.mxu0 0
      %1291 = vmatpush1.bf16.msra.mxu0 %v1095
      %1292 = vmatprep.subr.bf16.mxu0 0
      %1293 = vmatpush1.bf16.msra.mxu0 %v1096
      %1294 = vmatprep.subr.bf16.mxu0 0
      %1295 = vmatpush1.bf16.msra.mxu0 %v1097
      %1296 = vmatprep.subr.bf16.mxu0 0
      %1297 = vmatpush1.bf16.msra.mxu0 %v1098
      %1298 = vmatprep.subr.bf16.mxu0 0
      %1299 = vmatpush1.bf16.msra.mxu0 %v1099
      %1300 = vmatprep.subr.bf16.mxu0 0
      %1301 = vmatpush1.bf16.msra.mxu0 %v1100
      %1302 = vmatprep.subr.bf16.mxu0 0
      %1303 = vmatpush1.bf16.msra.mxu0 %v1101
      %1304 = vmatprep.subr.bf16.mxu0 0
      %1305 = vmatpush1.bf16.msra.mxu0 %v1102
      %1306 = vmatprep.subr.bf16.mxu0 0
      %1307 = vmatpush1.bf16.msra.mxu0 %v1103
      %1308 = vmatprep.subr.bf16.mxu0 0
      %1309 = vmatpush1.bf16.msra.mxu0 %v1104
      %1310 = vmatprep.subr.bf16.mxu0 0
      %1311 = vmatpush1.bf16.msra.mxu0 %v1105
      %1312 = vmatprep.subr.bf16.mxu0 0
      %1313 = vmatpush1.bf16.msra.mxu0 %v1106
      %1314 = vmatprep.subr.bf16.mxu0 0
      %1315 = vmatpush1.bf16.msra.mxu0 %v1107
      %1316 = vmatprep.subr.bf16.mxu0 0
      %1317 = vmatpush1.bf16.msra.mxu0 %v1108
      %1318 = vmatprep.subr.bf16.mxu0 0
      %1319 = vmatpush1.bf16.msra.mxu0 %v1109
      %1320 = vmatprep.mubr.bf16.mxu0 %v619
      %1321 = vmatmul.mubr.bf16.gmra.mrb[0].mxu0 %v618
      %v1322 = vpop.f32.mrb[0].mxu0
      %v1323 = vadd.f32 %v1282, %v1322
      %v1324 = vpop.f32.mrb[0].mxu0
      %v1325 = vpop.f32.mrb[0].mxu0
      %v1326 = vadd.f32 %v1285, %v1325
      %v1327 = vpop.f32.mrb[0].mxu0
      %1328 = vdwg.mxu0
      %1329 = vmatprep.subr.bf16.mxu0 0
      %1330 = vmatpush1.bf16.msra.mxu0 %v1110
      %1331 = vmatprep.subr.bf16.mxu0 0
      %1332 = vmatpush1.bf16.msra.mxu0 %v1111
      %1333 = vmatprep.subr.bf16.mxu0 0
      %1334 = vmatpush1.bf16.msra.mxu0 %v1112
      %1335 = vmatprep.subr.bf16.mxu0 0
      %1336 = vmatpush1.bf16.msra.mxu0 %v1113
      %1337 = vmatprep.subr.bf16.mxu0 0
      %1338 = vmatpush1.bf16.msra.mxu0 %v1114
      %1339 = vmatprep.subr.bf16.mxu0 0
      %1340 = vmatpush1.bf16.msra.mxu0 %v1115
      %1341 = vmatprep.subr.bf16.mxu0 0
      %1342 = vmatpush1.bf16.msra.mxu0 %v1116
      %1343 = vmatprep.subr.bf16.mxu0 0
      %1344 = vmatpush1.bf16.msra.mxu0 %v1117
      %1345 = vmatprep.subr.bf16.mxu0 0
      %1346 = vmatpush1.bf16.msra.mxu0 %v1118
      %1347 = vmatprep.subr.bf16.mxu0 0
      %1348 = vmatpush1.bf16.msra.mxu0 %v1119
      %1349 = vmatprep.subr.bf16.mxu0 0
      %1350 = vmatpush1.bf16.msra.mxu0 %v1120
      %1351 = vmatprep.subr.bf16.mxu0 0
      %1352 = vmatpush1.bf16.msra.mxu0 %v1121
      %1353 = vmatprep.subr.bf16.mxu0 0
      %1354 = vmatpush1.bf16.msra.mxu0 %v1122
      %1355 = vmatprep.subr.bf16.mxu0 0
      %1356 = vmatpush1.bf16.msra.mxu0 %v1123
      %1357 = vmatprep.subr.bf16.mxu0 0
      %1358 = vmatpush1.bf16.msra.mxu0 %v1124
      %1359 = vmatprep.subr.bf16.mxu0 0
      %1360 = vmatpush1.bf16.msra.mxu0 %v1125
      %1361 = vmatprep.mubr.bf16.mxu0 %v621
      %1362 = vmatmul.mubr.bf16.gmra.mrb[0].mxu0 %v620
      %v1363 = vpop.f32.mrb[0].mxu0
      %v1364 = vadd.f32 %v1323, %v1363
      %v1365 = vpop.f32.mrb[0].mxu0
      %v1366 = vpop.f32.mrb[0].mxu0
      %v1367 = vadd.f32 %v1326, %v1366
      %v1368 = vpop.f32.mrb[0].mxu0
      %1369 = vdwg.mxu0
      %1370 = vmatprep.subr.bf16.mxu0 0
      %1371 = vmatpush1.bf16.msra.mxu0 %v1126
      %1372 = vmatprep.subr.bf16.mxu0 0
      %1373 = vmatpush1.bf16.msra.mxu0 %v1127
      %1374 = vmatprep.subr.bf16.mxu0 0
      %1375 = vmatpush1.bf16.msra.mxu0 %v1128
      %1376 = vmatprep.subr.bf16.mxu0 0
      %1377 = vmatpush1.bf16.msra.mxu0 %v1129
      %1378 = vmatprep.subr.bf16.mxu0 0
      %1379 = vmatpush1.bf16.msra.mxu0 %v1130
      %1380 = vmatprep.subr.bf16.mxu0 0
      %1381 = vmatpush1.bf16.msra.mxu0 %v1131
      %1382 = vmatprep.subr.bf16.mxu0 0
      %1383 = vmatpush1.bf16.msra.mxu0 %v1132
      %1384 = vmatprep.subr.bf16.mxu0 0
      %1385 = vmatpush1.bf16.msra.mxu0 %v1133
      %1386 = vmatprep.subr.bf16.mxu0 0
      %1387 = vmatpush1.bf16.msra.mxu0 0
      %1388 = vmatprep.subr.bf16.mxu0 0
      %1389 = vmatpush1.bf16.msra.mxu0 0
      %1390 = vmatprep.subr.bf16.mxu0 0
      %1391 = vmatpush1.bf16.msra.mxu0 0
      %1392 = vmatprep.subr.bf16.mxu0 0
      %1393 = vmatpush1.bf16.msra.mxu0 0
      %1394 = vmatprep.subr.bf16.mxu0 0
      %1395 = vmatpush1.bf16.msra.mxu0 0
      %1396 = vmatprep.subr.bf16.mxu0 0
      %1397 = vmatpush1.bf16.msra.mxu0 0
      %1398 = vmatprep.subr.bf16.mxu0 0
      %1399 = vmatpush1.bf16.msra.mxu0 0
      %1400 = vmatprep.subr.bf16.mxu0 0
      %1401 = vmatpush1.bf16.msra.mxu0 0
      %1402 = vmatprep.mubr.bf16.mxu0 0
      %1403 = vmatmul.mubr.bf16.gmra.mrb[0].mxu0 %v622
      %v1404 = vpop.f32.mrb[0].mxu0
      %v1405 = vadd.f32 %v1364, %v1404
      %v1406 = vpop.f32.mrb[0].mxu0
      %v1407 = vpop.f32.mrb[0].mxu0
      %v1408 = vadd.f32 %v1367, %v1407
      %v1409 = vpop.f32.mrb[0].mxu0
      %1410 = vdwg.mxu0
      %v1411 = vmax.f32 %v1405, 0.0
      %v1412 = vmax.f32 %v1408, 0.0
      %1413 = vst [vmem:[#allocation3] sm:$0xf] 0
      %v1414 = vpack.c.bf16 %v1412, %v1411
      %v1416 = vrot.slane %v1414, 4
      %1418 = vst [vmem:[#allocation3] sm:$0xf0] %v1416
      %1419 = vst [vmem:[#allocation3 + $0x8] sm:$0xf] %v1416
      %1420 = vst [vmem:[#allocation3 + $0x8] sm:$0xf0] 0
      %v1421 = vld [vmem:[#allocation3] sm:$0xfe]
      %v1422 = vld [vmem:[#allocation3 + $0x8] sm:$0x3]
      %v1424 = vshrl.u32 %v259, 16
      %v1426 = vrot.slane %v1424, 6
      %v1427 = vshll.u32 %v259, 16
      %v1429 = vrot.slane %v1427, 7
      %v1430 = vor.u32 %v1426, %v1429
      %v1432 = vmul.bf16 %v1421, %v1430
      %v1433 = vmul.bf16 %v1422, %v1430
      %v1435 = vshrl.u32 %v1432, 16
      %v1437 = vrot.slane %v1435, 1
      %v1438 = vshll.u32 %v1432, 16
      %v1440 = vrot.slane %v1438, 2
      %v1441 = vor.u32 %v1437, %v1440
      %v1443 = vshrl.u32 %v1433, 16
      %v1445 = vrot.slane %v1443, 1
      %v1446 = vshll.u32 %v1433, 16
      %v1448 = vrot.slane %v1446, 2
      %v1449 = vor.u32 %v1445, %v1448
      %v1450 = vsel %vm321, %v1441, %v1449
      %1452 = vst [vmem:[#allocation2] sm:$0xff] %v1450
      %v1453 = vld [vmem:[#allocation3] sm:$0xfc]
      %v1454 = vld [vmem:[#allocation3 + $0x8] sm:$0x3]
      %v1457 = vrot.slane %v1453, 2
      %v1458 = vrot.slane %v1454, 2
      %v1459 = vsel %vm352, %v1457, %v1458
      %1461 = vst [vmem:[#allocation2 + $0x8] sm:$0xff] %v1459
      %v1462 = vld [vmem:[#allocation3] sm:$0xfc]
      %v1463 = vld [vmem:[#allocation3 + $0x8] sm:$0x7]
      %v1465 = vshrl.u32 %v266, 16
      %v1467 = vrot.slane %v1465, 5
      %v1468 = vshll.u32 %v266, 16
      %v1470 = vrot.slane %v1468, 6
      %v1471 = vor.u32 %v1467, %v1470
      %v1473 = vmul.bf16 %v1462, %v1471
      %v1474 = vmul.bf16 %v1463, %v1471
      %v1476 = vshrl.u32 %v1473, 16
      %v1478 = vrot.slane %v1476, 2
      %v1479 = vshll.u32 %v1473, 16
      %v1481 = vrot.slane %v1479, 3
      %v1482 = vor.u32 %v1478, %v1481
      %v1484 = vshrl.u32 %v1474, 16
      %v1486 = vrot.slane %v1484, 2
      %v1487 = vshll.u32 %v1474, 16
      %v1489 = vrot.slane %v1487, 3
      %v1490 = vor.u32 %v1486, %v1489
      %v1491 = vsel %vm412, %v1482, %v1490
      %1493 = vst [vmem:[#allocation2 + $0x10] sm:$0xff] %v1491
      %v1494 = vld [vmem:[#allocation3] sm:$0xf8]
      %v1495 = vld [vmem:[#allocation3 + $0x8] sm:$0xf]
      %v1496 = vrot.slane %v1424, 4
      %v1497 = vrot.slane %v1427, 5
      %v1498 = vor.u32 %v1496, %v1497
      %v1500 = vmul.bf16 %v1494, %v1498
      %v1501 = vmul.bf16 %v1495, %v1498
      %v1503 = vshrl.u32 %v1500, 16
      %v1505 = vrot.slane %v1503, 3
      %v1506 = vshll.u32 %v1500, 16
      %v1508 = vrot.slane %v1506, 4
      %v1509 = vor.u32 %v1505, %v1508
      %v1511 = vshrl.u32 %v1501, 16
      %v1513 = vrot.slane %v1511, 3
      %v1514 = vshll.u32 %v1501, 16
      %v1516 = vrot.slane %v1514, 4
      %v1517 = vor.u32 %v1513, %v1516
      %v1518 = vsel %vm461, %v1509, %v1517
      %1520 = vst [vmem:[#allocation2 + $0x18] sm:$0xff] %v1518
      %v1521 = vld [vmem:[#allocation3] sm:$0xf0]
      %v1522 = vld [vmem:[#allocation3 + $0x8] sm:$0xf]
      %vm1525 = vcmask 1043456
      %v1526 = vrot.slane %v1521, 4
      %v1527 = vrot.slane %v1522, 4
      %v1528 = vsel %vm1525, %v1526, %v1527
      %1530 = vst [vmem:[#allocation2 + $0x20] sm:$0xff] %v1528
      %v1531 = vld [vmem:[#allocation3] sm:$0xf0]
      %v1532 = vld [vmem:[#allocation3 + $0x8] sm:$0x1f]
      %v1533 = vrot.slane %v1465, 3
      %v1534 = vrot.slane %v1468, 4
      %v1535 = vor.u32 %v1533, %v1534
      %v1537 = vmul.bf16 %v1531, %v1535
      %v1538 = vmul.bf16 %v1532, %v1535
      %v1540 = vshrl.u32 %v1537, 16
      %v1542 = vrot.slane %v1540, 4
      %v1543 = vshll.u32 %v1537, 16
      %v1545 = vrot.slane %v1543, 5
      %v1546 = vor.u32 %v1542, %v1545
      %v1548 = vshrl.u32 %v1538, 16
      %v1550 = vrot.slane %v1548, 4
      %v1551 = vshll.u32 %v1538, 16
      %v1553 = vrot.slane %v1551, 5
      %v1554 = vor.u32 %v1550, %v1553
      %v1555 = vsel %vm435, %v1546, %v1554
      %1557 = vst [vmem:[#allocation2 + $0x28] sm:$0xff] %v1555
      %v1558 = vld [vmem:[#allocation3] sm:$0xe0]
      %v1559 = vld [vmem:[#allocation3 + $0x8] sm:$0x3f]
      %v1560 = vrot.slane %v1424, 2
      %v1561 = vrot.slane %v1427, 3
      %v1562 = vor.u32 %v1560, %v1561
      %v1564 = vmul.bf16 %v1558, %v1562
      %v1565 = vmul.bf16 %v1559, %v1562
      %v1567 = vshrl.u32 %v1564, 16
      %v1569 = vrot.slane %v1567, 5
      %v1570 = vshll.u32 %v1564, 16
      %v1572 = vrot.slane %v1570, 6
      %v1573 = vor.u32 %v1569, %v1572
      %v1575 = vshrl.u32 %v1565, 16
      %v1577 = vrot.slane %v1575, 5
      %v1578 = vshll.u32 %v1565, 16
      %v1580 = vrot.slane %v1578, 6
      %v1581 = vor.u32 %v1577, %v1580
      %v1582 = vsel %vm376, %v1573, %v1581
      %1584 = vst [vmem:[#allocation2 + $0x30] sm:$0xff] %v1582
      %v1585 = vld [vmem:[#allocation3] sm:$0xc0]
      %v1586 = vld [vmem:[#allocation3 + $0x8] sm:$0x3f]
      %vm1589 = vcmask 1041408
      %v1590 = vrot.slane %v1585, 6
      %v1591 = vrot.slane %v1586, 6
      %v1592 = vsel %vm1589, %v1590, %v1591
      %1594 = vst [vmem:[#allocation2 + $0x38] sm:$0xff] %v1592
      %v1595 = vld [vmem:[#allocation3] sm:$0xc0]
      %v1596 = vld [vmem:[#allocation3 + $0x8] sm:$0x7f]
      %v1597 = vrot.slane %v1465, 1
      %v1598 = vrot.slane %v1468, 2
      %v1599 = vor.u32 %v1597, %v1598
      %v1601 = vmul.bf16 %v1595, %v1599
      %v1602 = vmul.bf16 %v1596, %v1599
      %v1604 = vshrl.u32 %v1601, 16
      %v1606 = vrot.slane %v1604, 6
      %v1607 = vshll.u32 %v1601, 16
      %v1609 = vrot.slane %v1607, 7
      %v1610 = vor.u32 %v1606, %v1609
      %v1612 = vshrl.u32 %v1602, 16
      %v1614 = vrot.slane %v1612, 6
      %v1615 = vshll.u32 %v1602, 16
      %v1617 = vrot.slane %v1615, 7
      %v1618 = vor.u32 %v1614, %v1617
      %v1619 = vsel %vm285, %v1610, %v1618
      %1621 = vst [vmem:[#allocation2 + $0x40] sm:$0xff] %v1619
      %v1622 = vld [vmem:[#allocation2] sm:$0xff]
      %v1623 = vld [vmem:[#allocation2 + $0x8] sm:$0xff]
      %v1624 = vld [vmem:[#allocation2 + $0x10] sm:$0xff]
      %v1625 = vld [vmem:[#allocation2 + $0x18] sm:$0xff]
      %v1626 = vld [vmem:[#allocation2 + $0x20] sm:$0xff]
      %v1627 = vld [vmem:[#allocation2 + $0x28] sm:$0xff]
      %v1628 = vld [vmem:[#allocation2 + $0x30] sm:$0xff]
      %v1629 = vld [vmem:[#allocation2 + $0x38] sm:$0xff]
      %v1630 = vld [vmem:[#allocation2 + $0x40] sm:$0xff]
      %v1631 = vld [vmem:[%s3] sm:$0xf]
      %v1632 = vld [vmem:[%s3 + $0x4] sm:$0xf]
      %v1633 = vld [vmem:[%s3 + $0x8] sm:$0xf]
      %v1634 = vld [vmem:[%s3 + $0xc] sm:$0xf]
      %v1635 = vld [vmem:[%s3 + $0x10] sm:$0xf]
      %v1636 = vld [vmem:[%s3 + $0x14] sm:$0xf]
      %v1637 = vld [vmem:[%s3 + $0x18] sm:$0xf]
      %v1638 = vld [vmem:[%s3 + $0x1c] sm:$0xf]
      %v1639 = vld [vmem:[%s3 + $0x20] sm:$0xf]
      %v1640 = vld [vmem:[%s3 + $0x24] sm:$0xf]
      %v1641 = vld [vmem:[%s3 + $0x28] sm:$0xf]
      %v1642 = vld [vmem:[%s3 + $0x2c] sm:$0xf]
      %v1643 = vld [vmem:[%s3 + $0x30] sm:$0xf]
      %v1644 = vld [vmem:[%s3 + $0x34] sm:$0xf]
      %v1645 = vld [vmem:[%s3 + $0x38] sm:$0xf]
      %v1646 = vld [vmem:[%s3 + $0x3c] sm:$0xf]
      %v1647 = vld [vmem:[%s3 + $0x40] sm:$0xf]
      %v1648 = vld [vmem:[%s3 + $0x44] sm:$0xf]
      %v1649 = vld [vmem:[%s3 + $0x48] sm:$0xf]
      %v1650 = vld [vmem:[%s3 + $0x4c] sm:$0xf]
      %v1651 = vld [vmem:[%s3 + $0x50] sm:$0xf]
      %v1652 = vld [vmem:[%s3 + $0x54] sm:$0xf]
      %v1653 = vld [vmem:[%s3 + $0x58] sm:$0xf]
      %v1654 = vld [vmem:[%s3 + $0x5c] sm:$0xf]
      %v1655 = vld [vmem:[%s3 + $0x60] sm:$0xf]
      %v1656 = vld [vmem:[%s3 + $0x64] sm:$0xf]
      %v1657 = vld [vmem:[%s3 + $0x68] sm:$0xf]
      %v1658 = vld [vmem:[%s3 + $0x6c] sm:$0xf]
      %v1659 = vld [vmem:[%s3 + $0x70] sm:$0xf]
      %v1660 = vld [vmem:[%s3 + $0x74] sm:$0xf]
      %v1661 = vld [vmem:[%s3 + $0x78] sm:$0xf]
      %v1662 = vld [vmem:[%s3 + $0x7c] sm:$0xf]
      %v1663 = vld [vmem:[%s3 + $0x80] sm:$0xf]
      %v1664 = vld [vmem:[%s3 + $0x84] sm:$0xf]
      %v1665 = vld [vmem:[%s3 + $0x88] sm:$0xf]
      %v1666 = vld [vmem:[%s3 + $0x8c] sm:$0xf]
      %v1667 = vld [vmem:[%s3 + $0x90] sm:$0xf]
      %v1668 = vld [vmem:[%s3 + $0x94] sm:$0xf]
      %v1669 = vld [vmem:[%s3 + $0x98] sm:$0xf]
      %v1670 = vld [vmem:[%s3 + $0x9c] sm:$0xf]
      %v1671 = vld [vmem:[%s3 + $0xa0] sm:$0xf]
      %v1672 = vld [vmem:[%s3 + $0xa4] sm:$0xf]
      %v1673 = vld [vmem:[%s3 + $0xa8] sm:$0xf]
      %v1674 = vld [vmem:[%s3 + $0xac] sm:$0xf]
      %v1675 = vld [vmem:[%s3 + $0xb0] sm:$0xf]
      %v1676 = vld [vmem:[%s3 + $0xb4] sm:$0xf]
      %v1677 = vld [vmem:[%s3 + $0xb8] sm:$0xf]
      %v1678 = vld [vmem:[%s3 + $0xbc] sm:$0xf]
      %v1679 = vld [vmem:[%s3 + $0xc0] sm:$0xf]
      %v1680 = vld [vmem:[%s3 + $0xc4] sm:$0xf]
      %v1681 = vld [vmem:[%s3 + $0xc8] sm:$0xf]
      %v1682 = vld [vmem:[%s3 + $0xcc] sm:$0xf]
      %v1683 = vld [vmem:[%s3 + $0xd0] sm:$0xf]
      %v1684 = vld [vmem:[%s3 + $0xd4] sm:$0xf]
      %v1685 = vld [vmem:[%s3 + $0xd8] sm:$0xf]
      %v1686 = vld [vmem:[%s3 + $0xdc] sm:$0xf]
      %v1687 = vld [vmem:[%s3 + $0xe0] sm:$0xf]
      %v1688 = vld [vmem:[%s3 + $0xe4] sm:$0xf]
      %v1689 = vld [vmem:[%s3 + $0xe8] sm:$0xf]
      %v1690 = vld [vmem:[%s3 + $0xec] sm:$0xf]
      %v1691 = vld [vmem:[%s3 + $0xf0] sm:$0xf]
      %v1692 = vld [vmem:[%s3 + $0xf4] sm:$0xf]
      %v1693 = vld [vmem:[%s3 + $0xf8] sm:$0xf]
      %v1694 = vld [vmem:[%s3 + $0xfc] sm:$0xf]
      %v1695 = vld [vmem:[%s3 + $0x100] sm:$0xf]
      %v1696 = vld [vmem:[%s3 + $0x104] sm:$0xf]
      %v1697 = vld [vmem:[%s3 + $0x108] sm:$0xf]
      %v1698 = vld [vmem:[%s3 + $0x10c] sm:$0xf]
      %v1699 = vld [vmem:[%s3 + $0x110] sm:$0xf]
      %v1700 = vld [vmem:[%s3 + $0x114] sm:$0xf]
      %v1701 = vld [vmem:[%s3 + $0x118] sm:$0xf]
      %v1702 = vld [vmem:[%s3 + $0x11c] sm:$0xf]
      %v1703 = vld [vmem:[%s3 + $0x120] sm:$0xf]
      %v1704 = vld [vmem:[%s3 + $0x124] sm:$0xf]
      %v1705 = vld [vmem:[%s3 + $0x128] sm:$0xf]
      %v1706 = vld [vmem:[%s3 + $0x12c] sm:$0xf]
      %v1707 = vld [vmem:[%s3 + $0x130] sm:$0xf]
      %v1708 = vld [vmem:[%s3 + $0x134] sm:$0xf]
      %v1709 = vld [vmem:[%s3 + $0x138] sm:$0xf]
      %v1710 = vld [vmem:[%s3 + $0x13c] sm:$0xf]
      %v1711 = vld [vmem:[%s3 + $0x140] sm:$0xf]
      %v1712 = vld [vmem:[%s3 + $0x144] sm:$0xf]
      %v1713 = vld [vmem:[%s3 + $0x148] sm:$0xf]
      %v1714 = vld [vmem:[%s3 + $0x14c] sm:$0xf]
      %v1715 = vld [vmem:[%s3 + $0x150] sm:$0xf]
      %v1716 = vld [vmem:[%s3 + $0x154] sm:$0xf]
      %v1717 = vld [vmem:[%s3 + $0x158] sm:$0xf]
      %v1718 = vld [vmem:[%s3 + $0x15c] sm:$0xf]
      %v1719 = vld [vmem:[%s3 + $0x160] sm:$0xf]
      %v1720 = vld [vmem:[%s3 + $0x164] sm:$0xf]
      %v1721 = vld [vmem:[%s3 + $0x168] sm:$0xf]
      %v1722 = vld [vmem:[%s3 + $0x16c] sm:$0xf]
      %v1723 = vld [vmem:[%s3 + $0x170] sm:$0xf]
      %v1724 = vld [vmem:[%s3 + $0x174] sm:$0xf]
      %v1725 = vld [vmem:[%s3 + $0x178] sm:$0xf]
      %v1726 = vld [vmem:[%s3 + $0x17c] sm:$0xf]
      %v1727 = vld [vmem:[%s3 + $0x180] sm:$0xf]
      %v1728 = vld [vmem:[%s3 + $0x184] sm:$0xf]
      %v1729 = vld [vmem:[%s3 + $0x188] sm:$0xf]
      %v1730 = vld [vmem:[%s3 + $0x18c] sm:$0xf]
      %v1731 = vld [vmem:[%s3 + $0x190] sm:$0xf]
      %v1732 = vld [vmem:[%s3 + $0x194] sm:$0xf]
      %v1733 = vld [vmem:[%s3 + $0x198] sm:$0xf]
      %v1734 = vld [vmem:[%s3 + $0x19c] sm:$0xf]
      %v1735 = vld [vmem:[%s3 + $0x1a0] sm:$0xf]
      %v1736 = vld [vmem:[%s3 + $0x1a4] sm:$0xf]
      %v1737 = vld [vmem:[%s3 + $0x1a8] sm:$0xf]
      %v1738 = vld [vmem:[%s3 + $0x1ac] sm:$0xf]
      %v1739 = vld [vmem:[%s3 + $0x1b0] sm:$0xf]
      %v1740 = vld [vmem:[%s3 + $0x1b4] sm:$0xf]
      %v1741 = vld [vmem:[%s3 + $0x1b8] sm:$0xf]
      %v1742 = vld [vmem:[%s3 + $0x1bc] sm:$0xf]
      %v1743 = vld [vmem:[%s3 + $0x1c0] sm:$0xf]
      %v1744 = vld [vmem:[%s3 + $0x1c4] sm:$0xf]
      %v1745 = vld [vmem:[%s3 + $0x1c8] sm:$0xf]
      %v1746 = vld [vmem:[%s3 + $0x1cc] sm:$0xf]
      %v1747 = vld [vmem:[%s3 + $0x1d0] sm:$0xf]
      %v1748 = vld [vmem:[%s3 + $0x1d4] sm:$0xf]
      %v1749 = vld [vmem:[%s3 + $0x1d8] sm:$0xf]
      %v1750 = vld [vmem:[%s3 + $0x1dc] sm:$0xf]
      %v1751 = vld [vmem:[%s3 + $0x1e0] sm:$0xf]
      %v1752 = vld [vmem:[%s3 + $0x1e4] sm:$0xf]
      %v1753 = vld [vmem:[%s3 + $0x1e8] sm:$0xf]
      %v1754 = vld [vmem:[%s3 + $0x1ec] sm:$0xf]
      %v1755 = vld [vmem:[%s3 + $0x1f0] sm:$0xf]
      %v1756 = vld [vmem:[%s3 + $0x1f4] sm:$0xf]
      %v1757 = vld [vmem:[%s3 + $0x1f8] sm:$0xf]
      %v1758 = vld [vmem:[%s3 + $0x1fc] sm:$0xf]
      %v1759 = vld [vmem:[%s3 + $0x200] sm:$0xf]
      %v1760 = vld [vmem:[%s3 + $0x204] sm:$0xf]
      %v1761 = vld [vmem:[%s3 + $0x208] sm:$0xf]
      %v1762 = vld [vmem:[%s3 + $0x20c] sm:$0xf]
      %v1763 = vld [vmem:[%s3 + $0x210] sm:$0xf]
      %v1764 = vld [vmem:[%s3 + $0x214] sm:$0xf]
      %v1765 = vld [vmem:[%s3 + $0x218] sm:$0xf]
      %v1766 = vld [vmem:[%s3 + $0x21c] sm:$0xf]
      %v1767 = vld [vmem:[%s3 + $0x220] sm:$0xf]
      %v1768 = vld [vmem:[%s3 + $0x224] sm:$0xf]
      %v1769 = vld [vmem:[%s3 + $0x228] sm:$0xf]
      %v1770 = vld [vmem:[%s3 + $0x22c] sm:$0xf]
      %v1771 = vld [vmem:[%s3 + $0x230] sm:$0xf]
      %v1772 = vld [vmem:[%s3 + $0x234] sm:$0xf]
      %v1773 = vld [vmem:[%s3 + $0x238] sm:$0xf]
      %v1774 = vld [vmem:[%s3 + $0x23c] sm:$0xf]
      %v1775 = vld [vmem:[%s219 + $0x4] sm:$0xf]
      %v1776 = vld [vmem:[%s219 + $0x8] sm:$0xf]
      %v1777 = vunpack.c.l.bf16 %v1775
      %v1778 = vunpack.c.l.bf16 %v1776
      %v1779 = vld [vmem:[%s4] sm:$0x1]
      %v1781 = vlaneseq
      %v1782 = vshrl.u32 %v1781, 7
      %v1783 = vsub.s32 0, %v1782
      %v1784 = vrot.slane %v1779, %v1783
      %v1930 = vunpack.c.l.b16 %v1631
      %v1931 = vunpack.c.l.b16 %v1632
      %v1932 = vunpack.c.l.b16 %v1633
      %v1933 = vunpack.c.l.b16 %v1634
      %v1934 = vunpack.c.l.b16 %v1635
      %v1935 = vunpack.c.l.b16 %v1636
      %v1936 = vunpack.c.l.b16 %v1637
      %v1937 = vunpack.c.l.b16 %v1638
      %v1938 = vunpack.c.l.b16 %v1639
      %v1939 = vunpack.c.l.b16 %v1640
      %v1940 = vunpack.c.l.b16 %v1641
      %v1941 = vunpack.c.l.b16 %v1642
      %v1942 = vunpack.c.l.b16 %v1643
      %v1943 = vunpack.c.l.b16 %v1644
      %v1944 = vunpack.c.l.b16 %v1645
      %v1945 = vunpack.c.l.b16 %v1646
      %v1946 = vunpack.c.l.b16 %v1647
      %v1947 = vunpack.c.l.b16 %v1648
      %v1948 = vunpack.c.l.b16 %v1649
      %v1949 = vunpack.c.l.b16 %v1650
      %v1950 = vunpack.c.l.b16 %v1651
      %v1951 = vunpack.c.l.b16 %v1652
      %v1952 = vunpack.c.l.b16 %v1653
      %v1953 = vunpack.c.l.b16 %v1654
      %v1954 = vunpack.c.l.b16 %v1655
      %v1955 = vunpack.c.l.b16 %v1656
      %v1956 = vunpack.c.l.b16 %v1657
      %v1957 = vunpack.c.l.b16 %v1658
      %v1958 = vunpack.c.l.b16 %v1659
      %v1959 = vunpack.c.l.b16 %v1660
      %v1960 = vunpack.c.l.b16 %v1661
      %v1961 = vunpack.c.l.b16 %v1662
      %v1962 = vunpack.c.l.b16 %v1663
      %v1963 = vunpack.c.l.b16 %v1664
      %v1964 = vunpack.c.l.b16 %v1665
      %v1965 = vunpack.c.l.b16 %v1666
      %v1966 = vunpack.c.l.b16 %v1667
      %v1967 = vunpack.c.l.b16 %v1668
      %v1968 = vunpack.c.l.b16 %v1669
      %v1969 = vunpack.c.l.b16 %v1670
      %v1970 = vunpack.c.l.b16 %v1671
      %v1971 = vunpack.c.l.b16 %v1672
      %v1972 = vunpack.c.l.b16 %v1673
      %v1973 = vunpack.c.l.b16 %v1674
      %v1974 = vunpack.c.l.b16 %v1675
      %v1975 = vunpack.c.l.b16 %v1676
      %v1976 = vunpack.c.l.b16 %v1677
      %v1977 = vunpack.c.l.b16 %v1678
      %v1978 = vunpack.c.l.b16 %v1679
      %v1979 = vunpack.c.l.b16 %v1680
      %v1980 = vunpack.c.l.b16 %v1681
      %v1981 = vunpack.c.l.b16 %v1682
      %v1982 = vunpack.c.l.b16 %v1683
      %v1983 = vunpack.c.l.b16 %v1684
      %v1984 = vunpack.c.l.b16 %v1685
      %v1985 = vunpack.c.l.b16 %v1686
      %v1986 = vunpack.c.l.b16 %v1687
      %v1987 = vunpack.c.l.b16 %v1688
      %v1988 = vunpack.c.l.b16 %v1689
      %v1989 = vunpack.c.l.b16 %v1690
      %v1990 = vunpack.c.l.b16 %v1691
      %v1991 = vunpack.c.l.b16 %v1692
      %v1992 = vunpack.c.l.b16 %v1693
      %v1993 = vunpack.c.l.b16 %v1694
      %v1994 = vunpack.c.l.b16 %v1695
      %v1995 = vunpack.c.l.b16 %v1696
      %v1996 = vunpack.c.l.b16 %v1697
      %v1997 = vunpack.c.l.b16 %v1698
      %v1998 = vunpack.c.l.b16 %v1699
      %v1999 = vunpack.c.l.b16 %v1700
      %v2000 = vunpack.c.l.b16 %v1701
      %v2001 = vunpack.c.l.b16 %v1702
      %v2002 = vunpack.c.l.b16 %v1703
      %v2003 = vunpack.c.l.b16 %v1704
      %v2004 = vunpack.c.l.b16 %v1705
      %v2005 = vunpack.c.l.b16 %v1706
      %v2006 = vunpack.c.l.b16 %v1707
      %v2007 = vunpack.c.l.b16 %v1708
      %v2008 = vunpack.c.l.b16 %v1709
      %v2009 = vunpack.c.l.b16 %v1710
      %v2010 = vunpack.c.l.b16 %v1711
      %v2011 = vunpack.c.l.b16 %v1712
      %v2012 = vunpack.c.l.b16 %v1713
      %v2013 = vunpack.c.l.b16 %v1714
      %v2014 = vunpack.c.l.b16 %v1715
      %v2015 = vunpack.c.l.b16 %v1716
      %v2016 = vunpack.c.l.b16 %v1717
      %v2017 = vunpack.c.l.b16 %v1718
      %v2018 = vunpack.c.l.b16 %v1719
      %v2019 = vunpack.c.l.b16 %v1720
      %v2020 = vunpack.c.l.b16 %v1721
      %v2021 = vunpack.c.l.b16 %v1722
      %v2022 = vunpack.c.l.b16 %v1723
      %v2023 = vunpack.c.l.b16 %v1724
      %v2024 = vunpack.c.l.b16 %v1725
      %v2025 = vunpack.c.l.b16 %v1726
      %v2026 = vunpack.c.l.b16 %v1727
      %v2027 = vunpack.c.l.b16 %v1728
      %v2028 = vunpack.c.l.b16 %v1729
      %v2029 = vunpack.c.l.b16 %v1730
      %v2030 = vunpack.c.l.b16 %v1731
      %v2031 = vunpack.c.l.b16 %v1732
      %v2032 = vunpack.c.l.b16 %v1733
      %v2033 = vunpack.c.l.b16 %v1734
      %v2034 = vunpack.c.l.b16 %v1735
      %v2035 = vunpack.c.l.b16 %v1736
      %v2036 = vunpack.c.l.b16 %v1737
      %v2037 = vunpack.c.l.b16 %v1738
      %v2038 = vunpack.c.l.b16 %v1739
      %v2039 = vunpack.c.l.b16 %v1740
      %v2040 = vunpack.c.l.b16 %v1741
      %v2041 = vunpack.c.l.b16 %v1742
      %v2042 = vunpack.c.l.b16 %v1743
      %v2043 = vunpack.c.l.b16 %v1744
      %v2044 = vunpack.c.l.b16 %v1745
      %v2045 = vunpack.c.l.b16 %v1746
      %v2046 = vunpack.c.l.b16 %v1747
      %v2047 = vunpack.c.l.b16 %v1748
      %v2048 = vunpack.c.l.b16 %v1749
      %v2049 = vunpack.c.l.b16 %v1750
      %v2050 = vunpack.c.l.b16 %v1751
      %v2051 = vunpack.c.l.b16 %v1752
      %v2052 = vunpack.c.l.b16 %v1753
      %v2053 = vunpack.c.l.b16 %v1754
      %v2054 = vunpack.c.l.b16 %v1755
      %v2055 = vunpack.c.l.b16 %v1756
      %v2056 = vunpack.c.l.b16 %v1757
      %v2057 = vunpack.c.l.b16 %v1758
      %v2058 = vunpack.c.l.b16 %v1759
      %v2059 = vunpack.c.l.b16 %v1760
      %v2060 = vunpack.c.l.b16 %v1761
      %v2061 = vunpack.c.l.b16 %v1762
      %v2062 = vunpack.c.l.b16 %v1763
      %v2063 = vunpack.c.l.b16 %v1764
      %v2064 = vunpack.c.l.b16 %v1765
      %v2065 = vunpack.c.l.b16 %v1766
      %v2066 = vunpack.c.l.b16 %v1767
      %v2067 = vunpack.c.l.b16 %v1768
      %v2068 = vunpack.c.l.b16 %v1769
      %v2069 = vunpack.c.l.b16 %v1770
      %v2070 = vunpack.c.l.b16 %v1771
      %v2071 = vunpack.c.l.b16 %v1772
      %v2072 = vunpack.c.l.b16 %v1773
      %v2073 = vunpack.c.l.b16 %v1774
      %v2074 = vpack.c.b16 %v1931, %v1930
      %v2075 = vpack.c.b16 %v1933, %v1932
      %v2076 = vpack.c.b16 %v1935, %v1934
      %v2077 = vpack.c.b16 %v1937, %v1936
      %v2078 = vpack.c.b16 %v1939, %v1938
      %v2079 = vpack.c.b16 %v1941, %v1940
      %v2080 = vpack.c.b16 %v1943, %v1942
      %v2081 = vpack.c.b16 %v1945, %v1944
      %v2082 = vpack.c.b16 %v1947, %v1946
      %v2083 = vpack.c.b16 %v1949, %v1948
      %v2084 = vpack.c.b16 %v1951, %v1950
      %v2085 = vpack.c.b16 %v1953, %v1952
      %v2086 = vpack.c.b16 %v1955, %v1954
      %v2087 = vpack.c.b16 %v1957, %v1956
      %v2088 = vpack.c.b16 %v1959, %v1958
      %v2089 = vpack.c.b16 %v1961, %v1960
      %v2090 = vpack.c.b16 %v1963, %v1962
      %v2091 = vpack.c.b16 %v1965, %v1964
      %v2092 = vpack.c.b16 %v1967, %v1966
      %v2093 = vpack.c.b16 %v1969, %v1968
      %v2094 = vpack.c.b16 %v1971, %v1970
      %v2095 = vpack.c.b16 %v1973, %v1972
      %v2096 = vpack.c.b16 %v1975, %v1974
      %v2097 = vpack.c.b16 %v1977, %v1976
      %v2098 = vpack.c.b16 %v1979, %v1978
      %v2099 = vpack.c.b16 %v1981, %v1980
      %v2100 = vpack.c.b16 %v1983, %v1982
      %v2101 = vpack.c.b16 %v1985, %v1984
      %v2102 = vpack.c.b16 %v1987, %v1986
      %v2103 = vpack.c.b16 %v1989, %v1988
      %v2104 = vpack.c.b16 %v1991, %v1990
      %v2105 = vpack.c.b16 %v1993, %v1992
      %v2106 = vpack.c.b16 %v1995, %v1994
      %v2107 = vpack.c.b16 %v1997, %v1996
      %v2108 = vpack.c.b16 %v1999, %v1998
      %v2109 = vpack.c.b16 %v2001, %v2000
      %v2110 = vpack.c.b16 %v2003, %v2002
      %v2111 = vpack.c.b16 %v2005, %v2004
      %v2112 = vpack.c.b16 %v2007, %v2006
      %v2113 = vpack.c.b16 %v2009, %v2008
      %v2114 = vpack.c.b16 %v2011, %v2010
      %v2115 = vpack.c.b16 %v2013, %v2012
      %v2116 = vpack.c.b16 %v2015, %v2014
      %v2117 = vpack.c.b16 %v2017, %v2016
      %v2118 = vpack.c.b16 %v2019, %v2018
      %v2119 = vpack.c.b16 %v2021, %v2020
      %v2120 = vpack.c.b16 %v2023, %v2022
      %v2121 = vpack.c.b16 %v2025, %v2024
      %v2122 = vpack.c.b16 %v2027, %v2026
      %v2123 = vpack.c.b16 %v2029, %v2028
      %v2124 = vpack.c.b16 %v2031, %v2030
      %v2125 = vpack.c.b16 %v2033, %v2032
      %v2126 = vpack.c.b16 %v2035, %v2034
      %v2127 = vpack.c.b16 %v2037, %v2036
      %v2128 = vpack.c.b16 %v2039, %v2038
      %v2129 = vpack.c.b16 %v2041, %v2040
      %v2130 = vpack.c.b16 %v2043, %v2042
      %v2131 = vpack.c.b16 %v2045, %v2044
      %v2132 = vpack.c.b16 %v2047, %v2046
      %v2133 = vpack.c.b16 %v2049, %v2048
      %v2134 = vpack.c.b16 %v2051, %v2050
      %v2135 = vpack.c.b16 %v2053, %v2052
      %v2136 = vpack.c.b16 %v2055, %v2054
      %v2137 = vpack.c.b16 %v2057, %v2056
      %v2138 = vpack.c.b16 %v2059, %v2058
      %v2139 = vpack.c.b16 %v2061, %v2060
      %v2140 = vpack.c.b16 %v2063, %v2062
      %v2141 = vpack.c.b16 %v2065, %v2064
      %v2142 = vpack.c.b16 %v2067, %v2066
      %v2143 = vpack.c.b16 %v2069, %v2068
      %v2144 = vpack.c.b16 %v2071, %v2070
      %v2145 = vpack.c.b16 %v2073, %v2072
      %2218 = vmatprep.subr.bf16.mxu0 0
      %2219 = vmatpush1.bf16.msra.mxu0 %v2074
      %2220 = vmatprep.subr.bf16.mxu0 0
      %2221 = vmatpush1.bf16.msra.mxu0 %v2075
      %2222 = vmatprep.subr.bf16.mxu0 0
      %2223 = vmatpush1.bf16.msra.mxu0 %v2076
      %2224 = vmatprep.subr.bf16.mxu0 0
      %2225 = vmatpush1.bf16.msra.mxu0 %v2077
      %2226 = vmatprep.subr.bf16.mxu0 0
      %2227 = vmatpush1.bf16.msra.mxu0 %v2078
      %2228 = vmatprep.subr.bf16.mxu0 0
      %2229 = vmatpush1.bf16.msra.mxu0 %v2079
      %2230 = vmatprep.subr.bf16.mxu0 0
      %2231 = vmatpush1.bf16.msra.mxu0 %v2080
      %2232 = vmatprep.subr.bf16.mxu0 0
      %2233 = vmatpush1.bf16.msra.mxu0 %v2081
      %2234 = vmatprep.subr.bf16.mxu0 0
      %2235 = vmatpush1.bf16.msra.mxu0 %v2082
      %2236 = vmatprep.subr.bf16.mxu0 0
      %2237 = vmatpush1.bf16.msra.mxu0 %v2083
      %2238 = vmatprep.subr.bf16.mxu0 0
      %2239 = vmatpush1.bf16.msra.mxu0 %v2084
      %2240 = vmatprep.subr.bf16.mxu0 0
      %2241 = vmatpush1.bf16.msra.mxu0 %v2085
      %2242 = vmatprep.subr.bf16.mxu0 0
      %2243 = vmatpush1.bf16.msra.mxu0 %v2086
      %2244 = vmatprep.subr.bf16.mxu0 0
      %2245 = vmatpush1.bf16.msra.mxu0 %v2087
      %2246 = vmatprep.subr.bf16.mxu0 0
      %2247 = vmatpush1.bf16.msra.mxu0 %v2088
      %2248 = vmatprep.subr.bf16.mxu0 0
      %2249 = vmatpush1.bf16.msra.mxu0 %v2089
      %2250 = vmatprep.mubr.bf16.mxu0 %v1623
      %2251 = vmatmul.mubr.bf16.gmra.mrb[0].mxu0 %v1622
      %v2252 = vpop.f32.mrb[0].mxu0
      %v2253 = vadd.f32 %v1784, %v2252
      %v2254 = vpop.f32.mrb[0].mxu0
      %v2255 = vpop.f32.mrb[0].mxu0
      %v2256 = vadd.f32 %v1784, %v2255
      %v2257 = vpop.f32.mrb[0].mxu0
      %2258 = vdwg.mxu0
      %2259 = vmatprep.subr.bf16.mxu0 0
      %2260 = vmatpush1.bf16.msra.mxu0 %v2090
      %2261 = vmatprep.subr.bf16.mxu0 0
      %2262 = vmatpush1.bf16.msra.mxu0 %v2091
      %2263 = vmatprep.subr.bf16.mxu0 0
      %2264 = vmatpush1.bf16.msra.mxu0 %v2092
      %2265 = vmatprep.subr.bf16.mxu0 0
      %2266 = vmatpush1.bf16.msra.mxu0 %v2093
      %2267 = vmatprep.subr.bf16.mxu0 0
      %2268 = vmatpush1.bf16.msra.mxu0 %v2094
      %2269 = vmatprep.subr.bf16.mxu0 0
      %2270 = vmatpush1.bf16.msra.mxu0 %v2095
      %2271 = vmatprep.subr.bf16.mxu0 0
      %2272 = vmatpush1.bf16.msra.mxu0 %v2096
      %2273 = vmatprep.subr.bf16.mxu0 0
      %2274 = vmatpush1.bf16.msra.mxu0 %v2097
      %2275 = vmatprep.subr.bf16.mxu0 0
      %2276 = vmatpush1.bf16.msra.mxu0 %v2098
      %2277 = vmatprep.subr.bf16.mxu0 0
      %2278 = vmatpush1.bf16.msra.mxu0 %v2099
      %2279 = vmatprep.subr.bf16.mxu0 0
      %2280 = vmatpush1.bf16.msra.mxu0 %v2100
      %2281 = vmatprep.subr.bf16.mxu0 0
      %2282 = vmatpush1.bf16.msra.mxu0 %v2101
      %2283 = vmatprep.subr.bf16.mxu0 0
      %2284 = vmatpush1.bf16.msra.mxu0 %v2102
      %2285 = vmatprep.subr.bf16.mxu0 0
      %2286 = vmatpush1.bf16.msra.mxu0 %v2103
      %2287 = vmatprep.subr.bf16.mxu0 0
      %2288 = vmatpush1.bf16.msra.mxu0 %v2104
      %2289 = vmatprep.subr.bf16.mxu0 0
      %2290 = vmatpush1.bf16.msra.mxu0 %v2105
      %2291 = vmatprep.mubr.bf16.mxu0 %v1625
      %2292 = vmatmul.mubr.bf16.gmra.mrb[0].mxu0 %v1624
      %v2293 = vpop.f32.mrb[0].mxu0
      %v2294 = vadd.f32 %v2253, %v2293
      %v2295 = vpop.f32.mrb[0].mxu0
      %v2296 = vpop.f32.mrb[0].mxu0
      %v2297 = vadd.f32 %v2256, %v2296
      %v2298 = vpop.f32.mrb[0].mxu0
      %2299 = vdwg.mxu0
      %2300 = vmatprep.subr.bf16.mxu0 0
      %2301 = vmatpush1.bf16.msra.mxu0 %v2106
      %2302 = vmatprep.subr.bf16.mxu0 0
      %2303 = vmatpush1.bf16.msra.mxu0 %v2107
      %2304 = vmatprep.subr.bf16.mxu0 0
      %2305 = vmatpush1.bf16.msra.mxu0 %v2108
      %2306 = vmatprep.subr.bf16.mxu0 0
      %2307 = vmatpush1.bf16.msra.mxu0 %v2109
      %2308 = vmatprep.subr.bf16.mxu0 0
      %2309 = vmatpush1.bf16.msra.mxu0 %v2110
      %2310 = vmatprep.subr.bf16.mxu0 0
      %2311 = vmatpush1.bf16.msra.mxu0 %v2111
      %2312 = vmatprep.subr.bf16.mxu0 0
      %2313 = vmatpush1.bf16.msra.mxu0 %v2112
      %2314 = vmatprep.subr.bf16.mxu0 0
      %2315 = vmatpush1.bf16.msra.mxu0 %v2113
      %2316 = vmatprep.subr.bf16.mxu0 0
      %2317 = vmatpush1.bf16.msra.mxu0 %v2114
      %2318 = vmatprep.subr.bf16.mxu0 0
      %2319 = vmatpush1.bf16.msra.mxu0 %v2115
      %2320 = vmatprep.subr.bf16.mxu0 0
      %2321 = vmatpush1.bf16.msra.mxu0 %v2116
      %2322 = vmatprep.subr.bf16.mxu0 0
      %2323 = vmatpush1.bf16.msra.mxu0 %v2117
      %2324 = vmatprep.subr.bf16.mxu0 0
      %2325 = vmatpush1.bf16.msra.mxu0 %v2118
      %2326 = vmatprep.subr.bf16.mxu0 0
      %2327 = vmatpush1.bf16.msra.mxu0 %v2119
      %2328 = vmatprep.subr.bf16.mxu0 0
      %2329 = vmatpush1.bf16.msra.mxu0 %v2120
      %2330 = vmatprep.subr.bf16.mxu0 0
      %2331 = vmatpush1.bf16.msra.mxu0 %v2121
      %2332 = vmatprep.mubr.bf16.mxu0 %v1627
      %2333 = vmatmul.mubr.bf16.gmra.mrb[0].mxu0 %v1626
      %v2334 = vpop.f32.mrb[0].mxu0
      %v2335 = vadd.f32 %v2294, %v2334
      %v2336 = vpop.f32.mrb[0].mxu0
      %v2337 = vpop.f32.mrb[0].mxu0
      %v2338 = vadd.f32 %v2297, %v2337
      %v2339 = vpop.f32.mrb[0].mxu0
      %2340 = vdwg.mxu0
      %2341 = vmatprep.subr.bf16.mxu0 0
      %2342 = vmatpush1.bf16.msra.mxu0 %v2122
      %2343 = vmatprep.subr.bf16.mxu0 0
      %2344 = vmatpush1.bf16.msra.mxu0 %v2123
      %2345 = vmatprep.subr.bf16.mxu0 0
      %2346 = vmatpush1.bf16.msra.mxu0 %v2124
      %2347 = vmatprep.subr.bf16.mxu0 0
      %2348 = vmatpush1.bf16.msra.mxu0 %v2125
      %2349 = vmatprep.subr.bf16.mxu0 0
      %2350 = vmatpush1.bf16.msra.mxu0 %v2126
      %2351 = vmatprep.subr.bf16.mxu0 0
      %2352 = vmatpush1.bf16.msra.mxu0 %v2127
      %2353 = vmatprep.subr.bf16.mxu0 0
      %2354 = vmatpush1.bf16.msra.mxu0 %v2128
      %2355 = vmatprep.subr.bf16.mxu0 0
      %2356 = vmatpush1.bf16.msra.mxu0 %v2129
      %2357 = vmatprep.subr.bf16.mxu0 0
      %2358 = vmatpush1.bf16.msra.mxu0 %v2130
      %2359 = vmatprep.subr.bf16.mxu0 0
      %2360 = vmatpush1.bf16.msra.mxu0 %v2131
      %2361 = vmatprep.subr.bf16.mxu0 0
      %2362 = vmatpush1.bf16.msra.mxu0 %v2132
      %2363 = vmatprep.subr.bf16.mxu0 0
      %2364 = vmatpush1.bf16.msra.mxu0 %v2133
      %2365 = vmatprep.subr.bf16.mxu0 0
      %2366 = vmatpush1.bf16.msra.mxu0 %v2134
      %2367 = vmatprep.subr.bf16.mxu0 0
      %2368 = vmatpush1.bf16.msra.mxu0 %v2135
      %2369 = vmatprep.subr.bf16.mxu0 0
      %2370 = vmatpush1.bf16.msra.mxu0 %v2136
      %2371 = vmatprep.subr.bf16.mxu0 0
      %2372 = vmatpush1.bf16.msra.mxu0 %v2137
      %2373 = vmatprep.mubr.bf16.mxu0 %v1629
      %2374 = vmatmul.mubr.bf16.gmra.mrb[0].mxu0 %v1628
      %v2375 = vpop.f32.mrb[0].mxu0
      %v2376 = vadd.f32 %v2335, %v2375
      %v2377 = vpop.f32.mrb[0].mxu0
      %v2378 = vpop.f32.mrb[0].mxu0
      %v2379 = vadd.f32 %v2338, %v2378
      %v2380 = vpop.f32.mrb[0].mxu0
      %2381 = vdwg.mxu0
      %2382 = vmatprep.subr.bf16.mxu0 0
      %2383 = vmatpush1.bf16.msra.mxu0 %v2138
      %2384 = vmatprep.subr.bf16.mxu0 0
      %2385 = vmatpush1.bf16.msra.mxu0 %v2139
      %2386 = vmatprep.subr.bf16.mxu0 0
      %2387 = vmatpush1.bf16.msra.mxu0 %v2140
      %2388 = vmatprep.subr.bf16.mxu0 0
      %2389 = vmatpush1.bf16.msra.mxu0 %v2141
      %2390 = vmatprep.subr.bf16.mxu0 0
      %2391 = vmatpush1.bf16.msra.mxu0 %v2142
      %2392 = vmatprep.subr.bf16.mxu0 0
      %2393 = vmatpush1.bf16.msra.mxu0 %v2143
      %2394 = vmatprep.subr.bf16.mxu0 0
      %2395 = vmatpush1.bf16.msra.mxu0 %v2144
      %2396 = vmatprep.subr.bf16.mxu0 0
      %2397 = vmatpush1.bf16.msra.mxu0 %v2145
      %2398 = vmatprep.subr.bf16.mxu0 0
      %2399 = vmatpush1.bf16.msra.mxu0 0
      %2400 = vmatprep.subr.bf16.mxu0 0
      %2401 = vmatpush1.bf16.msra.mxu0 0
      %2402 = vmatprep.subr.bf16.mxu0 0
      %2403 = vmatpush1.bf16.msra.mxu0 0
      %2404 = vmatprep.subr.bf16.mxu0 0
      %2405 = vmatpush1.bf16.msra.mxu0 0
      %2406 = vmatprep.subr.bf16.mxu0 0
      %2407 = vmatpush1.bf16.msra.mxu0 0
      %2408 = vmatprep.subr.bf16.mxu0 0
      %2409 = vmatpush1.bf16.msra.mxu0 0
      %2410 = vmatprep.subr.bf16.mxu0 0
      %2411 = vmatpush1.bf16.msra.mxu0 0
      %2412 = vmatprep.subr.bf16.mxu0 0
      %2413 = vmatpush1.bf16.msra.mxu0 0
      %2414 = vmatprep.mubr.bf16.mxu0 0
      %2415 = vmatmul.mubr.bf16.gmra.mrb[0].mxu0 %v1630
      %v2416 = vpop.f32.mrb[0].mxu0
      %v2417 = vadd.f32 %v2376, %v2416
      %v2418 = vpop.f32.mrb[0].mxu0
      %v2419 = vpop.f32.mrb[0].mxu0
      %v2420 = vadd.f32 %v2379, %v2419
      %v2421 = vpop.f32.mrb[0].mxu0
      %2422 = vdwg.mxu0
      %v2423 = vadd.f32 %v2417, %v1777
      %v2424 = vadd.f32 %v2420, %v1778
      %v2425 = vmax.f32 %v2423, 0.0
      %v2426 = vmax.f32 %v2424, 0.0
      %v2427 = vpack.c.bf16 %v2426, %v2425
      %v2429 = vunpack.c.l.b16 %v2427
      %v2430 = vunpack.c.h.b16 %v2427
      %v2431 = vpack.c.b16 %v2429, %v2429
      %v2432 = vpack.c.b16 %v2430, %v2430
      %2435 = vst [vmem:[%s224] sm:$0xf] %v2431
      %2436 = vst [vmem:[%s224 + $0x4] sm:$0xf] %v2432
      %p2437 = scmp.lt.s32.totalorder %s16, 3
      %s2438 = scalar_select %p2437, %s16, 3
      %s2439 = smul.addr %s2438, 2
      %s2440 = smul.addr %s2439, 4
      %s2441 = scalar_lea.vmem %s5, %s2440
      // Predicated region
      $region41: #{radio_mamba_v2_forward.10} parent=39 // pred_check
        %p2442 = pneg %p144
      $region42: #{radio_mamba_v2_forward.10} parent=39 // pred_check_branch
        %2444 = sbr.rel (%p2442) target = $region44
      $region43: #{radio_mamba_v2_forward.10} parent=39 // pred_region
        _
      $region44: #{radio_mamba_v2_forward.10} parent=39 // pred_fallthru
        _
    $region40: #{radio_mamba_v2_forward.10} parent=5 // pred_fallthru
      _
    %p2445 = scmp.le.s32.totalorder 2, %s11
    // Predicated region
    $region45: #{radio_mamba_v2_forward.10} parent=5 // pred_check
      %p2446 = pneg %p2445
    $region46: #{radio_mamba_v2_forward.10} parent=5 // pred_check_branch
      %2448 = sbr.rel (%p2446) target = $region48
    $region47: #{radio_mamba_v2_forward.10} parent=5 // pred_region
      %s2449 = ssub.s32 %s11, 2
      // Predicated region
      $region49: #{radio_mamba_v2_forward.10} parent=47 // pred_check
        %p2450 = pneg %p150
      $region50: #{radio_mamba_v2_forward.10} parent=47 // pred_check_branch
        %2452 = sbr.rel (%p2450) target = $region52
      $region51: #{radio_mamba_v2_forward.10} parent=47 // pred_region
        %p2453 = scmp.lt.s32.totalorder %s17, 3
        %s2454 = scalar_select %p2453, %s17, 3
        %s2455 = smul.addr %s2454, 2
        %s2456 = smul.addr %s2455, 4
        %s2457 = scalar_lea.vmem %s5, %s2456
      $region52: #{radio_mamba_v2_forward.10} parent=47 // pred_fallthru
        _
    $region48: #{radio_mamba_v2_forward.10} parent=5 // pred_fallthru
      _
  $region6: #{radio_mamba_v2_forward.10} parent=0 // loop_footer
    %s15 = sadd.s32 1, %s11
  $region7: #{radio_mamba_v2_forward.10} parent=0 // loop_footer_branch
    %10 = sbr.rel target = $region3
  $region8: #{radio_mamba_v2_forward.10} parent=0 // loop_exit
    _

// kernel: radio_mamba_v2_forward.11
$region0: #{radio_mamba_v2_forward.11}
  #allocation0 [shape = 'u32[]', space=smem, size = 0x4, offset = 0x4, fixed_abs, tag = 'smem constant byte address 0x4 - core index']
  #allocation1 [shape = 'u32[144,128]{1,0:T(1,128)}', space=vmem, size = 0x12000, scoped, tag = 'internal scratch']
  #allocation2 [shape = 'bf16[16,2304]{1,0:T(16,128)(2,1)}', space=vmem, size = 0x12000, scoped, tag = 'scratch operand']
  #allocation3 [shape = 'f32[1,1]{1,0:T(1,128)S(1)}', space=vmem, size = 0x200, scoped, tag = 'scoped memory for radio_mamba_v2_forward.11']
  %s0 = inlined_call_operand.vmem [shape: bf16[2,32,128], index: 0, kind: input, shape index: {}]
  %s1 = inlined_call_operand.vmem [shape: bf16[2,32,128], index: 1, kind: input, shape index: {}]
  %s2 = inlined_call_operand.vmem [shape: bf16[2304,128], index: 2, kind: input, shape index: {}]
  %s3 = inlined_call_operand.vmem [shape: f32[1,128], index: 3, kind: input, shape index: {}]
  %s4 = inlined_call_operand.vmem [shape: f32[1,128], index: 4, kind: input, shape index: {}]
  %s5 = inlined_call_operand.<no memory space> [shape: f32[1,1], index: 5, kind: input, shape index: {}]
  %s6 = inlined_call_operand.vmem [shape: f32[2,16,1], index: 6, kind: output, shape index: {}]
  %s7 = sld [smem:[#allocation0]]
  $region57: #{radio_mamba_v2_forward.11} parent=0
    _
  %s9 = ssub.s32 1, %s7
  %s10 = scalar_select 0, %s9, %s7
  %v11 = vstv %s5
  %12 = vst [vmem:[#allocation3] sm:$0x1] %v11
  loop: start=0, step=1, limit=4
  $region2: #{radio_mamba_v2_forward.11} parent=0 // loop_pre_header
    _
  $region3: #{radio_mamba_v2_forward.11} parent=0 // loop_header
    %s14 = sphi 0, %s18
    %p15 = scmp.ge.s32.totalorder %s14, 4
    %s24 = sphi 0, %s26
    %s27 = sphi 0, %s24
    %s28 = sphi 0, %s27
    %s44 = sphi 0, %s28
    %s50 = sphi 0, %s52
    %s53 = sphi 0, %s50
    %s54 = sphi 0, %s53
    %s70 = sphi 0, %s54
    %s74 = sphi 0, %s74
    %s76 = sphi 0, %s74
    %s77 = sphi 0, %s76
    %s91 = sphi 0, %s77
    %s95 = sphi 0, %s95
    %s97 = sphi 0, %s95
    %s98 = sphi 0, %s97
    %s112 = sphi 0, %s98
    %s116 = sphi 0, %s116
    %s118 = sphi 0, %s116
    %s119 = sphi 0, %s118
    %s133 = sphi 0, %s119
    %s137 = sphi 0, %s137
    %s139 = sphi 0, %s137
    %s140 = sphi 0, %s139
    %s154 = sphi 0, %s140
    %s160 = sphi 0, %s162
    %s163 = sphi 0, %s160
    %s164 = sphi 0, %s163
    %s180 = sphi 0, %s164
  $region4: #{radio_mamba_v2_forward.11} parent=0 // loop_header_branch
    %17 = sbr.rel (%p15) target = $region8
  $region5: #{radio_mamba_v2_forward.11} parent=0 // loop_body
    %s19 = ssub.s32 %s14, 1
    %s20 = ssub.s32 %s14, 2
    %s21 = sadd.s32 %s14, 1
    %s22 = ssub.s32 %s14, %s21
    %p23 = scmp.eq.s32.totalorder %s22, 0
    %s25 = sadd.s32 %s24, 1
    %s26 = scalar_select %p23, %s24, %s25
    %p29 = pneg %p23
    %p30 = scmp.eq.s32.totalorder %s14, 1
    %p31 = por %p29, %p30
    %p32 = scmp.ne.s32.totalorder %s24, %s27
    %p33 = scmp.eq.s32.totalorder %s14, 0
    %p34 = por %p32, %p33
    %p35 = scmp.ne.s32.totalorder %s24, %s27
    %p36 = scmp.eq.s32.totalorder %s19, 1
    %p37 = por %p35, %p36
    %p38 = scmp.ne.s32.totalorder %s27, %s28
    %p39 = scmp.eq.s32.totalorder %s19, 0
    %p40 = por %p38, %p39
    %p41 = scmp.ne.s32.totalorder %s27, %s28
    %p42 = scmp.eq.s32.totalorder %s20, 1
    %p43 = por %p41, %p42
    %p45 = scmp.ne.s32.totalorder %s28, %s44
    %p46 = scmp.eq.s32.totalorder %s20, 0
    %p47 = por %p45, %p46
    %s48 = ssub.s32 %s14, %s21
    %p49 = scmp.eq.s32.totalorder %s48, 0
    %s51 = sadd.s32 %s50, 1
    %s52 = scalar_select %p49, %s50, %s51
    %p55 = pneg %p49
    %p56 = scmp.eq.s32.totalorder %s14, 1
    %p57 = por %p55, %p56
    %p58 = scmp.ne.s32.totalorder %s50, %s53
    %p59 = scmp.eq.s32.totalorder %s14, 0
    %p60 = por %p58, %p59
    %p61 = scmp.ne.s32.totalorder %s50, %s53
    %p62 = scmp.eq.s32.totalorder %s19, 1
    %p63 = por %p61, %p62
    %p64 = scmp.ne.s32.totalorder %s53, %s54
    %p65 = scmp.eq.s32.totalorder %s19, 0
    %p66 = por %p64, %p65
    %p67 = scmp.ne.s32.totalorder %s53, %s54
    %p68 = scmp.eq.s32.totalorder %s20, 1
    %p69 = por %p67, %p68
    %p71 = scmp.ne.s32.totalorder %s54, %s70
    %p72 = scmp.eq.s32.totalorder %s20, 0
    %p73 = por %p71, %p72
    %s75 = sadd.s32 %s74, 1
    %p78 = scmp.eq.s32.totalorder %s14, 1
    %p79 = scmp.ne.s32.totalorder %s74, %s76
    %p80 = scmp.eq.s32.totalorder %s14, 0
    %p81 = por %p79, %p80
    %p82 = scmp.ne.s32.totalorder %s74, %s76
    %p83 = scmp.eq.s32.totalorder %s19, 1
    %p84 = por %p82, %p83
    %p85 = scmp.ne.s32.totalorder %s76, %s77
    %p86 = scmp.eq.s32.totalorder %s19, 0
    %p87 = por %p85, %p86
    %p88 = scmp.ne.s32.totalorder %s76, %s77
    %p89 = scmp.eq.s32.totalorder %s20, 1
    %p90 = por %p88, %p89
    %p92 = scmp.ne.s32.totalorder %s77, %s91
    %p93 = scmp.eq.s32.totalorder %s20, 0
    %p94 = por %p92, %p93
    %s96 = sadd.s32 %s95, 1
    %p99 = scmp.eq.s32.totalorder %s14, 1
    %p100 = scmp.ne.s32.totalorder %s95, %s97
    %p101 = scmp.eq.s32.totalorder %s14, 0
    %p102 = por %p100, %p101
    %p103 = scmp.ne.s32.totalorder %s95, %s97
    %p104 = scmp.eq.s32.totalorder %s19, 1
    %p105 = por %p103, %p104
    %p106 = scmp.ne.s32.totalorder %s97, %s98
    %p107 = scmp.eq.s32.totalorder %s19, 0
    %p108 = por %p106, %p107
    %p109 = scmp.ne.s32.totalorder %s97, %s98
    %p110 = scmp.eq.s32.totalorder %s20, 1
    %p111 = por %p109, %p110
    %p113 = scmp.ne.s32.totalorder %s98, %s112
    %p114 = scmp.eq.s32.totalorder %s20, 0
    %p115 = por %p113, %p114
    %s117 = sadd.s32 %s116, 1
    %p120 = scmp.eq.s32.totalorder %s14, 1
    %p121 = scmp.ne.s32.totalorder %s116, %s118
    %p122 = scmp.eq.s32.totalorder %s14, 0
    %p123 = por %p121, %p122
    %p124 = scmp.ne.s32.totalorder %s116, %s118
    %p125 = scmp.eq.s32.totalorder %s19, 1
    %p126 = por %p124, %p125
    %p127 = scmp.ne.s32.totalorder %s118, %s119
    %p128 = scmp.eq.s32.totalorder %s19, 0
    %p129 = por %p127, %p128
    %p130 = scmp.ne.s32.totalorder %s118, %s119
    %p131 = scmp.eq.s32.totalorder %s20, 1
    %p132 = por %p130, %p131
    %p134 = scmp.ne.s32.totalorder %s119, %s133
    %p135 = scmp.eq.s32.totalorder %s20, 0
    %p136 = por %p134, %p135
    %s138 = sadd.s32 %s137, 1
    %p141 = scmp.eq.s32.totalorder %s14, 1
    %p142 = scmp.ne.s32.totalorder %s137, %s139
    %p143 = scmp.eq.s32.totalorder %s14, 0
    %p144 = por %p142, %p143
    %p145 = scmp.ne.s32.totalorder %s137, %s139
    %p146 = scmp.eq.s32.totalorder %s19, 1
    %p147 = por %p145, %p146
    %p148 = scmp.ne.s32.totalorder %s139, %s140
    %p149 = scmp.eq.s32.totalorder %s19, 0
    %p150 = por %p148, %p149
    %p151 = scmp.ne.s32.totalorder %s139, %s140
    %p152 = scmp.eq.s32.totalorder %s20, 1
    %p153 = por %p151, %p152
    %p155 = scmp.ne.s32.totalorder %s140, %s154
    %p156 = scmp.eq.s32.totalorder %s20, 0
    %p157 = por %p155, %p156
    %s158 = ssub.s32 %s14, %s21
    %p159 = scmp.eq.s32.totalorder %s158, 0
    %s161 = sadd.s32 %s160, 1
    %s162 = scalar_select %p159, %s160, %s161
    %p165 = pneg %p159
    %p166 = scmp.eq.s32.totalorder %s14, 1
    %p167 = por %p165, %p166
    %p168 = scmp.ne.s32.totalorder %s160, %s163
    %p169 = scmp.eq.s32.totalorder %s14, 0
    %p170 = por %p168, %p169
    %p171 = scmp.ne.s32.totalorder %s160, %s163
    %p172 = scmp.eq.s32.totalorder %s19, 1
    %p173 = por %p171, %p172
    %p174 = scmp.ne.s32.totalorder %s163, %s164
    %p175 = scmp.eq.s32.totalorder %s19, 0
    %p176 = por %p174, %p175
    %p177 = scmp.ne.s32.totalorder %s163, %s164
    %p178 = scmp.eq.s32.totalorder %s20, 1
    %p179 = por %p177, %p178
    %p181 = scmp.ne.s32.totalorder %s164, %s180
    %p182 = scmp.eq.s32.totalorder %s20, 0
    %p183 = por %p181, %p182
    %p184 = scmp.le.s32.totalorder 1, %s14
    %p185 = scmp.lt.s32.totalorder %s14, 3
    %p186 = pnand %p184, %p185
    %p187 = pneg %p186
    // Predicated region
    $region9: #{radio_mamba_v2_forward.11} parent=5 // pred_check
      _
    $region10: #{radio_mamba_v2_forward.11} parent=5 // pred_check_branch
      %189 = sbr.rel (%p186) target = $region12
    $region11: #{radio_mamba_v2_forward.11} parent=5 // pred_region
      %s190 = ssub.s32 %s14, 1
      // Predicated region
      $region13: #{radio_mamba_v2_forward.11} parent=11 // pred_check
        %p191 = pneg %p87
      $region14: #{radio_mamba_v2_forward.11} parent=11 // pred_check_branch
        %193 = sbr.rel (%p191) target = $region16
      $region15: #{radio_mamba_v2_forward.11} parent=11 // pred_region
        _
      $region16: #{radio_mamba_v2_forward.11} parent=11 // pred_fallthru
        _
      // Predicated region
      $region17: #{radio_mamba_v2_forward.11} parent=11 // pred_check
        %p194 = pneg %p108
      $region18: #{radio_mamba_v2_forward.11} parent=11 // pred_check_branch
        %196 = sbr.rel (%p194) target = $region20
      $region19: #{radio_mamba_v2_forward.11} parent=11 // pred_region
        _
      $region20: #{radio_mamba_v2_forward.11} parent=11 // pred_fallthru
        _
      // Predicated region
      $region21: #{radio_mamba_v2_forward.11} parent=11 // pred_check
        %p197 = pneg %p129
      $region22: #{radio_mamba_v2_forward.11} parent=11 // pred_check_branch
        %199 = sbr.rel (%p197) target = $region24
      $region23: #{radio_mamba_v2_forward.11} parent=11 // pred_region
        _
      $region24: #{radio_mamba_v2_forward.11} parent=11 // pred_fallthru
        _
      // Predicated region
      $region25: #{radio_mamba_v2_forward.11} parent=11 // pred_check
        %p200 = pneg %p150
      $region26: #{radio_mamba_v2_forward.11} parent=11 // pred_check_branch
        %202 = sbr.rel (%p200) target = $region28
      $region27: #{radio_mamba_v2_forward.11} parent=11 // pred_region
        _
      $region28: #{radio_mamba_v2_forward.11} parent=11 // pred_fallthru
        _
    $region12: #{radio_mamba_v2_forward.11} parent=5 // pred_fallthru
      _
    %p203 = scmp.lt.s32.totalorder %s14, 2
    // Predicated region
    $region29: #{radio_mamba_v2_forward.11} parent=5 // pred_check
      %p204 = pneg %p203
    $region30: #{radio_mamba_v2_forward.11} parent=5 // pred_check_branch
      %206 = sbr.rel (%p204) target = $region32
    $region31: #{radio_mamba_v2_forward.11} parent=5 // pred_region
      // Predicated region
      $region33: #{radio_mamba_v2_forward.11} parent=31 // pred_check
        %p207 = pneg %p34
      $region34: #{radio_mamba_v2_forward.11} parent=31 // pred_check_branch
        %209 = sbr.rel (%p207) target = $region36
      $region35: #{radio_mamba_v2_forward.11} parent=31 // pred_region
        %p210 = scmp.lt.s32.totalorder %s14, 1
        %s211 = scalar_select %p210, %s14, 1
        %s212 = smul.addr %s211, 4
        %s213 = smul.addr %s212, 4
        %s214 = scalar_lea.vmem %s0, %s213
      $region36: #{radio_mamba_v2_forward.11} parent=31 // pred_fallthru
        _
      // Predicated region
      $region37: #{radio_mamba_v2_forward.11} parent=31 // pred_check
        %p215 = pneg %p60
      $region38: #{radio_mamba_v2_forward.11} parent=31 // pred_check_branch
        %217 = sbr.rel (%p215) target = $region40
      $region39: #{radio_mamba_v2_forward.11} parent=31 // pred_region
        %p218 = scmp.lt.s32.totalorder %s14, 1
        %s219 = scalar_select %p218, %s14, 1
        %s220 = smul.addr %s219, 4
        %s221 = smul.addr %s220, 4
        %s222 = scalar_lea.vmem %s1, %s221
      $region40: #{radio_mamba_v2_forward.11} parent=31 // pred_fallthru
        _
    $region32: #{radio_mamba_v2_forward.11} parent=5 // pred_fallthru
      _
    %p223 = scmp.le.s32.totalorder 1, %s14
    %p224 = scmp.lt.s32.totalorder %s14, 3
    %p225 = pnand %p223, %p224
    %p226 = pneg %p225
    // Predicated region
    $region41: #{radio_mamba_v2_forward.11} parent=5 // pred_check
      _
    $region42: #{radio_mamba_v2_forward.11} parent=5 // pred_check_branch
      %228 = sbr.rel (%p225) target = $region44
    $region43: #{radio_mamba_v2_forward.11} parent=5 // pred_region
      %s229 = ssub.s32 %s14, 1
      %p230 = scmp.lt.s32.totalorder %s19, 1
      %s231 = scalar_select %p230, %s19, 1
      %s232 = smul.addr %s231, 4
      %s233 = smul.addr %s232, 4
      %s234 = scalar_lea.vmem %s0, %s233
      %p235 = pneg %p40
      %p236 = pneg %p37
      %p237 = scmp.lt.s32.totalorder %s19, 1
      %s238 = scalar_select %p237, %s19, 1
      %s239 = smul.addr %s238, 4
      %s240 = smul.addr %s239, 4
      %s241 = scalar_lea.vmem %s1, %s240
      %p242 = pneg %p66
      %p243 = pneg %p63
      %p244 = pneg %p87
      %p245 = pneg %p84
      %p246 = pneg %p108
      %p247 = pneg %p105
      %p248 = pneg %p129
      %p249 = pneg %p126
      %p250 = pneg %p150
      %p251 = pneg %p147
      %p252 = pneg %p176
      %p253 = pneg %p173
      %p254 = scmp.lt.s32.totalorder %s19, 1
      %s255 = scalar_select %p254, %s19, 1
      %s256 = smul.addr %s255, 2
      %s257 = smul.addr %s256, 8
      %s258 = scalar_lea.vmem %s6, %s257
      %p259 = scmp.lt.s32.totalorder %s19, 1
      %s260 = scalar_select %p259, %s19, 1
      %s261 = smul.addr %s260, 4
      %s262 = smul.addr %s261, 4
      %s263 = scalar_lea.vmem %s0, %s262
      %p264 = scmp.lt.s32.totalorder %s19, 1
      %s265 = scalar_select %p264, %s19, 1
      %s266 = smul.addr %s265, 4
      %s267 = smul.addr %s266, 4
      %s268 = scalar_lea.vmem %s1, %s267
      %p269 = scmp.lt.s32.totalorder %s19, 1
      %s270 = scalar_select %p269, %s19, 1
      %s271 = smul.addr %s270, 2
      %s272 = smul.addr %s271, 8
      %s273 = scalar_lea.vmem %s6, %s272
      %v275 = vlaneseq
      %v276 = vshrl.u32 %v275, 7
      %v277 = vadd.s32 %v276, 8
      %vm278 = vcmp.lt.s32.totalorder %v276, 0
      %v279 = vsub.s32 0, %v276
      %v280 = vsel %vm278, %v279, %v276
      %v281 = vshrl.u32 %v280, 2
      %v282 = vand.u32 %v280, 3
      %v283 = vsub.s32 0, %v282
      %v284 = vsel %vm278, %v283, %v282
      %vm285 = vcmp.lt.s32.totalorder %v277, 0
      %v286 = vsub.s32 0, %v277
      %v287 = vsel %vm285, %v286, %v277
      %v288 = vshrl.u32 %v287, 2
      %v289 = vand.u32 %v287, 3
      %v290 = vsub.s32 0, %v289
      %v291 = vsel %vm285, %v290, %v289
      %vm292 = vcmp.ne.s32.totalorder %v284, 0
      %vm293 = vcmp.ne.s32.totalorder %v291, 0
      %vm294 = vcmp.lt.s32.totalorder %v284, 0
      %vm295 = vcmp.lt.s32.totalorder %v291, 0
      %vm296 = vmand %vm294, %vm292
      %vm297 = vmand %vm295, %vm293
      %v298 = vadd.s32 %v284, 4
      %v299 = vadd.s32 %v291, 4
      %v300 = vsel %vm296, %v298, %v284
      %v301 = vsel %vm297, %v299, %v291
      %vm302 = vcmp.ne.s32.totalorder %v300, 0
      %vm303 = vcmp.ne.s32.totalorder %v301, 0
      %v304 = vsel %vm302, 1, 0
      %v305 = vsel %vm303, 1, 0
      %v306 = vcvt.s32.f32 %v304
      %v307 = vcvt.s32.f32 %v305
      %v308 = vpack.c.bf16 %v307, %v306
      %vm309 = vcmp.ne.s32.totalorder %v300, 3
      %vm310 = vcmp.ne.s32.totalorder %v301, 3
      %v311 = vsel %vm309, 1, 0
      %v312 = vsel %vm310, 1, 0
      %v313 = vcvt.s32.f32 %v311
      %v314 = vcvt.s32.f32 %v312
      %v315 = vpack.c.bf16 %v314, %v313
      %v316 = vld [vmem:[%s263] sm:$0xe]
      %v317 = vld [vmem:[%s263 + $0x4] sm:$0xf]
      %v318 = vld [vmem:[%s263 + $0x8] sm:$0x3]
      %v321 = vunpack.c.l.s4 839922192
      %v322 = vunpack.c.0.s8 %v321
      %v323 = vlaneseq
      %v324 = vshrl.u32 %v323, 7
      %v325 = vsub.s32 %v322, %v324
      %v326 = vrot.slane %v308, %v325
      %v328 = vunpack.c.l.s4 1985246804
      %v329 = vunpack.c.0.s8 %v328
      %v330 = vlaneseq
      %v331 = vshrl.u32 %v330, 7
      %v332 = vsub.s32 %v329, %v331
      %v333 = vrot.slane %v308, %v332
      %vm334 = vsmask.f32 1280
      %vm335 = vsmask.f32 5392
      %vm336 = vmor %vm334, %vm335
      %v338 = vshrl.u32 %v326, 16
      %v340 = vrot.slane %v338, 6
      %v341 = vshll.u32 %v326, 16
      %v343 = vrot.slane %v341, 7
      %v344 = vor.u32 %v340, %v343
      %v345 = vrot.slane %v344, 4
      %v347 = vshrl.u32 %v333, 16
      %v349 = vrot.slane %v347, 6
      %v350 = vshll.u32 %v333, 16
      %v352 = vrot.slane %v350, 7
      %v353 = vor.u32 %v349, %v352
      %v354 = vsel %vm336, %v345, %v353
      %v355 = vrot.slane %v353, 4
      %v359 = vmul.bf16 %v316, %v344
      %v360 = vmul.bf16 %v317, %v354
      %v361 = vmul.bf16 %v318, %v355
      %v365 = vunpack.c.l.b16 %v359
      %v366 = vunpack.c.l.b16 %v360
      %v367 = vunpack.c.l.b16 %v361
      %v368 = vpack.c.b16 %v366, %v365
      %v369 = vpack.c.b16 %v367, %v367
      %vm370 = vsmask.f32 6400
      %v372 = vshrl.u32 %v368, 16
      %v374 = vrot.slane %v372, 1
      %v375 = vshll.u32 %v368, 16
      %v377 = vrot.slane %v375, 2
      %v378 = vor.u32 %v374, %v377
      %v380 = vshrl.u32 %v369, 16
      %v382 = vrot.slane %v380, 1
      %v383 = vshll.u32 %v369, 16
      %v385 = vrot.slane %v383, 2
      %v386 = vor.u32 %v382, %v385
      %v387 = vsel %vm370, %v378, %v386
      %389 = vst [vmem:[#allocation2] sm:$0xff] %v387
      %v390 = vld [vmem:[%s263] sm:$0xc]
      %v391 = vld [vmem:[%s263 + $0x4] sm:$0xf]
      %v392 = vld [vmem:[%s263 + $0x8] sm:$0x3]
      %v396 = vunpack.c.l.b16 %v390
      %v397 = vunpack.c.l.b16 %v391
      %v398 = vunpack.c.l.b16 %v392
      %v399 = vpack.c.b16 %v397, %v396
      %v400 = vpack.c.b16 %v398, %v398
      %vm401 = vcmask 1045504
      %v402 = vrot.slane %v399, 2
      %v403 = vrot.slane %v400, 2
      %v404 = vsel %vm401, %v402, %v403
      %406 = vst [vmem:[#allocation2 + $0x8] sm:$0xff] %v404
      %v407 = vld [vmem:[%s263] sm:$0xc]
      %v408 = vld [vmem:[%s263 + $0x4] sm:$0xf]
      %v409 = vld [vmem:[%s263 + $0x8] sm:$0x7]
      %v412 = vunpack.c.l.s4 839922192
      %v413 = vunpack.c.0.s8 %v412
      %v414 = vlaneseq
      %v415 = vshrl.u32 %v414, 7
      %v416 = vsub.s32 %v413, %v415
      %v417 = vrot.slane %v315, %v416
      %v419 = vunpack.c.l.s4 1985246804
      %v420 = vunpack.c.0.s8 %v419
      %v421 = vlaneseq
      %v422 = vshrl.u32 %v421, 7
      %v423 = vsub.s32 %v420, %v422
      %v424 = vrot.slane %v315, %v423
      %vm425 = vsmask.f32 2304
      %vm426 = vsmask.f32 6416
      %vm427 = vmor %vm425, %vm426
      %v429 = vshrl.u32 %v417, 16
      %v431 = vrot.slane %v429, 5
      %v432 = vshll.u32 %v417, 16
      %v434 = vrot.slane %v432, 6
      %v435 = vor.u32 %v431, %v434
      %v436 = vrot.slane %v435, 4
      %v438 = vshrl.u32 %v424, 16
      %v440 = vrot.slane %v438, 5
      %v441 = vshll.u32 %v424, 16
      %v443 = vrot.slane %v441, 6
      %v444 = vor.u32 %v440, %v443
      %v445 = vsel %vm427, %v436, %v444
      %v446 = vrot.slane %v444, 4
      %v450 = vmul.bf16 %v407, %v435
      %v451 = vmul.bf16 %v408, %v445
      %v452 = vmul.bf16 %v409, %v446
      %v456 = vunpack.c.l.b16 %v450
      %v457 = vunpack.c.l.b16 %v451
      %v458 = vunpack.c.l.b16 %v452
      %v459 = vpack.c.b16 %v457, %v456
      %v460 = vpack.c.b16 %v458, %v458
      %vm461 = vsmask.f32 5376
      %v463 = vshrl.u32 %v459, 16
      %v465 = vrot.slane %v463, 2
      %v466 = vshll.u32 %v459, 16
      %v468 = vrot.slane %v466, 3
      %v469 = vor.u32 %v465, %v468
      %v471 = vshrl.u32 %v460, 16
      %v473 = vrot.slane %v471, 2
      %v474 = vshll.u32 %v460, 16
      %v476 = vrot.slane %v474, 3
      %v477 = vor.u32 %v473, %v476
      %v478 = vsel %vm461, %v469, %v477
      %480 = vst [vmem:[#allocation2 + $0x10] sm:$0xff] %v478
      %v481 = vld [vmem:[%s263] sm:$0x8]
      %v482 = vld [vmem:[%s263 + $0x4] sm:$0xf]
      %v483 = vld [vmem:[%s263 + $0x8] sm:$0xf]
      %vm484 = vsmask.f32 3328
      %vm485 = vsmask.f32 7440
      %vm486 = vmor %vm484, %vm485
      %v487 = vrot.slane %v341, 5
      %v488 = vrot.slane %v338, 4
      %v489 = vor.u32 %v488, %v487
      %v490 = vrot.slane %v489, 4
      %v491 = vrot.slane %v350, 5
      %v492 = vsel %vm486, %v490, %v491
      %v493 = vrot.slane %v347, 4
      %v494 = vor.u32 %v493, %v491
      %v495 = vrot.slane %v494, 4
      %v499 = vmul.bf16 %v481, %v487
      %v500 = vmul.bf16 %v482, %v492
      %v501 = vmul.bf16 %v483, %v495
      %v505 = vunpack.c.l.b16 %v499
      %v506 = vunpack.c.l.b16 %v500
      %v507 = vunpack.c.l.b16 %v501
      %v508 = vpack.c.b16 %v506, %v505
      %v509 = vpack.c.b16 %v507, %v507
      %vm510 = vsmask.f32 4352
      %v512 = vshrl.u32 %v508, 16
      %v514 = vrot.slane %v512, 3
      %v515 = vshll.u32 %v508, 16
      %v517 = vrot.slane %v515, 4
      %v518 = vor.u32 %v514, %v517
      %v520 = vshrl.u32 %v509, 16
      %v522 = vrot.slane %v520, 3
      %v523 = vshll.u32 %v509, 16
      %v525 = vrot.slane %v523, 4
      %v526 = vor.u32 %v522, %v525
      %v527 = vsel %vm510, %v518, %v526
      %529 = vst [vmem:[#allocation2 + $0x18] sm:$0xff] %v527
      %v530 = vld [vmem:[%s263 + $0x4] sm:$0xf]
      %v531 = vld [vmem:[%s263 + $0x8] sm:$0xf]
      %v534 = vunpack.c.l.b16 %v530
      %v535 = vunpack.c.l.b16 %v531
      %v536 = vpack.c.b16 %v535, %v534
      %538 = vst [vmem:[#allocation2 + $0x20] sm:$0xff] %v536
      %v539 = vld [vmem:[%s263 + $0x4] sm:$0xf]
      %v540 = vld [vmem:[%s263 + $0x8] sm:$0xf]
      %v541 = vld [vmem:[%s263 + $0xc] sm:$0x1]
      %vm542 = vsmask.f32 256
      %vm543 = vsmask.f32 4368
      %vm544 = vmor %vm542, %vm543
      %v545 = vrot.slane %v429, 7
      %v546 = vor.u32 %v545, %v432
      %v547 = vrot.slane %v545, 4
      %v548 = vrot.slane %v438, 7
      %v549 = vor.u32 %v548, %v441
      %v550 = vsel %vm544, %v547, %v549
      %v551 = vrot.slane %v548, 4
      %v555 = vmul.bf16 %v539, %v546
      %v556 = vmul.bf16 %v540, %v550
      %v557 = vmul.bf16 %v541, %v551
      %v561 = vunpack.c.l.b16 %v555
      %v562 = vunpack.c.l.b16 %v556
      %v563 = vunpack.c.l.b16 %v557
      %v564 = vpack.c.b16 %v562, %v561
      %v565 = vpack.c.b16 %v563, %v563
      %vm566 = vsmask.f32 7424
      %v568 = vshrl.u32 %v564, 16
      %v570 = vshll.u32 %v564, 16
      %v572 = vrot.slane %v570, 1
      %v573 = vor.u32 %v568, %v572
      %v575 = vshll.u32 %v565, 16
      %v577 = vrot.slane %v575, 1
      %v578 = vsel %vm566, %v573, %v577
      %580 = vst [vmem:[#allocation2 + $0x28] sm:$0xff] %v578
      %v581 = vld [vmem:[%s263 + $0x4] sm:$0xe]
      %v582 = vld [vmem:[%s263 + $0x8] sm:$0xf]
      %v583 = vld [vmem:[%s263 + $0xc] sm:$0x3]
      %v584 = vmul.bf16 %v581, %v344
      %v585 = vmul.bf16 %v582, %v354
      %v586 = vmul.bf16 %v583, %v355
      %v590 = vunpack.c.l.b16 %v584
      %v591 = vunpack.c.l.b16 %v585
      %v592 = vunpack.c.l.b16 %v586
      %v593 = vpack.c.b16 %v591, %v590
      %v594 = vpack.c.b16 %v592, %v592
      %v596 = vshrl.u32 %v593, 16
      %v598 = vrot.slane %v596, 1
      %v599 = vshll.u32 %v593, 16
      %v601 = vrot.slane %v599, 2
      %v602 = vor.u32 %v598, %v601
      %v604 = vshrl.u32 %v594, 16
      %v606 = vrot.slane %v604, 1
      %v607 = vshll.u32 %v594, 16
      %v609 = vrot.slane %v607, 2
      %v610 = vor.u32 %v606, %v609
      %v611 = vsel %vm370, %v602, %v610
      %613 = vst [vmem:[#allocation2 + $0x30] sm:$0xff] %v611
      %v614 = vld [vmem:[%s263 + $0x4] sm:$0xc]
      %v615 = vld [vmem:[%s263 + $0x8] sm:$0xf]
      %v616 = vld [vmem:[%s263 + $0xc] sm:$0x3]
      %v620 = vunpack.c.l.b16 %v614
      %v621 = vunpack.c.l.b16 %v615
      %v622 = vunpack.c.l.b16 %v616
      %v623 = vpack.c.b16 %v621, %v620
      %v624 = vpack.c.b16 %v622, %v622
      %v625 = vrot.slane %v623, 2
      %v626 = vrot.slane %v624, 2
      %v627 = vsel %vm401, %v625, %v626
      %629 = vst [vmem:[#allocation2 + $0x38] sm:$0xff] %v627
      %v630 = vld [vmem:[%s263 + $0x4] sm:$0xc]
      %v631 = vld [vmem:[%s263 + $0x8] sm:$0xf]
      %v632 = vld [vmem:[%s263 + $0xc] sm:$0x7]
      %v633 = vmul.bf16 %v630, %v435
      %v634 = vmul.bf16 %v631, %v445
      %v635 = vmul.bf16 %v632, %v446
      %v639 = vunpack.c.l.b16 %v633
      %v640 = vunpack.c.l.b16 %v634
      %v641 = vunpack.c.l.b16 %v635
      %v642 = vpack.c.b16 %v640, %v639
      %v643 = vpack.c.b16 %v641, %v641
      %v645 = vshrl.u32 %v642, 16
      %v647 = vrot.slane %v645, 2
      %v648 = vshll.u32 %v642, 16
      %v650 = vrot.slane %v648, 3
      %v651 = vor.u32 %v647, %v650
      %v653 = vshrl.u32 %v643, 16
      %v655 = vrot.slane %v653, 2
      %v656 = vshll.u32 %v643, 16
      %v658 = vrot.slane %v656, 3
      %v659 = vor.u32 %v655, %v658
      %v660 = vsel %vm461, %v651, %v659
      %662 = vst [vmem:[#allocation2 + $0x40] sm:$0xff] %v660
      %v663 = vld [vmem:[%s268] sm:$0xe]
      %v664 = vld [vmem:[%s268 + $0x4] sm:$0xf]
      %v665 = vld [vmem:[%s268 + $0x8] sm:$0x3]
      %v666 = vmul.bf16 %v663, %v344
      %v667 = vmul.bf16 %v664, %v354
      %v668 = vmul.bf16 %v665, %v355
      %v672 = vunpack.c.l.b16 %v666
      %v673 = vunpack.c.l.b16 %v667
      %v674 = vunpack.c.l.b16 %v668
      %v675 = vpack.c.b16 %v673, %v672
      %v676 = vpack.c.b16 %v674, %v674
      %v678 = vshrl.u32 %v675, 16
      %v680 = vrot.slane %v678, 1
      %v681 = vshll.u32 %v675, 16
      %v683 = vrot.slane %v681, 2
      %v684 = vor.u32 %v680, %v683
      %v686 = vshrl.u32 %v676, 16
      %v688 = vrot.slane %v686, 1
      %v689 = vshll.u32 %v676, 16
      %v691 = vrot.slane %v689, 2
      %v692 = vor.u32 %v688, %v691
      %v693 = vsel %vm370, %v684, %v692
      %695 = vst [vmem:[#allocation2 + $0x48] sm:$0xff] %v693
      %v696 = vld [vmem:[%s268] sm:$0xc]
      %v697 = vld [vmem:[%s268 + $0x4] sm:$0xf]
      %v698 = vld [vmem:[%s268 + $0x8] sm:$0x3]
      %v702 = vunpack.c.l.b16 %v696
      %v703 = vunpack.c.l.b16 %v697
      %v704 = vunpack.c.l.b16 %v698
      %v705 = vpack.c.b16 %v703, %v702
      %v706 = vpack.c.b16 %v704, %v704
      %v707 = vrot.slane %v705, 2
      %v708 = vrot.slane %v706, 2
      %v709 = vsel %vm401, %v707, %v708
      %711 = vst [vmem:[#allocation2 + $0x50] sm:$0xff] %v709
      %v712 = vld [vmem:[%s268] sm:$0xc]
      %v713 = vld [vmem:[%s268 + $0x4] sm:$0xf]
      %v714 = vld [vmem:[%s268 + $0x8] sm:$0x7]
      %v715 = vmul.bf16 %v712, %v435
      %v716 = vmul.bf16 %v713, %v445
      %v717 = vmul.bf16 %v714, %v446
      %v721 = vunpack.c.l.b16 %v715
      %v722 = vunpack.c.l.b16 %v716
      %v723 = vunpack.c.l.b16 %v717
      %v724 = vpack.c.b16 %v722, %v721
      %v725 = vpack.c.b16 %v723, %v723
      %v727 = vshrl.u32 %v724, 16
      %v729 = vrot.slane %v727, 2
      %v730 = vshll.u32 %v724, 16
      %v732 = vrot.slane %v730, 3
      %v733 = vor.u32 %v729, %v732
      %v735 = vshrl.u32 %v725, 16
      %v737 = vrot.slane %v735, 2
      %v738 = vshll.u32 %v725, 16
      %v740 = vrot.slane %v738, 3
      %v741 = vor.u32 %v737, %v740
      %v742 = vsel %vm461, %v733, %v741
      %744 = vst [vmem:[#allocation2 + $0x58] sm:$0xff] %v742
      %v745 = vld [vmem:[%s268] sm:$0x8]
      %v746 = vld [vmem:[%s268 + $0x4] sm:$0xf]
      %v747 = vld [vmem:[%s268 + $0x8] sm:$0xf]
      %v748 = vmul.bf16 %v745, %v487
      %v749 = vmul.bf16 %v746, %v492
      %v750 = vmul.bf16 %v747, %v495
      %v754 = vunpack.c.l.b16 %v748
      %v755 = vunpack.c.l.b16 %v749
      %v756 = vunpack.c.l.b16 %v750
      %v757 = vpack.c.b16 %v755, %v754
      %v758 = vpack.c.b16 %v756, %v756
      %v760 = vshrl.u32 %v757, 16
      %v762 = vrot.slane %v760, 3
      %v763 = vshll.u32 %v757, 16
      %v765 = vrot.slane %v763, 4
      %v766 = vor.u32 %v762, %v765
      %v768 = vshrl.u32 %v758, 16
      %v770 = vrot.slane %v768, 3
      %v771 = vshll.u32 %v758, 16
      %v773 = vrot.slane %v771, 4
      %v774 = vor.u32 %v770, %v773
      %v775 = vsel %vm510, %v766, %v774
      %777 = vst [vmem:[#allocation2 + $0x60] sm:$0xff] %v775
      %v778 = vld [vmem:[%s268 + $0x4] sm:$0xf]
      %v779 = vld [vmem:[%s268 + $0x8] sm:$0xf]
      %v782 = vunpack.c.l.b16 %v778
      %v783 = vunpack.c.l.b16 %v779
      %v784 = vpack.c.b16 %v783, %v782
      %786 = vst [vmem:[#allocation2 + $0x68] sm:$0xff] %v784
      %v787 = vld [vmem:[%s268 + $0x4] sm:$0xf]
      %v788 = vld [vmem:[%s268 + $0x8] sm:$0xf]
      %v789 = vld [vmem:[%s268 + $0xc] sm:$0x1]
      %v790 = vmul.bf16 %v787, %v546
      %v791 = vmul.bf16 %v788, %v550
      %v792 = vmul.bf16 %v789, %v551
      %v796 = vunpack.c.l.b16 %v790
      %v797 = vunpack.c.l.b16 %v791
      %v798 = vunpack.c.l.b16 %v792
      %v799 = vpack.c.b16 %v797, %v796
      %v800 = vpack.c.b16 %v798, %v798
      %v802 = vshrl.u32 %v799, 16
      %v804 = vshll.u32 %v799, 16
      %v806 = vrot.slane %v804, 1
      %v807 = vor.u32 %v802, %v806
      %v809 = vshll.u32 %v800, 16
      %v811 = vrot.slane %v809, 1
      %v812 = vsel %vm566, %v807, %v811
      %814 = vst [vmem:[#allocation2 + $0x70] sm:$0xff] %v812
      %v815 = vld [vmem:[%s268 + $0x4] sm:$0xe]
      %v816 = vld [vmem:[%s268 + $0x8] sm:$0xf]
      %v817 = vld [vmem:[%s268 + $0xc] sm:$0x3]
      %v818 = vmul.bf16 %v815, %v344
      %v819 = vmul.bf16 %v816, %v354
      %v820 = vmul.bf16 %v817, %v355
      %v824 = vunpack.c.l.b16 %v818
      %v825 = vunpack.c.l.b16 %v819
      %v826 = vunpack.c.l.b16 %v820
      %v827 = vpack.c.b16 %v825, %v824
      %v828 = vpack.c.b16 %v826, %v826
      %v830 = vshrl.u32 %v827, 16
      %v832 = vrot.slane %v830, 1
      %v833 = vshll.u32 %v827, 16
      %v835 = vrot.slane %v833, 2
      %v836 = vor.u32 %v832, %v835
      %v838 = vshrl.u32 %v828, 16
      %v840 = vrot.slane %v838, 1
      %v841 = vshll.u32 %v828, 16
      %v843 = vrot.slane %v841, 2
      %v844 = vor.u32 %v840, %v843
      %v845 = vsel %vm370, %v836, %v844
      %847 = vst [vmem:[#allocation2 + $0x78] sm:$0xff] %v845
      %v848 = vld [vmem:[%s268 + $0x4] sm:$0xc]
      %v849 = vld [vmem:[%s268 + $0x8] sm:$0xf]
      %v850 = vld [vmem:[%s268 + $0xc] sm:$0x3]
      %v854 = vunpack.c.l.b16 %v848
      %v855 = vunpack.c.l.b16 %v849
      %v856 = vunpack.c.l.b16 %v850
      %v857 = vpack.c.b16 %v855, %v854
      %v858 = vpack.c.b16 %v856, %v856
      %v859 = vrot.slane %v857, 2
      %v860 = vrot.slane %v858, 2
      %v861 = vsel %vm401, %v859, %v860
      %863 = vst [vmem:[#allocation2 + $0x80] sm:$0xff] %v861
      %v864 = vld [vmem:[%s268 + $0x4] sm:$0xc]
      %v865 = vld [vmem:[%s268 + $0x8] sm:$0xf]
      %v866 = vld [vmem:[%s268 + $0xc] sm:$0x7]
      %v867 = vmul.bf16 %v864, %v435
      %v868 = vmul.bf16 %v865, %v445
      %v869 = vmul.bf16 %v866, %v446
      %v873 = vunpack.c.l.b16 %v867
      %v874 = vunpack.c.l.b16 %v868
      %v875 = vunpack.c.l.b16 %v869
      %v876 = vpack.c.b16 %v874, %v873
      %v877 = vpack.c.b16 %v875, %v875
      %v879 = vshrl.u32 %v876, 16
      %v881 = vrot.slane %v879, 2
      %v882 = vshll.u32 %v876, 16
      %v884 = vrot.slane %v882, 3
      %v885 = vor.u32 %v881, %v884
      %v887 = vshrl.u32 %v877, 16
      %v889 = vrot.slane %v887, 2
      %v890 = vshll.u32 %v877, 16
      %v892 = vrot.slane %v890, 3
      %v893 = vor.u32 %v889, %v892
      %v894 = vsel %vm461, %v885, %v893
      %896 = vst [vmem:[#allocation2 + $0x88] sm:$0xff] %v894
      %v897 = vld [vmem:[#allocation2] sm:$0xff]
      %v898 = vld [vmem:[#allocation2 + $0x8] sm:$0xff]
      %v899 = vld [vmem:[#allocation2 + $0x10] sm:$0xff]
      %v900 = vld [vmem:[#allocation2 + $0x18] sm:$0xff]
      %v901 = vld [vmem:[#allocation2 + $0x20] sm:$0xff]
      %v902 = vld [vmem:[#allocation2 + $0x28] sm:$0xff]
      %v903 = vld [vmem:[#allocation2 + $0x30] sm:$0xff]
      %v904 = vld [vmem:[#allocation2 + $0x38] sm:$0xff]
      %v905 = vld [vmem:[#allocation2 + $0x40] sm:$0xff]
      %v906 = vld [vmem:[#allocation2 + $0x48] sm:$0xff]
      %v907 = vld [vmem:[#allocation2 + $0x50] sm:$0xff]
      %v908 = vld [vmem:[#allocation2 + $0x58] sm:$0xff]
      %v909 = vld [vmem:[#allocation2 + $0x60] sm:$0xff]
      %v910 = vld [vmem:[#allocation2 + $0x68] sm:$0xff]
      %v911 = vld [vmem:[#allocation2 + $0x70] sm:$0xff]
      %v912 = vld [vmem:[#allocation2 + $0x78] sm:$0xff]
      %v913 = vld [vmem:[#allocation2 + $0x80] sm:$0xff]
      %v914 = vld [vmem:[#allocation2 + $0x88] sm:$0xff]
      %v915 = vld [vmem:[%s2] sm:$0xf]
      %v916 = vld [vmem:[%s2 + $0x4] sm:$0xf]
      %v917 = vld [vmem:[%s2 + $0x8] sm:$0xf]
      %v918 = vld [vmem:[%s2 + $0xc] sm:$0xf]
      %v919 = vld [vmem:[%s2 + $0x10] sm:$0xf]
      %v920 = vld [vmem:[%s2 + $0x14] sm:$0xf]
      %v921 = vld [vmem:[%s2 + $0x18] sm:$0xf]
      %v922 = vld [vmem:[%s2 + $0x1c] sm:$0xf]
      %v923 = vld [vmem:[%s2 + $0x20] sm:$0xf]
      %v924 = vld [vmem:[%s2 + $0x24] sm:$0xf]
      %v925 = vld [vmem:[%s2 + $0x28] sm:$0xf]
      %v926 = vld [vmem:[%s2 + $0x2c] sm:$0xf]
      %v927 = vld [vmem:[%s2 + $0x30] sm:$0xf]
      %v928 = vld [vmem:[%s2 + $0x34] sm:$0xf]
      %v929 = vld [vmem:[%s2 + $0x38] sm:$0xf]
      %v930 = vld [vmem:[%s2 + $0x3c] sm:$0xf]
      %v931 = vld [vmem:[%s2 + $0x40] sm:$0xf]
      %v932 = vld [vmem:[%s2 + $0x44] sm:$0xf]
      %v933 = vld [vmem:[%s2 + $0x48] sm:$0xf]
      %v934 = vld [vmem:[%s2 + $0x4c] sm:$0xf]
      %v935 = vld [vmem:[%s2 + $0x50] sm:$0xf]
      %v936 = vld [vmem:[%s2 + $0x54] sm:$0xf]
      %v937 = vld [vmem:[%s2 + $0x58] sm:$0xf]
      %v938 = vld [vmem:[%s2 + $0x5c] sm:$0xf]
      %v939 = vld [vmem:[%s2 + $0x60] sm:$0xf]
      %v940 = vld [vmem:[%s2 + $0x64] sm:$0xf]
      %v941 = vld [vmem:[%s2 + $0x68] sm:$0xf]
      %v942 = vld [vmem:[%s2 + $0x6c] sm:$0xf]
      %v943 = vld [vmem:[%s2 + $0x70] sm:$0xf]
      %v944 = vld [vmem:[%s2 + $0x74] sm:$0xf]
      %v945 = vld [vmem:[%s2 + $0x78] sm:$0xf]
      %v946 = vld [vmem:[%s2 + $0x7c] sm:$0xf]
      %v947 = vld [vmem:[%s2 + $0x80] sm:$0xf]
      %v948 = vld [vmem:[%s2 + $0x84] sm:$0xf]
      %v949 = vld [vmem:[%s2 + $0x88] sm:$0xf]
      %v950 = vld [vmem:[%s2 + $0x8c] sm:$0xf]
      %v951 = vld [vmem:[%s2 + $0x90] sm:$0xf]
      %v952 = vld [vmem:[%s2 + $0x94] sm:$0xf]
      %v953 = vld [vmem:[%s2 + $0x98] sm:$0xf]
      %v954 = vld [vmem:[%s2 + $0x9c] sm:$0xf]
      %v955 = vld [vmem:[%s2 + $0xa0] sm:$0xf]
      %v956 = vld [vmem:[%s2 + $0xa4] sm:$0xf]
      %v957 = vld [vmem:[%s2 + $0xa8] sm:$0xf]
      %v958 = vld [vmem:[%s2 + $0xac] sm:$0xf]
      %v959 = vld [vmem:[%s2 + $0xb0] sm:$0xf]
      %v960 = vld [vmem:[%s2 + $0xb4] sm:$0xf]
      %v961 = vld [vmem:[%s2 + $0xb8] sm:$0xf]
      %v962 = vld [vmem:[%s2 + $0xbc] sm:$0xf]
      %v963 = vld [vmem:[%s2 + $0xc0] sm:$0xf]
      %v964 = vld [vmem:[%s2 + $0xc4] sm:$0xf]
      %v965 = vld [vmem:[%s2 + $0xc8] sm:$0xf]
      %v966 = vld [vmem:[%s2 + $0xcc] sm:$0xf]
      %v967 = vld [vmem:[%s2 + $0xd0] sm:$0xf]
      %v968 = vld [vmem:[%s2 + $0xd4] sm:$0xf]
      %v969 = vld [vmem:[%s2 + $0xd8] sm:$0xf]
      %v970 = vld [vmem:[%s2 + $0xdc] sm:$0xf]
      %v971 = vld [vmem:[%s2 + $0xe0] sm:$0xf]
      %v972 = vld [vmem:[%s2 + $0xe4] sm:$0xf]
      %v973 = vld [vmem:[%s2 + $0xe8] sm:$0xf]
      %v974 = vld [vmem:[%s2 + $0xec] sm:$0xf]
      %v975 = vld [vmem:[%s2 + $0xf0] sm:$0xf]
      %v976 = vld [vmem:[%s2 + $0xf4] sm:$0xf]
      %v977 = vld [vmem:[%s2 + $0xf8] sm:$0xf]
      %v978 = vld [vmem:[%s2 + $0xfc] sm:$0xf]
      %v979 = vld [vmem:[%s2 + $0x100] sm:$0xf]
      %v980 = vld [vmem:[%s2 + $0x104] sm:$0xf]
      %v981 = vld [vmem:[%s2 + $0x108] sm:$0xf]
      %v982 = vld [vmem:[%s2 + $0x10c] sm:$0xf]
      %v983 = vld [vmem:[%s2 + $0x110] sm:$0xf]
      %v984 = vld [vmem:[%s2 + $0x114] sm:$0xf]
      %v985 = vld [vmem:[%s2 + $0x118] sm:$0xf]
      %v986 = vld [vmem:[%s2 + $0x11c] sm:$0xf]
      %v987 = vld [vmem:[%s2 + $0x120] sm:$0xf]
      %v988 = vld [vmem:[%s2 + $0x124] sm:$0xf]
      %v989 = vld [vmem:[%s2 + $0x128] sm:$0xf]
      %v990 = vld [vmem:[%s2 + $0x12c] sm:$0xf]
      %v991 = vld [vmem:[%s2 + $0x130] sm:$0xf]
      %v992 = vld [vmem:[%s2 + $0x134] sm:$0xf]
      %v993 = vld [vmem:[%s2 + $0x138] sm:$0xf]
      %v994 = vld [vmem:[%s2 + $0x13c] sm:$0xf]
      %v995 = vld [vmem:[%s2 + $0x140] sm:$0xf]
      %v996 = vld [vmem:[%s2 + $0x144] sm:$0xf]
      %v997 = vld [vmem:[%s2 + $0x148] sm:$0xf]
      %v998 = vld [vmem:[%s2 + $0x14c] sm:$0xf]
      %v999 = vld [vmem:[%s2 + $0x150] sm:$0xf]
      %v1000 = vld [vmem:[%s2 + $0x154] sm:$0xf]
      %v1001 = vld [vmem:[%s2 + $0x158] sm:$0xf]
      %v1002 = vld [vmem:[%s2 + $0x15c] sm:$0xf]
      %v1003 = vld [vmem:[%s2 + $0x160] sm:$0xf]
      %v1004 = vld [vmem:[%s2 + $0x164] sm:$0xf]
      %v1005 = vld [vmem:[%s2 + $0x168] sm:$0xf]
      %v1006 = vld [vmem:[%s2 + $0x16c] sm:$0xf]
      %v1007 = vld [vmem:[%s2 + $0x170] sm:$0xf]
      %v1008 = vld [vmem:[%s2 + $0x174] sm:$0xf]
      %v1009 = vld [vmem:[%s2 + $0x178] sm:$0xf]
      %v1010 = vld [vmem:[%s2 + $0x17c] sm:$0xf]
      %v1011 = vld [vmem:[%s2 + $0x180] sm:$0xf]
      %v1012 = vld [vmem:[%s2 + $0x184] sm:$0xf]
      %v1013 = vld [vmem:[%s2 + $0x188] sm:$0xf]
      %v1014 = vld [vmem:[%s2 + $0x18c] sm:$0xf]
      %v1015 = vld [vmem:[%s2 + $0x190] sm:$0xf]
      %v1016 = vld [vmem:[%s2 + $0x194] sm:$0xf]
      %v1017 = vld [vmem:[%s2 + $0x198] sm:$0xf]
      %v1018 = vld [vmem:[%s2 + $0x19c] sm:$0xf]
      %v1019 = vld [vmem:[%s2 + $0x1a0] sm:$0xf]
      %v1020 = vld [vmem:[%s2 + $0x1a4] sm:$0xf]
      %v1021 = vld [vmem:[%s2 + $0x1a8] sm:$0xf]
      %v1022 = vld [vmem:[%s2 + $0x1ac] sm:$0xf]
      %v1023 = vld [vmem:[%s2 + $0x1b0] sm:$0xf]
      %v1024 = vld [vmem:[%s2 + $0x1b4] sm:$0xf]
      %v1025 = vld [vmem:[%s2 + $0x1b8] sm:$0xf]
      %v1026 = vld [vmem:[%s2 + $0x1bc] sm:$0xf]
      %v1027 = vld [vmem:[%s2 + $0x1c0] sm:$0xf]
      %v1028 = vld [vmem:[%s2 + $0x1c4] sm:$0xf]
      %v1029 = vld [vmem:[%s2 + $0x1c8] sm:$0xf]
      %v1030 = vld [vmem:[%s2 + $0x1cc] sm:$0xf]
      %v1031 = vld [vmem:[%s2 + $0x1d0] sm:$0xf]
      %v1032 = vld [vmem:[%s2 + $0x1d4] sm:$0xf]
      %v1033 = vld [vmem:[%s2 + $0x1d8] sm:$0xf]
      %v1034 = vld [vmem:[%s2 + $0x1dc] sm:$0xf]
      %v1035 = vld [vmem:[%s2 + $0x1e0] sm:$0xf]
      %v1036 = vld [vmem:[%s2 + $0x1e4] sm:$0xf]
      %v1037 = vld [vmem:[%s2 + $0x1e8] sm:$0xf]
      %v1038 = vld [vmem:[%s2 + $0x1ec] sm:$0xf]
      %v1039 = vld [vmem:[%s2 + $0x1f0] sm:$0xf]
      %v1040 = vld [vmem:[%s2 + $0x1f4] sm:$0xf]
      %v1041 = vld [vmem:[%s2 + $0x1f8] sm:$0xf]
      %v1042 = vld [vmem:[%s2 + $0x1fc] sm:$0xf]
      %v1043 = vld [vmem:[%s2 + $0x200] sm:$0xf]
      %v1044 = vld [vmem:[%s2 + $0x204] sm:$0xf]
      %v1045 = vld [vmem:[%s2 + $0x208] sm:$0xf]
      %v1046 = vld [vmem:[%s2 + $0x20c] sm:$0xf]
      %v1047 = vld [vmem:[%s2 + $0x210] sm:$0xf]
      %v1048 = vld [vmem:[%s2 + $0x214] sm:$0xf]
      %v1049 = vld [vmem:[%s2 + $0x218] sm:$0xf]
      %v1050 = vld [vmem:[%s2 + $0x21c] sm:$0xf]
      %v1051 = vld [vmem:[%s2 + $0x220] sm:$0xf]
      %v1052 = vld [vmem:[%s2 + $0x224] sm:$0xf]
      %v1053 = vld [vmem:[%s2 + $0x228] sm:$0xf]
      %v1054 = vld [vmem:[%s2 + $0x22c] sm:$0xf]
      %v1055 = vld [vmem:[%s2 + $0x230] sm:$0xf]
      %v1056 = vld [vmem:[%s2 + $0x234] sm:$0xf]
      %v1057 = vld [vmem:[%s2 + $0x238] sm:$0xf]
      %v1058 = vld [vmem:[%s2 + $0x23c] sm:$0xf]
      %v1059 = vld [vmem:[%s2 + $0x240] sm:$0xf]
      %v1060 = vld [vmem:[%s2 + $0x244] sm:$0xf]
      %v1061 = vld [vmem:[%s2 + $0x248] sm:$0xf]
      %v1062 = vld [vmem:[%s2 + $0x24c] sm:$0xf]
      %v1063 = vld [vmem:[%s2 + $0x250] sm:$0xf]
      %v1064 = vld [vmem:[%s2 + $0x254] sm:$0xf]
      %v1065 = vld [vmem:[%s2 + $0x258] sm:$0xf]
      %v1066 = vld [vmem:[%s2 + $0x25c] sm:$0xf]
      %v1067 = vld [vmem:[%s2 + $0x260] sm:$0xf]
      %v1068 = vld [vmem:[%s2 + $0x264] sm:$0xf]
      %v1069 = vld [vmem:[%s2 + $0x268] sm:$0xf]
      %v1070 = vld [vmem:[%s2 + $0x26c] sm:$0xf]
      %v1071 = vld [vmem:[%s2 + $0x270] sm:$0xf]
      %v1072 = vld [vmem:[%s2 + $0x274] sm:$0xf]
      %v1073 = vld [vmem:[%s2 + $0x278] sm:$0xf]
      %v1074 = vld [vmem:[%s2 + $0x27c] sm:$0xf]
      %v1075 = vld [vmem:[%s2 + $0x280] sm:$0xf]
      %v1076 = vld [vmem:[%s2 + $0x284] sm:$0xf]
      %v1077 = vld [vmem:[%s2 + $0x288] sm:$0xf]
      %v1078 = vld [vmem:[%s2 + $0x28c] sm:$0xf]
      %v1079 = vld [vmem:[%s2 + $0x290] sm:$0xf]
      %v1080 = vld [vmem:[%s2 + $0x294] sm:$0xf]
      %v1081 = vld [vmem:[%s2 + $0x298] sm:$0xf]
      %v1082 = vld [vmem:[%s2 + $0x29c] sm:$0xf]
      %v1083 = vld [vmem:[%s2 + $0x2a0] sm:$0xf]
      %v1084 = vld [vmem:[%s2 + $0x2a4] sm:$0xf]
      %v1085 = vld [vmem:[%s2 + $0x2a8] sm:$0xf]
      %v1086 = vld [vmem:[%s2 + $0x2ac] sm:$0xf]
      %v1087 = vld [vmem:[%s2 + $0x2b0] sm:$0xf]
      %v1088 = vld [vmem:[%s2 + $0x2b4] sm:$0xf]
      %v1089 = vld [vmem:[%s2 + $0x2b8] sm:$0xf]
      %v1090 = vld [vmem:[%s2 + $0x2bc] sm:$0xf]
      %v1091 = vld [vmem:[%s2 + $0x2c0] sm:$0xf]
      %v1092 = vld [vmem:[%s2 + $0x2c4] sm:$0xf]
      %v1093 = vld [vmem:[%s2 + $0x2c8] sm:$0xf]
      %v1094 = vld [vmem:[%s2 + $0x2cc] sm:$0xf]
      %v1095 = vld [vmem:[%s2 + $0x2d0] sm:$0xf]
      %v1096 = vld [vmem:[%s2 + $0x2d4] sm:$0xf]
      %v1097 = vld [vmem:[%s2 + $0x2d8] sm:$0xf]
      %v1098 = vld [vmem:[%s2 + $0x2dc] sm:$0xf]
      %v1099 = vld [vmem:[%s2 + $0x2e0] sm:$0xf]
      %v1100 = vld [vmem:[%s2 + $0x2e4] sm:$0xf]
      %v1101 = vld [vmem:[%s2 + $0x2e8] sm:$0xf]
      %v1102 = vld [vmem:[%s2 + $0x2ec] sm:$0xf]
      %v1103 = vld [vmem:[%s2 + $0x2f0] sm:$0xf]
      %v1104 = vld [vmem:[%s2 + $0x2f4] sm:$0xf]
      %v1105 = vld [vmem:[%s2 + $0x2f8] sm:$0xf]
      %v1106 = vld [vmem:[%s2 + $0x2fc] sm:$0xf]
      %v1107 = vld [vmem:[%s2 + $0x300] sm:$0xf]
      %v1108 = vld [vmem:[%s2 + $0x304] sm:$0xf]
      %v1109 = vld [vmem:[%s2 + $0x308] sm:$0xf]
      %v1110 = vld [vmem:[%s2 + $0x30c] sm:$0xf]
      %v1111 = vld [vmem:[%s2 + $0x310] sm:$0xf]
      %v1112 = vld [vmem:[%s2 + $0x314] sm:$0xf]
      %v1113 = vld [vmem:[%s2 + $0x318] sm:$0xf]
      %v1114 = vld [vmem:[%s2 + $0x31c] sm:$0xf]
      %v1115 = vld [vmem:[%s2 + $0x320] sm:$0xf]
      %v1116 = vld [vmem:[%s2 + $0x324] sm:$0xf]
      %v1117 = vld [vmem:[%s2 + $0x328] sm:$0xf]
      %v1118 = vld [vmem:[%s2 + $0x32c] sm:$0xf]
      %v1119 = vld [vmem:[%s2 + $0x330] sm:$0xf]
      %v1120 = vld [vmem:[%s2 + $0x334] sm:$0xf]
      %v1121 = vld [vmem:[%s2 + $0x338] sm:$0xf]
      %v1122 = vld [vmem:[%s2 + $0x33c] sm:$0xf]
      %v1123 = vld [vmem:[%s2 + $0x340] sm:$0xf]
      %v1124 = vld [vmem:[%s2 + $0x344] sm:$0xf]
      %v1125 = vld [vmem:[%s2 + $0x348] sm:$0xf]
      %v1126 = vld [vmem:[%s2 + $0x34c] sm:$0xf]
      %v1127 = vld [vmem:[%s2 + $0x350] sm:$0xf]
      %v1128 = vld [vmem:[%s2 + $0x354] sm:$0xf]
      %v1129 = vld [vmem:[%s2 + $0x358] sm:$0xf]
      %v1130 = vld [vmem:[%s2 + $0x35c] sm:$0xf]
      %v1131 = vld [vmem:[%s2 + $0x360] sm:$0xf]
      %v1132 = vld [vmem:[%s2 + $0x364] sm:$0xf]
      %v1133 = vld [vmem:[%s2 + $0x368] sm:$0xf]
      %v1134 = vld [vmem:[%s2 + $0x36c] sm:$0xf]
      %v1135 = vld [vmem:[%s2 + $0x370] sm:$0xf]
      %v1136 = vld [vmem:[%s2 + $0x374] sm:$0xf]
      %v1137 = vld [vmem:[%s2 + $0x378] sm:$0xf]
      %v1138 = vld [vmem:[%s2 + $0x37c] sm:$0xf]
      %v1139 = vld [vmem:[%s2 + $0x380] sm:$0xf]
      %v1140 = vld [vmem:[%s2 + $0x384] sm:$0xf]
      %v1141 = vld [vmem:[%s2 + $0x388] sm:$0xf]
      %v1142 = vld [vmem:[%s2 + $0x38c] sm:$0xf]
      %v1143 = vld [vmem:[%s2 + $0x390] sm:$0xf]
      %v1144 = vld [vmem:[%s2 + $0x394] sm:$0xf]
      %v1145 = vld [vmem:[%s2 + $0x398] sm:$0xf]
      %v1146 = vld [vmem:[%s2 + $0x39c] sm:$0xf]
      %v1147 = vld [vmem:[%s2 + $0x3a0] sm:$0xf]
      %v1148 = vld [vmem:[%s2 + $0x3a4] sm:$0xf]
      %v1149 = vld [vmem:[%s2 + $0x3a8] sm:$0xf]
      %v1150 = vld [vmem:[%s2 + $0x3ac] sm:$0xf]
      %v1151 = vld [vmem:[%s2 + $0x3b0] sm:$0xf]
      %v1152 = vld [vmem:[%s2 + $0x3b4] sm:$0xf]
      %v1153 = vld [vmem:[%s2 + $0x3b8] sm:$0xf]
      %v1154 = vld [vmem:[%s2 + $0x3bc] sm:$0xf]
      %v1155 = vld [vmem:[%s2 + $0x3c0] sm:$0xf]
      %v1156 = vld [vmem:[%s2 + $0x3c4] sm:$0xf]
      %v1157 = vld [vmem:[%s2 + $0x3c8] sm:$0xf]
      %v1158 = vld [vmem:[%s2 + $0x3cc] sm:$0xf]
      %v1159 = vld [vmem:[%s2 + $0x3d0] sm:$0xf]
      %v1160 = vld [vmem:[%s2 + $0x3d4] sm:$0xf]
      %v1161 = vld [vmem:[%s2 + $0x3d8] sm:$0xf]
      %v1162 = vld [vmem:[%s2 + $0x3dc] sm:$0xf]
      %v1163 = vld [vmem:[%s2 + $0x3e0] sm:$0xf]
      %v1164 = vld [vmem:[%s2 + $0x3e4] sm:$0xf]
      %v1165 = vld [vmem:[%s2 + $0x3e8] sm:$0xf]
      %v1166 = vld [vmem:[%s2 + $0x3ec] sm:$0xf]
      %v1167 = vld [vmem:[%s2 + $0x3f0] sm:$0xf]
      %v1168 = vld [vmem:[%s2 + $0x3f4] sm:$0xf]
      %v1169 = vld [vmem:[%s2 + $0x3f8] sm:$0xf]
      %v1170 = vld [vmem:[%s2 + $0x3fc] sm:$0xf]
      %v1171 = vld [vmem:[%s2 + $0x400] sm:$0xf]
      %v1172 = vld [vmem:[%s2 + $0x404] sm:$0xf]
      %v1173 = vld [vmem:[%s2 + $0x408] sm:$0xf]
      %v1174 = vld [vmem:[%s2 + $0x40c] sm:$0xf]
      %v1175 = vld [vmem:[%s2 + $0x410] sm:$0xf]
      %v1176 = vld [vmem:[%s2 + $0x414] sm:$0xf]
      %v1177 = vld [vmem:[%s2 + $0x418] sm:$0xf]
      %v1178 = vld [vmem:[%s2 + $0x41c] sm:$0xf]
      %v1179 = vld [vmem:[%s2 + $0x420] sm:$0xf]
      %v1180 = vld [vmem:[%s2 + $0x424] sm:$0xf]
      %v1181 = vld [vmem:[%s2 + $0x428] sm:$0xf]
      %v1182 = vld [vmem:[%s2 + $0x42c] sm:$0xf]
      %v1183 = vld [vmem:[%s2 + $0x430] sm:$0xf]
      %v1184 = vld [vmem:[%s2 + $0x434] sm:$0xf]
      %v1185 = vld [vmem:[%s2 + $0x438] sm:$0xf]
      %v1186 = vld [vmem:[%s2 + $0x43c] sm:$0xf]
      %v1187 = vld [vmem:[%s2 + $0x440] sm:$0xf]
      %v1188 = vld [vmem:[%s2 + $0x444] sm:$0xf]
      %v1189 = vld [vmem:[%s2 + $0x448] sm:$0xf]
      %v1190 = vld [vmem:[%s2 + $0x44c] sm:$0xf]
      %v1191 = vld [vmem:[%s2 + $0x450] sm:$0xf]
      %v1192 = vld [vmem:[%s2 + $0x454] sm:$0xf]
      %v1193 = vld [vmem:[%s2 + $0x458] sm:$0xf]
      %v1194 = vld [vmem:[%s2 + $0x45c] sm:$0xf]
      %v1195 = vld [vmem:[%s2 + $0x460] sm:$0xf]
      %v1196 = vld [vmem:[%s2 + $0x464] sm:$0xf]
      %v1197 = vld [vmem:[%s2 + $0x468] sm:$0xf]
      %v1198 = vld [vmem:[%s2 + $0x46c] sm:$0xf]
      %v1199 = vld [vmem:[%s2 + $0x470] sm:$0xf]
      %v1200 = vld [vmem:[%s2 + $0x474] sm:$0xf]
      %v1201 = vld [vmem:[%s2 + $0x478] sm:$0xf]
      %v1202 = vld [vmem:[%s2 + $0x47c] sm:$0xf]
      %v1203 = vld [vmem:[%s3] sm:$0x1]
      %v1205 = vlaneseq
      %v1206 = vshrl.u32 %v1205, 7
      %v1207 = vsub.s32 0, %v1206
      %v1208 = vrot.slane %v1203, %v1207
      %v1498 = vunpack.c.l.b16 %v915
      %v1499 = vunpack.c.l.b16 %v916
      %v1500 = vunpack.c.l.b16 %v917
      %v1501 = vunpack.c.l.b16 %v918
      %v1502 = vunpack.c.l.b16 %v919
      %v1503 = vunpack.c.l.b16 %v920
      %v1504 = vunpack.c.l.b16 %v921
      %v1505 = vunpack.c.l.b16 %v922
      %v1506 = vunpack.c.l.b16 %v923
      %v1507 = vunpack.c.l.b16 %v924
      %v1508 = vunpack.c.l.b16 %v925
      %v1509 = vunpack.c.l.b16 %v926
      %v1510 = vunpack.c.l.b16 %v927
      %v1511 = vunpack.c.l.b16 %v928
      %v1512 = vunpack.c.l.b16 %v929
      %v1513 = vunpack.c.l.b16 %v930
      %v1514 = vunpack.c.l.b16 %v931
      %v1515 = vunpack.c.l.b16 %v932
      %v1516 = vunpack.c.l.b16 %v933
      %v1517 = vunpack.c.l.b16 %v934
      %v1518 = vunpack.c.l.b16 %v935
      %v1519 = vunpack.c.l.b16 %v936
      %v1520 = vunpack.c.l.b16 %v937
      %v1521 = vunpack.c.l.b16 %v938
      %v1522 = vunpack.c.l.b16 %v939
      %v1523 = vunpack.c.l.b16 %v940
      %v1524 = vunpack.c.l.b16 %v941
      %v1525 = vunpack.c.l.b16 %v942
      %v1526 = vunpack.c.l.b16 %v943
      %v1527 = vunpack.c.l.b16 %v944
      %v1528 = vunpack.c.l.b16 %v945
      %v1529 = vunpack.c.l.b16 %v946
      %v1530 = vunpack.c.l.b16 %v947
      %v1531 = vunpack.c.l.b16 %v948
      %v1532 = vunpack.c.l.b16 %v949
      %v1533 = vunpack.c.l.b16 %v950
      %v1534 = vunpack.c.l.b16 %v951
      %v1535 = vunpack.c.l.b16 %v952
      %v1536 = vunpack.c.l.b16 %v953
      %v1537 = vunpack.c.l.b16 %v954
      %v1538 = vunpack.c.l.b16 %v955
      %v1539 = vunpack.c.l.b16 %v956
      %v1540 = vunpack.c.l.b16 %v957
      %v1541 = vunpack.c.l.b16 %v958
      %v1542 = vunpack.c.l.b16 %v959
      %v1543 = vunpack.c.l.b16 %v960
      %v1544 = vunpack.c.l.b16 %v961
      %v1545 = vunpack.c.l.b16 %v962
      %v1546 = vunpack.c.l.b16 %v963
      %v1547 = vunpack.c.l.b16 %v964
      %v1548 = vunpack.c.l.b16 %v965
      %v1549 = vunpack.c.l.b16 %v966
      %v1550 = vunpack.c.l.b16 %v967
      %v1551 = vunpack.c.l.b16 %v968
      %v1552 = vunpack.c.l.b16 %v969
      %v1553 = vunpack.c.l.b16 %v970
      %v1554 = vunpack.c.l.b16 %v971
      %v1555 = vunpack.c.l.b16 %v972
      %v1556 = vunpack.c.l.b16 %v973
      %v1557 = vunpack.c.l.b16 %v974
      %v1558 = vunpack.c.l.b16 %v975
      %v1559 = vunpack.c.l.b16 %v976
      %v1560 = vunpack.c.l.b16 %v977
      %v1561 = vunpack.c.l.b16 %v978
      %v1562 = vunpack.c.l.b16 %v979
      %v1563 = vunpack.c.l.b16 %v980
      %v1564 = vunpack.c.l.b16 %v981
      %v1565 = vunpack.c.l.b16 %v982
      %v1566 = vunpack.c.l.b16 %v983
      %v1567 = vunpack.c.l.b16 %v984
      %v1568 = vunpack.c.l.b16 %v985
      %v1569 = vunpack.c.l.b16 %v986
      %v1570 = vunpack.c.l.b16 %v987
      %v1571 = vunpack.c.l.b16 %v988
      %v1572 = vunpack.c.l.b16 %v989
      %v1573 = vunpack.c.l.b16 %v990
      %v1574 = vunpack.c.l.b16 %v991
      %v1575 = vunpack.c.l.b16 %v992
      %v1576 = vunpack.c.l.b16 %v993
      %v1577 = vunpack.c.l.b16 %v994
      %v1578 = vunpack.c.l.b16 %v995
      %v1579 = vunpack.c.l.b16 %v996
      %v1580 = vunpack.c.l.b16 %v997
      %v1581 = vunpack.c.l.b16 %v998
      %v1582 = vunpack.c.l.b16 %v999
      %v1583 = vunpack.c.l.b16 %v1000
      %v1584 = vunpack.c.l.b16 %v1001
      %v1585 = vunpack.c.l.b16 %v1002
      %v1586 = vunpack.c.l.b16 %v1003
      %v1587 = vunpack.c.l.b16 %v1004
      %v1588 = vunpack.c.l.b16 %v1005
      %v1589 = vunpack.c.l.b16 %v1006
      %v1590 = vunpack.c.l.b16 %v1007
      %v1591 = vunpack.c.l.b16 %v1008
      %v1592 = vunpack.c.l.b16 %v1009
      %v1593 = vunpack.c.l.b16 %v1010
      %v1594 = vunpack.c.l.b16 %v1011
      %v1595 = vunpack.c.l.b16 %v1012
      %v1596 = vunpack.c.l.b16 %v1013
      %v1597 = vunpack.c.l.b16 %v1014
      %v1598 = vunpack.c.l.b16 %v1015
      %v1599 = vunpack.c.l.b16 %v1016
      %v1600 = vunpack.c.l.b16 %v1017
      %v1601 = vunpack.c.l.b16 %v1018
      %v1602 = vunpack.c.l.b16 %v1019
      %v1603 = vunpack.c.l.b16 %v1020
      %v1604 = vunpack.c.l.b16 %v1021
      %v1605 = vunpack.c.l.b16 %v1022
      %v1606 = vunpack.c.l.b16 %v1023
      %v1607 = vunpack.c.l.b16 %v1024
      %v1608 = vunpack.c.l.b16 %v1025
      %v1609 = vunpack.c.l.b16 %v1026
      %v1610 = vunpack.c.l.b16 %v1027
      %v1611 = vunpack.c.l.b16 %v1028
      %v1612 = vunpack.c.l.b16 %v1029
      %v1613 = vunpack.c.l.b16 %v1030
      %v1614 = vunpack.c.l.b16 %v1031
      %v1615 = vunpack.c.l.b16 %v1032
      %v1616 = vunpack.c.l.b16 %v1033
      %v1617 = vunpack.c.l.b16 %v1034
      %v1618 = vunpack.c.l.b16 %v1035
      %v1619 = vunpack.c.l.b16 %v1036
      %v1620 = vunpack.c.l.b16 %v1037
      %v1621 = vunpack.c.l.b16 %v1038
      %v1622 = vunpack.c.l.b16 %v1039
      %v1623 = vunpack.c.l.b16 %v1040
      %v1624 = vunpack.c.l.b16 %v1041
      %v1625 = vunpack.c.l.b16 %v1042
      %v1626 = vunpack.c.l.b16 %v1043
      %v1627 = vunpack.c.l.b16 %v1044
      %v1628 = vunpack.c.l.b16 %v1045
      %v1629 = vunpack.c.l.b16 %v1046
      %v1630 = vunpack.c.l.b16 %v1047
      %v1631 = vunpack.c.l.b16 %v1048
      %v1632 = vunpack.c.l.b16 %v1049
      %v1633 = vunpack.c.l.b16 %v1050
      %v1634 = vunpack.c.l.b16 %v1051
      %v1635 = vunpack.c.l.b16 %v1052
      %v1636 = vunpack.c.l.b16 %v1053
      %v1637 = vunpack.c.l.b16 %v1054
      %v1638 = vunpack.c.l.b16 %v1055
      %v1639 = vunpack.c.l.b16 %v1056
      %v1640 = vunpack.c.l.b16 %v1057
      %v1641 = vunpack.c.l.b16 %v1058
      %v1642 = vunpack.c.l.b16 %v1059
      %v1643 = vunpack.c.l.b16 %v1060
      %v1644 = vunpack.c.l.b16 %v1061
      %v1645 = vunpack.c.l.b16 %v1062
      %v1646 = vunpack.c.l.b16 %v1063
      %v1647 = vunpack.c.l.b16 %v1064
      %v1648 = vunpack.c.l.b16 %v1065
      %v1649 = vunpack.c.l.b16 %v1066
      %v1650 = vunpack.c.l.b16 %v1067
      %v1651 = vunpack.c.l.b16 %v1068
      %v1652 = vunpack.c.l.b16 %v1069
      %v1653 = vunpack.c.l.b16 %v1070
      %v1654 = vunpack.c.l.b16 %v1071
      %v1655 = vunpack.c.l.b16 %v1072
      %v1656 = vunpack.c.l.b16 %v1073
      %v1657 = vunpack.c.l.b16 %v1074
      %v1658 = vunpack.c.l.b16 %v1075
      %v1659 = vunpack.c.l.b16 %v1076
      %v1660 = vunpack.c.l.b16 %v1077
      %v1661 = vunpack.c.l.b16 %v1078
      %v1662 = vunpack.c.l.b16 %v1079
      %v1663 = vunpack.c.l.b16 %v1080
      %v1664 = vunpack.c.l.b16 %v1081
      %v1665 = vunpack.c.l.b16 %v1082
      %v1666 = vunpack.c.l.b16 %v1083
      %v1667 = vunpack.c.l.b16 %v1084
      %v1668 = vunpack.c.l.b16 %v1085
      %v1669 = vunpack.c.l.b16 %v1086
      %v1670 = vunpack.c.l.b16 %v1087
      %v1671 = vunpack.c.l.b16 %v1088
      %v1672 = vunpack.c.l.b16 %v1089
      %v1673 = vunpack.c.l.b16 %v1090
      %v1674 = vunpack.c.l.b16 %v1091
      %v1675 = vunpack.c.l.b16 %v1092
      %v1676 = vunpack.c.l.b16 %v1093
      %v1677 = vunpack.c.l.b16 %v1094
      %v1678 = vunpack.c.l.b16 %v1095
      %v1679 = vunpack.c.l.b16 %v1096
      %v1680 = vunpack.c.l.b16 %v1097
      %v1681 = vunpack.c.l.b16 %v1098
      %v1682 = vunpack.c.l.b16 %v1099
      %v1683 = vunpack.c.l.b16 %v1100
      %v1684 = vunpack.c.l.b16 %v1101
      %v1685 = vunpack.c.l.b16 %v1102
      %v1686 = vunpack.c.l.b16 %v1103
      %v1687 = vunpack.c.l.b16 %v1104
      %v1688 = vunpack.c.l.b16 %v1105
      %v1689 = vunpack.c.l.b16 %v1106
      %v1690 = vunpack.c.l.b16 %v1107
      %v1691 = vunpack.c.l.b16 %v1108
      %v1692 = vunpack.c.l.b16 %v1109
      %v1693 = vunpack.c.l.b16 %v1110
      %v1694 = vunpack.c.l.b16 %v1111
      %v1695 = vunpack.c.l.b16 %v1112
      %v1696 = vunpack.c.l.b16 %v1113
      %v1697 = vunpack.c.l.b16 %v1114
      %v1698 = vunpack.c.l.b16 %v1115
      %v1699 = vunpack.c.l.b16 %v1116
      %v1700 = vunpack.c.l.b16 %v1117
      %v1701 = vunpack.c.l.b16 %v1118
      %v1702 = vunpack.c.l.b16 %v1119
      %v1703 = vunpack.c.l.b16 %v1120
      %v1704 = vunpack.c.l.b16 %v1121
      %v1705 = vunpack.c.l.b16 %v1122
      %v1706 = vunpack.c.l.b16 %v1123
      %v1707 = vunpack.c.l.b16 %v1124
      %v1708 = vunpack.c.l.b16 %v1125
      %v1709 = vunpack.c.l.b16 %v1126
      %v1710 = vunpack.c.l.b16 %v1127
      %v1711 = vunpack.c.l.b16 %v1128
      %v1712 = vunpack.c.l.b16 %v1129
      %v1713 = vunpack.c.l.b16 %v1130
      %v1714 = vunpack.c.l.b16 %v1131
      %v1715 = vunpack.c.l.b16 %v1132
      %v1716 = vunpack.c.l.b16 %v1133
      %v1717 = vunpack.c.l.b16 %v1134
      %v1718 = vunpack.c.l.b16 %v1135
      %v1719 = vunpack.c.l.b16 %v1136
      %v1720 = vunpack.c.l.b16 %v1137
      %v1721 = vunpack.c.l.b16 %v1138
      %v1722 = vunpack.c.l.b16 %v1139
      %v1723 = vunpack.c.l.b16 %v1140
      %v1724 = vunpack.c.l.b16 %v1141
      %v1725 = vunpack.c.l.b16 %v1142
      %v1726 = vunpack.c.l.b16 %v1143
      %v1727 = vunpack.c.l.b16 %v1144
      %v1728 = vunpack.c.l.b16 %v1145
      %v1729 = vunpack.c.l.b16 %v1146
      %v1730 = vunpack.c.l.b16 %v1147
      %v1731 = vunpack.c.l.b16 %v1148
      %v1732 = vunpack.c.l.b16 %v1149
      %v1733 = vunpack.c.l.b16 %v1150
      %v1734 = vunpack.c.l.b16 %v1151
      %v1735 = vunpack.c.l.b16 %v1152
      %v1736 = vunpack.c.l.b16 %v1153
      %v1737 = vunpack.c.l.b16 %v1154
      %v1738 = vunpack.c.l.b16 %v1155
      %v1739 = vunpack.c.l.b16 %v1156
      %v1740 = vunpack.c.l.b16 %v1157
      %v1741 = vunpack.c.l.b16 %v1158
      %v1742 = vunpack.c.l.b16 %v1159
      %v1743 = vunpack.c.l.b16 %v1160
      %v1744 = vunpack.c.l.b16 %v1161
      %v1745 = vunpack.c.l.b16 %v1162
      %v1746 = vunpack.c.l.b16 %v1163
      %v1747 = vunpack.c.l.b16 %v1164
      %v1748 = vunpack.c.l.b16 %v1165
      %v1749 = vunpack.c.l.b16 %v1166
      %v1750 = vunpack.c.l.b16 %v1167
      %v1751 = vunpack.c.l.b16 %v1168
      %v1752 = vunpack.c.l.b16 %v1169
      %v1753 = vunpack.c.l.b16 %v1170
      %v1754 = vunpack.c.l.b16 %v1171
      %v1755 = vunpack.c.l.b16 %v1172
      %v1756 = vunpack.c.l.b16 %v1173
      %v1757 = vunpack.c.l.b16 %v1174
      %v1758 = vunpack.c.l.b16 %v1175
      %v1759 = vunpack.c.l.b16 %v1176
      %v1760 = vunpack.c.l.b16 %v1177
      %v1761 = vunpack.c.l.b16 %v1178
      %v1762 = vunpack.c.l.b16 %v1179
      %v1763 = vunpack.c.l.b16 %v1180
      %v1764 = vunpack.c.l.b16 %v1181
      %v1765 = vunpack.c.l.b16 %v1182
      %v1766 = vunpack.c.l.b16 %v1183
      %v1767 = vunpack.c.l.b16 %v1184
      %v1768 = vunpack.c.l.b16 %v1185
      %v1769 = vunpack.c.l.b16 %v1186
      %v1770 = vunpack.c.l.b16 %v1187
      %v1771 = vunpack.c.l.b16 %v1188
      %v1772 = vunpack.c.l.b16 %v1189
      %v1773 = vunpack.c.l.b16 %v1190
      %v1774 = vunpack.c.l.b16 %v1191
      %v1775 = vunpack.c.l.b16 %v1192
      %v1776 = vunpack.c.l.b16 %v1193
      %v1777 = vunpack.c.l.b16 %v1194
      %v1778 = vunpack.c.l.b16 %v1195
      %v1779 = vunpack.c.l.b16 %v1196
      %v1780 = vunpack.c.l.b16 %v1197
      %v1781 = vunpack.c.l.b16 %v1198
      %v1782 = vunpack.c.l.b16 %v1199
      %v1783 = vunpack.c.l.b16 %v1200
      %v1784 = vunpack.c.l.b16 %v1201
      %v1785 = vunpack.c.l.b16 %v1202
      %v1786 = vpack.c.b16 %v1499, %v1498
      %v1787 = vpack.c.b16 %v1501, %v1500
      %v1788 = vpack.c.b16 %v1503, %v1502
      %v1789 = vpack.c.b16 %v1505, %v1504
      %v1790 = vpack.c.b16 %v1507, %v1506
      %v1791 = vpack.c.b16 %v1509, %v1508
      %v1792 = vpack.c.b16 %v1511, %v1510
      %v1793 = vpack.c.b16 %v1513, %v1512
      %v1794 = vpack.c.b16 %v1515, %v1514
      %v1795 = vpack.c.b16 %v1517, %v1516
      %v1796 = vpack.c.b16 %v1519, %v1518
      %v1797 = vpack.c.b16 %v1521, %v1520
      %v1798 = vpack.c.b16 %v1523, %v1522
      %v1799 = vpack.c.b16 %v1525, %v1524
      %v1800 = vpack.c.b16 %v1527, %v1526
      %v1801 = vpack.c.b16 %v1529, %v1528
      %v1802 = vpack.c.b16 %v1531, %v1530
      %v1803 = vpack.c.b16 %v1533, %v1532
      %v1804 = vpack.c.b16 %v1535, %v1534
      %v1805 = vpack.c.b16 %v1537, %v1536
      %v1806 = vpack.c.b16 %v1539, %v1538
      %v1807 = vpack.c.b16 %v1541, %v1540
      %v1808 = vpack.c.b16 %v1543, %v1542
      %v1809 = vpack.c.b16 %v1545, %v1544
      %v1810 = vpack.c.b16 %v1547, %v1546
      %v1811 = vpack.c.b16 %v1549, %v1548
      %v1812 = vpack.c.b16 %v1551, %v1550
      %v1813 = vpack.c.b16 %v1553, %v1552
      %v1814 = vpack.c.b16 %v1555, %v1554
      %v1815 = vpack.c.b16 %v1557, %v1556
      %v1816 = vpack.c.b16 %v1559, %v1558
      %v1817 = vpack.c.b16 %v1561, %v1560
      %v1818 = vpack.c.b16 %v1563, %v1562
      %v1819 = vpack.c.b16 %v1565, %v1564
      %v1820 = vpack.c.b16 %v1567, %v1566
      %v1821 = vpack.c.b16 %v1569, %v1568
      %v1822 = vpack.c.b16 %v1571, %v1570
      %v1823 = vpack.c.b16 %v1573, %v1572
      %v1824 = vpack.c.b16 %v1575, %v1574
      %v1825 = vpack.c.b16 %v1577, %v1576
      %v1826 = vpack.c.b16 %v1579, %v1578
      %v1827 = vpack.c.b16 %v1581, %v1580
      %v1828 = vpack.c.b16 %v1583, %v1582
      %v1829 = vpack.c.b16 %v1585, %v1584
      %v1830 = vpack.c.b16 %v1587, %v1586
      %v1831 = vpack.c.b16 %v1589, %v1588
      %v1832 = vpack.c.b16 %v1591, %v1590
      %v1833 = vpack.c.b16 %v1593, %v1592
      %v1834 = vpack.c.b16 %v1595, %v1594
      %v1835 = vpack.c.b16 %v1597, %v1596
      %v1836 = vpack.c.b16 %v1599, %v1598
      %v1837 = vpack.c.b16 %v1601, %v1600
      %v1838 = vpack.c.b16 %v1603, %v1602
      %v1839 = vpack.c.b16 %v1605, %v1604
      %v1840 = vpack.c.b16 %v1607, %v1606
      %v1841 = vpack.c.b16 %v1609, %v1608
      %v1842 = vpack.c.b16 %v1611, %v1610
      %v1843 = vpack.c.b16 %v1613, %v1612
      %v1844 = vpack.c.b16 %v1615, %v1614
      %v1845 = vpack.c.b16 %v1617, %v1616
      %v1846 = vpack.c.b16 %v1619, %v1618
      %v1847 = vpack.c.b16 %v1621, %v1620
      %v1848 = vpack.c.b16 %v1623, %v1622
      %v1849 = vpack.c.b16 %v1625, %v1624
      %v1850 = vpack.c.b16 %v1627, %v1626
      %v1851 = vpack.c.b16 %v1629, %v1628
      %v1852 = vpack.c.b16 %v1631, %v1630
      %v1853 = vpack.c.b16 %v1633, %v1632
      %v1854 = vpack.c.b16 %v1635, %v1634
      %v1855 = vpack.c.b16 %v1637, %v1636
      %v1856 = vpack.c.b16 %v1639, %v1638
      %v1857 = vpack.c.b16 %v1641, %v1640
      %v1858 = vpack.c.b16 %v1643, %v1642
      %v1859 = vpack.c.b16 %v1645, %v1644
      %v1860 = vpack.c.b16 %v1647, %v1646
      %v1861 = vpack.c.b16 %v1649, %v1648
      %v1862 = vpack.c.b16 %v1651, %v1650
      %v1863 = vpack.c.b16 %v1653, %v1652
      %v1864 = vpack.c.b16 %v1655, %v1654
      %v1865 = vpack.c.b16 %v1657, %v1656
      %v1866 = vpack.c.b16 %v1659, %v1658
      %v1867 = vpack.c.b16 %v1661, %v1660
      %v1868 = vpack.c.b16 %v1663, %v1662
      %v1869 = vpack.c.b16 %v1665, %v1664
      %v1870 = vpack.c.b16 %v1667, %v1666
      %v1871 = vpack.c.b16 %v1669, %v1668
      %v1872 = vpack.c.b16 %v1671, %v1670
      %v1873 = vpack.c.b16 %v1673, %v1672
      %v1874 = vpack.c.b16 %v1675, %v1674
      %v1875 = vpack.c.b16 %v1677, %v1676
      %v1876 = vpack.c.b16 %v1679, %v1678
      %v1877 = vpack.c.b16 %v1681, %v1680
      %v1878 = vpack.c.b16 %v1683, %v1682
      %v1879 = vpack.c.b16 %v1685, %v1684
      %v1880 = vpack.c.b16 %v1687, %v1686
      %v1881 = vpack.c.b16 %v1689, %v1688
      %v1882 = vpack.c.b16 %v1691, %v1690
      %v1883 = vpack.c.b16 %v1693, %v1692
      %v1884 = vpack.c.b16 %v1695, %v1694
      %v1885 = vpack.c.b16 %v1697, %v1696
      %v1886 = vpack.c.b16 %v1699, %v1698
      %v1887 = vpack.c.b16 %v1701, %v1700
      %v1888 = vpack.c.b16 %v1703, %v1702
      %v1889 = vpack.c.b16 %v1705, %v1704
      %v1890 = vpack.c.b16 %v1707, %v1706
      %v1891 = vpack.c.b16 %v1709, %v1708
      %v1892 = vpack.c.b16 %v1711, %v1710
      %v1893 = vpack.c.b16 %v1713, %v1712
      %v1894 = vpack.c.b16 %v1715, %v1714
      %v1895 = vpack.c.b16 %v1717, %v1716
      %v1896 = vpack.c.b16 %v1719, %v1718
      %v1897 = vpack.c.b16 %v1721, %v1720
      %v1898 = vpack.c.b16 %v1723, %v1722
      %v1899 = vpack.c.b16 %v1725, %v1724
      %v1900 = vpack.c.b16 %v1727, %v1726
      %v1901 = vpack.c.b16 %v1729, %v1728
      %v1902 = vpack.c.b16 %v1731, %v1730
      %v1903 = vpack.c.b16 %v1733, %v1732
      %v1904 = vpack.c.b16 %v1735, %v1734
      %v1905 = vpack.c.b16 %v1737, %v1736
      %v1906 = vpack.c.b16 %v1739, %v1738
      %v1907 = vpack.c.b16 %v1741, %v1740
      %v1908 = vpack.c.b16 %v1743, %v1742
      %v1909 = vpack.c.b16 %v1745, %v1744
      %v1910 = vpack.c.b16 %v1747, %v1746
      %v1911 = vpack.c.b16 %v1749, %v1748
      %v1912 = vpack.c.b16 %v1751, %v1750
      %v1913 = vpack.c.b16 %v1753, %v1752
      %v1914 = vpack.c.b16 %v1755, %v1754
      %v1915 = vpack.c.b16 %v1757, %v1756
      %v1916 = vpack.c.b16 %v1759, %v1758
      %v1917 = vpack.c.b16 %v1761, %v1760
      %v1918 = vpack.c.b16 %v1763, %v1762
      %v1919 = vpack.c.b16 %v1765, %v1764
      %v1920 = vpack.c.b16 %v1767, %v1766
      %v1921 = vpack.c.b16 %v1769, %v1768
      %v1922 = vpack.c.b16 %v1771, %v1770
      %v1923 = vpack.c.b16 %v1773, %v1772
      %v1924 = vpack.c.b16 %v1775, %v1774
      %v1925 = vpack.c.b16 %v1777, %v1776
      %v1926 = vpack.c.b16 %v1779, %v1778
      %v1927 = vpack.c.b16 %v1781, %v1780
      %v1928 = vpack.c.b16 %v1783, %v1782
      %v1929 = vpack.c.b16 %v1785, %v1784
      %2074 = vmatprep.subr.bf16.mxu0 0
      %2075 = vmatpush1.bf16.msra.mxu0 %v1786
      %2076 = vmatprep.subr.bf16.mxu0 0
      %2077 = vmatpush1.bf16.msra.mxu0 %v1787
      %2078 = vmatprep.subr.bf16.mxu0 0
      %2079 = vmatpush1.bf16.msra.mxu0 %v1788
      %2080 = vmatprep.subr.bf16.mxu0 0
      %2081 = vmatpush1.bf16.msra.mxu0 %v1789
      %2082 = vmatprep.subr.bf16.mxu0 0
      %2083 = vmatpush1.bf16.msra.mxu0 %v1790
      %2084 = vmatprep.subr.bf16.mxu0 0
      %2085 = vmatpush1.bf16.msra.mxu0 %v1791
      %2086 = vmatprep.subr.bf16.mxu0 0
      %2087 = vmatpush1.bf16.msra.mxu0 %v1792
      %2088 = vmatprep.subr.bf16.mxu0 0
      %2089 = vmatpush1.bf16.msra.mxu0 %v1793
      %2090 = vmatprep.subr.bf16.mxu0 0
      %2091 = vmatpush1.bf16.msra.mxu0 %v1794
      %2092 = vmatprep.subr.bf16.mxu0 0
      %2093 = vmatpush1.bf16.msra.mxu0 %v1795
      %2094 = vmatprep.subr.bf16.mxu0 0
      %2095 = vmatpush1.bf16.msra.mxu0 %v1796
      %2096 = vmatprep.subr.bf16.mxu0 0
      %2097 = vmatpush1.bf16.msra.mxu0 %v1797
      %2098 = vmatprep.subr.bf16.mxu0 0
      %2099 = vmatpush1.bf16.msra.mxu0 %v1798
      %2100 = vmatprep.subr.bf16.mxu0 0
      %2101 = vmatpush1.bf16.msra.mxu0 %v1799
      %2102 = vmatprep.subr.bf16.mxu0 0
      %2103 = vmatpush1.bf16.msra.mxu0 %v1800
      %2104 = vmatprep.subr.bf16.mxu0 0
      %2105 = vmatpush1.bf16.msra.mxu0 %v1801
      %2106 = vmatprep.mubr.bf16.mxu0 %v898
      %2107 = vmatmul.mubr.bf16.gmra.mrb[0].mxu0 %v897
      %v2108 = vpop.f32.mrb[0].mxu0
      %v2109 = vadd.f32 %v1208, %v2108
      %v2110 = vpop.f32.mrb[0].mxu0
      %v2111 = vpop.f32.mrb[0].mxu0
      %v2112 = vadd.f32 %v1208, %v2111
      %v2113 = vpop.f32.mrb[0].mxu0
      %2114 = vdwg.mxu0
      %2115 = vmatprep.subr.bf16.mxu0 0
      %2116 = vmatpush1.bf16.msra.mxu0 %v1802
      %2117 = vmatprep.subr.bf16.mxu0 0
      %2118 = vmatpush1.bf16.msra.mxu0 %v1803
      %2119 = vmatprep.subr.bf16.mxu0 0
      %2120 = vmatpush1.bf16.msra.mxu0 %v1804
      %2121 = vmatprep.subr.bf16.mxu0 0
      %2122 = vmatpush1.bf16.msra.mxu0 %v1805
      %2123 = vmatprep.subr.bf16.mxu0 0
      %2124 = vmatpush1.bf16.msra.mxu0 %v1806
      %2125 = vmatprep.subr.bf16.mxu0 0
      %2126 = vmatpush1.bf16.msra.mxu0 %v1807
      %2127 = vmatprep.subr.bf16.mxu0 0
      %2128 = vmatpush1.bf16.msra.mxu0 %v1808
      %2129 = vmatprep.subr.bf16.mxu0 0
      %2130 = vmatpush1.bf16.msra.mxu0 %v1809
      %2131 = vmatprep.subr.bf16.mxu0 0
      %2132 = vmatpush1.bf16.msra.mxu0 %v1810
      %2133 = vmatprep.subr.bf16.mxu0 0
      %2134 = vmatpush1.bf16.msra.mxu0 %v1811
      %2135 = vmatprep.subr.bf16.mxu0 0
      %2136 = vmatpush1.bf16.msra.mxu0 %v1812
      %2137 = vmatprep.subr.bf16.mxu0 0
      %2138 = vmatpush1.bf16.msra.mxu0 %v1813
      %2139 = vmatprep.subr.bf16.mxu0 0
      %2140 = vmatpush1.bf16.msra.mxu0 %v1814
      %2141 = vmatprep.subr.bf16.mxu0 0
      %2142 = vmatpush1.bf16.msra.mxu0 %v1815
      %2143 = vmatprep.subr.bf16.mxu0 0
      %2144 = vmatpush1.bf16.msra.mxu0 %v1816
      %2145 = vmatprep.subr.bf16.mxu0 0
      %2146 = vmatpush1.bf16.msra.mxu0 %v1817
      %2147 = vmatprep.mubr.bf16.mxu0 %v900
      %2148 = vmatmul.mubr.bf16.gmra.mrb[0].mxu0 %v899
      %v2149 = vpop.f32.mrb[0].mxu0
      %v2150 = vadd.f32 %v2109, %v2149
      %v2151 = vpop.f32.mrb[0].mxu0
      %v2152 = vpop.f32.mrb[0].mxu0
      %v2153 = vadd.f32 %v2112, %v2152
      %v2154 = vpop.f32.mrb[0].mxu0
      %2155 = vdwg.mxu0
      %2156 = vmatprep.subr.bf16.mxu0 0
      %2157 = vmatpush1.bf16.msra.mxu0 %v1818
      %2158 = vmatprep.subr.bf16.mxu0 0
      %2159 = vmatpush1.bf16.msra.mxu0 %v1819
      %2160 = vmatprep.subr.bf16.mxu0 0
      %2161 = vmatpush1.bf16.msra.mxu0 %v1820
      %2162 = vmatprep.subr.bf16.mxu0 0
      %2163 = vmatpush1.bf16.msra.mxu0 %v1821
      %2164 = vmatprep.subr.bf16.mxu0 0
      %2165 = vmatpush1.bf16.msra.mxu0 %v1822
      %2166 = vmatprep.subr.bf16.mxu0 0
      %2167 = vmatpush1.bf16.msra.mxu0 %v1823
      %2168 = vmatprep.subr.bf16.mxu0 0
      %2169 = vmatpush1.bf16.msra.mxu0 %v1824
      %2170 = vmatprep.subr.bf16.mxu0 0
      %2171 = vmatpush1.bf16.msra.mxu0 %v1825
      %2172 = vmatprep.subr.bf16.mxu0 0
      %2173 = vmatpush1.bf16.msra.mxu0 %v1826
      %2174 = vmatprep.subr.bf16.mxu0 0
      %2175 = vmatpush1.bf16.msra.mxu0 %v1827
      %2176 = vmatprep.subr.bf16.mxu0 0
      %2177 = vmatpush1.bf16.msra.mxu0 %v1828
      %2178 = vmatprep.subr.bf16.mxu0 0
      %2179 = vmatpush1.bf16.msra.mxu0 %v1829
      %2180 = vmatprep.subr.bf16.mxu0 0
      %2181 = vmatpush1.bf16.msra.mxu0 %v1830
      %2182 = vmatprep.subr.bf16.mxu0 0
      %2183 = vmatpush1.bf16.msra.mxu0 %v1831
      %2184 = vmatprep.subr.bf16.mxu0 0
      %2185 = vmatpush1.bf16.msra.mxu0 %v1832
      %2186 = vmatprep.subr.bf16.mxu0 0
      %2187 = vmatpush1.bf16.msra.mxu0 %v1833
      %2188 = vmatprep.mubr.bf16.mxu0 %v902
      %2189 = vmatmul.mubr.bf16.gmra.mrb[0].mxu0 %v901
      %v2190 = vpop.f32.mrb[0].mxu0
      %v2191 = vadd.f32 %v2150, %v2190
      %v2192 = vpop.f32.mrb[0].mxu0
      %v2193 = vpop.f32.mrb[0].mxu0
      %v2194 = vadd.f32 %v2153, %v2193
      %v2195 = vpop.f32.mrb[0].mxu0
      %2196 = vdwg.mxu0
      %2197 = vmatprep.subr.bf16.mxu0 0
      %2198 = vmatpush1.bf16.msra.mxu0 %v1834
      %2199 = vmatprep.subr.bf16.mxu0 0
      %2200 = vmatpush1.bf16.msra.mxu0 %v1835
      %2201 = vmatprep.subr.bf16.mxu0 0
      %2202 = vmatpush1.bf16.msra.mxu0 %v1836
      %2203 = vmatprep.subr.bf16.mxu0 0
      %2204 = vmatpush1.bf16.msra.mxu0 %v1837
      %2205 = vmatprep.subr.bf16.mxu0 0
      %2206 = vmatpush1.bf16.msra.mxu0 %v1838
      %2207 = vmatprep.subr.bf16.mxu0 0
      %2208 = vmatpush1.bf16.msra.mxu0 %v1839
      %2209 = vmatprep.subr.bf16.mxu0 0
      %2210 = vmatpush1.bf16.msra.mxu0 %v1840
      %2211 = vmatprep.subr.bf16.mxu0 0
      %2212 = vmatpush1.bf16.msra.mxu0 %v1841
      %2213 = vmatprep.subr.bf16.mxu0 0
      %2214 = vmatpush1.bf16.msra.mxu0 %v1842
      %2215 = vmatprep.subr.bf16.mxu0 0
      %2216 = vmatpush1.bf16.msra.mxu0 %v1843
      %2217 = vmatprep.subr.bf16.mxu0 0
      %2218 = vmatpush1.bf16.msra.mxu0 %v1844
      %2219 = vmatprep.subr.bf16.mxu0 0
      %2220 = vmatpush1.bf16.msra.mxu0 %v1845
      %2221 = vmatprep.subr.bf16.mxu0 0
      %2222 = vmatpush1.bf16.msra.mxu0 %v1846
      %2223 = vmatprep.subr.bf16.mxu0 0
      %2224 = vmatpush1.bf16.msra.mxu0 %v1847
      %2225 = vmatprep.subr.bf16.mxu0 0
      %2226 = vmatpush1.bf16.msra.mxu0 %v1848
      %2227 = vmatprep.subr.bf16.mxu0 0
      %2228 = vmatpush1.bf16.msra.mxu0 %v1849
      %2229 = vmatprep.mubr.bf16.mxu0 %v904
      %2230 = vmatmul.mubr.bf16.gmra.mrb[0].mxu0 %v903
      %v2231 = vpop.f32.mrb[0].mxu0
      %v2232 = vadd.f32 %v2191, %v2231
      %v2233 = vpop.f32.mrb[0].mxu0
      %v2234 = vpop.f32.mrb[0].mxu0
      %v2235 = vadd.f32 %v2194, %v2234
      %v2236 = vpop.f32.mrb[0].mxu0
      %2237 = vdwg.mxu0
      %2238 = vmatprep.subr.bf16.mxu0 0
      %2239 = vmatpush1.bf16.msra.mxu0 %v1850
      %2240 = vmatprep.subr.bf16.mxu0 0
      %2241 = vmatpush1.bf16.msra.mxu0 %v1851
      %2242 = vmatprep.subr.bf16.mxu0 0
      %2243 = vmatpush1.bf16.msra.mxu0 %v1852
      %2244 = vmatprep.subr.bf16.mxu0 0
      %2245 = vmatpush1.bf16.msra.mxu0 %v1853
      %2246 = vmatprep.subr.bf16.mxu0 0
      %2247 = vmatpush1.bf16.msra.mxu0 %v1854
      %2248 = vmatprep.subr.bf16.mxu0 0
      %2249 = vmatpush1.bf16.msra.mxu0 %v1855
      %2250 = vmatprep.subr.bf16.mxu0 0
      %2251 = vmatpush1.bf16.msra.mxu0 %v1856
      %2252 = vmatprep.subr.bf16.mxu0 0
      %2253 = vmatpush1.bf16.msra.mxu0 %v1857
      %2254 = vmatprep.subr.bf16.mxu0 0
      %2255 = vmatpush1.bf16.msra.mxu0 %v1858
      %2256 = vmatprep.subr.bf16.mxu0 0
      %2257 = vmatpush1.bf16.msra.mxu0 %v1859
      %2258 = vmatprep.subr.bf16.mxu0 0
      %2259 = vmatpush1.bf16.msra.mxu0 %v1860
      %2260 = vmatprep.subr.bf16.mxu0 0
      %2261 = vmatpush1.bf16.msra.mxu0 %v1861
      %2262 = vmatprep.subr.bf16.mxu0 0
      %2263 = vmatpush1.bf16.msra.mxu0 %v1862
      %2264 = vmatprep.subr.bf16.mxu0 0
      %2265 = vmatpush1.bf16.msra.mxu0 %v1863
      %2266 = vmatprep.subr.bf16.mxu0 0
      %2267 = vmatpush1.bf16.msra.mxu0 %v1864
      %2268 = vmatprep.subr.bf16.mxu0 0
      %2269 = vmatpush1.bf16.msra.mxu0 %v1865
      %2270 = vmatprep.mubr.bf16.mxu0 %v906
      %2271 = vmatmul.mubr.bf16.gmra.mrb[0].mxu0 %v905
      %v2272 = vpop.f32.mrb[0].mxu0
      %v2273 = vadd.f32 %v2232, %v2272
      %v2274 = vpop.f32.mrb[0].mxu0
      %v2275 = vpop.f32.mrb[0].mxu0
      %v2276 = vadd.f32 %v2235, %v2275
      %v2277 = vpop.f32.mrb[0].mxu0
      %2278 = vdwg.mxu0
      %2279 = vmatprep.subr.bf16.mxu0 0
      %2280 = vmatpush1.bf16.msra.mxu0 %v1866
      %2281 = vmatprep.subr.bf16.mxu0 0
      %2282 = vmatpush1.bf16.msra.mxu0 %v1867
      %2283 = vmatprep.subr.bf16.mxu0 0
      %2284 = vmatpush1.bf16.msra.mxu0 %v1868
      %2285 = vmatprep.subr.bf16.mxu0 0
      %2286 = vmatpush1.bf16.msra.mxu0 %v1869
      %2287 = vmatprep.subr.bf16.mxu0 0
      %2288 = vmatpush1.bf16.msra.mxu0 %v1870
      %2289 = vmatprep.subr.bf16.mxu0 0
      %2290 = vmatpush1.bf16.msra.mxu0 %v1871
      %2291 = vmatprep.subr.bf16.mxu0 0
      %2292 = vmatpush1.bf16.msra.mxu0 %v1872
      %2293 = vmatprep.subr.bf16.mxu0 0
      %2294 = vmatpush1.bf16.msra.mxu0 %v1873
      %2295 = vmatprep.subr.bf16.mxu0 0
      %2296 = vmatpush1.bf16.msra.mxu0 %v1874
      %2297 = vmatprep.subr.bf16.mxu0 0
      %2298 = vmatpush1.bf16.msra.mxu0 %v1875
      %2299 = vmatprep.subr.bf16.mxu0 0
      %2300 = vmatpush1.bf16.msra.mxu0 %v1876
      %2301 = vmatprep.subr.bf16.mxu0 0
      %2302 = vmatpush1.bf16.msra.mxu0 %v1877
      %2303 = vmatprep.subr.bf16.mxu0 0
      %2304 = vmatpush1.bf16.msra.mxu0 %v1878
      %2305 = vmatprep.subr.bf16.mxu0 0
      %2306 = vmatpush1.bf16.msra.mxu0 %v1879
      %2307 = vmatprep.subr.bf16.mxu0 0
      %2308 = vmatpush1.bf16.msra.mxu0 %v1880
      %2309 = vmatprep.subr.bf16.mxu0 0
      %2310 = vmatpush1.bf16.msra.mxu0 %v1881
      %2311 = vmatprep.mubr.bf16.mxu0 %v908
      %2312 = vmatmul.mubr.bf16.gmra.mrb[0].mxu0 %v907
      %v2313 = vpop.f32.mrb[0].mxu0
      %v2314 = vadd.f32 %v2273, %v2313
      %v2315 = vpop.f32.mrb[0].mxu0
      %v2316 = vpop.f32.mrb[0].mxu0
      %v2317 = vadd.f32 %v2276, %v2316
      %v2318 = vpop.f32.mrb[0].mxu0
      %2319 = vdwg.mxu0
      %2320 = vmatprep.subr.bf16.mxu0 0
      %2321 = vmatpush1.bf16.msra.mxu0 %v1882
      %2322 = vmatprep.subr.bf16.mxu0 0
      %2323 = vmatpush1.bf16.msra.mxu0 %v1883
      %2324 = vmatprep.subr.bf16.mxu0 0
      %2325 = vmatpush1.bf16.msra.mxu0 %v1884
      %2326 = vmatprep.subr.bf16.mxu0 0
      %2327 = vmatpush1.bf16.msra.mxu0 %v1885
      %2328 = vmatprep.subr.bf16.mxu0 0
      %2329 = vmatpush1.bf16.msra.mxu0 %v1886
      %2330 = vmatprep.subr.bf16.mxu0 0
      %2331 = vmatpush1.bf16.msra.mxu0 %v1887
      %2332 = vmatprep.subr.bf16.mxu0 0
      %2333 = vmatpush1.bf16.msra.mxu0 %v1888
      %2334 = vmatprep.subr.bf16.mxu0 0
      %2335 = vmatpush1.bf16.msra.mxu0 %v1889
      %2336 = vmatprep.subr.bf16.mxu0 0
      %2337 = vmatpush1.bf16.msra.mxu0 %v1890
      %2338 = vmatprep.subr.bf16.mxu0 0
      %2339 = vmatpush1.bf16.msra.mxu0 %v1891
      %2340 = vmatprep.subr.bf16.mxu0 0
      %2341 = vmatpush1.bf16.msra.mxu0 %v1892
      %2342 = vmatprep.subr.bf16.mxu0 0
      %2343 = vmatpush1.bf16.msra.mxu0 %v1893
      %2344 = vmatprep.subr.bf16.mxu0 0
      %2345 = vmatpush1.bf16.msra.mxu0 %v1894
      %2346 = vmatprep.subr.bf16.mxu0 0
      %2347 = vmatpush1.bf16.msra.mxu0 %v1895
      %2348 = vmatprep.subr.bf16.mxu0 0
      %2349 = vmatpush1.bf16.msra.mxu0 %v1896
      %2350 = vmatprep.subr.bf16.mxu0 0
      %2351 = vmatpush1.bf16.msra.mxu0 %v1897
      %2352 = vmatprep.mubr.bf16.mxu0 %v910
      %2353 = vmatmul.mubr.bf16.gmra.mrb[0].mxu0 %v909
      %v2354 = vpop.f32.mrb[0].mxu0
      %v2355 = vadd.f32 %v2314, %v2354
      %v2356 = vpop.f32.mrb[0].mxu0
      %v2357 = vpop.f32.mrb[0].mxu0
      %v2358 = vadd.f32 %v2317, %v2357
      %v2359 = vpop.f32.mrb[0].mxu0
      %2360 = vdwg.mxu0
      %2361 = vmatprep.subr.bf16.mxu0 0
      %2362 = vmatpush1.bf16.msra.mxu0 %v1898
      %2363 = vmatprep.subr.bf16.mxu0 0
      %2364 = vmatpush1.bf16.msra.mxu0 %v1899
      %2365 = vmatprep.subr.bf16.mxu0 0
      %2366 = vmatpush1.bf16.msra.mxu0 %v1900
      %2367 = vmatprep.subr.bf16.mxu0 0
      %2368 = vmatpush1.bf16.msra.mxu0 %v1901
      %2369 = vmatprep.subr.bf16.mxu0 0
      %2370 = vmatpush1.bf16.msra.mxu0 %v1902
      %2371 = vmatprep.subr.bf16.mxu0 0
      %2372 = vmatpush1.bf16.msra.mxu0 %v1903
      %2373 = vmatprep.subr.bf16.mxu0 0
      %2374 = vmatpush1.bf16.msra.mxu0 %v1904
      %2375 = vmatprep.subr.bf16.mxu0 0
      %2376 = vmatpush1.bf16.msra.mxu0 %v1905
      %2377 = vmatprep.subr.bf16.mxu0 0
      %2378 = vmatpush1.bf16.msra.mxu0 %v1906
      %2379 = vmatprep.subr.bf16.mxu0 0
      %2380 = vmatpush1.bf16.msra.mxu0 %v1907
      %2381 = vmatprep.subr.bf16.mxu0 0
      %2382 = vmatpush1.bf16.msra.mxu0 %v1908
      %2383 = vmatprep.subr.bf16.mxu0 0
      %2384 = vmatpush1.bf16.msra.mxu0 %v1909
      %2385 = vmatprep.subr.bf16.mxu0 0
      %2386 = vmatpush1.bf16.msra.mxu0 %v1910
      %2387 = vmatprep.subr.bf16.mxu0 0
      %2388 = vmatpush1.bf16.msra.mxu0 %v1911
      %2389 = vmatprep.subr.bf16.mxu0 0
      %2390 = vmatpush1.bf16.msra.mxu0 %v1912
      %2391 = vmatprep.subr.bf16.mxu0 0
      %2392 = vmatpush1.bf16.msra.mxu0 %v1913
      %2393 = vmatprep.mubr.bf16.mxu0 %v912
      %2394 = vmatmul.mubr.bf16.gmra.mrb[0].mxu0 %v911
      %v2395 = vpop.f32.mrb[0].mxu0
      %v2396 = vadd.f32 %v2355, %v2395
      %v2397 = vpop.f32.mrb[0].mxu0
      %v2398 = vpop.f32.mrb[0].mxu0
      %v2399 = vadd.f32 %v2358, %v2398
      %v2400 = vpop.f32.mrb[0].mxu0
      %2401 = vdwg.mxu0
      %2402 = vmatprep.subr.bf16.mxu0 0
      %2403 = vmatpush1.bf16.msra.mxu0 %v1914
      %2404 = vmatprep.subr.bf16.mxu0 0
      %2405 = vmatpush1.bf16.msra.mxu0 %v1915
      %2406 = vmatprep.subr.bf16.mxu0 0
      %2407 = vmatpush1.bf16.msra.mxu0 %v1916
      %2408 = vmatprep.subr.bf16.mxu0 0
      %2409 = vmatpush1.bf16.msra.mxu0 %v1917
      %2410 = vmatprep.subr.bf16.mxu0 0
      %2411 = vmatpush1.bf16.msra.mxu0 %v1918
      %2412 = vmatprep.subr.bf16.mxu0 0
      %2413 = vmatpush1.bf16.msra.mxu0 %v1919
      %2414 = vmatprep.subr.bf16.mxu0 0
      %2415 = vmatpush1.bf16.msra.mxu0 %v1920
      %2416 = vmatprep.subr.bf16.mxu0 0
      %2417 = vmatpush1.bf16.msra.mxu0 %v1921
      %2418 = vmatprep.subr.bf16.mxu0 0
      %2419 = vmatpush1.bf16.msra.mxu0 %v1922
      %2420 = vmatprep.subr.bf16.mxu0 0
      %2421 = vmatpush1.bf16.msra.mxu0 %v1923
      %2422 = vmatprep.subr.bf16.mxu0 0
      %2423 = vmatpush1.bf16.msra.mxu0 %v1924
      %2424 = vmatprep.subr.bf16.mxu0 0
      %2425 = vmatpush1.bf16.msra.mxu0 %v1925
      %2426 = vmatprep.subr.bf16.mxu0 0
      %2427 = vmatpush1.bf16.msra.mxu0 %v1926
      %2428 = vmatprep.subr.bf16.mxu0 0
      %2429 = vmatpush1.bf16.msra.mxu0 %v1927
      %2430 = vmatprep.subr.bf16.mxu0 0
      %2431 = vmatpush1.bf16.msra.mxu0 %v1928
      %2432 = vmatprep.subr.bf16.mxu0 0
      %2433 = vmatpush1.bf16.msra.mxu0 %v1929
      %2434 = vmatprep.mubr.bf16.mxu0 %v914
      %2435 = vmatmul.mubr.bf16.gmra.mrb[0].mxu0 %v913
      %v2436 = vpop.f32.mrb[0].mxu0
      %v2437 = vadd.f32 %v2396, %v2436
      %v2438 = vpop.f32.mrb[0].mxu0
      %v2439 = vpop.f32.mrb[0].mxu0
      %v2440 = vadd.f32 %v2399, %v2439
      %v2441 = vpop.f32.mrb[0].mxu0
      %2442 = vdwg.mxu0
      %v2443 = vmax.f32 %v2437, 0.0
      %v2444 = vmax.f32 %v2440, 0.0
      %v2445 = vld [vmem:[%s4] sm:$0x1]
      %v2447 = vlaneseq
      %v2448 = vshrl.u32 %v2447, 7
      %v2449 = vsub.s32 0, %v2448
      %v2450 = vrot.slane %v2445, %v2449
      %v2452 = vmul.f32 %v2443, %v2450
      %v2453 = vmul.f32 %v2444, %v2450
      %2454 = vadd.xlane.f32.xlu0 %v2452
      %v2455 = vpop.xlane.xlu0 %2454
      %2456 = vadd.xlane.f32.xlu0 %v2453
      %v2457 = vpop.xlane.xlu0 %2456
      %v2458 = vld [vmem:[#allocation3] sm:$0x1]
      %v2460 = vlaneseq
      %v2461 = vshrl.u32 %v2460, 7
      %v2462 = vsub.s32 0, %v2461
      %v2463 = vrot.slane %v2458, %v2462
      %v2465 = vadd.f32 %v2455, %v2463
      %v2466 = vadd.f32 %v2457, %v2463
      %vm2467 = vcmask 7168
      %2468 = vst.msk [vmem:[%s273] sm:$0xff] %vm2467, %v2465
      %2469 = vst.msk [vmem:[%s273 + $0x8] sm:$0xff] %vm2467, %v2466
      %p2470 = scmp.lt.s32.totalorder %s19, 1
      %s2471 = scalar_select %p2470, %s19, 1
      %s2472 = smul.addr %s2471, 2
      %s2473 = smul.addr %s2472, 8
      %s2474 = scalar_lea.vmem %s6, %s2473
      // Predicated region
      $region45: #{radio_mamba_v2_forward.11} parent=43 // pred_check
        %p2475 = pneg %p173
      $region46: #{radio_mamba_v2_forward.11} parent=43 // pred_check_branch
        %2477 = sbr.rel (%p2475) target = $region48
      $region47: #{radio_mamba_v2_forward.11} parent=43 // pred_region
        _
      $region48: #{radio_mamba_v2_forward.11} parent=43 // pred_fallthru
        _
    $region44: #{radio_mamba_v2_forward.11} parent=5 // pred_fallthru
      _
    %p2478 = scmp.le.s32.totalorder 2, %s14
    // Predicated region
    $region49: #{radio_mamba_v2_forward.11} parent=5 // pred_check
      %p2479 = pneg %p2478
    $region50: #{radio_mamba_v2_forward.11} parent=5 // pred_check_branch
      %2481 = sbr.rel (%p2479) target = $region52
    $region51: #{radio_mamba_v2_forward.11} parent=5 // pred_region
      %s2482 = ssub.s32 %s14, 2
      // Predicated region
      $region53: #{radio_mamba_v2_forward.11} parent=51 // pred_check
        %p2483 = pneg %p179
      $region54: #{radio_mamba_v2_forward.11} parent=51 // pred_check_branch
        %2485 = sbr.rel (%p2483) target = $region56
      $region55: #{radio_mamba_v2_forward.11} parent=51 // pred_region
        %p2486 = scmp.lt.s32.totalorder %s20, 1
        %s2487 = scalar_select %p2486, %s20, 1
        %s2488 = smul.addr %s2487, 2
        %s2489 = smul.addr %s2488, 8
        %s2490 = scalar_lea.vmem %s6, %s2489
      $region56: #{radio_mamba_v2_forward.11} parent=51 // pred_fallthru
        _
    $region52: #{radio_mamba_v2_forward.11} parent=5 // pred_fallthru
      _
  $region6: #{radio_mamba_v2_forward.11} parent=0 // loop_footer
    %s18 = sadd.s32 1, %s14
  $region7: #{radio_mamba_v2_forward.11} parent=0 // loop_footer_branch
    %13 = sbr.rel target = $region3
  $region8: #{radio_mamba_v2_forward.11} parent=0 // loop_exit
    _

</llo_original>
